<compile_context>
chip_gen: v6e
topology: v6e:2x2x1
jax: 0.10.0
libtpu: 0.0.40
codegen_flags: <defaults>
</compile_context>

<pallas_src>
import jax
import jax.numpy as jnp
from jax.experimental import pallas as pl
from jax.experimental.pallas import tpu as pltpu

EPS = 1e-5
LANE = 128
SUBLANE = 8


def _round_up(x, m):
    return (x + m - 1) // m * m


def _pick_batch_block(n, cap=8):
    """Largest divisor of n that is <= cap (images per grid step)."""
    b = min(n, cap)
    while n % b:
        b -= 1
    return max(b, 1)


# ---------------------------------------------------------------------------
# In-kernel helpers
# ---------------------------------------------------------------------------
def _im2col_into_slab(src_ref, slab_ref, h, w):
    """Write the 9 conv taps of a padded (B, HP, WP, C) ref into a VMEM
    (B*H*W, 9*C) slab so the conv becomes a single deep K=9*C MXU dot."""
    b = src_ref.shape[0]
    c = src_ref.shape[3]
    m = b * h * w
    for ky in range(3):
        for kx in range(3):
            t = ky * 3 + kx
            slab_ref[:, t * c:(t + 1) * c] = (
                src_ref[:, ky:ky + h, kx:kx + w, :].reshape(m, c))


def _store_out_and_stats(acc, y_ref, stats_ref):
    """Store the conv result (bf16) and emit per-block BN partial statistics
    (sum, sum-of-squares) from the *stored* (rounded) values so the downstream
    BN fold is self-consistent.  Rows written separately (no concat)."""
    b, h, w, c = y_ref.shape
    y_ref[...] = acc.reshape(b, h, w, c).astype(y_ref.dtype)
    yf = y_ref[...].astype(jnp.float32).reshape(b * h * w, c)
    stats_ref[0:1, :] = jnp.sum(yf, axis=0, keepdims=True)
    stats_ref[1:2, :] = jnp.sum(yf * yf, axis=0, keepdims=True)


# ---------------------------------------------------------------------------
# Pallas kernels
# ---------------------------------------------------------------------------
def _conv1_stats_kernel(x_ref, w_ref, y_ref, stats_ref, slab_ref):
    """conv3x3 (single K=9C dot) on a padded B-image tile + BN partial stats."""
    _, h, w, _ = y_ref.shape
    _im2col_into_slab(x_ref, slab_ref, h, w)
    acc = jnp.dot(slab_ref[...], w_ref[...],
                  preferred_element_type=jnp.float32)
    _store_out_and_stats(acc, y_ref, stats_ref)


def _bnrelu_conv2_stats_kernel(y1_ref, scale_ref, shift_ref, w_ref,
                               y2_ref, stats_ref, h1p_ref, slab_ref):
    """bn1 (folded scale/shift) -> ReLU -> conv3x3 from VMEM + partial stats.
    The intermediate activation h1 never touches HBM."""
    b, h, w, c = y2_ref.shape
    hp, wp = h1p_ref.shape[1], h1p_ref.shape[2]
    scale = scale_ref[...].reshape(1, 1, 1, c)     # hoisted once
    shift = shift_ref[...].reshape(1, 1, 1, c)
    h1 = jnp.maximum(y1_ref[...].astype(jnp.float32) * scale + shift, 0.0)
    # Zero only the 1-px halo border the taps actually read (never gate this
    # on program_id == 0: the grid is megacore-sharded under "parallel").
    zdt = h1p_ref.dtype
    h1p_ref[:, 0:1, :, :] = jnp.zeros((b, 1, wp, c), zdt)
    h1p_ref[:, h + 1:h + 2, :, :] = jnp.zeros((b, 1, wp, c), zdt)
    h1p_ref[:, :, 0:1, :] = jnp.zeros((b, hp, 1, c), zdt)
    h1p_ref[:, :, w + 1:w + 2, :] = jnp.zeros((b, hp, 1, c), zdt)
    h1p_ref[:, 1:h + 1, 1:w + 1, :] = h1.astype(zdt)
    _im2col_into_slab(h1p_ref, slab_ref, h, w)
    acc = jnp.dot(slab_ref[...], w_ref[...],
                  preferred_element_type=jnp.float32)
    _store_out_and_stats(acc, y2_ref, stats_ref)


def _bn_add_relu_kernel(y2_ref, scale_ref, shift_ref, xsp_ref, o_ref):
    """bn2 (folded scale/shift) -> + identity (interior of padded x) -> ReLU."""
    _, h, w, c = o_ref.shape
    scale = scale_ref[...].reshape(1, 1, 1, c)
    shift = shift_ref[...].reshape(1, 1, 1, c)
    ident = xsp_ref[:, 1:h + 1, 1:w + 1, :].astype(jnp.float32)
    y = y2_ref[...].astype(jnp.float32) * scale + shift + ident
    o_ref[...] = jnp.maximum(y, 0.0)


# ---------------------------------------------------------------------------
# pallas_call wrappers (grid over batch blocks, "parallel")
# ---------------------------------------------------------------------------
def _conv1_stats(x_sp, w_pack, bb, h, w):
    n, hp, wp, c = x_sp.shape
    nblk = n // bb
    return pl.pallas_call(
        _conv1_stats_kernel,
        out_shape=(jax.ShapeDtypeStruct((n, h, w, c), jnp.bfloat16),
                   jax.ShapeDtypeStruct((nblk, 2, c), jnp.float32)),
        grid=(nblk,),
        in_specs=[
            pl.BlockSpec((bb, hp, wp, c), lambda i: (i, 0, 0, 0)),
            # Grid-invariant weight (same block every step).  On v7x it could
            # additionally be single-buffered to save scoped VMEM.
            pl.BlockSpec((9 * c, c), lambda i: (0, 0)),
        ],
        out_specs=(
            pl.BlockSpec((bb, h, w, c), lambda i: (i, 0, 0, 0)),
            pl.BlockSpec((None, 2, c), lambda i: (i, 0, 0)),
        ),
        scratch_shapes=[pltpu.VMEM((bb * h * w, 9 * c), jnp.bfloat16)],
        compiler_params=pltpu.CompilerParams(
            dimension_semantics=("parallel",)),
    )(x_sp, w_pack)


def _bnrelu_conv2_stats(y1, scale, shift, w_pack, bb, hp, wp):
    n, h, w, c = y1.shape
    nblk = n // bb
    return pl.pallas_call(
        _bnrelu_conv2_stats_kernel,
        out_shape=(jax.ShapeDtypeStruct((n, h, w, c), jnp.bfloat16),
                   jax.ShapeDtypeStruct((nblk, 2, c), jnp.float32)),
        grid=(nblk,),
        in_specs=[
            pl.BlockSpec((bb, h, w, c), lambda i: (i, 0, 0, 0)),
            pl.BlockSpec((1, c), lambda i: (0, 0)),
            pl.BlockSpec((1, c), lambda i: (0, 0)),
            pl.BlockSpec((9 * c, c), lambda i: (0, 0)),
        ],
        out_specs=(
            pl.BlockSpec((bb, h, w, c), lambda i: (i, 0, 0, 0)),
            pl.BlockSpec((None, 2, c), lambda i: (i, 0, 0)),
        ),
        scratch_shapes=[pltpu.VMEM((bb, hp, wp, c), jnp.bfloat16),
                        pltpu.VMEM((bb * h * w, 9 * c), jnp.bfloat16)],
        compiler_params=pltpu.CompilerParams(
            dimension_semantics=("parallel",)),
    )(y1, scale, shift, w_pack)


def _bn_add_relu(y2, scale, shift, x_sp, bb):
    n, h, w, c = y2.shape
    _, hp, wp, _ = x_sp.shape
    nblk = n // bb
    return pl.pallas_call(
        _bn_add_relu_kernel,
        out_shape=jax.ShapeDtypeStruct((n, h, w, c), jnp.float32),
        grid=(nblk,),
        in_specs=[
            pl.BlockSpec((bb, h, w, c), lambda i: (i, 0, 0, 0)),
            pl.BlockSpec((1, c), lambda i: (0, 0)),
            pl.BlockSpec((1, c), lambda i: (0, 0)),
            pl.BlockSpec((bb, hp, wp, c), lambda i: (i, 0, 0, 0)),
        ],
        out_specs=pl.BlockSpec((bb, h, w, c), lambda i: (i, 0, 0, 0)),
        compiler_params=pltpu.CompilerParams(
            dimension_semantics=("parallel",)),
    )(y2, scale, shift, x_sp)


# ---------------------------------------------------------------------------
# Glue (plain JAX): single layout transform, weight packing, BN finalize
# ---------------------------------------------------------------------------
def _pack_conv_weight(w_oihw, cpad):
    """PyTorch (Cout,Cin,3,3) -> (9*Cpad, Cpad) bf16; row = (ky*3+kx)*Cpad+cin."""
    cout, cin, _, _ = w_oihw.shape
    wt = jnp.transpose(w_oihw.astype(jnp.float32), (2, 3, 1, 0))   # (3,3,cin,cout)
    wt = jnp.pad(wt, ((0, 0), (0, 0), (0, cpad - cin), (0, cpad - cout)))
    return wt.reshape(9 * cpad, cpad).astype(jnp.bfloat16)


def _pad_vec(v, cpad):
    v = v.astype(jnp.float32)
    return jnp.pad(v, (0, cpad - v.shape[0]))


def _finalize_bn(stats, gamma, beta, count):
    """Fold batch mean / biased var / gamma / beta into per-channel scale+shift."""
    total = jnp.sum(stats, axis=0)                          # (2, C)
    mean = total[0] / count
    var = jnp.maximum(total[1] / count - mean * mean, 0.0)  # clamp bf16 noise
    inv = gamma * jax.lax.rsqrt(var + EPS)
    scale = inv.reshape(1, -1)
    shift = (beta - mean * inv).reshape(1, -1)
    return scale, shift


def basic_block_ap_forward(x_nchw, params):
    """BasicBlock_AP.forward with stride=1, downsample=None (train-mode BN)."""
    n, c, h, w = x_nchw.shape
    planes = params["w1"].shape[0]
    assert params["w1"].shape[1] == c and planes == c, \
        "stride=1 / downsample=None requires inplanes == planes"
    cpad = _round_up(max(c, planes), LANE)
    hp = h + 2
    wp = _round_up(w + 2, SUBLANE)          # sublane-aligned padded width
    bb = _pick_batch_block(n)

    # Host glue collapsed to one transpose + one fused pad&cast:
    # NCHW -> NHWC, 1-px halo (+ sublane alignment pad) + channel pad to a
    # full 128-lane slab, bf16 for the MXU.  Serves conv1 AND the residual.
    x_nhwc = jnp.transpose(x_nchw.astype(jnp.float32), (0, 2, 3, 1))
    x_sp = jnp.pad(
        x_nhwc, ((0, 0), (1, hp - 1 - h), (1, wp - 1 - w), (0, cpad - c))
    ).astype(jnp.bfloat16)

    w1 = _pack_conv_weight(params["w1"], cpad)
    w2 = _pack_conv_weight(params["w2"], cpad)
    g1 = _pad_vec(params["g1"], cpad)
    b1 = _pad_vec(params["b1"], cpad)
    g2 = _pad_vec(params["g2"], cpad)
    b2 = _pad_vec(params["b2"], cpad)

    count = n * h * w

    # conv1 (+ per-block BN partial stats); self.pool is Identity (stride==1).
    y1, st1 = _conv1_stats(x_sp, w1, bb, h, w)
    scale1, shift1 = _finalize_bn(st1, g1, b1, count)

    # bn1 + relu + conv2 fused (+ partial stats); h1 never leaves VMEM.
    y2, st2 = _bnrelu_conv2_stats(y1, scale1, shift1, w2, bb, hp, wp)
    scale2, shift2 = _finalize_bn(st2, g2, b2, count)

    # bn2 + residual add (identity == x, downsample is None) + relu.
    out = _bn_add_relu(y2, scale2, shift2, x_sp, bb)
    out = out[..., :planes]
    return jnp.transpose(out, (0, 3, 1, 2))                 # NHWC -> NCHW


# ---------------------------------------------------------------------------
# Pure-JAX f32 reference (numerical sanity check)
# ---------------------------------------------------------------------------
def _reference_forward(x_nchw, params):
    x = x_nchw.astype(jnp.float32)

    def conv3x3(inp, wgt):
        return jax.lax.conv_general_dilated(
            inp, wgt, window_strides=(1, 1), padding=((1, 1), (1, 1)),
            dimension_numbers=("NCHW", "OIHW", "NCHW"))

    def bn(inp, g, b):
        mean = jnp.mean(inp, axis=(0, 2, 3), keepdims=True)
        var = jnp.mean((inp - mean) ** 2, axis=(0, 2, 3), keepdims=True)
        y = (inp - mean) * jax.lax.rsqrt(var + EPS)
        return y * g.reshape(1, -1, 1, 1) + b.reshape(1, -1, 1, 1)

    out = jax.nn.relu(bn(conv3x3(x, params["w1"]), params["g1"], params["b1"]))
    out = bn(conv3x3(out, params["w2"]), params["g2"], params["b2"]) + x
    return jax.nn.relu(out)


# ---------------------------------------------------------------------------
if __name__ == "__main__":
    N, C, H, W = 2, 8, 16, 16          # inplanes == planes == 8, stride = 1
    key = jax.random.PRNGKey(0)
    kx, kw1, kw2, kg1, kb1, kg2, kb2 = jax.random.split(key, 7)

    x = jax.random.normal(kx, (N, C, H, W), dtype=jnp.float32)
    params = {
        # conv3x3 weights, PyTorch layout (Cout, Cin, 3, 3), bias=False
        "w1": jax.random.normal(kw1, (C, C, 3, 3), dtype=jnp.float32) * 0.2,
        "w2": jax.random.normal(kw2, (C, C, 3, 3), dtype=jnp.float32) * 0.2,
        # BatchNorm affine parameters
        "g1": 1.0 + 0.5 * jax.random.uniform(kg1, (C,), dtype=jnp.float32),
        "b1": 0.1 * jax.random.normal(kb1, (C,), dtype=jnp.float32),
        "g2": 1.0 + 0.5 * jax.random.uniform(kg2, (C,), dtype=jnp.float32),
        "b2": 0.1 * jax.random.normal(kb2, (C,), dtype=jnp.float32),
    }

    out = jax.block_until_ready(basic_block_ap_forward(x, params))
    ref = jax.block_until_ready(_reference_forward(x, params))

    assert out.shape == (N, C, H, W) and out.dtype == jnp.float32
    # bf16 MXU inputs AND bf16 inter-kernel activations (f32 accumulation and
    # f32 BN/ReLU epilogue math) vs. a pure-f32 reference: expect ~1e-2-level
    # absolute deviation; thresholds leave comfortable margin.
    max_err = float(jnp.max(jnp.abs(out - ref)))
    mean_err = float(jnp.mean(jnp.abs(out - ref)))
    if max_err > 1.5e-1 or mean_err > 2e-2:
        raise AssertionError(
            f"Pallas output mismatch, max abs err = {max_err}, mean = {mean_err}")

    print("KERNEL_OK")
</pallas_src>

<mosaic_0001>
module attributes {stable_mosaic.version = 11 : i64} {
  func.func @_conv1_stats_kernel(%arg0: i32, %arg1: memref<2x18x24x128xbf16, #tpu.memory_space<vmem>>, %arg2: memref<1152x128xbf16, #tpu.memory_space<vmem>>, %arg3: memref<2x16x16x128xbf16, #tpu.memory_space<vmem>>, %arg4: memref<1x2x128xf32, #tpu.memory_space<vmem>>, %arg5: memref<512x1152xbf16, #tpu.memory_space<vmem>>) attributes {dimension_semantics = [#tpu.dimension_semantics<parallel>], iteration_bounds = array<i64: 1>, scalar_prefetch = 0 : i64, scratch_operands = 1 : i64, tpu.core_type = #tpu.core_type<tc>, window_params = [{transform_indices = @transform_0, window_bounds = array<i64: 2, 18, 24, 128>}, {pipeline_mode = #tpu.pipeline_mode<synchronous>, transform_indices = @transform_1, window_bounds = array<i64: 1152, 128>}, {transform_indices = @transform_2, window_bounds = array<i64: 2, 16, 16, 128>}, {transform_indices = @transform_3, window_bounds = array<i64: 1, 2, 128>}]} {
    %c0 = arith.constant 0 : index
    %c0_0 = arith.constant 0 : index
    %c0_1 = arith.constant 0 : index
    %c0_2 = arith.constant 0 : index
    %0 = vector.load %arg1[%c0, %c0_0, %c0_1, %c0_2] : memref<2x18x24x128xbf16, #tpu.memory_space<vmem>>, vector<2x16x16x128xbf16>
    %1 = vector.shape_cast %0 : vector<2x16x16x128xbf16> to vector<512x128xbf16>
    %c0_3 = arith.constant 0 : index
    %c0_4 = arith.constant 0 : index
    %2 = vector.load %arg5[%c0_3, %c0_4] : memref<512x1152xbf16, #tpu.memory_space<vmem>>, vector<512x128xbf16>
    tpu.vector_store %arg5[%c0_3, %c0_4], %1 {strides = array<i32>} : memref<512x1152xbf16, #tpu.memory_space<vmem>>, vector<512x128xbf16>,
    %c0_5 = arith.constant 0 : index
    %c0_6 = arith.constant 0 : index
    %c1 = arith.constant 1 : index
    %c0_7 = arith.constant 0 : index
    %3 = vector.load %arg1[%c0_5, %c0_6, %c1, %c0_7] : memref<2x18x24x128xbf16, #tpu.memory_space<vmem>>, vector<2x16x16x128xbf16>
    %4 = vector.shape_cast %3 : vector<2x16x16x128xbf16> to vector<512x128xbf16>
    %c0_8 = arith.constant 0 : index
    %c128 = arith.constant 128 : index
    %5 = vector.load %arg5[%c0_8, %c128] : memref<512x1152xbf16, #tpu.memory_space<vmem>>, vector<512x128xbf16>
    tpu.vector_store %arg5[%c0_8, %c128], %4 {strides = array<i32>} : memref<512x1152xbf16, #tpu.memory_space<vmem>>, vector<512x128xbf16>,
    %c0_9 = arith.constant 0 : index
    %c0_10 = arith.constant 0 : index
    %c2 = arith.constant 2 : index
    %c0_11 = arith.constant 0 : index
    %6 = vector.load %arg1[%c0_9, %c0_10, %c2, %c0_11] : memref<2x18x24x128xbf16, #tpu.memory_space<vmem>>, vector<2x16x16x128xbf16>
    %7 = vector.shape_cast %6 : vector<2x16x16x128xbf16> to vector<512x128xbf16>
    %c0_12 = arith.constant 0 : index
    %c256 = arith.constant 256 : index
    %8 = vector.load %arg5[%c0_12, %c256] : memref<512x1152xbf16, #tpu.memory_space<vmem>>, vector<512x128xbf16>
    tpu.vector_store %arg5[%c0_12, %c256], %7 {strides = array<i32>} : memref<512x1152xbf16, #tpu.memory_space<vmem>>, vector<512x128xbf16>,
    %c0_13 = arith.constant 0 : index
    %c1_14 = arith.constant 1 : index
    %c0_15 = arith.constant 0 : index
    %c0_16 = arith.constant 0 : index
    %9 = vector.load %arg1[%c0_13, %c1_14, %c0_15, %c0_16] : memref<2x18x24x128xbf16, #tpu.memory_space<vmem>>, vector<2x16x16x128xbf16>
    %10 = vector.shape_cast %9 : vector<2x16x16x128xbf16> to vector<512x128xbf16>
    %c0_17 = arith.constant 0 : index
    %c384 = arith.constant 384 : index
    %11 = vector.load %arg5[%c0_17, %c384] : memref<512x1152xbf16, #tpu.memory_space<vmem>>, vector<512x128xbf16>
    tpu.vector_store %arg5[%c0_17, %c384], %10 {strides = array<i32>} : memref<512x1152xbf16, #tpu.memory_space<vmem>>, vector<512x128xbf16>,
    %c0_18 = arith.constant 0 : index
    %c1_19 = arith.constant 1 : index
    %c1_20 = arith.constant 1 : index
    %c0_21 = arith.constant 0 : index
    %12 = vector.load %arg1[%c0_18, %c1_19, %c1_20, %c0_21] : memref<2x18x24x128xbf16, #tpu.memory_space<vmem>>, vector<2x16x16x128xbf16>
    %13 = vector.shape_cast %12 : vector<2x16x16x128xbf16> to vector<512x128xbf16>
    %c0_22 = arith.constant 0 : index
    %c512 = arith.constant 512 : index
    %14 = vector.load %arg5[%c0_22, %c512] : memref<512x1152xbf16, #tpu.memory_space<vmem>>, vector<512x128xbf16>
    tpu.vector_store %arg5[%c0_22, %c512], %13 {strides = array<i32>} : memref<512x1152xbf16, #tpu.memory_space<vmem>>, vector<512x128xbf16>,
    %c0_23 = arith.constant 0 : index
    %c1_24 = arith.constant 1 : index
    %c2_25 = arith.constant 2 : index
    %c0_26 = arith.constant 0 : index
    %15 = vector.load %arg1[%c0_23, %c1_24, %c2_25, %c0_26] : memref<2x18x24x128xbf16, #tpu.memory_space<vmem>>, vector<2x16x16x128xbf16>
    %16 = vector.shape_cast %15 : vector<2x16x16x128xbf16> to vector<512x128xbf16>
    %c0_27 = arith.constant 0 : index
    %c640 = arith.constant 640 : index
    %17 = vector.load %arg5[%c0_27, %c640] : memref<512x1152xbf16, #tpu.memory_space<vmem>>, vector<512x128xbf16>
    tpu.vector_store %arg5[%c0_27, %c640], %16 {strides = array<i32>} : memref<512x1152xbf16, #tpu.memory_space<vmem>>, vector<512x128xbf16>,
    %c0_28 = arith.constant 0 : index
    %c2_29 = arith.constant 2 : index
    %c0_30 = arith.constant 0 : index
    %c0_31 = arith.constant 0 : index
    %18 = vector.load %arg1[%c0_28, %c2_29, %c0_30, %c0_31] : memref<2x18x24x128xbf16, #tpu.memory_space<vmem>>, vector<2x16x16x128xbf16>
    %19 = vector.shape_cast %18 : vector<2x16x16x128xbf16> to vector<512x128xbf16>
    %c0_32 = arith.constant 0 : index
    %c768 = arith.constant 768 : index
    %20 = vector.load %arg5[%c0_32, %c768] : memref<512x1152xbf16, #tpu.memory_space<vmem>>, vector<512x128xbf16>
    tpu.vector_store %arg5[%c0_32, %c768], %19 {strides = array<i32>} : memref<512x1152xbf16, #tpu.memory_space<vmem>>, vector<512x128xbf16>,
    %c0_33 = arith.constant 0 : index
    %c2_34 = arith.constant 2 : index
    %c1_35 = arith.constant 1 : index
    %c0_36 = arith.constant 0 : index
    %21 = vector.load %arg1[%c0_33, %c2_34, %c1_35, %c0_36] : memref<2x18x24x128xbf16, #tpu.memory_space<vmem>>, vector<2x16x16x128xbf16>
    %22 = vector.shape_cast %21 : vector<2x16x16x128xbf16> to vector<512x128xbf16>
    %c0_37 = arith.constant 0 : index
    %c896 = arith.constant 896 : index
    %23 = vector.load %arg5[%c0_37, %c896] : memref<512x1152xbf16, #tpu.memory_space<vmem>>, vector<512x128xbf16>
    tpu.vector_store %arg5[%c0_37, %c896], %22 {strides = array<i32>} : memref<512x1152xbf16, #tpu.memory_space<vmem>>, vector<512x128xbf16>,
    %c0_38 = arith.constant 0 : index
    %c2_39 = arith.constant 2 : index
    %c2_40 = arith.constant 2 : index
    %c0_41 = arith.constant 0 : index
    %24 = vector.load %arg1[%c0_38, %c2_39, %c2_40, %c0_41] : memref<2x18x24x128xbf16, #tpu.memory_space<vmem>>, vector<2x16x16x128xbf16>
    %25 = vector.shape_cast %24 : vector<2x16x16x128xbf16> to vector<512x128xbf16>
    %c0_42 = arith.constant 0 : index
    %c1024 = arith.constant 1024 : index
    %26 = vector.load %arg5[%c0_42, %c1024] : memref<512x1152xbf16, #tpu.memory_space<vmem>>, vector<512x128xbf16>
    tpu.vector_store %arg5[%c0_42, %c1024], %25 {strides = array<i32>} : memref<512x1152xbf16, #tpu.memory_space<vmem>>, vector<512x128xbf16>,
    %c0_43 = arith.constant 0 : index
    %c0_44 = arith.constant 0 : index
    %27 = vector.load %arg5[%c0_43, %c0_44] : memref<512x1152xbf16, #tpu.memory_space<vmem>>, vector<512x1152xbf16>
    %c0_45 = arith.constant 0 : index
    %c0_46 = arith.constant 0 : index
    %28 = vector.load %arg2[%c0_45, %c0_46] : memref<1152x128xbf16, #tpu.memory_space<vmem>>, vector<1152x128xbf16>
    %cst = arith.constant dense<0.000000e+00> : vector<512x128xf32>
    %29 = tpu.matmul %27, %28, %cst {dimension_numbers = #tpu.dot_dimension_numbers<[1], [0], [0], [1], [0, 0, 1, 1], [], []>} : vector<512x1152xbf16>, vector<1152x128xbf16>, vector<512x128xf32> -> vector<512x128xf32>
    %30 = vector.shape_cast %29 : vector<512x128xf32> to vector<2x16x16x128xf32>
    %31 = arith.truncf %30 : vector<2x16x16x128xf32> to vector<2x16x16x128xbf16>
    %c0_47 = arith.constant 0 : index
    %c0_48 = arith.constant 0 : index
    %c0_49 = arith.constant 0 : index
    %c0_50 = arith.constant 0 : index
    %32 = vector.load %arg3[%c0_47, %c0_48, %c0_49, %c0_50] : memref<2x16x16x128xbf16, #tpu.memory_space<vmem>>, vector<2x16x16x128xbf16>
    tpu.vector_store %arg3[%c0_47, %c0_48, %c0_49, %c0_50], %31 {strides = array<i32>} : memref<2x16x16x128xbf16, #tpu.memory_space<vmem>>, vector<2x16x16x128xbf16>,
    %c0_51 = arith.constant 0 : index
    %c0_52 = arith.constant 0 : index
    %c0_53 = arith.constant 0 : index
    %c0_54 = arith.constant 0 : index
    %33 = vector.load %arg3[%c0_51, %c0_52, %c0_53, %c0_54] : memref<2x16x16x128xbf16, #tpu.memory_space<vmem>>, vector<2x16x16x128xbf16>
    %34 = arith.extf %33 : vector<2x16x16x128xbf16> to vector<2x16x16x128xf32>
    %35 = vector.shape_cast %34 : vector<2x16x16x128xf32> to vector<512x128xf32>
    %cst_55 = arith.constant dense<0.000000e+00> : vector<128xf32>
    %36 = vector.multi_reduction <add>, %35, %cst_55 [0] : vector<512x128xf32> to vector<128xf32>
    %37 = vector.shape_cast %36 : vector<128xf32> to vector<1x128xf32>
    %c0_56 = arith.constant 0 : index
    %c0_57 = arith.constant 0 : index
    %c0_58 = arith.constant 0 : index
    %38 = vector.load %arg4[%c0_56, %c0_57, %c0_58] : memref<1x2x128xf32, #tpu.memory_space<vmem>>, vector<1x1x128xf32>
    %39 = vector.shape_cast %38 : vector<1x1x128xf32> to vector<1x128xf32>
    %40 = vector.shape_cast %37 : vector<1x128xf32> to vector<1x1x128xf32>
    tpu.vector_store %arg4[%c0_56, %c0_57, %c0_58], %40 {strides = array<i32>} : memref<1x2x128xf32, #tpu.memory_space<vmem>>, vector<1x1x128xf32>,
    %41 = arith.mulf %35, %35 : vector<512x128xf32>
    %cst_59 = arith.constant dense<0.000000e+00> : vector<128xf32>
    %42 = vector.multi_reduction <add>, %41, %cst_59 [0] : vector<512x128xf32> to vector<128xf32>
    %43 = vector.shape_cast %42 : vector<128xf32> to vector<1x128xf32>
    %c0_60 = arith.constant 0 : index
    %c1_61 = arith.constant 1 : index
    %c0_62 = arith.constant 0 : index
    %44 = vector.load %arg4[%c0_60, %c1_61, %c0_62] : memref<1x2x128xf32, #tpu.memory_space<vmem>>, vector<1x1x128xf32>
    %45 = vector.shape_cast %44 : vector<1x1x128xf32> to vector<1x128xf32>
    %46 = vector.shape_cast %43 : vector<1x128xf32> to vector<1x1x128xf32>
    tpu.vector_store %arg4[%c0_60, %c1_61, %c0_62], %46 {strides = array<i32>} : memref<1x2x128xf32, #tpu.memory_space<vmem>>, vector<1x1x128xf32>,
    return
  }
  func.func @transform_0(%arg0: i32) -> (i32, i32, i32, i32) {
    %c0_i32 = arith.constant 0 : i32
    %c0_i32_0 = arith.constant 0 : i32
    %c0_i32_1 = arith.constant 0 : i32
    %c0_i32_2 = arith.constant 0 : i32
    return %arg0, %c0_i32, %c0_i32_0, %c0_i32_1 : i32, i32, i32, i32
  }
  func.func @transform_1(%arg0: i32) -> (i32, i32) {
    %c0_i32 = arith.constant 0 : i32
    %c0_i32_0 = arith.constant 0 : i32
    %c0_i32_1 = arith.constant 0 : i32
    return %c0_i32, %c0_i32_0 : i32, i32
  }
  func.func @transform_2(%arg0: i32) -> (i32, i32, i32, i32) {
    %c0_i32 = arith.constant 0 : i32
    %c0_i32_0 = arith.constant 0 : i32
    %c0_i32_1 = arith.constant 0 : i32
    %c0_i32_2 = arith.constant 0 : i32
    return %arg0, %c0_i32, %c0_i32_0, %c0_i32_1 : i32, i32, i32, i32
  }
  func.func @transform_3(%arg0: i32) -> (i32, i32, i32) {
    %c0_i32 = arith.constant 0 : i32
    %c0_i32_0 = arith.constant 0 : i32
    %c0_i32_1 = arith.constant 0 : i32
    return %arg0, %c0_i32, %c0_i32_0 : i32, i32, i32
  }
}

</mosaic_0001>

<llo_original>
// kernel: tpu_custom_call.1
$region0: #{tpu_custom_call.1}
  #allocation0 [shape = 'u32[]', space=smem, size = 0x4, offset = 0x4, fixed_abs, tag = 'smem constant byte address 0x4 - core index']
  #allocation1 [shape = 'u32[144,128]{1,0:T(1,128)}', space=vmem, size = 0x12000, scoped, tag = 'internal scratch']
  #allocation2 [shape = 'bf16[512,1152]{1,0:T(8,128)(2,1)}', space=vmem, size = 0x120000, scoped, tag = 'scratch operand']
  %s0 = inlined_call_operand.hbm [shape: bf16[2,18,24,128], index: 0, kind: input, shape index: {}]
  %s1 = inlined_call_operand.hbm [shape: bf16[1152,128], index: 1, kind: input, shape index: {}]
  %s2 = inlined_call_operand.hbm [shape: bf16[2,16,16,128], index: 2, kind: output, shape index: {0}]
  %s3 = inlined_call_operand.hbm [shape: f32[1,2,128], index: 3, kind: output, shape index: {1}]
  %4 = xla_tuple %s2, %s3
  %s5 = sld [smem:[#allocation0]]
  $region34: #{tpu_custom_call.1} parent=0
    _
  %s7 = ssub.s32 1, %s5
  %s8 = scalar_select 0, %s7, %s5
  $region1: #{tpu_custom_call.1} parent=0
    #allocation3 [shape = 'u8[221184]{0}', space=vmem, size = 0x36000, scoped, tag = 'input window, operand 0, single buffered']
    #allocation4 [shape = 's32[1]{0}', space=sflag, size = 0x4, scoped, tag = 'scoped memory for tpu_custom_call.1']
    #allocation5 [shape = 's32[1]{0}', space=sflag, size = 0x4, scoped, tag = 'scoped memory for tpu_custom_call.1']
    #allocation6 [shape = 'u8[294912]{0}', space=vmem, size = 0x48000, scoped, tag = 'input window, operand 1, single buffered']
    #allocation7 [shape = 's32[1]{0}', space=sflag, size = 0x4, scoped, tag = 'scoped memory for tpu_custom_call.1']
    #allocation8 [shape = 'u8[131072]{0}', space=vmem, size = 0x20000, scoped, tag = 'output window, operand 0, single buffered']
    #allocation9 [shape = 'u8[1024]{0}', space=vmem, size = 0x400, scoped, tag = 'output window, operand 1, single buffered']
    #allocation10 [shape = 's32[1]{0}', space=sflag, size = 0x4, scoped, tag = 'scoped memory for tpu_custom_call.1']
    %9 = vsyncpa [#allocation4], 0
    %10 = vsyncpa [#allocation7], 0
    %11 = vsyncpa [#allocation5], 0
    %12 = vsyncpa [#allocation10], 0
    // Predicated region
    $region2: #{tpu_custom_call.1} parent=1 // pred_check
      _
    $region3: #{tpu_custom_call.1} parent=1 // pred_check_branch
      %14 = sbr.rel (0) target = $region5
    $region4: #{tpu_custom_call.1} parent=1 // pred_region
      %s16 = ssub.s32 6912, 6912
      %17 = vsyncadd [#allocation4], %s16
      %s18 = sshll.u32 [#allocation3], 4
      %s19 = int_to_ptr.vmem [resolvable:$true] %s18
      %24 = dma.hbm_to_vmem [thread:$0]  %s0, 6912, %s19, [#allocation4], 64, 64, 4
    $region5: #{tpu_custom_call.1} parent=1 // pred_fallthru
      _
    // Predicated region
    $region6: #{tpu_custom_call.1} parent=1 // pred_check
      _
    $region7: #{tpu_custom_call.1} parent=1 // pred_check_branch
      %26 = sbr.rel (0) target = $region9
    $region8: #{tpu_custom_call.1} parent=1 // pred_region
      %s28 = ssub.s32 9216, 9216
      %29 = vsyncadd [#allocation7], %s28
      %s30 = sshll.u32 [#allocation6], 4
      %s31 = int_to_ptr.vmem [resolvable:$true] %s30
      %36 = dma.hbm_to_vmem [thread:$0]  %s1, 9216, %s31, [#allocation7], 64, 64, 4
    $region9: #{tpu_custom_call.1} parent=1 // pred_fallthru
      _
    // Predicated region
    $region10: #{tpu_custom_call.1} parent=1 // pred_check
      _
    $region11: #{tpu_custom_call.1} parent=1 // pred_check_branch
      %38 = sbr.rel (0) target = $region13
    $region12: #{tpu_custom_call.1} parent=1 // pred_region
      %39 = dma.done [#allocation4], 6912
    $region13: #{tpu_custom_call.1} parent=1 // pred_fallthru
      _
    // Predicated region
    $region14: #{tpu_custom_call.1} parent=1 // pred_check
      _
    $region15: #{tpu_custom_call.1} parent=1 // pred_check_branch
      %41 = sbr.rel (0) target = $region17
    $region16: #{tpu_custom_call.1} parent=1 // pred_region
      %42 = dma.done [#allocation7], 9216
    $region17: #{tpu_custom_call.1} parent=1 // pred_fallthru
      _
    %v44 = vld [vmem:[#allocation3] sm:$0xf]
    %v45 = vld [vmem:[#allocation3 + $0x4] sm:$0xf]
    %v46 = vld [vmem:[#allocation3 + $0xc] sm:$0xf]
    %v47 = vld [vmem:[#allocation3 + $0x10] sm:$0xf]
    %v48 = vld [vmem:[#allocation3 + $0x18] sm:$0xf]
    %v49 = vld [vmem:[#allocation3 + $0x1c] sm:$0xf]
    %v50 = vld [vmem:[#allocation3 + $0x24] sm:$0xf]
    %v51 = vld [vmem:[#allocation3 + $0x28] sm:$0xf]
    %v52 = vld [vmem:[#allocation3 + $0x30] sm:$0xf]
    %v53 = vld [vmem:[#allocation3 + $0x34] sm:$0xf]
    %v54 = vld [vmem:[#allocation3 + $0x3c] sm:$0xf]
    %v55 = vld [vmem:[#allocation3 + $0x40] sm:$0xf]
    %v56 = vld [vmem:[#allocation3 + $0x48] sm:$0xf]
    %v57 = vld [vmem:[#allocation3 + $0x4c] sm:$0xf]
    %v58 = vld [vmem:[#allocation3 + $0x54] sm:$0xf]
    %v59 = vld [vmem:[#allocation3 + $0x58] sm:$0xf]
    %v60 = vld [vmem:[#allocation3 + $0x60] sm:$0xf]
    %v61 = vld [vmem:[#allocation3 + $0x64] sm:$0xf]
    %v62 = vld [vmem:[#allocation3 + $0x6c] sm:$0xf]
    %v63 = vld [vmem:[#allocation3 + $0x70] sm:$0xf]
    %v64 = vld [vmem:[#allocation3 + $0x78] sm:$0xf]
    %v65 = vld [vmem:[#allocation3 + $0x7c] sm:$0xf]
    %v66 = vld [vmem:[#allocation3 + $0x84] sm:$0xf]
    %v67 = vld [vmem:[#allocation3 + $0x88] sm:$0xf]
    %v68 = vld [vmem:[#allocation3 + $0x90] sm:$0xf]
    %v69 = vld [vmem:[#allocation3 + $0x94] sm:$0xf]
    %v70 = vld [vmem:[#allocation3 + $0x9c] sm:$0xf]
    %v71 = vld [vmem:[#allocation3 + $0xa0] sm:$0xf]
    %v72 = vld [vmem:[#allocation3 + $0xa8] sm:$0xf]
    %v73 = vld [vmem:[#allocation3 + $0xac] sm:$0xf]
    %v74 = vld [vmem:[#allocation3 + $0xb4] sm:$0xf]
    %v75 = vld [vmem:[#allocation3 + $0xb8] sm:$0xf]
    %v76 = vld [vmem:[#allocation3 + $0xd8] sm:$0xf]
    %v77 = vld [vmem:[#allocation3 + $0xdc] sm:$0xf]
    %v78 = vld [vmem:[#allocation3 + $0xe4] sm:$0xf]
    %v79 = vld [vmem:[#allocation3 + $0xe8] sm:$0xf]
    %v80 = vld [vmem:[#allocation3 + $0xf0] sm:$0xf]
    %v81 = vld [vmem:[#allocation3 + $0xf4] sm:$0xf]
    %v82 = vld [vmem:[#allocation3 + $0xfc] sm:$0xf]
    %v83 = vld [vmem:[#allocation3 + $0x100] sm:$0xf]
    %v84 = vld [vmem:[#allocation3 + $0x108] sm:$0xf]
    %v85 = vld [vmem:[#allocation3 + $0x10c] sm:$0xf]
    %v86 = vld [vmem:[#allocation3 + $0x114] sm:$0xf]
    %v87 = vld [vmem:[#allocation3 + $0x118] sm:$0xf]
    %v88 = vld [vmem:[#allocation3 + $0x120] sm:$0xf]
    %v89 = vld [vmem:[#allocation3 + $0x124] sm:$0xf]
    %v90 = vld [vmem:[#allocation3 + $0x12c] sm:$0xf]
    %v91 = vld [vmem:[#allocation3 + $0x130] sm:$0xf]
    %v92 = vld [vmem:[#allocation3 + $0x138] sm:$0xf]
    %v93 = vld [vmem:[#allocation3 + $0x13c] sm:$0xf]
    %v94 = vld [vmem:[#allocation3 + $0x144] sm:$0xf]
    %v95 = vld [vmem:[#allocation3 + $0x148] sm:$0xf]
    %v96 = vld [vmem:[#allocation3 + $0x150] sm:$0xf]
    %v97 = vld [vmem:[#allocation3 + $0x154] sm:$0xf]
    %v98 = vld [vmem:[#allocation3 + $0x15c] sm:$0xf]
    %v99 = vld [vmem:[#allocation3 + $0x160] sm:$0xf]
    %v100 = vld [vmem:[#allocation3 + $0x168] sm:$0xf]
    %v101 = vld [vmem:[#allocation3 + $0x16c] sm:$0xf]
    %v102 = vld [vmem:[#allocation3 + $0x174] sm:$0xf]
    %v103 = vld [vmem:[#allocation3 + $0x178] sm:$0xf]
    %v104 = vld [vmem:[#allocation3 + $0x180] sm:$0xf]
    %v105 = vld [vmem:[#allocation3 + $0x184] sm:$0xf]
    %v106 = vld [vmem:[#allocation3 + $0x18c] sm:$0xf]
    %v107 = vld [vmem:[#allocation3 + $0x190] sm:$0xf]
    %108 = vst [vmem:[#allocation2] sm:$0xf] %v44
    %109 = vst [vmem:[#allocation2 + $0x24] sm:$0xf] %v45
    %110 = vst [vmem:[#allocation2 + $0x48] sm:$0xf] %v46
    %111 = vst [vmem:[#allocation2 + $0x6c] sm:$0xf] %v47
    %112 = vst [vmem:[#allocation2 + $0x90] sm:$0xf] %v48
    %113 = vst [vmem:[#allocation2 + $0xb4] sm:$0xf] %v49
    %114 = vst [vmem:[#allocation2 + $0xd8] sm:$0xf] %v50
    %115 = vst [vmem:[#allocation2 + $0xfc] sm:$0xf] %v51
    %116 = vst [vmem:[#allocation2 + $0x120] sm:$0xf] %v52
    %117 = vst [vmem:[#allocation2 + $0x144] sm:$0xf] %v53
    %118 = vst [vmem:[#allocation2 + $0x168] sm:$0xf] %v54
    %119 = vst [vmem:[#allocation2 + $0x18c] sm:$0xf] %v55
    %120 = vst [vmem:[#allocation2 + $0x1b0] sm:$0xf] %v56
    %121 = vst [vmem:[#allocation2 + $0x1d4] sm:$0xf] %v57
    %122 = vst [vmem:[#allocation2 + $0x1f8] sm:$0xf] %v58
    %123 = vst [vmem:[#allocation2 + $0x21c] sm:$0xf] %v59
    %124 = vst [vmem:[#allocation2 + $0x240] sm:$0xf] %v60
    %125 = vst [vmem:[#allocation2 + $0x264] sm:$0xf] %v61
    %126 = vst [vmem:[#allocation2 + $0x288] sm:$0xf] %v62
    %127 = vst [vmem:[#allocation2 + $0x2ac] sm:$0xf] %v63
    %128 = vst [vmem:[#allocation2 + $0x2d0] sm:$0xf] %v64
    %129 = vst [vmem:[#allocation2 + $0x2f4] sm:$0xf] %v65
    %130 = vst [vmem:[#allocation2 + $0x318] sm:$0xf] %v66
    %131 = vst [vmem:[#allocation2 + $0x33c] sm:$0xf] %v67
    %132 = vst [vmem:[#allocation2 + $0x360] sm:$0xf] %v68
    %133 = vst [vmem:[#allocation2 + $0x384] sm:$0xf] %v69
    %134 = vst [vmem:[#allocation2 + $0x3a8] sm:$0xf] %v70
    %135 = vst [vmem:[#allocation2 + $0x3cc] sm:$0xf] %v71
    %136 = vst [vmem:[#allocation2 + $0x3f0] sm:$0xf] %v72
    %137 = vst [vmem:[#allocation2 + $0x414] sm:$0xf] %v73
    %138 = vst [vmem:[#allocation2 + $0x438] sm:$0xf] %v74
    %139 = vst [vmem:[#allocation2 + $0x45c] sm:$0xf] %v75
    %140 = vst [vmem:[#allocation2 + $0x480] sm:$0xf] %v76
    %141 = vst [vmem:[#allocation2 + $0x4a4] sm:$0xf] %v77
    %142 = vst [vmem:[#allocation2 + $0x4c8] sm:$0xf] %v78
    %143 = vst [vmem:[#allocation2 + $0x4ec] sm:$0xf] %v79
    %144 = vst [vmem:[#allocation2 + $0x510] sm:$0xf] %v80
    %145 = vst [vmem:[#allocation2 + $0x534] sm:$0xf] %v81
    %146 = vst [vmem:[#allocation2 + $0x558] sm:$0xf] %v82
    %147 = vst [vmem:[#allocation2 + $0x57c] sm:$0xf] %v83
    %148 = vst [vmem:[#allocation2 + $0x5a0] sm:$0xf] %v84
    %149 = vst [vmem:[#allocation2 + $0x5c4] sm:$0xf] %v85
    %150 = vst [vmem:[#allocation2 + $0x5e8] sm:$0xf] %v86
    %151 = vst [vmem:[#allocation2 + $0x60c] sm:$0xf] %v87
    %152 = vst [vmem:[#allocation2 + $0x630] sm:$0xf] %v88
    %153 = vst [vmem:[#allocation2 + $0x654] sm:$0xf] %v89
    %154 = vst [vmem:[#allocation2 + $0x678] sm:$0xf] %v90
    %155 = vst [vmem:[#allocation2 + $0x69c] sm:$0xf] %v91
    %156 = vst [vmem:[#allocation2 + $0x6c0] sm:$0xf] %v92
    %157 = vst [vmem:[#allocation2 + $0x6e4] sm:$0xf] %v93
    %158 = vst [vmem:[#allocation2 + $0x708] sm:$0xf] %v94
    %159 = vst [vmem:[#allocation2 + $0x72c] sm:$0xf] %v95
    %160 = vst [vmem:[#allocation2 + $0x750] sm:$0xf] %v96
    %161 = vst [vmem:[#allocation2 + $0x774] sm:$0xf] %v97
    %162 = vst [vmem:[#allocation2 + $0x798] sm:$0xf] %v98
    %163 = vst [vmem:[#allocation2 + $0x7bc] sm:$0xf] %v99
    %164 = vst [vmem:[#allocation2 + $0x7e0] sm:$0xf] %v100
    %165 = vst [vmem:[#allocation2 + $0x804] sm:$0xf] %v101
    %166 = vst [vmem:[#allocation2 + $0x828] sm:$0xf] %v102
    %167 = vst [vmem:[#allocation2 + $0x84c] sm:$0xf] %v103
    %168 = vst [vmem:[#allocation2 + $0x870] sm:$0xf] %v104
    %169 = vst [vmem:[#allocation2 + $0x894] sm:$0xf] %v105
    %170 = vst [vmem:[#allocation2 + $0x8b8] sm:$0xf] %v106
    %171 = vst [vmem:[#allocation2 + $0x8dc] sm:$0xf] %v107
    %v172 = vld [vmem:[#allocation3] sm:$0xf]
    %v173 = vld [vmem:[#allocation3 + $0x4] sm:$0xf]
    %v174 = vld [vmem:[#allocation3 + $0x8] sm:$0x1]
    %v175 = vld [vmem:[#allocation3 + $0xc] sm:$0xf]
    %v176 = vld [vmem:[#allocation3 + $0x10] sm:$0xf]
    %v177 = vld [vmem:[#allocation3 + $0x14] sm:$0x1]
    %v178 = vld [vmem:[#allocation3 + $0x18] sm:$0xf]
    %v179 = vld [vmem:[#allocation3 + $0x1c] sm:$0xf]
    %v180 = vld [vmem:[#allocation3 + $0x20] sm:$0x1]
    %v181 = vld [vmem:[#allocation3 + $0x24] sm:$0xf]
    %v182 = vld [vmem:[#allocation3 + $0x28] sm:$0xf]
    %v183 = vld [vmem:[#allocation3 + $0x2c] sm:$0x1]
    %v184 = vld [vmem:[#allocation3 + $0x30] sm:$0xf]
    %v185 = vld [vmem:[#allocation3 + $0x34] sm:$0xf]
    %v186 = vld [vmem:[#allocation3 + $0x38] sm:$0x1]
    %v187 = vld [vmem:[#allocation3 + $0x3c] sm:$0xf]
    %v188 = vld [vmem:[#allocation3 + $0x40] sm:$0xf]
    %v189 = vld [vmem:[#allocation3 + $0x44] sm:$0x1]
    %v190 = vld [vmem:[#allocation3 + $0x48] sm:$0xf]
    %v191 = vld [vmem:[#allocation3 + $0x4c] sm:$0xf]
    %v192 = vld [vmem:[#allocation3 + $0x50] sm:$0x1]
    %v193 = vld [vmem:[#allocation3 + $0x54] sm:$0xf]
    %v194 = vld [vmem:[#allocation3 + $0x58] sm:$0xf]
    %v195 = vld [vmem:[#allocation3 + $0x5c] sm:$0x1]
    %v196 = vld [vmem:[#allocation3 + $0x60] sm:$0xf]
    %v197 = vld [vmem:[#allocation3 + $0x64] sm:$0xf]
    %v198 = vld [vmem:[#allocation3 + $0x68] sm:$0x1]
    %v199 = vld [vmem:[#allocation3 + $0x6c] sm:$0xf]
    %v200 = vld [vmem:[#allocation3 + $0x70] sm:$0xf]
    %v201 = vld [vmem:[#allocation3 + $0x74] sm:$0x1]
    %v202 = vld [vmem:[#allocation3 + $0x78] sm:$0xf]
    %v203 = vld [vmem:[#allocation3 + $0x7c] sm:$0xf]
    %v204 = vld [vmem:[#allocation3 + $0x80] sm:$0x1]
    %v205 = vld [vmem:[#allocation3 + $0x84] sm:$0xf]
    %v206 = vld [vmem:[#allocation3 + $0x88] sm:$0xf]
    %v207 = vld [vmem:[#allocation3 + $0x8c] sm:$0x1]
    %v208 = vld [vmem:[#allocation3 + $0x90] sm:$0xf]
    %v209 = vld [vmem:[#allocation3 + $0x94] sm:$0xf]
    %v210 = vld [vmem:[#allocation3 + $0x98] sm:$0x1]
    %v211 = vld [vmem:[#allocation3 + $0x9c] sm:$0xf]
    %v212 = vld [vmem:[#allocation3 + $0xa0] sm:$0xf]
    %v213 = vld [vmem:[#allocation3 + $0xa4] sm:$0x1]
    %v214 = vld [vmem:[#allocation3 + $0xa8] sm:$0xf]
    %v215 = vld [vmem:[#allocation3 + $0xac] sm:$0xf]
    %v216 = vld [vmem:[#allocation3 + $0xb0] sm:$0x1]
    %v217 = vld [vmem:[#allocation3 + $0xb4] sm:$0xf]
    %v218 = vld [vmem:[#allocation3 + $0xb8] sm:$0xf]
    %v219 = vld [vmem:[#allocation3 + $0xbc] sm:$0x1]
    %v220 = vld [vmem:[#allocation3 + $0xd8] sm:$0xf]
    %v221 = vld [vmem:[#allocation3 + $0xdc] sm:$0xf]
    %v222 = vld [vmem:[#allocation3 + $0xe0] sm:$0x1]
    %v223 = vld [vmem:[#allocation3 + $0xe4] sm:$0xf]
    %v224 = vld [vmem:[#allocation3 + $0xe8] sm:$0xf]
    %v225 = vld [vmem:[#allocation3 + $0xec] sm:$0x1]
    %v226 = vld [vmem:[#allocation3 + $0xf0] sm:$0xf]
    %v227 = vld [vmem:[#allocation3 + $0xf4] sm:$0xf]
    %v228 = vld [vmem:[#allocation3 + $0xf8] sm:$0x1]
    %v229 = vld [vmem:[#allocation3 + $0xfc] sm:$0xf]
    %v230 = vld [vmem:[#allocation3 + $0x100] sm:$0xf]
    %v231 = vld [vmem:[#allocation3 + $0x104] sm:$0x1]
    %v232 = vld [vmem:[#allocation3 + $0x108] sm:$0xf]
    %v233 = vld [vmem:[#allocation3 + $0x10c] sm:$0xf]
    %v234 = vld [vmem:[#allocation3 + $0x110] sm:$0x1]
    %v235 = vld [vmem:[#allocation3 + $0x114] sm:$0xf]
    %v236 = vld [vmem:[#allocation3 + $0x118] sm:$0xf]
    %v237 = vld [vmem:[#allocation3 + $0x11c] sm:$0x1]
    %v238 = vld [vmem:[#allocation3 + $0x120] sm:$0xf]
    %v239 = vld [vmem:[#allocation3 + $0x124] sm:$0xf]
    %v240 = vld [vmem:[#allocation3 + $0x128] sm:$0x1]
    %v241 = vld [vmem:[#allocation3 + $0x12c] sm:$0xf]
    %v242 = vld [vmem:[#allocation3 + $0x130] sm:$0xf]
    %v243 = vld [vmem:[#allocation3 + $0x134] sm:$0x1]
    %v244 = vld [vmem:[#allocation3 + $0x138] sm:$0xf]
    %v245 = vld [vmem:[#allocation3 + $0x13c] sm:$0xf]
    %v246 = vld [vmem:[#allocation3 + $0x140] sm:$0x1]
    %v247 = vld [vmem:[#allocation3 + $0x144] sm:$0xf]
    %v248 = vld [vmem:[#allocation3 + $0x148] sm:$0xf]
    %v249 = vld [vmem:[#allocation3 + $0x14c] sm:$0x1]
    %v250 = vld [vmem:[#allocation3 + $0x150] sm:$0xf]
    %v251 = vld [vmem:[#allocation3 + $0x154] sm:$0xf]
    %v252 = vld [vmem:[#allocation3 + $0x158] sm:$0x1]
    %v253 = vld [vmem:[#allocation3 + $0x15c] sm:$0xf]
    %v254 = vld [vmem:[#allocation3 + $0x160] sm:$0xf]
    %v255 = vld [vmem:[#allocation3 + $0x164] sm:$0x1]
    %v256 = vld [vmem:[#allocation3 + $0x168] sm:$0xf]
    %v257 = vld [vmem:[#allocation3 + $0x16c] sm:$0xf]
    %v258 = vld [vmem:[#allocation3 + $0x170] sm:$0x1]
    %v259 = vld [vmem:[#allocation3 + $0x174] sm:$0xf]
    %v260 = vld [vmem:[#allocation3 + $0x178] sm:$0xf]
    %v261 = vld [vmem:[#allocation3 + $0x17c] sm:$0x1]
    %v262 = vld [vmem:[#allocation3 + $0x180] sm:$0xf]
    %v263 = vld [vmem:[#allocation3 + $0x184] sm:$0xf]
    %v264 = vld [vmem:[#allocation3 + $0x188] sm:$0x1]
    %v265 = vld [vmem:[#allocation3 + $0x18c] sm:$0xf]
    %v266 = vld [vmem:[#allocation3 + $0x190] sm:$0xf]
    %v267 = vld [vmem:[#allocation3 + $0x194] sm:$0x1]
    %vm268 = vsmask.f32 3328
    %vm269 = vsmask.f32 7440
    %vm270 = vmor %vm268, %vm269
    %v272 = vshrl.u32 %v172, 16
    %v274 = vrot.slane %v272, 4
    %v275 = vshll.u32 %v172, 16
    %v277 = vrot.slane %v275, 5
    %v278 = vor.u32 %v274, %v277
    %v279 = vrot.slane %v278, 4
    %v281 = vshll.u32 %v173, 16
    %v283 = vrot.slane %v281, 5
    %v284 = vsel %vm270, %v279, %v283
    %v285 = vshrl.u32 %v173, 16
    %v287 = vrot.slane %v285, 4
    %v288 = vor.u32 %v287, %v283
    %v289 = vrot.slane %v288, 4
    %v291 = vshll.u32 %v174, 16
    %v293 = vrot.slane %v291, 5
    %v294 = vsel %vm270, %v289, %v293
    %v296 = vshrl.u32 %v175, 16
    %v298 = vrot.slane %v296, 4
    %v299 = vshll.u32 %v175, 16
    %v301 = vrot.slane %v299, 5
    %v302 = vor.u32 %v298, %v301
    %v303 = vrot.slane %v302, 4
    %v305 = vshll.u32 %v176, 16
    %v307 = vrot.slane %v305, 5
    %v308 = vsel %vm270, %v303, %v307
    %v309 = vshrl.u32 %v176, 16
    %v311 = vrot.slane %v309, 4
    %v312 = vor.u32 %v311, %v307
    %v313 = vrot.slane %v312, 4
    %v315 = vshll.u32 %v177, 16
    %v317 = vrot.slane %v315, 5
    %v318 = vsel %vm270, %v313, %v317
    %v320 = vshrl.u32 %v178, 16
    %v322 = vrot.slane %v320, 4
    %v323 = vshll.u32 %v178, 16
    %v325 = vrot.slane %v323, 5
    %v326 = vor.u32 %v322, %v325
    %v327 = vrot.slane %v326, 4
    %v329 = vshll.u32 %v179, 16
    %v331 = vrot.slane %v329, 5
    %v332 = vsel %vm270, %v327, %v331
    %v333 = vshrl.u32 %v179, 16
    %v335 = vrot.slane %v333, 4
    %v336 = vor.u32 %v335, %v331
    %v337 = vrot.slane %v336, 4
    %v339 = vshll.u32 %v180, 16
    %v341 = vrot.slane %v339, 5
    %v342 = vsel %vm270, %v337, %v341
    %v344 = vshrl.u32 %v181, 16
    %v346 = vrot.slane %v344, 4
    %v347 = vshll.u32 %v181, 16
    %v349 = vrot.slane %v347, 5
    %v350 = vor.u32 %v346, %v349
    %v351 = vrot.slane %v350, 4
    %v353 = vshll.u32 %v182, 16
    %v355 = vrot.slane %v353, 5
    %v356 = vsel %vm270, %v351, %v355
    %v357 = vshrl.u32 %v182, 16
    %v359 = vrot.slane %v357, 4
    %v360 = vor.u32 %v359, %v355
    %v361 = vrot.slane %v360, 4
    %v363 = vshll.u32 %v183, 16
    %v365 = vrot.slane %v363, 5
    %v366 = vsel %vm270, %v361, %v365
    %v368 = vshrl.u32 %v184, 16
    %v370 = vrot.slane %v368, 4
    %v371 = vshll.u32 %v184, 16
    %v373 = vrot.slane %v371, 5
    %v374 = vor.u32 %v370, %v373
    %v375 = vrot.slane %v374, 4
    %v377 = vshll.u32 %v185, 16
    %v379 = vrot.slane %v377, 5
    %v380 = vsel %vm270, %v375, %v379
    %v381 = vshrl.u32 %v185, 16
    %v383 = vrot.slane %v381, 4
    %v384 = vor.u32 %v383, %v379
    %v385 = vrot.slane %v384, 4
    %v387 = vshll.u32 %v186, 16
    %v389 = vrot.slane %v387, 5
    %v390 = vsel %vm270, %v385, %v389
    %v392 = vshrl.u32 %v187, 16
    %v394 = vrot.slane %v392, 4
    %v395 = vshll.u32 %v187, 16
    %v397 = vrot.slane %v395, 5
    %v398 = vor.u32 %v394, %v397
    %v399 = vrot.slane %v398, 4
    %v401 = vshll.u32 %v188, 16
    %v403 = vrot.slane %v401, 5
    %v404 = vsel %vm270, %v399, %v403
    %v405 = vshrl.u32 %v188, 16
    %v407 = vrot.slane %v405, 4
    %v408 = vor.u32 %v407, %v403
    %v409 = vrot.slane %v408, 4
    %v411 = vshll.u32 %v189, 16
    %v413 = vrot.slane %v411, 5
    %v414 = vsel %vm270, %v409, %v413
    %v416 = vshrl.u32 %v190, 16
    %v418 = vrot.slane %v416, 4
    %v419 = vshll.u32 %v190, 16
    %v421 = vrot.slane %v419, 5
    %v422 = vor.u32 %v418, %v421
    %v423 = vrot.slane %v422, 4
    %v425 = vshll.u32 %v191, 16
    %v427 = vrot.slane %v425, 5
    %v428 = vsel %vm270, %v423, %v427
    %v429 = vshrl.u32 %v191, 16
    %v431 = vrot.slane %v429, 4
    %v432 = vor.u32 %v431, %v427
    %v433 = vrot.slane %v432, 4
    %v435 = vshll.u32 %v192, 16
    %v437 = vrot.slane %v435, 5
    %v438 = vsel %vm270, %v433, %v437
    %v440 = vshrl.u32 %v193, 16
    %v442 = vrot.slane %v440, 4
    %v443 = vshll.u32 %v193, 16
    %v445 = vrot.slane %v443, 5
    %v446 = vor.u32 %v442, %v445
    %v447 = vrot.slane %v446, 4
    %v449 = vshll.u32 %v194, 16
    %v451 = vrot.slane %v449, 5
    %v452 = vsel %vm270, %v447, %v451
    %v453 = vshrl.u32 %v194, 16
    %v455 = vrot.slane %v453, 4
    %v456 = vor.u32 %v455, %v451
    %v457 = vrot.slane %v456, 4
    %v459 = vshll.u32 %v195, 16
    %v461 = vrot.slane %v459, 5
    %v462 = vsel %vm270, %v457, %v461
    %v464 = vshrl.u32 %v196, 16
    %v466 = vrot.slane %v464, 4
    %v467 = vshll.u32 %v196, 16
    %v469 = vrot.slane %v467, 5
    %v470 = vor.u32 %v466, %v469
    %v471 = vrot.slane %v470, 4
    %v473 = vshll.u32 %v197, 16
    %v475 = vrot.slane %v473, 5
    %v476 = vsel %vm270, %v471, %v475
    %v477 = vshrl.u32 %v197, 16
    %v479 = vrot.slane %v477, 4
    %v480 = vor.u32 %v479, %v475
    %v481 = vrot.slane %v480, 4
    %v483 = vshll.u32 %v198, 16
    %v485 = vrot.slane %v483, 5
    %v486 = vsel %vm270, %v481, %v485
    %v488 = vshrl.u32 %v199, 16
    %v490 = vrot.slane %v488, 4
    %v491 = vshll.u32 %v199, 16
    %v493 = vrot.slane %v491, 5
    %v494 = vor.u32 %v490, %v493
    %v495 = vrot.slane %v494, 4
    %v497 = vshll.u32 %v200, 16
    %v499 = vrot.slane %v497, 5
    %v500 = vsel %vm270, %v495, %v499
    %v501 = vshrl.u32 %v200, 16
    %v503 = vrot.slane %v501, 4
    %v504 = vor.u32 %v503, %v499
    %v505 = vrot.slane %v504, 4
    %v507 = vshll.u32 %v201, 16
    %v509 = vrot.slane %v507, 5
    %v510 = vsel %vm270, %v505, %v509
    %v512 = vshrl.u32 %v202, 16
    %v514 = vrot.slane %v512, 4
    %v515 = vshll.u32 %v202, 16
    %v517 = vrot.slane %v515, 5
    %v518 = vor.u32 %v514, %v517
    %v519 = vrot.slane %v518, 4
    %v521 = vshll.u32 %v203, 16
    %v523 = vrot.slane %v521, 5
    %v524 = vsel %vm270, %v519, %v523
    %v525 = vshrl.u32 %v203, 16
    %v527 = vrot.slane %v525, 4
    %v528 = vor.u32 %v527, %v523
    %v529 = vrot.slane %v528, 4
    %v531 = vshll.u32 %v204, 16
    %v533 = vrot.slane %v531, 5
    %v534 = vsel %vm270, %v529, %v533
    %v536 = vshrl.u32 %v205, 16
    %v538 = vrot.slane %v536, 4
    %v539 = vshll.u32 %v205, 16
    %v541 = vrot.slane %v539, 5
    %v542 = vor.u32 %v538, %v541
    %v543 = vrot.slane %v542, 4
    %v545 = vshll.u32 %v206, 16
    %v547 = vrot.slane %v545, 5
    %v548 = vsel %vm270, %v543, %v547
    %v549 = vshrl.u32 %v206, 16
    %v551 = vrot.slane %v549, 4
    %v552 = vor.u32 %v551, %v547
    %v553 = vrot.slane %v552, 4
    %v555 = vshll.u32 %v207, 16
    %v557 = vrot.slane %v555, 5
    %v558 = vsel %vm270, %v553, %v557
    %v560 = vshrl.u32 %v208, 16
    %v562 = vrot.slane %v560, 4
    %v563 = vshll.u32 %v208, 16
    %v565 = vrot.slane %v563, 5
    %v566 = vor.u32 %v562, %v565
    %v567 = vrot.slane %v566, 4
    %v569 = vshll.u32 %v209, 16
    %v571 = vrot.slane %v569, 5
    %v572 = vsel %vm270, %v567, %v571
    %v573 = vshrl.u32 %v209, 16
    %v575 = vrot.slane %v573, 4
    %v576 = vor.u32 %v575, %v571
    %v577 = vrot.slane %v576, 4
    %v579 = vshll.u32 %v210, 16
    %v581 = vrot.slane %v579, 5
    %v582 = vsel %vm270, %v577, %v581
    %v584 = vshrl.u32 %v211, 16
    %v586 = vrot.slane %v584, 4
    %v587 = vshll.u32 %v211, 16
    %v589 = vrot.slane %v587, 5
    %v590 = vor.u32 %v586, %v589
    %v591 = vrot.slane %v590, 4
    %v593 = vshll.u32 %v212, 16
    %v595 = vrot.slane %v593, 5
    %v596 = vsel %vm270, %v591, %v595
    %v597 = vshrl.u32 %v212, 16
    %v599 = vrot.slane %v597, 4
    %v600 = vor.u32 %v599, %v595
    %v601 = vrot.slane %v600, 4
    %v603 = vshll.u32 %v213, 16
    %v605 = vrot.slane %v603, 5
    %v606 = vsel %vm270, %v601, %v605
    %v608 = vshrl.u32 %v214, 16
    %v610 = vrot.slane %v608, 4
    %v611 = vshll.u32 %v214, 16
    %v613 = vrot.slane %v611, 5
    %v614 = vor.u32 %v610, %v613
    %v615 = vrot.slane %v614, 4
    %v617 = vshll.u32 %v215, 16
    %v619 = vrot.slane %v617, 5
    %v620 = vsel %vm270, %v615, %v619
    %v621 = vshrl.u32 %v215, 16
    %v623 = vrot.slane %v621, 4
    %v624 = vor.u32 %v623, %v619
    %v625 = vrot.slane %v624, 4
    %v627 = vshll.u32 %v216, 16
    %v629 = vrot.slane %v627, 5
    %v630 = vsel %vm270, %v625, %v629
    %v632 = vshrl.u32 %v217, 16
    %v634 = vrot.slane %v632, 4
    %v635 = vshll.u32 %v217, 16
    %v637 = vrot.slane %v635, 5
    %v638 = vor.u32 %v634, %v637
    %v639 = vrot.slane %v638, 4
    %v641 = vshll.u32 %v218, 16
    %v643 = vrot.slane %v641, 5
    %v644 = vsel %vm270, %v639, %v643
    %v645 = vshrl.u32 %v218, 16
    %v647 = vrot.slane %v645, 4
    %v648 = vor.u32 %v647, %v643
    %v649 = vrot.slane %v648, 4
    %v651 = vshll.u32 %v219, 16
    %v653 = vrot.slane %v651, 5
    %v654 = vsel %vm270, %v649, %v653
    %v656 = vshrl.u32 %v220, 16
    %v658 = vrot.slane %v656, 4
    %v659 = vshll.u32 %v220, 16
    %v661 = vrot.slane %v659, 5
    %v662 = vor.u32 %v658, %v661
    %v663 = vrot.slane %v662, 4
    %v665 = vshll.u32 %v221, 16
    %v667 = vrot.slane %v665, 5
    %v668 = vsel %vm270, %v663, %v667
    %v669 = vshrl.u32 %v221, 16
    %v671 = vrot.slane %v669, 4
    %v672 = vor.u32 %v671, %v667
    %v673 = vrot.slane %v672, 4
    %v675 = vshll.u32 %v222, 16
    %v677 = vrot.slane %v675, 5
    %v678 = vsel %vm270, %v673, %v677
    %v680 = vshrl.u32 %v223, 16
    %v682 = vrot.slane %v680, 4
    %v683 = vshll.u32 %v223, 16
    %v685 = vrot.slane %v683, 5
    %v686 = vor.u32 %v682, %v685
    %v687 = vrot.slane %v686, 4
    %v689 = vshll.u32 %v224, 16
    %v691 = vrot.slane %v689, 5
    %v692 = vsel %vm270, %v687, %v691
    %v693 = vshrl.u32 %v224, 16
    %v695 = vrot.slane %v693, 4
    %v696 = vor.u32 %v695, %v691
    %v697 = vrot.slane %v696, 4
    %v699 = vshll.u32 %v225, 16
    %v701 = vrot.slane %v699, 5
    %v702 = vsel %vm270, %v697, %v701
    %v704 = vshrl.u32 %v226, 16
    %v706 = vrot.slane %v704, 4
    %v707 = vshll.u32 %v226, 16
    %v709 = vrot.slane %v707, 5
    %v710 = vor.u32 %v706, %v709
    %v711 = vrot.slane %v710, 4
    %v713 = vshll.u32 %v227, 16
    %v715 = vrot.slane %v713, 5
    %v716 = vsel %vm270, %v711, %v715
    %v717 = vshrl.u32 %v227, 16
    %v719 = vrot.slane %v717, 4
    %v720 = vor.u32 %v719, %v715
    %v721 = vrot.slane %v720, 4
    %v723 = vshll.u32 %v228, 16
    %v725 = vrot.slane %v723, 5
    %v726 = vsel %vm270, %v721, %v725
    %v728 = vshrl.u32 %v229, 16
    %v730 = vrot.slane %v728, 4
    %v731 = vshll.u32 %v229, 16
    %v733 = vrot.slane %v731, 5
    %v734 = vor.u32 %v730, %v733
    %v735 = vrot.slane %v734, 4
    %v737 = vshll.u32 %v230, 16
    %v739 = vrot.slane %v737, 5
    %v740 = vsel %vm270, %v735, %v739
    %v741 = vshrl.u32 %v230, 16
    %v743 = vrot.slane %v741, 4
    %v744 = vor.u32 %v743, %v739
    %v745 = vrot.slane %v744, 4
    %v747 = vshll.u32 %v231, 16
    %v749 = vrot.slane %v747, 5
    %v750 = vsel %vm270, %v745, %v749
    %v752 = vshrl.u32 %v232, 16
    %v754 = vrot.slane %v752, 4
    %v755 = vshll.u32 %v232, 16
    %v757 = vrot.slane %v755, 5
    %v758 = vor.u32 %v754, %v757
    %v759 = vrot.slane %v758, 4
    %v761 = vshll.u32 %v233, 16
    %v763 = vrot.slane %v761, 5
    %v764 = vsel %vm270, %v759, %v763
    %v765 = vshrl.u32 %v233, 16
    %v767 = vrot.slane %v765, 4
    %v768 = vor.u32 %v767, %v763
    %v769 = vrot.slane %v768, 4
    %v771 = vshll.u32 %v234, 16
    %v773 = vrot.slane %v771, 5
    %v774 = vsel %vm270, %v769, %v773
    %v776 = vshrl.u32 %v235, 16
    %v778 = vrot.slane %v776, 4
    %v779 = vshll.u32 %v235, 16
    %v781 = vrot.slane %v779, 5
    %v782 = vor.u32 %v778, %v781
    %v783 = vrot.slane %v782, 4
    %v785 = vshll.u32 %v236, 16
    %v787 = vrot.slane %v785, 5
    %v788 = vsel %vm270, %v783, %v787
    %v789 = vshrl.u32 %v236, 16
    %v791 = vrot.slane %v789, 4
    %v792 = vor.u32 %v791, %v787
    %v793 = vrot.slane %v792, 4
    %v795 = vshll.u32 %v237, 16
    %v797 = vrot.slane %v795, 5
    %v798 = vsel %vm270, %v793, %v797
    %v800 = vshrl.u32 %v238, 16
    %v802 = vrot.slane %v800, 4
    %v803 = vshll.u32 %v238, 16
    %v805 = vrot.slane %v803, 5
    %v806 = vor.u32 %v802, %v805
    %v807 = vrot.slane %v806, 4
    %v809 = vshll.u32 %v239, 16
    %v811 = vrot.slane %v809, 5
    %v812 = vsel %vm270, %v807, %v811
    %v813 = vshrl.u32 %v239, 16
    %v815 = vrot.slane %v813, 4
    %v816 = vor.u32 %v815, %v811
    %v817 = vrot.slane %v816, 4
    %v819 = vshll.u32 %v240, 16
    %v821 = vrot.slane %v819, 5
    %v822 = vsel %vm270, %v817, %v821
    %v824 = vshrl.u32 %v241, 16
    %v826 = vrot.slane %v824, 4
    %v827 = vshll.u32 %v241, 16
    %v829 = vrot.slane %v827, 5
    %v830 = vor.u32 %v826, %v829
    %v831 = vrot.slane %v830, 4
    %v833 = vshll.u32 %v242, 16
    %v835 = vrot.slane %v833, 5
    %v836 = vsel %vm270, %v831, %v835
    %v837 = vshrl.u32 %v242, 16
    %v839 = vrot.slane %v837, 4
    %v840 = vor.u32 %v839, %v835
    %v841 = vrot.slane %v840, 4
    %v843 = vshll.u32 %v243, 16
    %v845 = vrot.slane %v843, 5
    %v846 = vsel %vm270, %v841, %v845
    %v848 = vshrl.u32 %v244, 16
    %v850 = vrot.slane %v848, 4
    %v851 = vshll.u32 %v244, 16
    %v853 = vrot.slane %v851, 5
    %v854 = vor.u32 %v850, %v853
    %v855 = vrot.slane %v854, 4
    %v857 = vshll.u32 %v245, 16
    %v859 = vrot.slane %v857, 5
    %v860 = vsel %vm270, %v855, %v859
    %v861 = vshrl.u32 %v245, 16
    %v863 = vrot.slane %v861, 4
    %v864 = vor.u32 %v863, %v859
    %v865 = vrot.slane %v864, 4
    %v867 = vshll.u32 %v246, 16
    %v869 = vrot.slane %v867, 5
    %v870 = vsel %vm270, %v865, %v869
    %v872 = vshrl.u32 %v247, 16
    %v874 = vrot.slane %v872, 4
    %v875 = vshll.u32 %v247, 16
    %v877 = vrot.slane %v875, 5
    %v878 = vor.u32 %v874, %v877
    %v879 = vrot.slane %v878, 4
    %v881 = vshll.u32 %v248, 16
    %v883 = vrot.slane %v881, 5
    %v884 = vsel %vm270, %v879, %v883
    %v885 = vshrl.u32 %v248, 16
    %v887 = vrot.slane %v885, 4
    %v888 = vor.u32 %v887, %v883
    %v889 = vrot.slane %v888, 4
    %v891 = vshll.u32 %v249, 16
    %v893 = vrot.slane %v891, 5
    %v894 = vsel %vm270, %v889, %v893
    %v896 = vshrl.u32 %v250, 16
    %v898 = vrot.slane %v896, 4
    %v899 = vshll.u32 %v250, 16
    %v901 = vrot.slane %v899, 5
    %v902 = vor.u32 %v898, %v901
    %v903 = vrot.slane %v902, 4
    %v905 = vshll.u32 %v251, 16
    %v907 = vrot.slane %v905, 5
    %v908 = vsel %vm270, %v903, %v907
    %v909 = vshrl.u32 %v251, 16
    %v911 = vrot.slane %v909, 4
    %v912 = vor.u32 %v911, %v907
    %v913 = vrot.slane %v912, 4
    %v915 = vshll.u32 %v252, 16
    %v917 = vrot.slane %v915, 5
    %v918 = vsel %vm270, %v913, %v917
    %v920 = vshrl.u32 %v253, 16
    %v922 = vrot.slane %v920, 4
    %v923 = vshll.u32 %v253, 16
    %v925 = vrot.slane %v923, 5
    %v926 = vor.u32 %v922, %v925
    %v927 = vrot.slane %v926, 4
    %v929 = vshll.u32 %v254, 16
    %v931 = vrot.slane %v929, 5
    %v932 = vsel %vm270, %v927, %v931
    %v933 = vshrl.u32 %v254, 16
    %v935 = vrot.slane %v933, 4
    %v936 = vor.u32 %v935, %v931
    %v937 = vrot.slane %v936, 4
    %v939 = vshll.u32 %v255, 16
    %v941 = vrot.slane %v939, 5
    %v942 = vsel %vm270, %v937, %v941
    %v944 = vshrl.u32 %v256, 16
    %v946 = vrot.slane %v944, 4
    %v947 = vshll.u32 %v256, 16
    %v949 = vrot.slane %v947, 5
    %v950 = vor.u32 %v946, %v949
    %v951 = vrot.slane %v950, 4
    %v953 = vshll.u32 %v257, 16
    %v955 = vrot.slane %v953, 5
    %v956 = vsel %vm270, %v951, %v955
    %v957 = vshrl.u32 %v257, 16
    %v959 = vrot.slane %v957, 4
    %v960 = vor.u32 %v959, %v955
    %v961 = vrot.slane %v960, 4
    %v963 = vshll.u32 %v258, 16
    %v965 = vrot.slane %v963, 5
    %v966 = vsel %vm270, %v961, %v965
    %v968 = vshrl.u32 %v259, 16
    %v970 = vrot.slane %v968, 4
    %v971 = vshll.u32 %v259, 16
    %v973 = vrot.slane %v971, 5
    %v974 = vor.u32 %v970, %v973
    %v975 = vrot.slane %v974, 4
    %v977 = vshll.u32 %v260, 16
    %v979 = vrot.slane %v977, 5
    %v980 = vsel %vm270, %v975, %v979
    %v981 = vshrl.u32 %v260, 16
    %v983 = vrot.slane %v981, 4
    %v984 = vor.u32 %v983, %v979
    %v985 = vrot.slane %v984, 4
    %v987 = vshll.u32 %v261, 16
    %v989 = vrot.slane %v987, 5
    %v990 = vsel %vm270, %v985, %v989
    %v992 = vshrl.u32 %v262, 16
    %v994 = vrot.slane %v992, 4
    %v995 = vshll.u32 %v262, 16
    %v997 = vrot.slane %v995, 5
    %v998 = vor.u32 %v994, %v997
    %v999 = vrot.slane %v998, 4
    %v1001 = vshll.u32 %v263, 16
    %v1003 = vrot.slane %v1001, 5
    %v1004 = vsel %vm270, %v999, %v1003
    %v1005 = vshrl.u32 %v263, 16
    %v1007 = vrot.slane %v1005, 4
    %v1008 = vor.u32 %v1007, %v1003
    %v1009 = vrot.slane %v1008, 4
    %v1011 = vshll.u32 %v264, 16
    %v1013 = vrot.slane %v1011, 5
    %v1014 = vsel %vm270, %v1009, %v1013
    %v1016 = vshrl.u32 %v265, 16
    %v1018 = vrot.slane %v1016, 4
    %v1019 = vshll.u32 %v265, 16
    %v1021 = vrot.slane %v1019, 5
    %v1022 = vor.u32 %v1018, %v1021
    %v1023 = vrot.slane %v1022, 4
    %v1025 = vshll.u32 %v266, 16
    %v1027 = vrot.slane %v1025, 5
    %v1028 = vsel %vm270, %v1023, %v1027
    %v1029 = vshrl.u32 %v266, 16
    %v1031 = vrot.slane %v1029, 4
    %v1032 = vor.u32 %v1031, %v1027
    %v1033 = vrot.slane %v1032, 4
    %v1035 = vshll.u32 %v267, 16
    %v1037 = vrot.slane %v1035, 5
    %v1038 = vsel %vm270, %v1033, %v1037
    %1103 = vst [vmem:[#allocation2 + $0x4] sm:$0xf] %v284
    %1104 = vst [vmem:[#allocation2 + $0x28] sm:$0xf] %v294
    %1105 = vst [vmem:[#allocation2 + $0x4c] sm:$0xf] %v308
    %1106 = vst [vmem:[#allocation2 + $0x70] sm:$0xf] %v318
    %1107 = vst [vmem:[#allocation2 + $0x94] sm:$0xf] %v332
    %1108 = vst [vmem:[#allocation2 + $0xb8] sm:$0xf] %v342
    %1109 = vst [vmem:[#allocation2 + $0xdc] sm:$0xf] %v356
    %1110 = vst [vmem:[#allocation2 + $0x100] sm:$0xf] %v366
    %1111 = vst [vmem:[#allocation2 + $0x124] sm:$0xf] %v380
    %1112 = vst [vmem:[#allocation2 + $0x148] sm:$0xf] %v390
    %1113 = vst [vmem:[#allocation2 + $0x16c] sm:$0xf] %v404
    %1114 = vst [vmem:[#allocation2 + $0x190] sm:$0xf] %v414
    %1115 = vst [vmem:[#allocation2 + $0x1b4] sm:$0xf] %v428
    %1116 = vst [vmem:[#allocation2 + $0x1d8] sm:$0xf] %v438
    %1117 = vst [vmem:[#allocation2 + $0x1fc] sm:$0xf] %v452
    %1118 = vst [vmem:[#allocation2 + $0x220] sm:$0xf] %v462
    %1119 = vst [vmem:[#allocation2 + $0x244] sm:$0xf] %v476
    %1120 = vst [vmem:[#allocation2 + $0x268] sm:$0xf] %v486
    %1121 = vst [vmem:[#allocation2 + $0x28c] sm:$0xf] %v500
    %1122 = vst [vmem:[#allocation2 + $0x2b0] sm:$0xf] %v510
    %1123 = vst [vmem:[#allocation2 + $0x2d4] sm:$0xf] %v524
    %1124 = vst [vmem:[#allocation2 + $0x2f8] sm:$0xf] %v534
    %1125 = vst [vmem:[#allocation2 + $0x31c] sm:$0xf] %v548
    %1126 = vst [vmem:[#allocation2 + $0x340] sm:$0xf] %v558
    %1127 = vst [vmem:[#allocation2 + $0x364] sm:$0xf] %v572
    %1128 = vst [vmem:[#allocation2 + $0x388] sm:$0xf] %v582
    %1129 = vst [vmem:[#allocation2 + $0x3ac] sm:$0xf] %v596
    %1130 = vst [vmem:[#allocation2 + $0x3d0] sm:$0xf] %v606
    %1131 = vst [vmem:[#allocation2 + $0x3f4] sm:$0xf] %v620
    %1132 = vst [vmem:[#allocation2 + $0x418] sm:$0xf] %v630
    %1133 = vst [vmem:[#allocation2 + $0x43c] sm:$0xf] %v644
    %1134 = vst [vmem:[#allocation2 + $0x460] sm:$0xf] %v654
    %1135 = vst [vmem:[#allocation2 + $0x484] sm:$0xf] %v668
    %1136 = vst [vmem:[#allocation2 + $0x4a8] sm:$0xf] %v678
    %1137 = vst [vmem:[#allocation2 + $0x4cc] sm:$0xf] %v692
    %1138 = vst [vmem:[#allocation2 + $0x4f0] sm:$0xf] %v702
    %1139 = vst [vmem:[#allocation2 + $0x514] sm:$0xf] %v716
    %1140 = vst [vmem:[#allocation2 + $0x538] sm:$0xf] %v726
    %1141 = vst [vmem:[#allocation2 + $0x55c] sm:$0xf] %v740
    %1142 = vst [vmem:[#allocation2 + $0x580] sm:$0xf] %v750
    %1143 = vst [vmem:[#allocation2 + $0x5a4] sm:$0xf] %v764
    %1144 = vst [vmem:[#allocation2 + $0x5c8] sm:$0xf] %v774
    %1145 = vst [vmem:[#allocation2 + $0x5ec] sm:$0xf] %v788
    %1146 = vst [vmem:[#allocation2 + $0x610] sm:$0xf] %v798
    %1147 = vst [vmem:[#allocation2 + $0x634] sm:$0xf] %v812
    %1148 = vst [vmem:[#allocation2 + $0x658] sm:$0xf] %v822
    %1149 = vst [vmem:[#allocation2 + $0x67c] sm:$0xf] %v836
    %1150 = vst [vmem:[#allocation2 + $0x6a0] sm:$0xf] %v846
    %1151 = vst [vmem:[#allocation2 + $0x6c4] sm:$0xf] %v860
    %1152 = vst [vmem:[#allocation2 + $0x6e8] sm:$0xf] %v870
    %1153 = vst [vmem:[#allocation2 + $0x70c] sm:$0xf] %v884
    %1154 = vst [vmem:[#allocation2 + $0x730] sm:$0xf] %v894
    %1155 = vst [vmem:[#allocation2 + $0x754] sm:$0xf] %v908
    %1156 = vst [vmem:[#allocation2 + $0x778] sm:$0xf] %v918
    %1157 = vst [vmem:[#allocation2 + $0x79c] sm:$0xf] %v932
    %1158 = vst [vmem:[#allocation2 + $0x7c0] sm:$0xf] %v942
    %1159 = vst [vmem:[#allocation2 + $0x7e4] sm:$0xf] %v956
    %1160 = vst [vmem:[#allocation2 + $0x808] sm:$0xf] %v966
    %1161 = vst [vmem:[#allocation2 + $0x82c] sm:$0xf] %v980
    %1162 = vst [vmem:[#allocation2 + $0x850] sm:$0xf] %v990
    %1163 = vst [vmem:[#allocation2 + $0x874] sm:$0xf] %v1004
    %1164 = vst [vmem:[#allocation2 + $0x898] sm:$0xf] %v1014
    %1165 = vst [vmem:[#allocation2 + $0x8bc] sm:$0xf] %v1028
    %1166 = vst [vmem:[#allocation2 + $0x8e0] sm:$0xf] %v1038
    %v1167 = vld [vmem:[#allocation3] sm:$0xe]
    %v1168 = vld [vmem:[#allocation3 + $0x4] sm:$0xf]
    %v1169 = vld [vmem:[#allocation3 + $0x8] sm:$0x1]
    %v1170 = vld [vmem:[#allocation3 + $0xc] sm:$0xe]
    %v1171 = vld [vmem:[#allocation3 + $0x10] sm:$0xf]
    %v1172 = vld [vmem:[#allocation3 + $0x14] sm:$0x1]
    %v1173 = vld [vmem:[#allocation3 + $0x18] sm:$0xe]
    %v1174 = vld [vmem:[#allocation3 + $0x1c] sm:$0xf]
    %v1175 = vld [vmem:[#allocation3 + $0x20] sm:$0x1]
    %v1176 = vld [vmem:[#allocation3 + $0x24] sm:$0xe]
    %v1177 = vld [vmem:[#allocation3 + $0x28] sm:$0xf]
    %v1178 = vld [vmem:[#allocation3 + $0x2c] sm:$0x1]
    %v1179 = vld [vmem:[#allocation3 + $0x30] sm:$0xe]
    %v1180 = vld [vmem:[#allocation3 + $0x34] sm:$0xf]
    %v1181 = vld [vmem:[#allocation3 + $0x38] sm:$0x1]
    %v1182 = vld [vmem:[#allocation3 + $0x3c] sm:$0xe]
    %v1183 = vld [vmem:[#allocation3 + $0x40] sm:$0xf]
    %v1184 = vld [vmem:[#allocation3 + $0x44] sm:$0x1]
    %v1185 = vld [vmem:[#allocation3 + $0x48] sm:$0xe]
    %v1186 = vld [vmem:[#allocation3 + $0x4c] sm:$0xf]
    %v1187 = vld [vmem:[#allocation3 + $0x50] sm:$0x1]
    %v1188 = vld [vmem:[#allocation3 + $0x54] sm:$0xe]
    %v1189 = vld [vmem:[#allocation3 + $0x58] sm:$0xf]
    %v1190 = vld [vmem:[#allocation3 + $0x5c] sm:$0x1]
    %v1191 = vld [vmem:[#allocation3 + $0x60] sm:$0xe]
    %v1192 = vld [vmem:[#allocation3 + $0x64] sm:$0xf]
    %v1193 = vld [vmem:[#allocation3 + $0x68] sm:$0x1]
    %v1194 = vld [vmem:[#allocation3 + $0x6c] sm:$0xe]
    %v1195 = vld [vmem:[#allocation3 + $0x70] sm:$0xf]
    %v1196 = vld [vmem:[#allocation3 + $0x74] sm:$0x1]
    %v1197 = vld [vmem:[#allocation3 + $0x78] sm:$0xe]
    %v1198 = vld [vmem:[#allocation3 + $0x7c] sm:$0xf]
    %v1199 = vld [vmem:[#allocation3 + $0x80] sm:$0x1]
    %v1200 = vld [vmem:[#allocation3 + $0x84] sm:$0xe]
    %v1201 = vld [vmem:[#allocation3 + $0x88] sm:$0xf]
    %v1202 = vld [vmem:[#allocation3 + $0x8c] sm:$0x1]
    %v1203 = vld [vmem:[#allocation3 + $0x90] sm:$0xe]
    %v1204 = vld [vmem:[#allocation3 + $0x94] sm:$0xf]
    %v1205 = vld [vmem:[#allocation3 + $0x98] sm:$0x1]
    %v1206 = vld [vmem:[#allocation3 + $0x9c] sm:$0xe]
    %v1207 = vld [vmem:[#allocation3 + $0xa0] sm:$0xf]
    %v1208 = vld [vmem:[#allocation3 + $0xa4] sm:$0x1]
    %v1209 = vld [vmem:[#allocation3 + $0xa8] sm:$0xe]
    %v1210 = vld [vmem:[#allocation3 + $0xac] sm:$0xf]
    %v1211 = vld [vmem:[#allocation3 + $0xb0] sm:$0x1]
    %v1212 = vld [vmem:[#allocation3 + $0xb4] sm:$0xe]
    %v1213 = vld [vmem:[#allocation3 + $0xb8] sm:$0xf]
    %v1214 = vld [vmem:[#allocation3 + $0xbc] sm:$0x1]
    %v1215 = vld [vmem:[#allocation3 + $0xd8] sm:$0xe]
    %v1216 = vld [vmem:[#allocation3 + $0xdc] sm:$0xf]
    %v1217 = vld [vmem:[#allocation3 + $0xe0] sm:$0x1]
    %v1218 = vld [vmem:[#allocation3 + $0xe4] sm:$0xe]
    %v1219 = vld [vmem:[#allocation3 + $0xe8] sm:$0xf]
    %v1220 = vld [vmem:[#allocation3 + $0xec] sm:$0x1]
    %v1221 = vld [vmem:[#allocation3 + $0xf0] sm:$0xe]
    %v1222 = vld [vmem:[#allocation3 + $0xf4] sm:$0xf]
    %v1223 = vld [vmem:[#allocation3 + $0xf8] sm:$0x1]
    %v1224 = vld [vmem:[#allocation3 + $0xfc] sm:$0xe]
    %v1225 = vld [vmem:[#allocation3 + $0x100] sm:$0xf]
    %v1226 = vld [vmem:[#allocation3 + $0x104] sm:$0x1]
    %v1227 = vld [vmem:[#allocation3 + $0x108] sm:$0xe]
    %v1228 = vld [vmem:[#allocation3 + $0x10c] sm:$0xf]
    %v1229 = vld [vmem:[#allocation3 + $0x110] sm:$0x1]
    %v1230 = vld [vmem:[#allocation3 + $0x114] sm:$0xe]
    %v1231 = vld [vmem:[#allocation3 + $0x118] sm:$0xf]
    %v1232 = vld [vmem:[#allocation3 + $0x11c] sm:$0x1]
    %v1233 = vld [vmem:[#allocation3 + $0x120] sm:$0xe]
    %v1234 = vld [vmem:[#allocation3 + $0x124] sm:$0xf]
    %v1235 = vld [vmem:[#allocation3 + $0x128] sm:$0x1]
    %v1236 = vld [vmem:[#allocation3 + $0x12c] sm:$0xe]
    %v1237 = vld [vmem:[#allocation3 + $0x130] sm:$0xf]
    %v1238 = vld [vmem:[#allocation3 + $0x134] sm:$0x1]
    %v1239 = vld [vmem:[#allocation3 + $0x138] sm:$0xe]
    %v1240 = vld [vmem:[#allocation3 + $0x13c] sm:$0xf]
    %v1241 = vld [vmem:[#allocation3 + $0x140] sm:$0x1]
    %v1242 = vld [vmem:[#allocation3 + $0x144] sm:$0xe]
    %v1243 = vld [vmem:[#allocation3 + $0x148] sm:$0xf]
    %v1244 = vld [vmem:[#allocation3 + $0x14c] sm:$0x1]
    %v1245 = vld [vmem:[#allocation3 + $0x150] sm:$0xe]
    %v1246 = vld [vmem:[#allocation3 + $0x154] sm:$0xf]
    %v1247 = vld [vmem:[#allocation3 + $0x158] sm:$0x1]
    %v1248 = vld [vmem:[#allocation3 + $0x15c] sm:$0xe]
    %v1249 = vld [vmem:[#allocation3 + $0x160] sm:$0xf]
    %v1250 = vld [vmem:[#allocation3 + $0x164] sm:$0x1]
    %v1251 = vld [vmem:[#allocation3 + $0x168] sm:$0xe]
    %v1252 = vld [vmem:[#allocation3 + $0x16c] sm:$0xf]
    %v1253 = vld [vmem:[#allocation3 + $0x170] sm:$0x1]
    %v1254 = vld [vmem:[#allocation3 + $0x174] sm:$0xe]
    %v1255 = vld [vmem:[#allocation3 + $0x178] sm:$0xf]
    %v1256 = vld [vmem:[#allocation3 + $0x17c] sm:$0x1]
    %v1257 = vld [vmem:[#allocation3 + $0x180] sm:$0xe]
    %v1258 = vld [vmem:[#allocation3 + $0x184] sm:$0xf]
    %v1259 = vld [vmem:[#allocation3 + $0x188] sm:$0x1]
    %v1260 = vld [vmem:[#allocation3 + $0x18c] sm:$0xe]
    %v1261 = vld [vmem:[#allocation3 + $0x190] sm:$0xf]
    %v1262 = vld [vmem:[#allocation3 + $0x194] sm:$0x1]
    %vm1359 = vcmask 1042432
    %vm1360 = vcmask 1046532
    %vm1361 = vmor %vm1359, %vm1360
    %v1362 = vrot.slane %v1167, 5
    %v1363 = vrot.slane %v1362, 4
    %v1364 = vrot.slane %v1168, 5
    %v1365 = vsel %vm1361, %v1363, %v1364
    %v1366 = vrot.slane %v1364, 4
    %v1367 = vrot.slane %v1169, 5
    %v1368 = vsel %vm1361, %v1366, %v1367
    %v1369 = vrot.slane %v1170, 5
    %v1370 = vrot.slane %v1369, 4
    %v1371 = vrot.slane %v1171, 5
    %v1372 = vsel %vm1361, %v1370, %v1371
    %v1373 = vrot.slane %v1371, 4
    %v1374 = vrot.slane %v1172, 5
    %v1375 = vsel %vm1361, %v1373, %v1374
    %v1376 = vrot.slane %v1173, 5
    %v1377 = vrot.slane %v1376, 4
    %v1378 = vrot.slane %v1174, 5
    %v1379 = vsel %vm1361, %v1377, %v1378
    %v1380 = vrot.slane %v1378, 4
    %v1381 = vrot.slane %v1175, 5
    %v1382 = vsel %vm1361, %v1380, %v1381
    %v1383 = vrot.slane %v1176, 5
    %v1384 = vrot.slane %v1383, 4
    %v1385 = vrot.slane %v1177, 5
    %v1386 = vsel %vm1361, %v1384, %v1385
    %v1387 = vrot.slane %v1385, 4
    %v1388 = vrot.slane %v1178, 5
    %v1389 = vsel %vm1361, %v1387, %v1388
    %v1390 = vrot.slane %v1179, 5
    %v1391 = vrot.slane %v1390, 4
    %v1392 = vrot.slane %v1180, 5
    %v1393 = vsel %vm1361, %v1391, %v1392
    %v1394 = vrot.slane %v1392, 4
    %v1395 = vrot.slane %v1181, 5
    %v1396 = vsel %vm1361, %v1394, %v1395
    %v1397 = vrot.slane %v1182, 5
    %v1398 = vrot.slane %v1397, 4
    %v1399 = vrot.slane %v1183, 5
    %v1400 = vsel %vm1361, %v1398, %v1399
    %v1401 = vrot.slane %v1399, 4
    %v1402 = vrot.slane %v1184, 5
    %v1403 = vsel %vm1361, %v1401, %v1402
    %v1404 = vrot.slane %v1185, 5
    %v1405 = vrot.slane %v1404, 4
    %v1406 = vrot.slane %v1186, 5
    %v1407 = vsel %vm1361, %v1405, %v1406
    %v1408 = vrot.slane %v1406, 4
    %v1409 = vrot.slane %v1187, 5
    %v1410 = vsel %vm1361, %v1408, %v1409
    %v1411 = vrot.slane %v1188, 5
    %v1412 = vrot.slane %v1411, 4
    %v1413 = vrot.slane %v1189, 5
    %v1414 = vsel %vm1361, %v1412, %v1413
    %v1415 = vrot.slane %v1413, 4
    %v1416 = vrot.slane %v1190, 5
    %v1417 = vsel %vm1361, %v1415, %v1416
    %v1418 = vrot.slane %v1191, 5
    %v1419 = vrot.slane %v1418, 4
    %v1420 = vrot.slane %v1192, 5
    %v1421 = vsel %vm1361, %v1419, %v1420
    %v1422 = vrot.slane %v1420, 4
    %v1423 = vrot.slane %v1193, 5
    %v1424 = vsel %vm1361, %v1422, %v1423
    %v1425 = vrot.slane %v1194, 5
    %v1426 = vrot.slane %v1425, 4
    %v1427 = vrot.slane %v1195, 5
    %v1428 = vsel %vm1361, %v1426, %v1427
    %v1429 = vrot.slane %v1427, 4
    %v1430 = vrot.slane %v1196, 5
    %v1431 = vsel %vm1361, %v1429, %v1430
    %v1432 = vrot.slane %v1197, 5
    %v1433 = vrot.slane %v1432, 4
    %v1434 = vrot.slane %v1198, 5
    %v1435 = vsel %vm1361, %v1433, %v1434
    %v1436 = vrot.slane %v1434, 4
    %v1437 = vrot.slane %v1199, 5
    %v1438 = vsel %vm1361, %v1436, %v1437
    %v1439 = vrot.slane %v1200, 5
    %v1440 = vrot.slane %v1439, 4
    %v1441 = vrot.slane %v1201, 5
    %v1442 = vsel %vm1361, %v1440, %v1441
    %v1443 = vrot.slane %v1441, 4
    %v1444 = vrot.slane %v1202, 5
    %v1445 = vsel %vm1361, %v1443, %v1444
    %v1446 = vrot.slane %v1203, 5
    %v1447 = vrot.slane %v1446, 4
    %v1448 = vrot.slane %v1204, 5
    %v1449 = vsel %vm1361, %v1447, %v1448
    %v1450 = vrot.slane %v1448, 4
    %v1451 = vrot.slane %v1205, 5
    %v1452 = vsel %vm1361, %v1450, %v1451
    %v1453 = vrot.slane %v1206, 5
    %v1454 = vrot.slane %v1453, 4
    %v1455 = vrot.slane %v1207, 5
    %v1456 = vsel %vm1361, %v1454, %v1455
    %v1457 = vrot.slane %v1455, 4
    %v1458 = vrot.slane %v1208, 5
    %v1459 = vsel %vm1361, %v1457, %v1458
    %v1460 = vrot.slane %v1209, 5
    %v1461 = vrot.slane %v1460, 4
    %v1462 = vrot.slane %v1210, 5
    %v1463 = vsel %vm1361, %v1461, %v1462
    %v1464 = vrot.slane %v1462, 4
    %v1465 = vrot.slane %v1211, 5
    %v1466 = vsel %vm1361, %v1464, %v1465
    %v1467 = vrot.slane %v1212, 5
    %v1468 = vrot.slane %v1467, 4
    %v1469 = vrot.slane %v1213, 5
    %v1470 = vsel %vm1361, %v1468, %v1469
    %v1471 = vrot.slane %v1469, 4
    %v1472 = vrot.slane %v1214, 5
    %v1473 = vsel %vm1361, %v1471, %v1472
    %v1474 = vrot.slane %v1215, 5
    %v1475 = vrot.slane %v1474, 4
    %v1476 = vrot.slane %v1216, 5
    %v1477 = vsel %vm1361, %v1475, %v1476
    %v1478 = vrot.slane %v1476, 4
    %v1479 = vrot.slane %v1217, 5
    %v1480 = vsel %vm1361, %v1478, %v1479
    %v1481 = vrot.slane %v1218, 5
    %v1482 = vrot.slane %v1481, 4
    %v1483 = vrot.slane %v1219, 5
    %v1484 = vsel %vm1361, %v1482, %v1483
    %v1485 = vrot.slane %v1483, 4
    %v1486 = vrot.slane %v1220, 5
    %v1487 = vsel %vm1361, %v1485, %v1486
    %v1488 = vrot.slane %v1221, 5
    %v1489 = vrot.slane %v1488, 4
    %v1490 = vrot.slane %v1222, 5
    %v1491 = vsel %vm1361, %v1489, %v1490
    %v1492 = vrot.slane %v1490, 4
    %v1493 = vrot.slane %v1223, 5
    %v1494 = vsel %vm1361, %v1492, %v1493
    %v1495 = vrot.slane %v1224, 5
    %v1496 = vrot.slane %v1495, 4
    %v1497 = vrot.slane %v1225, 5
    %v1498 = vsel %vm1361, %v1496, %v1497
    %v1499 = vrot.slane %v1497, 4
    %v1500 = vrot.slane %v1226, 5
    %v1501 = vsel %vm1361, %v1499, %v1500
    %v1502 = vrot.slane %v1227, 5
    %v1503 = vrot.slane %v1502, 4
    %v1504 = vrot.slane %v1228, 5
    %v1505 = vsel %vm1361, %v1503, %v1504
    %v1506 = vrot.slane %v1504, 4
    %v1507 = vrot.slane %v1229, 5
    %v1508 = vsel %vm1361, %v1506, %v1507
    %v1509 = vrot.slane %v1230, 5
    %v1510 = vrot.slane %v1509, 4
    %v1511 = vrot.slane %v1231, 5
    %v1512 = vsel %vm1361, %v1510, %v1511
    %v1513 = vrot.slane %v1511, 4
    %v1514 = vrot.slane %v1232, 5
    %v1515 = vsel %vm1361, %v1513, %v1514
    %v1516 = vrot.slane %v1233, 5
    %v1517 = vrot.slane %v1516, 4
    %v1518 = vrot.slane %v1234, 5
    %v1519 = vsel %vm1361, %v1517, %v1518
    %v1520 = vrot.slane %v1518, 4
    %v1521 = vrot.slane %v1235, 5
    %v1522 = vsel %vm1361, %v1520, %v1521
    %v1523 = vrot.slane %v1236, 5
    %v1524 = vrot.slane %v1523, 4
    %v1525 = vrot.slane %v1237, 5
    %v1526 = vsel %vm1361, %v1524, %v1525
    %v1527 = vrot.slane %v1525, 4
    %v1528 = vrot.slane %v1238, 5
    %v1529 = vsel %vm1361, %v1527, %v1528
    %v1530 = vrot.slane %v1239, 5
    %v1531 = vrot.slane %v1530, 4
    %v1532 = vrot.slane %v1240, 5
    %v1533 = vsel %vm1361, %v1531, %v1532
    %v1534 = vrot.slane %v1532, 4
    %v1535 = vrot.slane %v1241, 5
    %v1536 = vsel %vm1361, %v1534, %v1535
    %v1537 = vrot.slane %v1242, 5
    %v1538 = vrot.slane %v1537, 4
    %v1539 = vrot.slane %v1243, 5
    %v1540 = vsel %vm1361, %v1538, %v1539
    %v1541 = vrot.slane %v1539, 4
    %v1542 = vrot.slane %v1244, 5
    %v1543 = vsel %vm1361, %v1541, %v1542
    %v1544 = vrot.slane %v1245, 5
    %v1545 = vrot.slane %v1544, 4
    %v1546 = vrot.slane %v1246, 5
    %v1547 = vsel %vm1361, %v1545, %v1546
    %v1548 = vrot.slane %v1546, 4
    %v1549 = vrot.slane %v1247, 5
    %v1550 = vsel %vm1361, %v1548, %v1549
    %v1551 = vrot.slane %v1248, 5
    %v1552 = vrot.slane %v1551, 4
    %v1553 = vrot.slane %v1249, 5
    %v1554 = vsel %vm1361, %v1552, %v1553
    %v1555 = vrot.slane %v1553, 4
    %v1556 = vrot.slane %v1250, 5
    %v1557 = vsel %vm1361, %v1555, %v1556
    %v1558 = vrot.slane %v1251, 5
    %v1559 = vrot.slane %v1558, 4
    %v1560 = vrot.slane %v1252, 5
    %v1561 = vsel %vm1361, %v1559, %v1560
    %v1562 = vrot.slane %v1560, 4
    %v1563 = vrot.slane %v1253, 5
    %v1564 = vsel %vm1361, %v1562, %v1563
    %v1565 = vrot.slane %v1254, 5
    %v1566 = vrot.slane %v1565, 4
    %v1567 = vrot.slane %v1255, 5
    %v1568 = vsel %vm1361, %v1566, %v1567
    %v1569 = vrot.slane %v1567, 4
    %v1570 = vrot.slane %v1256, 5
    %v1571 = vsel %vm1361, %v1569, %v1570
    %v1572 = vrot.slane %v1257, 5
    %v1573 = vrot.slane %v1572, 4
    %v1574 = vrot.slane %v1258, 5
    %v1575 = vsel %vm1361, %v1573, %v1574
    %v1576 = vrot.slane %v1574, 4
    %v1577 = vrot.slane %v1259, 5
    %v1578 = vsel %vm1361, %v1576, %v1577
    %v1579 = vrot.slane %v1260, 5
    %v1580 = vrot.slane %v1579, 4
    %v1581 = vrot.slane %v1261, 5
    %v1582 = vsel %vm1361, %v1580, %v1581
    %v1583 = vrot.slane %v1581, 4
    %v1584 = vrot.slane %v1262, 5
    %v1585 = vsel %vm1361, %v1583, %v1584
    %1650 = vst [vmem:[#allocation2 + $0x8] sm:$0xf] %v1365
    %1651 = vst [vmem:[#allocation2 + $0x2c] sm:$0xf] %v1368
    %1652 = vst [vmem:[#allocation2 + $0x50] sm:$0xf] %v1372
    %1653 = vst [vmem:[#allocation2 + $0x74] sm:$0xf] %v1375
    %1654 = vst [vmem:[#allocation2 + $0x98] sm:$0xf] %v1379
    %1655 = vst [vmem:[#allocation2 + $0xbc] sm:$0xf] %v1382
    %1656 = vst [vmem:[#allocation2 + $0xe0] sm:$0xf] %v1386
    %1657 = vst [vmem:[#allocation2 + $0x104] sm:$0xf] %v1389
    %1658 = vst [vmem:[#allocation2 + $0x128] sm:$0xf] %v1393
    %1659 = vst [vmem:[#allocation2 + $0x14c] sm:$0xf] %v1396
    %1660 = vst [vmem:[#allocation2 + $0x170] sm:$0xf] %v1400
    %1661 = vst [vmem:[#allocation2 + $0x194] sm:$0xf] %v1403
    %1662 = vst [vmem:[#allocation2 + $0x1b8] sm:$0xf] %v1407
    %1663 = vst [vmem:[#allocation2 + $0x1dc] sm:$0xf] %v1410
    %1664 = vst [vmem:[#allocation2 + $0x200] sm:$0xf] %v1414
    %1665 = vst [vmem:[#allocation2 + $0x224] sm:$0xf] %v1417
    %1666 = vst [vmem:[#allocation2 + $0x248] sm:$0xf] %v1421
    %1667 = vst [vmem:[#allocation2 + $0x26c] sm:$0xf] %v1424
    %1668 = vst [vmem:[#allocation2 + $0x290] sm:$0xf] %v1428
    %1669 = vst [vmem:[#allocation2 + $0x2b4] sm:$0xf] %v1431
    %1670 = vst [vmem:[#allocation2 + $0x2d8] sm:$0xf] %v1435
    %1671 = vst [vmem:[#allocation2 + $0x2fc] sm:$0xf] %v1438
    %1672 = vst [vmem:[#allocation2 + $0x320] sm:$0xf] %v1442
    %1673 = vst [vmem:[#allocation2 + $0x344] sm:$0xf] %v1445
    %1674 = vst [vmem:[#allocation2 + $0x368] sm:$0xf] %v1449
    %1675 = vst [vmem:[#allocation2 + $0x38c] sm:$0xf] %v1452
    %1676 = vst [vmem:[#allocation2 + $0x3b0] sm:$0xf] %v1456
    %1677 = vst [vmem:[#allocation2 + $0x3d4] sm:$0xf] %v1459
    %1678 = vst [vmem:[#allocation2 + $0x3f8] sm:$0xf] %v1463
    %1679 = vst [vmem:[#allocation2 + $0x41c] sm:$0xf] %v1466
    %1680 = vst [vmem:[#allocation2 + $0x440] sm:$0xf] %v1470
    %1681 = vst [vmem:[#allocation2 + $0x464] sm:$0xf] %v1473
    %1682 = vst [vmem:[#allocation2 + $0x488] sm:$0xf] %v1477
    %1683 = vst [vmem:[#allocation2 + $0x4ac] sm:$0xf] %v1480
    %1684 = vst [vmem:[#allocation2 + $0x4d0] sm:$0xf] %v1484
    %1685 = vst [vmem:[#allocation2 + $0x4f4] sm:$0xf] %v1487
    %1686 = vst [vmem:[#allocation2 + $0x518] sm:$0xf] %v1491
    %1687 = vst [vmem:[#allocation2 + $0x53c] sm:$0xf] %v1494
    %1688 = vst [vmem:[#allocation2 + $0x560] sm:$0xf] %v1498
    %1689 = vst [vmem:[#allocation2 + $0x584] sm:$0xf] %v1501
    %1690 = vst [vmem:[#allocation2 + $0x5a8] sm:$0xf] %v1505
    %1691 = vst [vmem:[#allocation2 + $0x5cc] sm:$0xf] %v1508
    %1692 = vst [vmem:[#allocation2 + $0x5f0] sm:$0xf] %v1512
    %1693 = vst [vmem:[#allocation2 + $0x614] sm:$0xf] %v1515
    %1694 = vst [vmem:[#allocation2 + $0x638] sm:$0xf] %v1519
    %1695 = vst [vmem:[#allocation2 + $0x65c] sm:$0xf] %v1522
    %1696 = vst [vmem:[#allocation2 + $0x680] sm:$0xf] %v1526
    %1697 = vst [vmem:[#allocation2 + $0x6a4] sm:$0xf] %v1529
    %1698 = vst [vmem:[#allocation2 + $0x6c8] sm:$0xf] %v1533
    %1699 = vst [vmem:[#allocation2 + $0x6ec] sm:$0xf] %v1536
    %1700 = vst [vmem:[#allocation2 + $0x710] sm:$0xf] %v1540
    %1701 = vst [vmem:[#allocation2 + $0x734] sm:$0xf] %v1543
    %1702 = vst [vmem:[#allocation2 + $0x758] sm:$0xf] %v1547
    %1703 = vst [vmem:[#allocation2 + $0x77c] sm:$0xf] %v1550
    %1704 = vst [vmem:[#allocation2 + $0x7a0] sm:$0xf] %v1554
    %1705 = vst [vmem:[#allocation2 + $0x7c4] sm:$0xf] %v1557
    %1706 = vst [vmem:[#allocation2 + $0x7e8] sm:$0xf] %v1561
    %1707 = vst [vmem:[#allocation2 + $0x80c] sm:$0xf] %v1564
    %1708 = vst [vmem:[#allocation2 + $0x830] sm:$0xf] %v1568
    %1709 = vst [vmem:[#allocation2 + $0x854] sm:$0xf] %v1571
    %1710 = vst [vmem:[#allocation2 + $0x878] sm:$0xf] %v1575
    %1711 = vst [vmem:[#allocation2 + $0x89c] sm:$0xf] %v1578
    %1712 = vst [vmem:[#allocation2 + $0x8c0] sm:$0xf] %v1582
    %1713 = vst [vmem:[#allocation2 + $0x8e4] sm:$0xf] %v1585
    %s1714 = scalar_lea.vmem [#allocation3], 12
    %v1715 = vld [vmem:[%s1714] sm:$0xf]
    %v1716 = vld [vmem:[%s1714 + $0x4] sm:$0xf]
    %v1717 = vld [vmem:[%s1714 + $0xc] sm:$0xf]
    %v1718 = vld [vmem:[%s1714 + $0x10] sm:$0xf]
    %v1719 = vld [vmem:[%s1714 + $0x18] sm:$0xf]
    %v1720 = vld [vmem:[%s1714 + $0x1c] sm:$0xf]
    %v1721 = vld [vmem:[%s1714 + $0x24] sm:$0xf]
    %v1722 = vld [vmem:[%s1714 + $0x28] sm:$0xf]
    %v1723 = vld [vmem:[%s1714 + $0x30] sm:$0xf]
    %v1724 = vld [vmem:[%s1714 + $0x34] sm:$0xf]
    %v1725 = vld [vmem:[%s1714 + $0x3c] sm:$0xf]
    %v1726 = vld [vmem:[%s1714 + $0x40] sm:$0xf]
    %v1727 = vld [vmem:[%s1714 + $0x48] sm:$0xf]
    %v1728 = vld [vmem:[%s1714 + $0x4c] sm:$0xf]
    %v1729 = vld [vmem:[%s1714 + $0x54] sm:$0xf]
    %v1730 = vld [vmem:[%s1714 + $0x58] sm:$0xf]
    %v1731 = vld [vmem:[%s1714 + $0x60] sm:$0xf]
    %v1732 = vld [vmem:[%s1714 + $0x64] sm:$0xf]
    %v1733 = vld [vmem:[%s1714 + $0x6c] sm:$0xf]
    %v1734 = vld [vmem:[%s1714 + $0x70] sm:$0xf]
    %v1735 = vld [vmem:[%s1714 + $0x78] sm:$0xf]
    %v1736 = vld [vmem:[%s1714 + $0x7c] sm:$0xf]
    %v1737 = vld [vmem:[%s1714 + $0x84] sm:$0xf]
    %v1738 = vld [vmem:[%s1714 + $0x88] sm:$0xf]
    %v1739 = vld [vmem:[%s1714 + $0x90] sm:$0xf]
    %v1740 = vld [vmem:[%s1714 + $0x94] sm:$0xf]
    %v1741 = vld [vmem:[%s1714 + $0x9c] sm:$0xf]
    %v1742 = vld [vmem:[%s1714 + $0xa0] sm:$0xf]
    %v1743 = vld [vmem:[%s1714 + $0xa8] sm:$0xf]
    %v1744 = vld [vmem:[%s1714 + $0xac] sm:$0xf]
    %v1745 = vld [vmem:[%s1714 + $0xb4] sm:$0xf]
    %v1746 = vld [vmem:[%s1714 + $0xb8] sm:$0xf]
    %v1747 = vld [vmem:[%s1714 + $0xd8] sm:$0xf]
    %v1748 = vld [vmem:[%s1714 + $0xdc] sm:$0xf]
    %v1749 = vld [vmem:[%s1714 + $0xe4] sm:$0xf]
    %v1750 = vld [vmem:[%s1714 + $0xe8] sm:$0xf]
    %v1751 = vld [vmem:[%s1714 + $0xf0] sm:$0xf]
    %v1752 = vld [vmem:[%s1714 + $0xf4] sm:$0xf]
    %v1753 = vld [vmem:[%s1714 + $0xfc] sm:$0xf]
    %v1754 = vld [vmem:[%s1714 + $0x100] sm:$0xf]
    %v1755 = vld [vmem:[%s1714 + $0x108] sm:$0xf]
    %v1756 = vld [vmem:[%s1714 + $0x10c] sm:$0xf]
    %v1757 = vld [vmem:[%s1714 + $0x114] sm:$0xf]
    %v1758 = vld [vmem:[%s1714 + $0x118] sm:$0xf]
    %v1759 = vld [vmem:[%s1714 + $0x120] sm:$0xf]
    %v1760 = vld [vmem:[%s1714 + $0x124] sm:$0xf]
    %v1761 = vld [vmem:[%s1714 + $0x12c] sm:$0xf]
    %v1762 = vld [vmem:[%s1714 + $0x130] sm:$0xf]
    %v1763 = vld [vmem:[%s1714 + $0x138] sm:$0xf]
    %v1764 = vld [vmem:[%s1714 + $0x13c] sm:$0xf]
    %v1765 = vld [vmem:[%s1714 + $0x144] sm:$0xf]
    %v1766 = vld [vmem:[%s1714 + $0x148] sm:$0xf]
    %v1767 = vld [vmem:[%s1714 + $0x150] sm:$0xf]
    %v1768 = vld [vmem:[%s1714 + $0x154] sm:$0xf]
    %v1769 = vld [vmem:[%s1714 + $0x15c] sm:$0xf]
    %v1770 = vld [vmem:[%s1714 + $0x160] sm:$0xf]
    %v1771 = vld [vmem:[%s1714 + $0x168] sm:$0xf]
    %v1772 = vld [vmem:[%s1714 + $0x16c] sm:$0xf]
    %v1773 = vld [vmem:[%s1714 + $0x174] sm:$0xf]
    %v1774 = vld [vmem:[%s1714 + $0x178] sm:$0xf]
    %v1775 = vld [vmem:[%s1714 + $0x180] sm:$0xf]
    %v1776 = vld [vmem:[%s1714 + $0x184] sm:$0xf]
    %v1777 = vld [vmem:[%s1714 + $0x18c] sm:$0xf]
    %v1778 = vld [vmem:[%s1714 + $0x190] sm:$0xf]
    %1779 = vst [vmem:[#allocation2 + $0xc] sm:$0xf] %v1715
    %1780 = vst [vmem:[#allocation2 + $0x30] sm:$0xf] %v1716
    %1781 = vst [vmem:[#allocation2 + $0x54] sm:$0xf] %v1717
    %1782 = vst [vmem:[#allocation2 + $0x78] sm:$0xf] %v1718
    %1783 = vst [vmem:[#allocation2 + $0x9c] sm:$0xf] %v1719
    %1784 = vst [vmem:[#allocation2 + $0xc0] sm:$0xf] %v1720
    %1785 = vst [vmem:[#allocation2 + $0xe4] sm:$0xf] %v1721
    %1786 = vst [vmem:[#allocation2 + $0x108] sm:$0xf] %v1722
    %1787 = vst [vmem:[#allocation2 + $0x12c] sm:$0xf] %v1723
    %1788 = vst [vmem:[#allocation2 + $0x150] sm:$0xf] %v1724
    %1789 = vst [vmem:[#allocation2 + $0x174] sm:$0xf] %v1725
    %1790 = vst [vmem:[#allocation2 + $0x198] sm:$0xf] %v1726
    %1791 = vst [vmem:[#allocation2 + $0x1bc] sm:$0xf] %v1727
    %1792 = vst [vmem:[#allocation2 + $0x1e0] sm:$0xf] %v1728
    %1793 = vst [vmem:[#allocation2 + $0x204] sm:$0xf] %v1729
    %1794 = vst [vmem:[#allocation2 + $0x228] sm:$0xf] %v1730
    %1795 = vst [vmem:[#allocation2 + $0x24c] sm:$0xf] %v1731
    %1796 = vst [vmem:[#allocation2 + $0x270] sm:$0xf] %v1732
    %1797 = vst [vmem:[#allocation2 + $0x294] sm:$0xf] %v1733
    %1798 = vst [vmem:[#allocation2 + $0x2b8] sm:$0xf] %v1734
    %1799 = vst [vmem:[#allocation2 + $0x2dc] sm:$0xf] %v1735
    %1800 = vst [vmem:[#allocation2 + $0x300] sm:$0xf] %v1736
    %1801 = vst [vmem:[#allocation2 + $0x324] sm:$0xf] %v1737
    %1802 = vst [vmem:[#allocation2 + $0x348] sm:$0xf] %v1738
    %1803 = vst [vmem:[#allocation2 + $0x36c] sm:$0xf] %v1739
    %1804 = vst [vmem:[#allocation2 + $0x390] sm:$0xf] %v1740
    %1805 = vst [vmem:[#allocation2 + $0x3b4] sm:$0xf] %v1741
    %1806 = vst [vmem:[#allocation2 + $0x3d8] sm:$0xf] %v1742
    %1807 = vst [vmem:[#allocation2 + $0x3fc] sm:$0xf] %v1743
    %1808 = vst [vmem:[#allocation2 + $0x420] sm:$0xf] %v1744
    %1809 = vst [vmem:[#allocation2 + $0x444] sm:$0xf] %v1745
    %1810 = vst [vmem:[#allocation2 + $0x468] sm:$0xf] %v1746
    %1811 = vst [vmem:[#allocation2 + $0x48c] sm:$0xf] %v1747
    %1812 = vst [vmem:[#allocation2 + $0x4b0] sm:$0xf] %v1748
    %1813 = vst [vmem:[#allocation2 + $0x4d4] sm:$0xf] %v1749
    %1814 = vst [vmem:[#allocation2 + $0x4f8] sm:$0xf] %v1750
    %1815 = vst [vmem:[#allocation2 + $0x51c] sm:$0xf] %v1751
    %1816 = vst [vmem:[#allocation2 + $0x540] sm:$0xf] %v1752
    %1817 = vst [vmem:[#allocation2 + $0x564] sm:$0xf] %v1753
    %1818 = vst [vmem:[#allocation2 + $0x588] sm:$0xf] %v1754
    %1819 = vst [vmem:[#allocation2 + $0x5ac] sm:$0xf] %v1755
    %1820 = vst [vmem:[#allocation2 + $0x5d0] sm:$0xf] %v1756
    %1821 = vst [vmem:[#allocation2 + $0x5f4] sm:$0xf] %v1757
    %1822 = vst [vmem:[#allocation2 + $0x618] sm:$0xf] %v1758
    %1823 = vst [vmem:[#allocation2 + $0x63c] sm:$0xf] %v1759
    %1824 = vst [vmem:[#allocation2 + $0x660] sm:$0xf] %v1760
    %1825 = vst [vmem:[#allocation2 + $0x684] sm:$0xf] %v1761
    %1826 = vst [vmem:[#allocation2 + $0x6a8] sm:$0xf] %v1762
    %1827 = vst [vmem:[#allocation2 + $0x6cc] sm:$0xf] %v1763
    %1828 = vst [vmem:[#allocation2 + $0x6f0] sm:$0xf] %v1764
    %1829 = vst [vmem:[#allocation2 + $0x714] sm:$0xf] %v1765
    %1830 = vst [vmem:[#allocation2 + $0x738] sm:$0xf] %v1766
    %1831 = vst [vmem:[#allocation2 + $0x75c] sm:$0xf] %v1767
    %1832 = vst [vmem:[#allocation2 + $0x780] sm:$0xf] %v1768
    %1833 = vst [vmem:[#allocation2 + $0x7a4] sm:$0xf] %v1769
    %1834 = vst [vmem:[#allocation2 + $0x7c8] sm:$0xf] %v1770
    %1835 = vst [vmem:[#allocation2 + $0x7ec] sm:$0xf] %v1771
    %1836 = vst [vmem:[#allocation2 + $0x810] sm:$0xf] %v1772
    %1837 = vst [vmem:[#allocation2 + $0x834] sm:$0xf] %v1773
    %1838 = vst [vmem:[#allocation2 + $0x858] sm:$0xf] %v1774
    %1839 = vst [vmem:[#allocation2 + $0x87c] sm:$0xf] %v1775
    %1840 = vst [vmem:[#allocation2 + $0x8a0] sm:$0xf] %v1776
    %1841 = vst [vmem:[#allocation2 + $0x8c4] sm:$0xf] %v1777
    %1842 = vst [vmem:[#allocation2 + $0x8e8] sm:$0xf] %v1778
    %v1843 = vld [vmem:[%s1714] sm:$0xf]
    %v1844 = vld [vmem:[%s1714 + $0x4] sm:$0xf]
    %v1845 = vld [vmem:[%s1714 + $0x8] sm:$0x1]
    %v1846 = vld [vmem:[%s1714 + $0xc] sm:$0xf]
    %v1847 = vld [vmem:[%s1714 + $0x10] sm:$0xf]
    %v1848 = vld [vmem:[%s1714 + $0x14] sm:$0x1]
    %v1849 = vld [vmem:[%s1714 + $0x18] sm:$0xf]
    %v1850 = vld [vmem:[%s1714 + $0x1c] sm:$0xf]
    %v1851 = vld [vmem:[%s1714 + $0x20] sm:$0x1]
    %v1852 = vld [vmem:[%s1714 + $0x24] sm:$0xf]
    %v1853 = vld [vmem:[%s1714 + $0x28] sm:$0xf]
    %v1854 = vld [vmem:[%s1714 + $0x2c] sm:$0x1]
    %v1855 = vld [vmem:[%s1714 + $0x30] sm:$0xf]
    %v1856 = vld [vmem:[%s1714 + $0x34] sm:$0xf]
    %v1857 = vld [vmem:[%s1714 + $0x38] sm:$0x1]
    %v1858 = vld [vmem:[%s1714 + $0x3c] sm:$0xf]
    %v1859 = vld [vmem:[%s1714 + $0x40] sm:$0xf]
    %v1860 = vld [vmem:[%s1714 + $0x44] sm:$0x1]
    %v1861 = vld [vmem:[%s1714 + $0x48] sm:$0xf]
    %v1862 = vld [vmem:[%s1714 + $0x4c] sm:$0xf]
    %v1863 = vld [vmem:[%s1714 + $0x50] sm:$0x1]
    %v1864 = vld [vmem:[%s1714 + $0x54] sm:$0xf]
    %v1865 = vld [vmem:[%s1714 + $0x58] sm:$0xf]
    %v1866 = vld [vmem:[%s1714 + $0x5c] sm:$0x1]
    %v1867 = vld [vmem:[%s1714 + $0x60] sm:$0xf]
    %v1868 = vld [vmem:[%s1714 + $0x64] sm:$0xf]
    %v1869 = vld [vmem:[%s1714 + $0x68] sm:$0x1]
    %v1870 = vld [vmem:[%s1714 + $0x6c] sm:$0xf]
    %v1871 = vld [vmem:[%s1714 + $0x70] sm:$0xf]
    %v1872 = vld [vmem:[%s1714 + $0x74] sm:$0x1]
    %v1873 = vld [vmem:[%s1714 + $0x78] sm:$0xf]
    %v1874 = vld [vmem:[%s1714 + $0x7c] sm:$0xf]
    %v1875 = vld [vmem:[%s1714 + $0x80] sm:$0x1]
    %v1876 = vld [vmem:[%s1714 + $0x84] sm:$0xf]
    %v1877 = vld [vmem:[%s1714 + $0x88] sm:$0xf]
    %v1878 = vld [vmem:[%s1714 + $0x8c] sm:$0x1]
    %v1879 = vld [vmem:[%s1714 + $0x90] sm:$0xf]
    %v1880 = vld [vmem:[%s1714 + $0x94] sm:$0xf]
    %v1881 = vld [vmem:[%s1714 + $0x98] sm:$0x1]
    %v1882 = vld [vmem:[%s1714 + $0x9c] sm:$0xf]
    %v1883 = vld [vmem:[%s1714 + $0xa0] sm:$0xf]
    %v1884 = vld [vmem:[%s1714 + $0xa4] sm:$0x1]
    %v1885 = vld [vmem:[%s1714 + $0xa8] sm:$0xf]
    %v1886 = vld [vmem:[%s1714 + $0xac] sm:$0xf]
    %v1887 = vld [vmem:[%s1714 + $0xb0] sm:$0x1]
    %v1888 = vld [vmem:[%s1714 + $0xb4] sm:$0xf]
    %v1889 = vld [vmem:[%s1714 + $0xb8] sm:$0xf]
    %v1890 = vld [vmem:[%s1714 + $0xbc] sm:$0x1]
    %v1891 = vld [vmem:[%s1714 + $0xd8] sm:$0xf]
    %v1892 = vld [vmem:[%s1714 + $0xdc] sm:$0xf]
    %v1893 = vld [vmem:[%s1714 + $0xe0] sm:$0x1]
    %v1894 = vld [vmem:[%s1714 + $0xe4] sm:$0xf]
    %v1895 = vld [vmem:[%s1714 + $0xe8] sm:$0xf]
    %v1896 = vld [vmem:[%s1714 + $0xec] sm:$0x1]
    %v1897 = vld [vmem:[%s1714 + $0xf0] sm:$0xf]
    %v1898 = vld [vmem:[%s1714 + $0xf4] sm:$0xf]
    %v1899 = vld [vmem:[%s1714 + $0xf8] sm:$0x1]
    %v1900 = vld [vmem:[%s1714 + $0xfc] sm:$0xf]
    %v1901 = vld [vmem:[%s1714 + $0x100] sm:$0xf]
    %v1902 = vld [vmem:[%s1714 + $0x104] sm:$0x1]
    %v1903 = vld [vmem:[%s1714 + $0x108] sm:$0xf]
    %v1904 = vld [vmem:[%s1714 + $0x10c] sm:$0xf]
    %v1905 = vld [vmem:[%s1714 + $0x110] sm:$0x1]
    %v1906 = vld [vmem:[%s1714 + $0x114] sm:$0xf]
    %v1907 = vld [vmem:[%s1714 + $0x118] sm:$0xf]
    %v1908 = vld [vmem:[%s1714 + $0x11c] sm:$0x1]
    %v1909 = vld [vmem:[%s1714 + $0x120] sm:$0xf]
    %v1910 = vld [vmem:[%s1714 + $0x124] sm:$0xf]
    %v1911 = vld [vmem:[%s1714 + $0x128] sm:$0x1]
    %v1912 = vld [vmem:[%s1714 + $0x12c] sm:$0xf]
    %v1913 = vld [vmem:[%s1714 + $0x130] sm:$0xf]
    %v1914 = vld [vmem:[%s1714 + $0x134] sm:$0x1]
    %v1915 = vld [vmem:[%s1714 + $0x138] sm:$0xf]
    %v1916 = vld [vmem:[%s1714 + $0x13c] sm:$0xf]
    %v1917 = vld [vmem:[%s1714 + $0x140] sm:$0x1]
    %v1918 = vld [vmem:[%s1714 + $0x144] sm:$0xf]
    %v1919 = vld [vmem:[%s1714 + $0x148] sm:$0xf]
    %v1920 = vld [vmem:[%s1714 + $0x14c] sm:$0x1]
    %v1921 = vld [vmem:[%s1714 + $0x150] sm:$0xf]
    %v1922 = vld [vmem:[%s1714 + $0x154] sm:$0xf]
    %v1923 = vld [vmem:[%s1714 + $0x158] sm:$0x1]
    %v1924 = vld [vmem:[%s1714 + $0x15c] sm:$0xf]
    %v1925 = vld [vmem:[%s1714 + $0x160] sm:$0xf]
    %v1926 = vld [vmem:[%s1714 + $0x164] sm:$0x1]
    %v1927 = vld [vmem:[%s1714 + $0x168] sm:$0xf]
    %v1928 = vld [vmem:[%s1714 + $0x16c] sm:$0xf]
    %v1929 = vld [vmem:[%s1714 + $0x170] sm:$0x1]
    %v1930 = vld [vmem:[%s1714 + $0x174] sm:$0xf]
    %v1931 = vld [vmem:[%s1714 + $0x178] sm:$0xf]
    %v1932 = vld [vmem:[%s1714 + $0x17c] sm:$0x1]
    %v1933 = vld [vmem:[%s1714 + $0x180] sm:$0xf]
    %v1934 = vld [vmem:[%s1714 + $0x184] sm:$0xf]
    %v1935 = vld [vmem:[%s1714 + $0x188] sm:$0x1]
    %v1936 = vld [vmem:[%s1714 + $0x18c] sm:$0xf]
    %v1937 = vld [vmem:[%s1714 + $0x190] sm:$0xf]
    %v1938 = vld [vmem:[%s1714 + $0x194] sm:$0x1]
    %v1940 = vshrl.u32 %v1843, 16
    %v1942 = vrot.slane %v1940, 4
    %v1943 = vshll.u32 %v1843, 16
    %v1945 = vrot.slane %v1943, 5
    %v1946 = vor.u32 %v1942, %v1945
    %v1947 = vrot.slane %v1946, 4
    %v1949 = vshll.u32 %v1844, 16
    %v1951 = vrot.slane %v1949, 5
    %v1952 = vsel %vm270, %v1947, %v1951
    %v1953 = vshrl.u32 %v1844, 16
    %v1955 = vrot.slane %v1953, 4
    %v1956 = vor.u32 %v1955, %v1951
    %v1957 = vrot.slane %v1956, 4
    %v1959 = vshll.u32 %v1845, 16
    %v1961 = vrot.slane %v1959, 5
    %v1962 = vsel %vm270, %v1957, %v1961
    %v1964 = vshrl.u32 %v1846, 16
    %v1966 = vrot.slane %v1964, 4
    %v1967 = vshll.u32 %v1846, 16
    %v1969 = vrot.slane %v1967, 5
    %v1970 = vor.u32 %v1966, %v1969
    %v1971 = vrot.slane %v1970, 4
    %v1973 = vshll.u32 %v1847, 16
    %v1975 = vrot.slane %v1973, 5
    %v1976 = vsel %vm270, %v1971, %v1975
    %v1977 = vshrl.u32 %v1847, 16
    %v1979 = vrot.slane %v1977, 4
    %v1980 = vor.u32 %v1979, %v1975
    %v1981 = vrot.slane %v1980, 4
    %v1983 = vshll.u32 %v1848, 16
    %v1985 = vrot.slane %v1983, 5
    %v1986 = vsel %vm270, %v1981, %v1985
    %v1988 = vshrl.u32 %v1849, 16
    %v1990 = vrot.slane %v1988, 4
    %v1991 = vshll.u32 %v1849, 16
    %v1993 = vrot.slane %v1991, 5
    %v1994 = vor.u32 %v1990, %v1993
    %v1995 = vrot.slane %v1994, 4
    %v1997 = vshll.u32 %v1850, 16
    %v1999 = vrot.slane %v1997, 5
    %v2000 = vsel %vm270, %v1995, %v1999
    %v2001 = vshrl.u32 %v1850, 16
    %v2003 = vrot.slane %v2001, 4
    %v2004 = vor.u32 %v2003, %v1999
    %v2005 = vrot.slane %v2004, 4
    %v2007 = vshll.u32 %v1851, 16
    %v2009 = vrot.slane %v2007, 5
    %v2010 = vsel %vm270, %v2005, %v2009
    %v2012 = vshrl.u32 %v1852, 16
    %v2014 = vrot.slane %v2012, 4
    %v2015 = vshll.u32 %v1852, 16
    %v2017 = vrot.slane %v2015, 5
    %v2018 = vor.u32 %v2014, %v2017
    %v2019 = vrot.slane %v2018, 4
    %v2021 = vshll.u32 %v1853, 16
    %v2023 = vrot.slane %v2021, 5
    %v2024 = vsel %vm270, %v2019, %v2023
    %v2025 = vshrl.u32 %v1853, 16
    %v2027 = vrot.slane %v2025, 4
    %v2028 = vor.u32 %v2027, %v2023
    %v2029 = vrot.slane %v2028, 4
    %v2031 = vshll.u32 %v1854, 16
    %v2033 = vrot.slane %v2031, 5
    %v2034 = vsel %vm270, %v2029, %v2033
    %v2036 = vshrl.u32 %v1855, 16
    %v2038 = vrot.slane %v2036, 4
    %v2039 = vshll.u32 %v1855, 16
    %v2041 = vrot.slane %v2039, 5
    %v2042 = vor.u32 %v2038, %v2041
    %v2043 = vrot.slane %v2042, 4
    %v2045 = vshll.u32 %v1856, 16
    %v2047 = vrot.slane %v2045, 5
    %v2048 = vsel %vm270, %v2043, %v2047
    %v2049 = vshrl.u32 %v1856, 16
    %v2051 = vrot.slane %v2049, 4
    %v2052 = vor.u32 %v2051, %v2047
    %v2053 = vrot.slane %v2052, 4
    %v2055 = vshll.u32 %v1857, 16
    %v2057 = vrot.slane %v2055, 5
    %v2058 = vsel %vm270, %v2053, %v2057
    %v2060 = vshrl.u32 %v1858, 16
    %v2062 = vrot.slane %v2060, 4
    %v2063 = vshll.u32 %v1858, 16
    %v2065 = vrot.slane %v2063, 5
    %v2066 = vor.u32 %v2062, %v2065
    %v2067 = vrot.slane %v2066, 4
    %v2069 = vshll.u32 %v1859, 16
    %v2071 = vrot.slane %v2069, 5
    %v2072 = vsel %vm270, %v2067, %v2071
    %v2073 = vshrl.u32 %v1859, 16
    %v2075 = vrot.slane %v2073, 4
    %v2076 = vor.u32 %v2075, %v2071
    %v2077 = vrot.slane %v2076, 4
    %v2079 = vshll.u32 %v1860, 16
    %v2081 = vrot.slane %v2079, 5
    %v2082 = vsel %vm270, %v2077, %v2081
    %v2084 = vshrl.u32 %v1861, 16
    %v2086 = vrot.slane %v2084, 4
    %v2087 = vshll.u32 %v1861, 16
    %v2089 = vrot.slane %v2087, 5
    %v2090 = vor.u32 %v2086, %v2089
    %v2091 = vrot.slane %v2090, 4
    %v2093 = vshll.u32 %v1862, 16
    %v2095 = vrot.slane %v2093, 5
    %v2096 = vsel %vm270, %v2091, %v2095
    %v2097 = vshrl.u32 %v1862, 16
    %v2099 = vrot.slane %v2097, 4
    %v2100 = vor.u32 %v2099, %v2095
    %v2101 = vrot.slane %v2100, 4
    %v2103 = vshll.u32 %v1863, 16
    %v2105 = vrot.slane %v2103, 5
    %v2106 = vsel %vm270, %v2101, %v2105
    %v2108 = vshrl.u32 %v1864, 16
    %v2110 = vrot.slane %v2108, 4
    %v2111 = vshll.u32 %v1864, 16
    %v2113 = vrot.slane %v2111, 5
    %v2114 = vor.u32 %v2110, %v2113
    %v2115 = vrot.slane %v2114, 4
    %v2117 = vshll.u32 %v1865, 16
    %v2119 = vrot.slane %v2117, 5
    %v2120 = vsel %vm270, %v2115, %v2119
    %v2121 = vshrl.u32 %v1865, 16
    %v2123 = vrot.slane %v2121, 4
    %v2124 = vor.u32 %v2123, %v2119
    %v2125 = vrot.slane %v2124, 4
    %v2127 = vshll.u32 %v1866, 16
    %v2129 = vrot.slane %v2127, 5
    %v2130 = vsel %vm270, %v2125, %v2129
    %v2132 = vshrl.u32 %v1867, 16
    %v2134 = vrot.slane %v2132, 4
    %v2135 = vshll.u32 %v1867, 16
    %v2137 = vrot.slane %v2135, 5
    %v2138 = vor.u32 %v2134, %v2137
    %v2139 = vrot.slane %v2138, 4
    %v2141 = vshll.u32 %v1868, 16
    %v2143 = vrot.slane %v2141, 5
    %v2144 = vsel %vm270, %v2139, %v2143
    %v2145 = vshrl.u32 %v1868, 16
    %v2147 = vrot.slane %v2145, 4
    %v2148 = vor.u32 %v2147, %v2143
    %v2149 = vrot.slane %v2148, 4
    %v2151 = vshll.u32 %v1869, 16
    %v2153 = vrot.slane %v2151, 5
    %v2154 = vsel %vm270, %v2149, %v2153
    %v2156 = vshrl.u32 %v1870, 16
    %v2158 = vrot.slane %v2156, 4
    %v2159 = vshll.u32 %v1870, 16
    %v2161 = vrot.slane %v2159, 5
    %v2162 = vor.u32 %v2158, %v2161
    %v2163 = vrot.slane %v2162, 4
    %v2165 = vshll.u32 %v1871, 16
    %v2167 = vrot.slane %v2165, 5
    %v2168 = vsel %vm270, %v2163, %v2167
    %v2169 = vshrl.u32 %v1871, 16
    %v2171 = vrot.slane %v2169, 4
    %v2172 = vor.u32 %v2171, %v2167
    %v2173 = vrot.slane %v2172, 4
    %v2175 = vshll.u32 %v1872, 16
    %v2177 = vrot.slane %v2175, 5
    %v2178 = vsel %vm270, %v2173, %v2177
    %v2180 = vshrl.u32 %v1873, 16
    %v2182 = vrot.slane %v2180, 4
    %v2183 = vshll.u32 %v1873, 16
    %v2185 = vrot.slane %v2183, 5
    %v2186 = vor.u32 %v2182, %v2185
    %v2187 = vrot.slane %v2186, 4
    %v2189 = vshll.u32 %v1874, 16
    %v2191 = vrot.slane %v2189, 5
    %v2192 = vsel %vm270, %v2187, %v2191
    %v2193 = vshrl.u32 %v1874, 16
    %v2195 = vrot.slane %v2193, 4
    %v2196 = vor.u32 %v2195, %v2191
    %v2197 = vrot.slane %v2196, 4
    %v2199 = vshll.u32 %v1875, 16
    %v2201 = vrot.slane %v2199, 5
    %v2202 = vsel %vm270, %v2197, %v2201
    %v2204 = vshrl.u32 %v1876, 16
    %v2206 = vrot.slane %v2204, 4
    %v2207 = vshll.u32 %v1876, 16
    %v2209 = vrot.slane %v2207, 5
    %v2210 = vor.u32 %v2206, %v2209
    %v2211 = vrot.slane %v2210, 4
    %v2213 = vshll.u32 %v1877, 16
    %v2215 = vrot.slane %v2213, 5
    %v2216 = vsel %vm270, %v2211, %v2215
    %v2217 = vshrl.u32 %v1877, 16
    %v2219 = vrot.slane %v2217, 4
    %v2220 = vor.u32 %v2219, %v2215
    %v2221 = vrot.slane %v2220, 4
    %v2223 = vshll.u32 %v1878, 16
    %v2225 = vrot.slane %v2223, 5
    %v2226 = vsel %vm270, %v2221, %v2225
    %v2228 = vshrl.u32 %v1879, 16
    %v2230 = vrot.slane %v2228, 4
    %v2231 = vshll.u32 %v1879, 16
    %v2233 = vrot.slane %v2231, 5
    %v2234 = vor.u32 %v2230, %v2233
    %v2235 = vrot.slane %v2234, 4
    %v2237 = vshll.u32 %v1880, 16
    %v2239 = vrot.slane %v2237, 5
    %v2240 = vsel %vm270, %v2235, %v2239
    %v2241 = vshrl.u32 %v1880, 16
    %v2243 = vrot.slane %v2241, 4
    %v2244 = vor.u32 %v2243, %v2239
    %v2245 = vrot.slane %v2244, 4
    %v2247 = vshll.u32 %v1881, 16
    %v2249 = vrot.slane %v2247, 5
    %v2250 = vsel %vm270, %v2245, %v2249
    %v2252 = vshrl.u32 %v1882, 16
    %v2254 = vrot.slane %v2252, 4
    %v2255 = vshll.u32 %v1882, 16
    %v2257 = vrot.slane %v2255, 5
    %v2258 = vor.u32 %v2254, %v2257
    %v2259 = vrot.slane %v2258, 4
    %v2261 = vshll.u32 %v1883, 16
    %v2263 = vrot.slane %v2261, 5
    %v2264 = vsel %vm270, %v2259, %v2263
    %v2265 = vshrl.u32 %v1883, 16
    %v2267 = vrot.slane %v2265, 4
    %v2268 = vor.u32 %v2267, %v2263
    %v2269 = vrot.slane %v2268, 4
    %v2271 = vshll.u32 %v1884, 16
    %v2273 = vrot.slane %v2271, 5
    %v2274 = vsel %vm270, %v2269, %v2273
    %v2276 = vshrl.u32 %v1885, 16
    %v2278 = vrot.slane %v2276, 4
    %v2279 = vshll.u32 %v1885, 16
    %v2281 = vrot.slane %v2279, 5
    %v2282 = vor.u32 %v2278, %v2281
    %v2283 = vrot.slane %v2282, 4
    %v2285 = vshll.u32 %v1886, 16
    %v2287 = vrot.slane %v2285, 5
    %v2288 = vsel %vm270, %v2283, %v2287
    %v2289 = vshrl.u32 %v1886, 16
    %v2291 = vrot.slane %v2289, 4
    %v2292 = vor.u32 %v2291, %v2287
    %v2293 = vrot.slane %v2292, 4
    %v2295 = vshll.u32 %v1887, 16
    %v2297 = vrot.slane %v2295, 5
    %v2298 = vsel %vm270, %v2293, %v2297
    %v2300 = vshrl.u32 %v1888, 16
    %v2302 = vrot.slane %v2300, 4
    %v2303 = vshll.u32 %v1888, 16
    %v2305 = vrot.slane %v2303, 5
    %v2306 = vor.u32 %v2302, %v2305
    %v2307 = vrot.slane %v2306, 4
    %v2309 = vshll.u32 %v1889, 16
    %v2311 = vrot.slane %v2309, 5
    %v2312 = vsel %vm270, %v2307, %v2311
    %v2313 = vshrl.u32 %v1889, 16
    %v2315 = vrot.slane %v2313, 4
    %v2316 = vor.u32 %v2315, %v2311
    %v2317 = vrot.slane %v2316, 4
    %v2319 = vshll.u32 %v1890, 16
    %v2321 = vrot.slane %v2319, 5
    %v2322 = vsel %vm270, %v2317, %v2321
    %v2324 = vshrl.u32 %v1891, 16
    %v2326 = vrot.slane %v2324, 4
    %v2327 = vshll.u32 %v1891, 16
    %v2329 = vrot.slane %v2327, 5
    %v2330 = vor.u32 %v2326, %v2329
    %v2331 = vrot.slane %v2330, 4
    %v2333 = vshll.u32 %v1892, 16
    %v2335 = vrot.slane %v2333, 5
    %v2336 = vsel %vm270, %v2331, %v2335
    %v2337 = vshrl.u32 %v1892, 16
    %v2339 = vrot.slane %v2337, 4
    %v2340 = vor.u32 %v2339, %v2335
    %v2341 = vrot.slane %v2340, 4
    %v2343 = vshll.u32 %v1893, 16
    %v2345 = vrot.slane %v2343, 5
    %v2346 = vsel %vm270, %v2341, %v2345
    %v2348 = vshrl.u32 %v1894, 16
    %v2350 = vrot.slane %v2348, 4
    %v2351 = vshll.u32 %v1894, 16
    %v2353 = vrot.slane %v2351, 5
    %v2354 = vor.u32 %v2350, %v2353
    %v2355 = vrot.slane %v2354, 4
    %v2357 = vshll.u32 %v1895, 16
    %v2359 = vrot.slane %v2357, 5
    %v2360 = vsel %vm270, %v2355, %v2359
    %v2361 = vshrl.u32 %v1895, 16
    %v2363 = vrot.slane %v2361, 4
    %v2364 = vor.u32 %v2363, %v2359
    %v2365 = vrot.slane %v2364, 4
    %v2367 = vshll.u32 %v1896, 16
    %v2369 = vrot.slane %v2367, 5
    %v2370 = vsel %vm270, %v2365, %v2369
    %v2372 = vshrl.u32 %v1897, 16
    %v2374 = vrot.slane %v2372, 4
    %v2375 = vshll.u32 %v1897, 16
    %v2377 = vrot.slane %v2375, 5
    %v2378 = vor.u32 %v2374, %v2377
    %v2379 = vrot.slane %v2378, 4
    %v2381 = vshll.u32 %v1898, 16
    %v2383 = vrot.slane %v2381, 5
    %v2384 = vsel %vm270, %v2379, %v2383
    %v2385 = vshrl.u32 %v1898, 16
    %v2387 = vrot.slane %v2385, 4
    %v2388 = vor.u32 %v2387, %v2383
    %v2389 = vrot.slane %v2388, 4
    %v2391 = vshll.u32 %v1899, 16
    %v2393 = vrot.slane %v2391, 5
    %v2394 = vsel %vm270, %v2389, %v2393
    %v2396 = vshrl.u32 %v1900, 16
    %v2398 = vrot.slane %v2396, 4
    %v2399 = vshll.u32 %v1900, 16
    %v2401 = vrot.slane %v2399, 5
    %v2402 = vor.u32 %v2398, %v2401
    %v2403 = vrot.slane %v2402, 4
    %v2405 = vshll.u32 %v1901, 16
    %v2407 = vrot.slane %v2405, 5
    %v2408 = vsel %vm270, %v2403, %v2407
    %v2409 = vshrl.u32 %v1901, 16
    %v2411 = vrot.slane %v2409, 4
    %v2412 = vor.u32 %v2411, %v2407
    %v2413 = vrot.slane %v2412, 4
    %v2415 = vshll.u32 %v1902, 16
    %v2417 = vrot.slane %v2415, 5
    %v2418 = vsel %vm270, %v2413, %v2417
    %v2420 = vshrl.u32 %v1903, 16
    %v2422 = vrot.slane %v2420, 4
    %v2423 = vshll.u32 %v1903, 16
    %v2425 = vrot.slane %v2423, 5
    %v2426 = vor.u32 %v2422, %v2425
    %v2427 = vrot.slane %v2426, 4
    %v2429 = vshll.u32 %v1904, 16
    %v2431 = vrot.slane %v2429, 5
    %v2432 = vsel %vm270, %v2427, %v2431
    %v2433 = vshrl.u32 %v1904, 16
    %v2435 = vrot.slane %v2433, 4
    %v2436 = vor.u32 %v2435, %v2431
    %v2437 = vrot.slane %v2436, 4
    %v2439 = vshll.u32 %v1905, 16
    %v2441 = vrot.slane %v2439, 5
    %v2442 = vsel %vm270, %v2437, %v2441
    %v2444 = vshrl.u32 %v1906, 16
    %v2446 = vrot.slane %v2444, 4
    %v2447 = vshll.u32 %v1906, 16
    %v2449 = vrot.slane %v2447, 5
    %v2450 = vor.u32 %v2446, %v2449
    %v2451 = vrot.slane %v2450, 4
    %v2453 = vshll.u32 %v1907, 16
    %v2455 = vrot.slane %v2453, 5
    %v2456 = vsel %vm270, %v2451, %v2455
    %v2457 = vshrl.u32 %v1907, 16
    %v2459 = vrot.slane %v2457, 4
    %v2460 = vor.u32 %v2459, %v2455
    %v2461 = vrot.slane %v2460, 4
    %v2463 = vshll.u32 %v1908, 16
    %v2465 = vrot.slane %v2463, 5
    %v2466 = vsel %vm270, %v2461, %v2465
    %v2468 = vshrl.u32 %v1909, 16
    %v2470 = vrot.slane %v2468, 4
    %v2471 = vshll.u32 %v1909, 16
    %v2473 = vrot.slane %v2471, 5
    %v2474 = vor.u32 %v2470, %v2473
    %v2475 = vrot.slane %v2474, 4
    %v2477 = vshll.u32 %v1910, 16
    %v2479 = vrot.slane %v2477, 5
    %v2480 = vsel %vm270, %v2475, %v2479
    %v2481 = vshrl.u32 %v1910, 16
    %v2483 = vrot.slane %v2481, 4
    %v2484 = vor.u32 %v2483, %v2479
    %v2485 = vrot.slane %v2484, 4
    %v2487 = vshll.u32 %v1911, 16
    %v2489 = vrot.slane %v2487, 5
    %v2490 = vsel %vm270, %v2485, %v2489
    %v2492 = vshrl.u32 %v1912, 16
    %v2494 = vrot.slane %v2492, 4
    %v2495 = vshll.u32 %v1912, 16
    %v2497 = vrot.slane %v2495, 5
    %v2498 = vor.u32 %v2494, %v2497
    %v2499 = vrot.slane %v2498, 4
    %v2501 = vshll.u32 %v1913, 16
    %v2503 = vrot.slane %v2501, 5
    %v2504 = vsel %vm270, %v2499, %v2503
    %v2505 = vshrl.u32 %v1913, 16
    %v2507 = vrot.slane %v2505, 4
    %v2508 = vor.u32 %v2507, %v2503
    %v2509 = vrot.slane %v2508, 4
    %v2511 = vshll.u32 %v1914, 16
    %v2513 = vrot.slane %v2511, 5
    %v2514 = vsel %vm270, %v2509, %v2513
    %v2516 = vshrl.u32 %v1915, 16
    %v2518 = vrot.slane %v2516, 4
    %v2519 = vshll.u32 %v1915, 16
    %v2521 = vrot.slane %v2519, 5
    %v2522 = vor.u32 %v2518, %v2521
    %v2523 = vrot.slane %v2522, 4
    %v2525 = vshll.u32 %v1916, 16
    %v2527 = vrot.slane %v2525, 5
    %v2528 = vsel %vm270, %v2523, %v2527
    %v2529 = vshrl.u32 %v1916, 16
    %v2531 = vrot.slane %v2529, 4
    %v2532 = vor.u32 %v2531, %v2527
    %v2533 = vrot.slane %v2532, 4
    %v2535 = vshll.u32 %v1917, 16
    %v2537 = vrot.slane %v2535, 5
    %v2538 = vsel %vm270, %v2533, %v2537
    %v2540 = vshrl.u32 %v1918, 16
    %v2542 = vrot.slane %v2540, 4
    %v2543 = vshll.u32 %v1918, 16
    %v2545 = vrot.slane %v2543, 5
    %v2546 = vor.u32 %v2542, %v2545
    %v2547 = vrot.slane %v2546, 4
    %v2549 = vshll.u32 %v1919, 16
    %v2551 = vrot.slane %v2549, 5
    %v2552 = vsel %vm270, %v2547, %v2551
    %v2553 = vshrl.u32 %v1919, 16
    %v2555 = vrot.slane %v2553, 4
    %v2556 = vor.u32 %v2555, %v2551
    %v2557 = vrot.slane %v2556, 4
    %v2559 = vshll.u32 %v1920, 16
    %v2561 = vrot.slane %v2559, 5
    %v2562 = vsel %vm270, %v2557, %v2561
    %v2564 = vshrl.u32 %v1921, 16
    %v2566 = vrot.slane %v2564, 4
    %v2567 = vshll.u32 %v1921, 16
    %v2569 = vrot.slane %v2567, 5
    %v2570 = vor.u32 %v2566, %v2569
    %v2571 = vrot.slane %v2570, 4
    %v2573 = vshll.u32 %v1922, 16
    %v2575 = vrot.slane %v2573, 5
    %v2576 = vsel %vm270, %v2571, %v2575
    %v2577 = vshrl.u32 %v1922, 16
    %v2579 = vrot.slane %v2577, 4
    %v2580 = vor.u32 %v2579, %v2575
    %v2581 = vrot.slane %v2580, 4
    %v2583 = vshll.u32 %v1923, 16
    %v2585 = vrot.slane %v2583, 5
    %v2586 = vsel %vm270, %v2581, %v2585
    %v2588 = vshrl.u32 %v1924, 16
    %v2590 = vrot.slane %v2588, 4
    %v2591 = vshll.u32 %v1924, 16
    %v2593 = vrot.slane %v2591, 5
    %v2594 = vor.u32 %v2590, %v2593
    %v2595 = vrot.slane %v2594, 4
    %v2597 = vshll.u32 %v1925, 16
    %v2599 = vrot.slane %v2597, 5
    %v2600 = vsel %vm270, %v2595, %v2599
    %v2601 = vshrl.u32 %v1925, 16
    %v2603 = vrot.slane %v2601, 4
    %v2604 = vor.u32 %v2603, %v2599
    %v2605 = vrot.slane %v2604, 4
    %v2607 = vshll.u32 %v1926, 16
    %v2609 = vrot.slane %v2607, 5
    %v2610 = vsel %vm270, %v2605, %v2609
    %v2612 = vshrl.u32 %v1927, 16
    %v2614 = vrot.slane %v2612, 4
    %v2615 = vshll.u32 %v1927, 16
    %v2617 = vrot.slane %v2615, 5
    %v2618 = vor.u32 %v2614, %v2617
    %v2619 = vrot.slane %v2618, 4
    %v2621 = vshll.u32 %v1928, 16
    %v2623 = vrot.slane %v2621, 5
    %v2624 = vsel %vm270, %v2619, %v2623
    %v2625 = vshrl.u32 %v1928, 16
    %v2627 = vrot.slane %v2625, 4
    %v2628 = vor.u32 %v2627, %v2623
    %v2629 = vrot.slane %v2628, 4
    %v2631 = vshll.u32 %v1929, 16
    %v2633 = vrot.slane %v2631, 5
    %v2634 = vsel %vm270, %v2629, %v2633
    %v2636 = vshrl.u32 %v1930, 16
    %v2638 = vrot.slane %v2636, 4
    %v2639 = vshll.u32 %v1930, 16
    %v2641 = vrot.slane %v2639, 5
    %v2642 = vor.u32 %v2638, %v2641
    %v2643 = vrot.slane %v2642, 4
    %v2645 = vshll.u32 %v1931, 16
    %v2647 = vrot.slane %v2645, 5
    %v2648 = vsel %vm270, %v2643, %v2647
    %v2649 = vshrl.u32 %v1931, 16
    %v2651 = vrot.slane %v2649, 4
    %v2652 = vor.u32 %v2651, %v2647
    %v2653 = vrot.slane %v2652, 4
    %v2655 = vshll.u32 %v1932, 16
    %v2657 = vrot.slane %v2655, 5
    %v2658 = vsel %vm270, %v2653, %v2657
    %v2660 = vshrl.u32 %v1933, 16
    %v2662 = vrot.slane %v2660, 4
    %v2663 = vshll.u32 %v1933, 16
    %v2665 = vrot.slane %v2663, 5
    %v2666 = vor.u32 %v2662, %v2665
    %v2667 = vrot.slane %v2666, 4
    %v2669 = vshll.u32 %v1934, 16
    %v2671 = vrot.slane %v2669, 5
    %v2672 = vsel %vm270, %v2667, %v2671
    %v2673 = vshrl.u32 %v1934, 16
    %v2675 = vrot.slane %v2673, 4
    %v2676 = vor.u32 %v2675, %v2671
    %v2677 = vrot.slane %v2676, 4
    %v2679 = vshll.u32 %v1935, 16
    %v2681 = vrot.slane %v2679, 5
    %v2682 = vsel %vm270, %v2677, %v2681
    %v2684 = vshrl.u32 %v1936, 16
    %v2686 = vrot.slane %v2684, 4
    %v2687 = vshll.u32 %v1936, 16
    %v2689 = vrot.slane %v2687, 5
    %v2690 = vor.u32 %v2686, %v2689
    %v2691 = vrot.slane %v2690, 4
    %v2693 = vshll.u32 %v1937, 16
    %v2695 = vrot.slane %v2693, 5
    %v2696 = vsel %vm270, %v2691, %v2695
    %v2697 = vshrl.u32 %v1937, 16
    %v2699 = vrot.slane %v2697, 4
    %v2700 = vor.u32 %v2699, %v2695
    %v2701 = vrot.slane %v2700, 4
    %v2703 = vshll.u32 %v1938, 16
    %v2705 = vrot.slane %v2703, 5
    %v2706 = vsel %vm270, %v2701, %v2705
    %2771 = vst [vmem:[#allocation2 + $0x10] sm:$0xf] %v1952
    %2772 = vst [vmem:[#allocation2 + $0x34] sm:$0xf] %v1962
    %2773 = vst [vmem:[#allocation2 + $0x58] sm:$0xf] %v1976
    %2774 = vst [vmem:[#allocation2 + $0x7c] sm:$0xf] %v1986
    %2775 = vst [vmem:[#allocation2 + $0xa0] sm:$0xf] %v2000
    %2776 = vst [vmem:[#allocation2 + $0xc4] sm:$0xf] %v2010
    %2777 = vst [vmem:[#allocation2 + $0xe8] sm:$0xf] %v2024
    %2778 = vst [vmem:[#allocation2 + $0x10c] sm:$0xf] %v2034
    %2779 = vst [vmem:[#allocation2 + $0x130] sm:$0xf] %v2048
    %2780 = vst [vmem:[#allocation2 + $0x154] sm:$0xf] %v2058
    %2781 = vst [vmem:[#allocation2 + $0x178] sm:$0xf] %v2072
    %2782 = vst [vmem:[#allocation2 + $0x19c] sm:$0xf] %v2082
    %2783 = vst [vmem:[#allocation2 + $0x1c0] sm:$0xf] %v2096
    %2784 = vst [vmem:[#allocation2 + $0x1e4] sm:$0xf] %v2106
    %2785 = vst [vmem:[#allocation2 + $0x208] sm:$0xf] %v2120
    %2786 = vst [vmem:[#allocation2 + $0x22c] sm:$0xf] %v2130
    %2787 = vst [vmem:[#allocation2 + $0x250] sm:$0xf] %v2144
    %2788 = vst [vmem:[#allocation2 + $0x274] sm:$0xf] %v2154
    %2789 = vst [vmem:[#allocation2 + $0x298] sm:$0xf] %v2168
    %2790 = vst [vmem:[#allocation2 + $0x2bc] sm:$0xf] %v2178
    %2791 = vst [vmem:[#allocation2 + $0x2e0] sm:$0xf] %v2192
    %2792 = vst [vmem:[#allocation2 + $0x304] sm:$0xf] %v2202
    %2793 = vst [vmem:[#allocation2 + $0x328] sm:$0xf] %v2216
    %2794 = vst [vmem:[#allocation2 + $0x34c] sm:$0xf] %v2226
    %2795 = vst [vmem:[#allocation2 + $0x370] sm:$0xf] %v2240
    %2796 = vst [vmem:[#allocation2 + $0x394] sm:$0xf] %v2250
    %2797 = vst [vmem:[#allocation2 + $0x3b8] sm:$0xf] %v2264
    %2798 = vst [vmem:[#allocation2 + $0x3dc] sm:$0xf] %v2274
    %2799 = vst [vmem:[#allocation2 + $0x400] sm:$0xf] %v2288
    %2800 = vst [vmem:[#allocation2 + $0x424] sm:$0xf] %v2298
    %2801 = vst [vmem:[#allocation2 + $0x448] sm:$0xf] %v2312
    %2802 = vst [vmem:[#allocation2 + $0x46c] sm:$0xf] %v2322
    %2803 = vst [vmem:[#allocation2 + $0x490] sm:$0xf] %v2336
    %2804 = vst [vmem:[#allocation2 + $0x4b4] sm:$0xf] %v2346
    %2805 = vst [vmem:[#allocation2 + $0x4d8] sm:$0xf] %v2360
    %2806 = vst [vmem:[#allocation2 + $0x4fc] sm:$0xf] %v2370
    %2807 = vst [vmem:[#allocation2 + $0x520] sm:$0xf] %v2384
    %2808 = vst [vmem:[#allocation2 + $0x544] sm:$0xf] %v2394
    %2809 = vst [vmem:[#allocation2 + $0x568] sm:$0xf] %v2408
    %2810 = vst [vmem:[#allocation2 + $0x58c] sm:$0xf] %v2418
    %2811 = vst [vmem:[#allocation2 + $0x5b0] sm:$0xf] %v2432
    %2812 = vst [vmem:[#allocation2 + $0x5d4] sm:$0xf] %v2442
    %2813 = vst [vmem:[#allocation2 + $0x5f8] sm:$0xf] %v2456
    %2814 = vst [vmem:[#allocation2 + $0x61c] sm:$0xf] %v2466
    %2815 = vst [vmem:[#allocation2 + $0x640] sm:$0xf] %v2480
    %2816 = vst [vmem:[#allocation2 + $0x664] sm:$0xf] %v2490
    %2817 = vst [vmem:[#allocation2 + $0x688] sm:$0xf] %v2504
    %2818 = vst [vmem:[#allocation2 + $0x6ac] sm:$0xf] %v2514
    %2819 = vst [vmem:[#allocation2 + $0x6d0] sm:$0xf] %v2528
    %2820 = vst [vmem:[#allocation2 + $0x6f4] sm:$0xf] %v2538
    %2821 = vst [vmem:[#allocation2 + $0x718] sm:$0xf] %v2552
    %2822 = vst [vmem:[#allocation2 + $0x73c] sm:$0xf] %v2562
    %2823 = vst [vmem:[#allocation2 + $0x760] sm:$0xf] %v2576
    %2824 = vst [vmem:[#allocation2 + $0x784] sm:$0xf] %v2586
    %2825 = vst [vmem:[#allocation2 + $0x7a8] sm:$0xf] %v2600
    %2826 = vst [vmem:[#allocation2 + $0x7cc] sm:$0xf] %v2610
    %2827 = vst [vmem:[#allocation2 + $0x7f0] sm:$0xf] %v2624
    %2828 = vst [vmem:[#allocation2 + $0x814] sm:$0xf] %v2634
    %2829 = vst [vmem:[#allocation2 + $0x838] sm:$0xf] %v2648
    %2830 = vst [vmem:[#allocation2 + $0x85c] sm:$0xf] %v2658
    %2831 = vst [vmem:[#allocation2 + $0x880] sm:$0xf] %v2672
    %2832 = vst [vmem:[#allocation2 + $0x8a4] sm:$0xf] %v2682
    %2833 = vst [vmem:[#allocation2 + $0x8c8] sm:$0xf] %v2696
    %2834 = vst [vmem:[#allocation2 + $0x8ec] sm:$0xf] %v2706
    %v2835 = vld [vmem:[%s1714] sm:$0xe]
    %v2836 = vld [vmem:[%s1714 + $0x4] sm:$0xf]
    %v2837 = vld [vmem:[%s1714 + $0x8] sm:$0x1]
    %v2838 = vld [vmem:[%s1714 + $0xc] sm:$0xe]
    %v2839 = vld [vmem:[%s1714 + $0x10] sm:$0xf]
    %v2840 = vld [vmem:[%s1714 + $0x14] sm:$0x1]
    %v2841 = vld [vmem:[%s1714 + $0x18] sm:$0xe]
    %v2842 = vld [vmem:[%s1714 + $0x1c] sm:$0xf]
    %v2843 = vld [vmem:[%s1714 + $0x20] sm:$0x1]
    %v2844 = vld [vmem:[%s1714 + $0x24] sm:$0xe]
    %v2845 = vld [vmem:[%s1714 + $0x28] sm:$0xf]
    %v2846 = vld [vmem:[%s1714 + $0x2c] sm:$0x1]
    %v2847 = vld [vmem:[%s1714 + $0x30] sm:$0xe]
    %v2848 = vld [vmem:[%s1714 + $0x34] sm:$0xf]
    %v2849 = vld [vmem:[%s1714 + $0x38] sm:$0x1]
    %v2850 = vld [vmem:[%s1714 + $0x3c] sm:$0xe]
    %v2851 = vld [vmem:[%s1714 + $0x40] sm:$0xf]
    %v2852 = vld [vmem:[%s1714 + $0x44] sm:$0x1]
    %v2853 = vld [vmem:[%s1714 + $0x48] sm:$0xe]
    %v2854 = vld [vmem:[%s1714 + $0x4c] sm:$0xf]
    %v2855 = vld [vmem:[%s1714 + $0x50] sm:$0x1]
    %v2856 = vld [vmem:[%s1714 + $0x54] sm:$0xe]
    %v2857 = vld [vmem:[%s1714 + $0x58] sm:$0xf]
    %v2858 = vld [vmem:[%s1714 + $0x5c] sm:$0x1]
    %v2859 = vld [vmem:[%s1714 + $0x60] sm:$0xe]
    %v2860 = vld [vmem:[%s1714 + $0x64] sm:$0xf]
    %v2861 = vld [vmem:[%s1714 + $0x68] sm:$0x1]
    %v2862 = vld [vmem:[%s1714 + $0x6c] sm:$0xe]
    %v2863 = vld [vmem:[%s1714 + $0x70] sm:$0xf]
    %v2864 = vld [vmem:[%s1714 + $0x74] sm:$0x1]
    %v2865 = vld [vmem:[%s1714 + $0x78] sm:$0xe]
    %v2866 = vld [vmem:[%s1714 + $0x7c] sm:$0xf]
    %v2867 = vld [vmem:[%s1714 + $0x80] sm:$0x1]
    %v2868 = vld [vmem:[%s1714 + $0x84] sm:$0xe]
    %v2869 = vld [vmem:[%s1714 + $0x88] sm:$0xf]
    %v2870 = vld [vmem:[%s1714 + $0x8c] sm:$0x1]
    %v2871 = vld [vmem:[%s1714 + $0x90] sm:$0xe]
    %v2872 = vld [vmem:[%s1714 + $0x94] sm:$0xf]
    %v2873 = vld [vmem:[%s1714 + $0x98] sm:$0x1]
    %v2874 = vld [vmem:[%s1714 + $0x9c] sm:$0xe]
    %v2875 = vld [vmem:[%s1714 + $0xa0] sm:$0xf]
    %v2876 = vld [vmem:[%s1714 + $0xa4] sm:$0x1]
    %v2877 = vld [vmem:[%s1714 + $0xa8] sm:$0xe]
    %v2878 = vld [vmem:[%s1714 + $0xac] sm:$0xf]
    %v2879 = vld [vmem:[%s1714 + $0xb0] sm:$0x1]
    %v2880 = vld [vmem:[%s1714 + $0xb4] sm:$0xe]
    %v2881 = vld [vmem:[%s1714 + $0xb8] sm:$0xf]
    %v2882 = vld [vmem:[%s1714 + $0xbc] sm:$0x1]
    %v2883 = vld [vmem:[%s1714 + $0xd8] sm:$0xe]
    %v2884 = vld [vmem:[%s1714 + $0xdc] sm:$0xf]
    %v2885 = vld [vmem:[%s1714 + $0xe0] sm:$0x1]
    %v2886 = vld [vmem:[%s1714 + $0xe4] sm:$0xe]
    %v2887 = vld [vmem:[%s1714 + $0xe8] sm:$0xf]
    %v2888 = vld [vmem:[%s1714 + $0xec] sm:$0x1]
    %v2889 = vld [vmem:[%s1714 + $0xf0] sm:$0xe]
    %v2890 = vld [vmem:[%s1714 + $0xf4] sm:$0xf]
    %v2891 = vld [vmem:[%s1714 + $0xf8] sm:$0x1]
    %v2892 = vld [vmem:[%s1714 + $0xfc] sm:$0xe]
    %v2893 = vld [vmem:[%s1714 + $0x100] sm:$0xf]
    %v2894 = vld [vmem:[%s1714 + $0x104] sm:$0x1]
    %v2895 = vld [vmem:[%s1714 + $0x108] sm:$0xe]
    %v2896 = vld [vmem:[%s1714 + $0x10c] sm:$0xf]
    %v2897 = vld [vmem:[%s1714 + $0x110] sm:$0x1]
    %v2898 = vld [vmem:[%s1714 + $0x114] sm:$0xe]
    %v2899 = vld [vmem:[%s1714 + $0x118] sm:$0xf]
    %v2900 = vld [vmem:[%s1714 + $0x11c] sm:$0x1]
    %v2901 = vld [vmem:[%s1714 + $0x120] sm:$0xe]
    %v2902 = vld [vmem:[%s1714 + $0x124] sm:$0xf]
    %v2903 = vld [vmem:[%s1714 + $0x128] sm:$0x1]
    %v2904 = vld [vmem:[%s1714 + $0x12c] sm:$0xe]
    %v2905 = vld [vmem:[%s1714 + $0x130] sm:$0xf]
    %v2906 = vld [vmem:[%s1714 + $0x134] sm:$0x1]
    %v2907 = vld [vmem:[%s1714 + $0x138] sm:$0xe]
    %v2908 = vld [vmem:[%s1714 + $0x13c] sm:$0xf]
    %v2909 = vld [vmem:[%s1714 + $0x140] sm:$0x1]
    %v2910 = vld [vmem:[%s1714 + $0x144] sm:$0xe]
    %v2911 = vld [vmem:[%s1714 + $0x148] sm:$0xf]
    %v2912 = vld [vmem:[%s1714 + $0x14c] sm:$0x1]
    %v2913 = vld [vmem:[%s1714 + $0x150] sm:$0xe]
    %v2914 = vld [vmem:[%s1714 + $0x154] sm:$0xf]
    %v2915 = vld [vmem:[%s1714 + $0x158] sm:$0x1]
    %v2916 = vld [vmem:[%s1714 + $0x15c] sm:$0xe]
    %v2917 = vld [vmem:[%s1714 + $0x160] sm:$0xf]
    %v2918 = vld [vmem:[%s1714 + $0x164] sm:$0x1]
    %v2919 = vld [vmem:[%s1714 + $0x168] sm:$0xe]
    %v2920 = vld [vmem:[%s1714 + $0x16c] sm:$0xf]
    %v2921 = vld [vmem:[%s1714 + $0x170] sm:$0x1]
    %v2922 = vld [vmem:[%s1714 + $0x174] sm:$0xe]
    %v2923 = vld [vmem:[%s1714 + $0x178] sm:$0xf]
    %v2924 = vld [vmem:[%s1714 + $0x17c] sm:$0x1]
    %v2925 = vld [vmem:[%s1714 + $0x180] sm:$0xe]
    %v2926 = vld [vmem:[%s1714 + $0x184] sm:$0xf]
    %v2927 = vld [vmem:[%s1714 + $0x188] sm:$0x1]
    %v2928 = vld [vmem:[%s1714 + $0x18c] sm:$0xe]
    %v2929 = vld [vmem:[%s1714 + $0x190] sm:$0xf]
    %v2930 = vld [vmem:[%s1714 + $0x194] sm:$0x1]
    %v3027 = vrot.slane %v2835, 5
    %v3028 = vrot.slane %v3027, 4
    %v3029 = vrot.slane %v2836, 5
    %v3030 = vsel %vm1361, %v3028, %v3029
    %v3031 = vrot.slane %v3029, 4
    %v3032 = vrot.slane %v2837, 5
    %v3033 = vsel %vm1361, %v3031, %v3032
    %v3034 = vrot.slane %v2838, 5
    %v3035 = vrot.slane %v3034, 4
    %v3036 = vrot.slane %v2839, 5
    %v3037 = vsel %vm1361, %v3035, %v3036
    %v3038 = vrot.slane %v3036, 4
    %v3039 = vrot.slane %v2840, 5
    %v3040 = vsel %vm1361, %v3038, %v3039
    %v3041 = vrot.slane %v2841, 5
    %v3042 = vrot.slane %v3041, 4
    %v3043 = vrot.slane %v2842, 5
    %v3044 = vsel %vm1361, %v3042, %v3043
    %v3045 = vrot.slane %v3043, 4
    %v3046 = vrot.slane %v2843, 5
    %v3047 = vsel %vm1361, %v3045, %v3046
    %v3048 = vrot.slane %v2844, 5
    %v3049 = vrot.slane %v3048, 4
    %v3050 = vrot.slane %v2845, 5
    %v3051 = vsel %vm1361, %v3049, %v3050
    %v3052 = vrot.slane %v3050, 4
    %v3053 = vrot.slane %v2846, 5
    %v3054 = vsel %vm1361, %v3052, %v3053
    %v3055 = vrot.slane %v2847, 5
    %v3056 = vrot.slane %v3055, 4
    %v3057 = vrot.slane %v2848, 5
    %v3058 = vsel %vm1361, %v3056, %v3057
    %v3059 = vrot.slane %v3057, 4
    %v3060 = vrot.slane %v2849, 5
    %v3061 = vsel %vm1361, %v3059, %v3060
    %v3062 = vrot.slane %v2850, 5
    %v3063 = vrot.slane %v3062, 4
    %v3064 = vrot.slane %v2851, 5
    %v3065 = vsel %vm1361, %v3063, %v3064
    %v3066 = vrot.slane %v3064, 4
    %v3067 = vrot.slane %v2852, 5
    %v3068 = vsel %vm1361, %v3066, %v3067
    %v3069 = vrot.slane %v2853, 5
    %v3070 = vrot.slane %v3069, 4
    %v3071 = vrot.slane %v2854, 5
    %v3072 = vsel %vm1361, %v3070, %v3071
    %v3073 = vrot.slane %v3071, 4
    %v3074 = vrot.slane %v2855, 5
    %v3075 = vsel %vm1361, %v3073, %v3074
    %v3076 = vrot.slane %v2856, 5
    %v3077 = vrot.slane %v3076, 4
    %v3078 = vrot.slane %v2857, 5
    %v3079 = vsel %vm1361, %v3077, %v3078
    %v3080 = vrot.slane %v3078, 4
    %v3081 = vrot.slane %v2858, 5
    %v3082 = vsel %vm1361, %v3080, %v3081
    %v3083 = vrot.slane %v2859, 5
    %v3084 = vrot.slane %v3083, 4
    %v3085 = vrot.slane %v2860, 5
    %v3086 = vsel %vm1361, %v3084, %v3085
    %v3087 = vrot.slane %v3085, 4
    %v3088 = vrot.slane %v2861, 5
    %v3089 = vsel %vm1361, %v3087, %v3088
    %v3090 = vrot.slane %v2862, 5
    %v3091 = vrot.slane %v3090, 4
    %v3092 = vrot.slane %v2863, 5
    %v3093 = vsel %vm1361, %v3091, %v3092
    %v3094 = vrot.slane %v3092, 4
    %v3095 = vrot.slane %v2864, 5
    %v3096 = vsel %vm1361, %v3094, %v3095
    %v3097 = vrot.slane %v2865, 5
    %v3098 = vrot.slane %v3097, 4
    %v3099 = vrot.slane %v2866, 5
    %v3100 = vsel %vm1361, %v3098, %v3099
    %v3101 = vrot.slane %v3099, 4
    %v3102 = vrot.slane %v2867, 5
    %v3103 = vsel %vm1361, %v3101, %v3102
    %v3104 = vrot.slane %v2868, 5
    %v3105 = vrot.slane %v3104, 4
    %v3106 = vrot.slane %v2869, 5
    %v3107 = vsel %vm1361, %v3105, %v3106
    %v3108 = vrot.slane %v3106, 4
    %v3109 = vrot.slane %v2870, 5
    %v3110 = vsel %vm1361, %v3108, %v3109
    %v3111 = vrot.slane %v2871, 5
    %v3112 = vrot.slane %v3111, 4
    %v3113 = vrot.slane %v2872, 5
    %v3114 = vsel %vm1361, %v3112, %v3113
    %v3115 = vrot.slane %v3113, 4
    %v3116 = vrot.slane %v2873, 5
    %v3117 = vsel %vm1361, %v3115, %v3116
    %v3118 = vrot.slane %v2874, 5
    %v3119 = vrot.slane %v3118, 4
    %v3120 = vrot.slane %v2875, 5
    %v3121 = vsel %vm1361, %v3119, %v3120
    %v3122 = vrot.slane %v3120, 4
    %v3123 = vrot.slane %v2876, 5
    %v3124 = vsel %vm1361, %v3122, %v3123
    %v3125 = vrot.slane %v2877, 5
    %v3126 = vrot.slane %v3125, 4
    %v3127 = vrot.slane %v2878, 5
    %v3128 = vsel %vm1361, %v3126, %v3127
    %v3129 = vrot.slane %v3127, 4
    %v3130 = vrot.slane %v2879, 5
    %v3131 = vsel %vm1361, %v3129, %v3130
    %v3132 = vrot.slane %v2880, 5
    %v3133 = vrot.slane %v3132, 4
    %v3134 = vrot.slane %v2881, 5
    %v3135 = vsel %vm1361, %v3133, %v3134
    %v3136 = vrot.slane %v3134, 4
    %v3137 = vrot.slane %v2882, 5
    %v3138 = vsel %vm1361, %v3136, %v3137
    %v3139 = vrot.slane %v2883, 5
    %v3140 = vrot.slane %v3139, 4
    %v3141 = vrot.slane %v2884, 5
    %v3142 = vsel %vm1361, %v3140, %v3141
    %v3143 = vrot.slane %v3141, 4
    %v3144 = vrot.slane %v2885, 5
    %v3145 = vsel %vm1361, %v3143, %v3144
    %v3146 = vrot.slane %v2886, 5
    %v3147 = vrot.slane %v3146, 4
    %v3148 = vrot.slane %v2887, 5
    %v3149 = vsel %vm1361, %v3147, %v3148
    %v3150 = vrot.slane %v3148, 4
    %v3151 = vrot.slane %v2888, 5
    %v3152 = vsel %vm1361, %v3150, %v3151
    %v3153 = vrot.slane %v2889, 5
    %v3154 = vrot.slane %v3153, 4
    %v3155 = vrot.slane %v2890, 5
    %v3156 = vsel %vm1361, %v3154, %v3155
    %v3157 = vrot.slane %v3155, 4
    %v3158 = vrot.slane %v2891, 5
    %v3159 = vsel %vm1361, %v3157, %v3158
    %v3160 = vrot.slane %v2892, 5
    %v3161 = vrot.slane %v3160, 4
    %v3162 = vrot.slane %v2893, 5
    %v3163 = vsel %vm1361, %v3161, %v3162
    %v3164 = vrot.slane %v3162, 4
    %v3165 = vrot.slane %v2894, 5
    %v3166 = vsel %vm1361, %v3164, %v3165
    %v3167 = vrot.slane %v2895, 5
    %v3168 = vrot.slane %v3167, 4
    %v3169 = vrot.slane %v2896, 5
    %v3170 = vsel %vm1361, %v3168, %v3169
    %v3171 = vrot.slane %v3169, 4
    %v3172 = vrot.slane %v2897, 5
    %v3173 = vsel %vm1361, %v3171, %v3172
    %v3174 = vrot.slane %v2898, 5
    %v3175 = vrot.slane %v3174, 4
    %v3176 = vrot.slane %v2899, 5
    %v3177 = vsel %vm1361, %v3175, %v3176
    %v3178 = vrot.slane %v3176, 4
    %v3179 = vrot.slane %v2900, 5
    %v3180 = vsel %vm1361, %v3178, %v3179
    %v3181 = vrot.slane %v2901, 5
    %v3182 = vrot.slane %v3181, 4
    %v3183 = vrot.slane %v2902, 5
    %v3184 = vsel %vm1361, %v3182, %v3183
    %v3185 = vrot.slane %v3183, 4
    %v3186 = vrot.slane %v2903, 5
    %v3187 = vsel %vm1361, %v3185, %v3186
    %v3188 = vrot.slane %v2904, 5
    %v3189 = vrot.slane %v3188, 4
    %v3190 = vrot.slane %v2905, 5
    %v3191 = vsel %vm1361, %v3189, %v3190
    %v3192 = vrot.slane %v3190, 4
    %v3193 = vrot.slane %v2906, 5
    %v3194 = vsel %vm1361, %v3192, %v3193
    %v3195 = vrot.slane %v2907, 5
    %v3196 = vrot.slane %v3195, 4
    %v3197 = vrot.slane %v2908, 5
    %v3198 = vsel %vm1361, %v3196, %v3197
    %v3199 = vrot.slane %v3197, 4
    %v3200 = vrot.slane %v2909, 5
    %v3201 = vsel %vm1361, %v3199, %v3200
    %v3202 = vrot.slane %v2910, 5
    %v3203 = vrot.slane %v3202, 4
    %v3204 = vrot.slane %v2911, 5
    %v3205 = vsel %vm1361, %v3203, %v3204
    %v3206 = vrot.slane %v3204, 4
    %v3207 = vrot.slane %v2912, 5
    %v3208 = vsel %vm1361, %v3206, %v3207
    %v3209 = vrot.slane %v2913, 5
    %v3210 = vrot.slane %v3209, 4
    %v3211 = vrot.slane %v2914, 5
    %v3212 = vsel %vm1361, %v3210, %v3211
    %v3213 = vrot.slane %v3211, 4
    %v3214 = vrot.slane %v2915, 5
    %v3215 = vsel %vm1361, %v3213, %v3214
    %v3216 = vrot.slane %v2916, 5
    %v3217 = vrot.slane %v3216, 4
    %v3218 = vrot.slane %v2917, 5
    %v3219 = vsel %vm1361, %v3217, %v3218
    %v3220 = vrot.slane %v3218, 4
    %v3221 = vrot.slane %v2918, 5
    %v3222 = vsel %vm1361, %v3220, %v3221
    %v3223 = vrot.slane %v2919, 5
    %v3224 = vrot.slane %v3223, 4
    %v3225 = vrot.slane %v2920, 5
    %v3226 = vsel %vm1361, %v3224, %v3225
    %v3227 = vrot.slane %v3225, 4
    %v3228 = vrot.slane %v2921, 5
    %v3229 = vsel %vm1361, %v3227, %v3228
    %v3230 = vrot.slane %v2922, 5
    %v3231 = vrot.slane %v3230, 4
    %v3232 = vrot.slane %v2923, 5
    %v3233 = vsel %vm1361, %v3231, %v3232
    %v3234 = vrot.slane %v3232, 4
    %v3235 = vrot.slane %v2924, 5
    %v3236 = vsel %vm1361, %v3234, %v3235
    %v3237 = vrot.slane %v2925, 5
    %v3238 = vrot.slane %v3237, 4
    %v3239 = vrot.slane %v2926, 5
    %v3240 = vsel %vm1361, %v3238, %v3239
    %v3241 = vrot.slane %v3239, 4
    %v3242 = vrot.slane %v2927, 5
    %v3243 = vsel %vm1361, %v3241, %v3242
    %v3244 = vrot.slane %v2928, 5
    %v3245 = vrot.slane %v3244, 4
    %v3246 = vrot.slane %v2929, 5
    %v3247 = vsel %vm1361, %v3245, %v3246
    %v3248 = vrot.slane %v3246, 4
    %v3249 = vrot.slane %v2930, 5
    %v3250 = vsel %vm1361, %v3248, %v3249
    %3315 = vst [vmem:[#allocation2 + $0x14] sm:$0xf] %v3030
    %3316 = vst [vmem:[#allocation2 + $0x38] sm:$0xf] %v3033
    %3317 = vst [vmem:[#allocation2 + $0x5c] sm:$0xf] %v3037
    %3318 = vst [vmem:[#allocation2 + $0x80] sm:$0xf] %v3040
    %3319 = vst [vmem:[#allocation2 + $0xa4] sm:$0xf] %v3044
    %3320 = vst [vmem:[#allocation2 + $0xc8] sm:$0xf] %v3047
    %3321 = vst [vmem:[#allocation2 + $0xec] sm:$0xf] %v3051
    %3322 = vst [vmem:[#allocation2 + $0x110] sm:$0xf] %v3054
    %3323 = vst [vmem:[#allocation2 + $0x134] sm:$0xf] %v3058
    %3324 = vst [vmem:[#allocation2 + $0x158] sm:$0xf] %v3061
    %3325 = vst [vmem:[#allocation2 + $0x17c] sm:$0xf] %v3065
    %3326 = vst [vmem:[#allocation2 + $0x1a0] sm:$0xf] %v3068
    %3327 = vst [vmem:[#allocation2 + $0x1c4] sm:$0xf] %v3072
    %3328 = vst [vmem:[#allocation2 + $0x1e8] sm:$0xf] %v3075
    %3329 = vst [vmem:[#allocation2 + $0x20c] sm:$0xf] %v3079
    %3330 = vst [vmem:[#allocation2 + $0x230] sm:$0xf] %v3082
    %3331 = vst [vmem:[#allocation2 + $0x254] sm:$0xf] %v3086
    %3332 = vst [vmem:[#allocation2 + $0x278] sm:$0xf] %v3089
    %3333 = vst [vmem:[#allocation2 + $0x29c] sm:$0xf] %v3093
    %3334 = vst [vmem:[#allocation2 + $0x2c0] sm:$0xf] %v3096
    %3335 = vst [vmem:[#allocation2 + $0x2e4] sm:$0xf] %v3100
    %3336 = vst [vmem:[#allocation2 + $0x308] sm:$0xf] %v3103
    %3337 = vst [vmem:[#allocation2 + $0x32c] sm:$0xf] %v3107
    %3338 = vst [vmem:[#allocation2 + $0x350] sm:$0xf] %v3110
    %3339 = vst [vmem:[#allocation2 + $0x374] sm:$0xf] %v3114
    %3340 = vst [vmem:[#allocation2 + $0x398] sm:$0xf] %v3117
    %3341 = vst [vmem:[#allocation2 + $0x3bc] sm:$0xf] %v3121
    %3342 = vst [vmem:[#allocation2 + $0x3e0] sm:$0xf] %v3124
    %3343 = vst [vmem:[#allocation2 + $0x404] sm:$0xf] %v3128
    %3344 = vst [vmem:[#allocation2 + $0x428] sm:$0xf] %v3131
    %3345 = vst [vmem:[#allocation2 + $0x44c] sm:$0xf] %v3135
    %3346 = vst [vmem:[#allocation2 + $0x470] sm:$0xf] %v3138
    %3347 = vst [vmem:[#allocation2 + $0x494] sm:$0xf] %v3142
    %3348 = vst [vmem:[#allocation2 + $0x4b8] sm:$0xf] %v3145
    %3349 = vst [vmem:[#allocation2 + $0x4dc] sm:$0xf] %v3149
    %3350 = vst [vmem:[#allocation2 + $0x500] sm:$0xf] %v3152
    %3351 = vst [vmem:[#allocation2 + $0x524] sm:$0xf] %v3156
    %3352 = vst [vmem:[#allocation2 + $0x548] sm:$0xf] %v3159
    %3353 = vst [vmem:[#allocation2 + $0x56c] sm:$0xf] %v3163
    %3354 = vst [vmem:[#allocation2 + $0x590] sm:$0xf] %v3166
    %3355 = vst [vmem:[#allocation2 + $0x5b4] sm:$0xf] %v3170
    %3356 = vst [vmem:[#allocation2 + $0x5d8] sm:$0xf] %v3173
    %3357 = vst [vmem:[#allocation2 + $0x5fc] sm:$0xf] %v3177
    %3358 = vst [vmem:[#allocation2 + $0x620] sm:$0xf] %v3180
    %3359 = vst [vmem:[#allocation2 + $0x644] sm:$0xf] %v3184
    %3360 = vst [vmem:[#allocation2 + $0x668] sm:$0xf] %v3187
    %3361 = vst [vmem:[#allocation2 + $0x68c] sm:$0xf] %v3191
    %3362 = vst [vmem:[#allocation2 + $0x6b0] sm:$0xf] %v3194
    %3363 = vst [vmem:[#allocation2 + $0x6d4] sm:$0xf] %v3198
    %3364 = vst [vmem:[#allocation2 + $0x6f8] sm:$0xf] %v3201
    %3365 = vst [vmem:[#allocation2 + $0x71c] sm:$0xf] %v3205
    %3366 = vst [vmem:[#allocation2 + $0x740] sm:$0xf] %v3208
    %3367 = vst [vmem:[#allocation2 + $0x764] sm:$0xf] %v3212
    %3368 = vst [vmem:[#allocation2 + $0x788] sm:$0xf] %v3215
    %3369 = vst [vmem:[#allocation2 + $0x7ac] sm:$0xf] %v3219
    %3370 = vst [vmem:[#allocation2 + $0x7d0] sm:$0xf] %v3222
    %3371 = vst [vmem:[#allocation2 + $0x7f4] sm:$0xf] %v3226
    %3372 = vst [vmem:[#allocation2 + $0x818] sm:$0xf] %v3229
    %3373 = vst [vmem:[#allocation2 + $0x83c] sm:$0xf] %v3233
    %3374 = vst [vmem:[#allocation2 + $0x860] sm:$0xf] %v3236
    %3375 = vst [vmem:[#allocation2 + $0x884] sm:$0xf] %v3240
    %3376 = vst [vmem:[#allocation2 + $0x8a8] sm:$0xf] %v3243
    %3377 = vst [vmem:[#allocation2 + $0x8cc] sm:$0xf] %v3247
    %3378 = vst [vmem:[#allocation2 + $0x8f0] sm:$0xf] %v3250
    %s3379 = scalar_lea.vmem [#allocation3], 24
    %v3380 = vld [vmem:[%s3379] sm:$0xf]
    %v3381 = vld [vmem:[%s3379 + $0x4] sm:$0xf]
    %v3382 = vld [vmem:[%s3379 + $0xc] sm:$0xf]
    %v3383 = vld [vmem:[%s3379 + $0x10] sm:$0xf]
    %v3384 = vld [vmem:[%s3379 + $0x18] sm:$0xf]
    %v3385 = vld [vmem:[%s3379 + $0x1c] sm:$0xf]
    %v3386 = vld [vmem:[%s3379 + $0x24] sm:$0xf]
    %v3387 = vld [vmem:[%s3379 + $0x28] sm:$0xf]
    %v3388 = vld [vmem:[%s3379 + $0x30] sm:$0xf]
    %v3389 = vld [vmem:[%s3379 + $0x34] sm:$0xf]
    %v3390 = vld [vmem:[%s3379 + $0x3c] sm:$0xf]
    %v3391 = vld [vmem:[%s3379 + $0x40] sm:$0xf]
    %v3392 = vld [vmem:[%s3379 + $0x48] sm:$0xf]
    %v3393 = vld [vmem:[%s3379 + $0x4c] sm:$0xf]
    %v3394 = vld [vmem:[%s3379 + $0x54] sm:$0xf]
    %v3395 = vld [vmem:[%s3379 + $0x58] sm:$0xf]
    %v3396 = vld [vmem:[%s3379 + $0x60] sm:$0xf]
    %v3397 = vld [vmem:[%s3379 + $0x64] sm:$0xf]
    %v3398 = vld [vmem:[%s3379 + $0x6c] sm:$0xf]
    %v3399 = vld [vmem:[%s3379 + $0x70] sm:$0xf]
    %v3400 = vld [vmem:[%s3379 + $0x78] sm:$0xf]
    %v3401 = vld [vmem:[%s3379 + $0x7c] sm:$0xf]
    %v3402 = vld [vmem:[%s3379 + $0x84] sm:$0xf]
    %v3403 = vld [vmem:[%s3379 + $0x88] sm:$0xf]
    %v3404 = vld [vmem:[%s3379 + $0x90] sm:$0xf]
    %v3405 = vld [vmem:[%s3379 + $0x94] sm:$0xf]
    %v3406 = vld [vmem:[%s3379 + $0x9c] sm:$0xf]
    %v3407 = vld [vmem:[%s3379 + $0xa0] sm:$0xf]
    %v3408 = vld [vmem:[%s3379 + $0xa8] sm:$0xf]
    %v3409 = vld [vmem:[%s3379 + $0xac] sm:$0xf]
    %v3410 = vld [vmem:[%s3379 + $0xb4] sm:$0xf]
    %v3411 = vld [vmem:[%s3379 + $0xb8] sm:$0xf]
    %v3412 = vld [vmem:[%s3379 + $0xd8] sm:$0xf]
    %v3413 = vld [vmem:[%s3379 + $0xdc] sm:$0xf]
    %v3414 = vld [vmem:[%s3379 + $0xe4] sm:$0xf]
    %v3415 = vld [vmem:[%s3379 + $0xe8] sm:$0xf]
    %v3416 = vld [vmem:[%s3379 + $0xf0] sm:$0xf]
    %v3417 = vld [vmem:[%s3379 + $0xf4] sm:$0xf]
    %v3418 = vld [vmem:[%s3379 + $0xfc] sm:$0xf]
    %v3419 = vld [vmem:[%s3379 + $0x100] sm:$0xf]
    %v3420 = vld [vmem:[%s3379 + $0x108] sm:$0xf]
    %v3421 = vld [vmem:[%s3379 + $0x10c] sm:$0xf]
    %v3422 = vld [vmem:[%s3379 + $0x114] sm:$0xf]
    %v3423 = vld [vmem:[%s3379 + $0x118] sm:$0xf]
    %v3424 = vld [vmem:[%s3379 + $0x120] sm:$0xf]
    %v3425 = vld [vmem:[%s3379 + $0x124] sm:$0xf]
    %v3426 = vld [vmem:[%s3379 + $0x12c] sm:$0xf]
    %v3427 = vld [vmem:[%s3379 + $0x130] sm:$0xf]
    %v3428 = vld [vmem:[%s3379 + $0x138] sm:$0xf]
    %v3429 = vld [vmem:[%s3379 + $0x13c] sm:$0xf]
    %v3430 = vld [vmem:[%s3379 + $0x144] sm:$0xf]
    %v3431 = vld [vmem:[%s3379 + $0x148] sm:$0xf]
    %v3432 = vld [vmem:[%s3379 + $0x150] sm:$0xf]
    %v3433 = vld [vmem:[%s3379 + $0x154] sm:$0xf]
    %v3434 = vld [vmem:[%s3379 + $0x15c] sm:$0xf]
    %v3435 = vld [vmem:[%s3379 + $0x160] sm:$0xf]
    %v3436 = vld [vmem:[%s3379 + $0x168] sm:$0xf]
    %v3437 = vld [vmem:[%s3379 + $0x16c] sm:$0xf]
    %v3438 = vld [vmem:[%s3379 + $0x174] sm:$0xf]
    %v3439 = vld [vmem:[%s3379 + $0x178] sm:$0xf]
    %v3440 = vld [vmem:[%s3379 + $0x180] sm:$0xf]
    %v3441 = vld [vmem:[%s3379 + $0x184] sm:$0xf]
    %v3442 = vld [vmem:[%s3379 + $0x18c] sm:$0xf]
    %v3443 = vld [vmem:[%s3379 + $0x190] sm:$0xf]
    %3444 = vst [vmem:[#allocation2 + $0x18] sm:$0xf] %v3380
    %3445 = vst [vmem:[#allocation2 + $0x3c] sm:$0xf] %v3381
    %3446 = vst [vmem:[#allocation2 + $0x60] sm:$0xf] %v3382
    %3447 = vst [vmem:[#allocation2 + $0x84] sm:$0xf] %v3383
    %3448 = vst [vmem:[#allocation2 + $0xa8] sm:$0xf] %v3384
    %3449 = vst [vmem:[#allocation2 + $0xcc] sm:$0xf] %v3385
    %3450 = vst [vmem:[#allocation2 + $0xf0] sm:$0xf] %v3386
    %3451 = vst [vmem:[#allocation2 + $0x114] sm:$0xf] %v3387
    %3452 = vst [vmem:[#allocation2 + $0x138] sm:$0xf] %v3388
    %3453 = vst [vmem:[#allocation2 + $0x15c] sm:$0xf] %v3389
    %3454 = vst [vmem:[#allocation2 + $0x180] sm:$0xf] %v3390
    %3455 = vst [vmem:[#allocation2 + $0x1a4] sm:$0xf] %v3391
    %3456 = vst [vmem:[#allocation2 + $0x1c8] sm:$0xf] %v3392
    %3457 = vst [vmem:[#allocation2 + $0x1ec] sm:$0xf] %v3393
    %3458 = vst [vmem:[#allocation2 + $0x210] sm:$0xf] %v3394
    %3459 = vst [vmem:[#allocation2 + $0x234] sm:$0xf] %v3395
    %3460 = vst [vmem:[#allocation2 + $0x258] sm:$0xf] %v3396
    %3461 = vst [vmem:[#allocation2 + $0x27c] sm:$0xf] %v3397
    %3462 = vst [vmem:[#allocation2 + $0x2a0] sm:$0xf] %v3398
    %3463 = vst [vmem:[#allocation2 + $0x2c4] sm:$0xf] %v3399
    %3464 = vst [vmem:[#allocation2 + $0x2e8] sm:$0xf] %v3400
    %3465 = vst [vmem:[#allocation2 + $0x30c] sm:$0xf] %v3401
    %3466 = vst [vmem:[#allocation2 + $0x330] sm:$0xf] %v3402
    %3467 = vst [vmem:[#allocation2 + $0x354] sm:$0xf] %v3403
    %3468 = vst [vmem:[#allocation2 + $0x378] sm:$0xf] %v3404
    %3469 = vst [vmem:[#allocation2 + $0x39c] sm:$0xf] %v3405
    %3470 = vst [vmem:[#allocation2 + $0x3c0] sm:$0xf] %v3406
    %3471 = vst [vmem:[#allocation2 + $0x3e4] sm:$0xf] %v3407
    %3472 = vst [vmem:[#allocation2 + $0x408] sm:$0xf] %v3408
    %3473 = vst [vmem:[#allocation2 + $0x42c] sm:$0xf] %v3409
    %3474 = vst [vmem:[#allocation2 + $0x450] sm:$0xf] %v3410
    %3475 = vst [vmem:[#allocation2 + $0x474] sm:$0xf] %v3411
    %3476 = vst [vmem:[#allocation2 + $0x498] sm:$0xf] %v3412
    %3477 = vst [vmem:[#allocation2 + $0x4bc] sm:$0xf] %v3413
    %3478 = vst [vmem:[#allocation2 + $0x4e0] sm:$0xf] %v3414
    %3479 = vst [vmem:[#allocation2 + $0x504] sm:$0xf] %v3415
    %3480 = vst [vmem:[#allocation2 + $0x528] sm:$0xf] %v3416
    %3481 = vst [vmem:[#allocation2 + $0x54c] sm:$0xf] %v3417
    %3482 = vst [vmem:[#allocation2 + $0x570] sm:$0xf] %v3418
    %3483 = vst [vmem:[#allocation2 + $0x594] sm:$0xf] %v3419
    %3484 = vst [vmem:[#allocation2 + $0x5b8] sm:$0xf] %v3420
    %3485 = vst [vmem:[#allocation2 + $0x5dc] sm:$0xf] %v3421
    %3486 = vst [vmem:[#allocation2 + $0x600] sm:$0xf] %v3422
    %3487 = vst [vmem:[#allocation2 + $0x624] sm:$0xf] %v3423
    %3488 = vst [vmem:[#allocation2 + $0x648] sm:$0xf] %v3424
    %3489 = vst [vmem:[#allocation2 + $0x66c] sm:$0xf] %v3425
    %3490 = vst [vmem:[#allocation2 + $0x690] sm:$0xf] %v3426
    %3491 = vst [vmem:[#allocation2 + $0x6b4] sm:$0xf] %v3427
    %3492 = vst [vmem:[#allocation2 + $0x6d8] sm:$0xf] %v3428
    %3493 = vst [vmem:[#allocation2 + $0x6fc] sm:$0xf] %v3429
    %3494 = vst [vmem:[#allocation2 + $0x720] sm:$0xf] %v3430
    %3495 = vst [vmem:[#allocation2 + $0x744] sm:$0xf] %v3431
    %3496 = vst [vmem:[#allocation2 + $0x768] sm:$0xf] %v3432
    %3497 = vst [vmem:[#allocation2 + $0x78c] sm:$0xf] %v3433
    %3498 = vst [vmem:[#allocation2 + $0x7b0] sm:$0xf] %v3434
    %3499 = vst [vmem:[#allocation2 + $0x7d4] sm:$0xf] %v3435
    %3500 = vst [vmem:[#allocation2 + $0x7f8] sm:$0xf] %v3436
    %3501 = vst [vmem:[#allocation2 + $0x81c] sm:$0xf] %v3437
    %3502 = vst [vmem:[#allocation2 + $0x840] sm:$0xf] %v3438
    %3503 = vst [vmem:[#allocation2 + $0x864] sm:$0xf] %v3439
    %3504 = vst [vmem:[#allocation2 + $0x888] sm:$0xf] %v3440
    %3505 = vst [vmem:[#allocation2 + $0x8ac] sm:$0xf] %v3441
    %3506 = vst [vmem:[#allocation2 + $0x8d0] sm:$0xf] %v3442
    %3507 = vst [vmem:[#allocation2 + $0x8f4] sm:$0xf] %v3443
    %v3508 = vld [vmem:[%s3379] sm:$0xf]
    %v3509 = vld [vmem:[%s3379 + $0x4] sm:$0xf]
    %v3510 = vld [vmem:[%s3379 + $0x8] sm:$0x1]
    %v3511 = vld [vmem:[%s3379 + $0xc] sm:$0xf]
    %v3512 = vld [vmem:[%s3379 + $0x10] sm:$0xf]
    %v3513 = vld [vmem:[%s3379 + $0x14] sm:$0x1]
    %v3514 = vld [vmem:[%s3379 + $0x18] sm:$0xf]
    %v3515 = vld [vmem:[%s3379 + $0x1c] sm:$0xf]
    %v3516 = vld [vmem:[%s3379 + $0x20] sm:$0x1]
    %v3517 = vld [vmem:[%s3379 + $0x24] sm:$0xf]
    %v3518 = vld [vmem:[%s3379 + $0x28] sm:$0xf]
    %v3519 = vld [vmem:[%s3379 + $0x2c] sm:$0x1]
    %v3520 = vld [vmem:[%s3379 + $0x30] sm:$0xf]
    %v3521 = vld [vmem:[%s3379 + $0x34] sm:$0xf]
    %v3522 = vld [vmem:[%s3379 + $0x38] sm:$0x1]
    %v3523 = vld [vmem:[%s3379 + $0x3c] sm:$0xf]
    %v3524 = vld [vmem:[%s3379 + $0x40] sm:$0xf]
    %v3525 = vld [vmem:[%s3379 + $0x44] sm:$0x1]
    %v3526 = vld [vmem:[%s3379 + $0x48] sm:$0xf]
    %v3527 = vld [vmem:[%s3379 + $0x4c] sm:$0xf]
    %v3528 = vld [vmem:[%s3379 + $0x50] sm:$0x1]
    %v3529 = vld [vmem:[%s3379 + $0x54] sm:$0xf]
    %v3530 = vld [vmem:[%s3379 + $0x58] sm:$0xf]
    %v3531 = vld [vmem:[%s3379 + $0x5c] sm:$0x1]
    %v3532 = vld [vmem:[%s3379 + $0x60] sm:$0xf]
    %v3533 = vld [vmem:[%s3379 + $0x64] sm:$0xf]
    %v3534 = vld [vmem:[%s3379 + $0x68] sm:$0x1]
    %v3535 = vld [vmem:[%s3379 + $0x6c] sm:$0xf]
    %v3536 = vld [vmem:[%s3379 + $0x70] sm:$0xf]
    %v3537 = vld [vmem:[%s3379 + $0x74] sm:$0x1]
    %v3538 = vld [vmem:[%s3379 + $0x78] sm:$0xf]
    %v3539 = vld [vmem:[%s3379 + $0x7c] sm:$0xf]
    %v3540 = vld [vmem:[%s3379 + $0x80] sm:$0x1]
    %v3541 = vld [vmem:[%s3379 + $0x84] sm:$0xf]
    %v3542 = vld [vmem:[%s3379 + $0x88] sm:$0xf]
    %v3543 = vld [vmem:[%s3379 + $0x8c] sm:$0x1]
    %v3544 = vld [vmem:[%s3379 + $0x90] sm:$0xf]
    %v3545 = vld [vmem:[%s3379 + $0x94] sm:$0xf]
    %v3546 = vld [vmem:[%s3379 + $0x98] sm:$0x1]
    %v3547 = vld [vmem:[%s3379 + $0x9c] sm:$0xf]
    %v3548 = vld [vmem:[%s3379 + $0xa0] sm:$0xf]
    %v3549 = vld [vmem:[%s3379 + $0xa4] sm:$0x1]
    %v3550 = vld [vmem:[%s3379 + $0xa8] sm:$0xf]
    %v3551 = vld [vmem:[%s3379 + $0xac] sm:$0xf]
    %v3552 = vld [vmem:[%s3379 + $0xb0] sm:$0x1]
    %v3553 = vld [vmem:[%s3379 + $0xb4] sm:$0xf]
    %v3554 = vld [vmem:[%s3379 + $0xb8] sm:$0xf]
    %v3555 = vld [vmem:[%s3379 + $0xbc] sm:$0x1]
    %v3556 = vld [vmem:[%s3379 + $0xd8] sm:$0xf]
    %v3557 = vld [vmem:[%s3379 + $0xdc] sm:$0xf]
    %v3558 = vld [vmem:[%s3379 + $0xe0] sm:$0x1]
    %v3559 = vld [vmem:[%s3379 + $0xe4] sm:$0xf]
    %v3560 = vld [vmem:[%s3379 + $0xe8] sm:$0xf]
    %v3561 = vld [vmem:[%s3379 + $0xec] sm:$0x1]
    %v3562 = vld [vmem:[%s3379 + $0xf0] sm:$0xf]
    %v3563 = vld [vmem:[%s3379 + $0xf4] sm:$0xf]
    %v3564 = vld [vmem:[%s3379 + $0xf8] sm:$0x1]
    %v3565 = vld [vmem:[%s3379 + $0xfc] sm:$0xf]
    %v3566 = vld [vmem:[%s3379 + $0x100] sm:$0xf]
    %v3567 = vld [vmem:[%s3379 + $0x104] sm:$0x1]
    %v3568 = vld [vmem:[%s3379 + $0x108] sm:$0xf]
    %v3569 = vld [vmem:[%s3379 + $0x10c] sm:$0xf]
    %v3570 = vld [vmem:[%s3379 + $0x110] sm:$0x1]
    %v3571 = vld [vmem:[%s3379 + $0x114] sm:$0xf]
    %v3572 = vld [vmem:[%s3379 + $0x118] sm:$0xf]
    %v3573 = vld [vmem:[%s3379 + $0x11c] sm:$0x1]
    %v3574 = vld [vmem:[%s3379 + $0x120] sm:$0xf]
    %v3575 = vld [vmem:[%s3379 + $0x124] sm:$0xf]
    %v3576 = vld [vmem:[%s3379 + $0x128] sm:$0x1]
    %v3577 = vld [vmem:[%s3379 + $0x12c] sm:$0xf]
    %v3578 = vld [vmem:[%s3379 + $0x130] sm:$0xf]
    %v3579 = vld [vmem:[%s3379 + $0x134] sm:$0x1]
    %v3580 = vld [vmem:[%s3379 + $0x138] sm:$0xf]
    %v3581 = vld [vmem:[%s3379 + $0x13c] sm:$0xf]
    %v3582 = vld [vmem:[%s3379 + $0x140] sm:$0x1]
    %v3583 = vld [vmem:[%s3379 + $0x144] sm:$0xf]
    %v3584 = vld [vmem:[%s3379 + $0x148] sm:$0xf]
    %v3585 = vld [vmem:[%s3379 + $0x14c] sm:$0x1]
    %v3586 = vld [vmem:[%s3379 + $0x150] sm:$0xf]
    %v3587 = vld [vmem:[%s3379 + $0x154] sm:$0xf]
    %v3588 = vld [vmem:[%s3379 + $0x158] sm:$0x1]
    %v3589 = vld [vmem:[%s3379 + $0x15c] sm:$0xf]
    %v3590 = vld [vmem:[%s3379 + $0x160] sm:$0xf]
    %v3591 = vld [vmem:[%s3379 + $0x164] sm:$0x1]
    %v3592 = vld [vmem:[%s3379 + $0x168] sm:$0xf]
    %v3593 = vld [vmem:[%s3379 + $0x16c] sm:$0xf]
    %v3594 = vld [vmem:[%s3379 + $0x170] sm:$0x1]
    %v3595 = vld [vmem:[%s3379 + $0x174] sm:$0xf]
    %v3596 = vld [vmem:[%s3379 + $0x178] sm:$0xf]
    %v3597 = vld [vmem:[%s3379 + $0x17c] sm:$0x1]
    %v3598 = vld [vmem:[%s3379 + $0x180] sm:$0xf]
    %v3599 = vld [vmem:[%s3379 + $0x184] sm:$0xf]
    %v3600 = vld [vmem:[%s3379 + $0x188] sm:$0x1]
    %v3601 = vld [vmem:[%s3379 + $0x18c] sm:$0xf]
    %v3602 = vld [vmem:[%s3379 + $0x190] sm:$0xf]
    %v3603 = vld [vmem:[%s3379 + $0x194] sm:$0x1]
    %v3605 = vshrl.u32 %v3508, 16
    %v3607 = vrot.slane %v3605, 4
    %v3608 = vshll.u32 %v3508, 16
    %v3610 = vrot.slane %v3608, 5
    %v3611 = vor.u32 %v3607, %v3610
    %v3612 = vrot.slane %v3611, 4
    %v3614 = vshll.u32 %v3509, 16
    %v3616 = vrot.slane %v3614, 5
    %v3617 = vsel %vm270, %v3612, %v3616
    %v3618 = vshrl.u32 %v3509, 16
    %v3620 = vrot.slane %v3618, 4
    %v3621 = vor.u32 %v3620, %v3616
    %v3622 = vrot.slane %v3621, 4
    %v3624 = vshll.u32 %v3510, 16
    %v3626 = vrot.slane %v3624, 5
    %v3627 = vsel %vm270, %v3622, %v3626
    %v3629 = vshrl.u32 %v3511, 16
    %v3631 = vrot.slane %v3629, 4
    %v3632 = vshll.u32 %v3511, 16
    %v3634 = vrot.slane %v3632, 5
    %v3635 = vor.u32 %v3631, %v3634
    %v3636 = vrot.slane %v3635, 4
    %v3638 = vshll.u32 %v3512, 16
    %v3640 = vrot.slane %v3638, 5
    %v3641 = vsel %vm270, %v3636, %v3640
    %v3642 = vshrl.u32 %v3512, 16
    %v3644 = vrot.slane %v3642, 4
    %v3645 = vor.u32 %v3644, %v3640
    %v3646 = vrot.slane %v3645, 4
    %v3648 = vshll.u32 %v3513, 16
    %v3650 = vrot.slane %v3648, 5
    %v3651 = vsel %vm270, %v3646, %v3650
    %v3653 = vshrl.u32 %v3514, 16
    %v3655 = vrot.slane %v3653, 4
    %v3656 = vshll.u32 %v3514, 16
    %v3658 = vrot.slane %v3656, 5
    %v3659 = vor.u32 %v3655, %v3658
    %v3660 = vrot.slane %v3659, 4
    %v3662 = vshll.u32 %v3515, 16
    %v3664 = vrot.slane %v3662, 5
    %v3665 = vsel %vm270, %v3660, %v3664
    %v3666 = vshrl.u32 %v3515, 16
    %v3668 = vrot.slane %v3666, 4
    %v3669 = vor.u32 %v3668, %v3664
    %v3670 = vrot.slane %v3669, 4
    %v3672 = vshll.u32 %v3516, 16
    %v3674 = vrot.slane %v3672, 5
    %v3675 = vsel %vm270, %v3670, %v3674
    %v3677 = vshrl.u32 %v3517, 16
    %v3679 = vrot.slane %v3677, 4
    %v3680 = vshll.u32 %v3517, 16
    %v3682 = vrot.slane %v3680, 5
    %v3683 = vor.u32 %v3679, %v3682
    %v3684 = vrot.slane %v3683, 4
    %v3686 = vshll.u32 %v3518, 16
    %v3688 = vrot.slane %v3686, 5
    %v3689 = vsel %vm270, %v3684, %v3688
    %v3690 = vshrl.u32 %v3518, 16
    %v3692 = vrot.slane %v3690, 4
    %v3693 = vor.u32 %v3692, %v3688
    %v3694 = vrot.slane %v3693, 4
    %v3696 = vshll.u32 %v3519, 16
    %v3698 = vrot.slane %v3696, 5
    %v3699 = vsel %vm270, %v3694, %v3698
    %v3701 = vshrl.u32 %v3520, 16
    %v3703 = vrot.slane %v3701, 4
    %v3704 = vshll.u32 %v3520, 16
    %v3706 = vrot.slane %v3704, 5
    %v3707 = vor.u32 %v3703, %v3706
    %v3708 = vrot.slane %v3707, 4
    %v3710 = vshll.u32 %v3521, 16
    %v3712 = vrot.slane %v3710, 5
    %v3713 = vsel %vm270, %v3708, %v3712
    %v3714 = vshrl.u32 %v3521, 16
    %v3716 = vrot.slane %v3714, 4
    %v3717 = vor.u32 %v3716, %v3712
    %v3718 = vrot.slane %v3717, 4
    %v3720 = vshll.u32 %v3522, 16
    %v3722 = vrot.slane %v3720, 5
    %v3723 = vsel %vm270, %v3718, %v3722
    %v3725 = vshrl.u32 %v3523, 16
    %v3727 = vrot.slane %v3725, 4
    %v3728 = vshll.u32 %v3523, 16
    %v3730 = vrot.slane %v3728, 5
    %v3731 = vor.u32 %v3727, %v3730
    %v3732 = vrot.slane %v3731, 4
    %v3734 = vshll.u32 %v3524, 16
    %v3736 = vrot.slane %v3734, 5
    %v3737 = vsel %vm270, %v3732, %v3736
    %v3738 = vshrl.u32 %v3524, 16
    %v3740 = vrot.slane %v3738, 4
    %v3741 = vor.u32 %v3740, %v3736
    %v3742 = vrot.slane %v3741, 4
    %v3744 = vshll.u32 %v3525, 16
    %v3746 = vrot.slane %v3744, 5
    %v3747 = vsel %vm270, %v3742, %v3746
    %v3749 = vshrl.u32 %v3526, 16
    %v3751 = vrot.slane %v3749, 4
    %v3752 = vshll.u32 %v3526, 16
    %v3754 = vrot.slane %v3752, 5
    %v3755 = vor.u32 %v3751, %v3754
    %v3756 = vrot.slane %v3755, 4
    %v3758 = vshll.u32 %v3527, 16
    %v3760 = vrot.slane %v3758, 5
    %v3761 = vsel %vm270, %v3756, %v3760
    %v3762 = vshrl.u32 %v3527, 16
    %v3764 = vrot.slane %v3762, 4
    %v3765 = vor.u32 %v3764, %v3760
    %v3766 = vrot.slane %v3765, 4
    %v3768 = vshll.u32 %v3528, 16
    %v3770 = vrot.slane %v3768, 5
    %v3771 = vsel %vm270, %v3766, %v3770
    %v3773 = vshrl.u32 %v3529, 16
    %v3775 = vrot.slane %v3773, 4
    %v3776 = vshll.u32 %v3529, 16
    %v3778 = vrot.slane %v3776, 5
    %v3779 = vor.u32 %v3775, %v3778
    %v3780 = vrot.slane %v3779, 4
    %v3782 = vshll.u32 %v3530, 16
    %v3784 = vrot.slane %v3782, 5
    %v3785 = vsel %vm270, %v3780, %v3784
    %v3786 = vshrl.u32 %v3530, 16
    %v3788 = vrot.slane %v3786, 4
    %v3789 = vor.u32 %v3788, %v3784
    %v3790 = vrot.slane %v3789, 4
    %v3792 = vshll.u32 %v3531, 16
    %v3794 = vrot.slane %v3792, 5
    %v3795 = vsel %vm270, %v3790, %v3794
    %v3797 = vshrl.u32 %v3532, 16
    %v3799 = vrot.slane %v3797, 4
    %v3800 = vshll.u32 %v3532, 16
    %v3802 = vrot.slane %v3800, 5
    %v3803 = vor.u32 %v3799, %v3802
    %v3804 = vrot.slane %v3803, 4
    %v3806 = vshll.u32 %v3533, 16
    %v3808 = vrot.slane %v3806, 5
    %v3809 = vsel %vm270, %v3804, %v3808
    %v3810 = vshrl.u32 %v3533, 16
    %v3812 = vrot.slane %v3810, 4
    %v3813 = vor.u32 %v3812, %v3808
    %v3814 = vrot.slane %v3813, 4
    %v3816 = vshll.u32 %v3534, 16
    %v3818 = vrot.slane %v3816, 5
    %v3819 = vsel %vm270, %v3814, %v3818
    %v3821 = vshrl.u32 %v3535, 16
    %v3823 = vrot.slane %v3821, 4
    %v3824 = vshll.u32 %v3535, 16
    %v3826 = vrot.slane %v3824, 5
    %v3827 = vor.u32 %v3823, %v3826
    %v3828 = vrot.slane %v3827, 4
    %v3830 = vshll.u32 %v3536, 16
    %v3832 = vrot.slane %v3830, 5
    %v3833 = vsel %vm270, %v3828, %v3832
    %v3834 = vshrl.u32 %v3536, 16
    %v3836 = vrot.slane %v3834, 4
    %v3837 = vor.u32 %v3836, %v3832
    %v3838 = vrot.slane %v3837, 4
    %v3840 = vshll.u32 %v3537, 16
    %v3842 = vrot.slane %v3840, 5
    %v3843 = vsel %vm270, %v3838, %v3842
    %v3845 = vshrl.u32 %v3538, 16
    %v3847 = vrot.slane %v3845, 4
    %v3848 = vshll.u32 %v3538, 16
    %v3850 = vrot.slane %v3848, 5
    %v3851 = vor.u32 %v3847, %v3850
    %v3852 = vrot.slane %v3851, 4
    %v3854 = vshll.u32 %v3539, 16
    %v3856 = vrot.slane %v3854, 5
    %v3857 = vsel %vm270, %v3852, %v3856
    %v3858 = vshrl.u32 %v3539, 16
    %v3860 = vrot.slane %v3858, 4
    %v3861 = vor.u32 %v3860, %v3856
    %v3862 = vrot.slane %v3861, 4
    %v3864 = vshll.u32 %v3540, 16
    %v3866 = vrot.slane %v3864, 5
    %v3867 = vsel %vm270, %v3862, %v3866
    %v3869 = vshrl.u32 %v3541, 16
    %v3871 = vrot.slane %v3869, 4
    %v3872 = vshll.u32 %v3541, 16
    %v3874 = vrot.slane %v3872, 5
    %v3875 = vor.u32 %v3871, %v3874
    %v3876 = vrot.slane %v3875, 4
    %v3878 = vshll.u32 %v3542, 16
    %v3880 = vrot.slane %v3878, 5
    %v3881 = vsel %vm270, %v3876, %v3880
    %v3882 = vshrl.u32 %v3542, 16
    %v3884 = vrot.slane %v3882, 4
    %v3885 = vor.u32 %v3884, %v3880
    %v3886 = vrot.slane %v3885, 4
    %v3888 = vshll.u32 %v3543, 16
    %v3890 = vrot.slane %v3888, 5
    %v3891 = vsel %vm270, %v3886, %v3890
    %v3893 = vshrl.u32 %v3544, 16
    %v3895 = vrot.slane %v3893, 4
    %v3896 = vshll.u32 %v3544, 16
    %v3898 = vrot.slane %v3896, 5
    %v3899 = vor.u32 %v3895, %v3898
    %v3900 = vrot.slane %v3899, 4
    %v3902 = vshll.u32 %v3545, 16
    %v3904 = vrot.slane %v3902, 5
    %v3905 = vsel %vm270, %v3900, %v3904
    %v3906 = vshrl.u32 %v3545, 16
    %v3908 = vrot.slane %v3906, 4
    %v3909 = vor.u32 %v3908, %v3904
    %v3910 = vrot.slane %v3909, 4
    %v3912 = vshll.u32 %v3546, 16
    %v3914 = vrot.slane %v3912, 5
    %v3915 = vsel %vm270, %v3910, %v3914
    %v3917 = vshrl.u32 %v3547, 16
    %v3919 = vrot.slane %v3917, 4
    %v3920 = vshll.u32 %v3547, 16
    %v3922 = vrot.slane %v3920, 5
    %v3923 = vor.u32 %v3919, %v3922
    %v3924 = vrot.slane %v3923, 4
    %v3926 = vshll.u32 %v3548, 16
    %v3928 = vrot.slane %v3926, 5
    %v3929 = vsel %vm270, %v3924, %v3928
    %v3930 = vshrl.u32 %v3548, 16
    %v3932 = vrot.slane %v3930, 4
    %v3933 = vor.u32 %v3932, %v3928
    %v3934 = vrot.slane %v3933, 4
    %v3936 = vshll.u32 %v3549, 16
    %v3938 = vrot.slane %v3936, 5
    %v3939 = vsel %vm270, %v3934, %v3938
    %v3941 = vshrl.u32 %v3550, 16
    %v3943 = vrot.slane %v3941, 4
    %v3944 = vshll.u32 %v3550, 16
    %v3946 = vrot.slane %v3944, 5
    %v3947 = vor.u32 %v3943, %v3946
    %v3948 = vrot.slane %v3947, 4
    %v3950 = vshll.u32 %v3551, 16
    %v3952 = vrot.slane %v3950, 5
    %v3953 = vsel %vm270, %v3948, %v3952
    %v3954 = vshrl.u32 %v3551, 16
    %v3956 = vrot.slane %v3954, 4
    %v3957 = vor.u32 %v3956, %v3952
    %v3958 = vrot.slane %v3957, 4
    %v3960 = vshll.u32 %v3552, 16
    %v3962 = vrot.slane %v3960, 5
    %v3963 = vsel %vm270, %v3958, %v3962
    %v3965 = vshrl.u32 %v3553, 16
    %v3967 = vrot.slane %v3965, 4
    %v3968 = vshll.u32 %v3553, 16
    %v3970 = vrot.slane %v3968, 5
    %v3971 = vor.u32 %v3967, %v3970
    %v3972 = vrot.slane %v3971, 4
    %v3974 = vshll.u32 %v3554, 16
    %v3976 = vrot.slane %v3974, 5
    %v3977 = vsel %vm270, %v3972, %v3976
    %v3978 = vshrl.u32 %v3554, 16
    %v3980 = vrot.slane %v3978, 4
    %v3981 = vor.u32 %v3980, %v3976
    %v3982 = vrot.slane %v3981, 4
    %v3984 = vshll.u32 %v3555, 16
    %v3986 = vrot.slane %v3984, 5
    %v3987 = vsel %vm270, %v3982, %v3986
    %v3989 = vshrl.u32 %v3556, 16
    %v3991 = vrot.slane %v3989, 4
    %v3992 = vshll.u32 %v3556, 16
    %v3994 = vrot.slane %v3992, 5
    %v3995 = vor.u32 %v3991, %v3994
    %v3996 = vrot.slane %v3995, 4
    %v3998 = vshll.u32 %v3557, 16
    %v4000 = vrot.slane %v3998, 5
    %v4001 = vsel %vm270, %v3996, %v4000
    %v4002 = vshrl.u32 %v3557, 16
    %v4004 = vrot.slane %v4002, 4
    %v4005 = vor.u32 %v4004, %v4000
    %v4006 = vrot.slane %v4005, 4
    %v4008 = vshll.u32 %v3558, 16
    %v4010 = vrot.slane %v4008, 5
    %v4011 = vsel %vm270, %v4006, %v4010
    %v4013 = vshrl.u32 %v3559, 16
    %v4015 = vrot.slane %v4013, 4
    %v4016 = vshll.u32 %v3559, 16
    %v4018 = vrot.slane %v4016, 5
    %v4019 = vor.u32 %v4015, %v4018
    %v4020 = vrot.slane %v4019, 4
    %v4022 = vshll.u32 %v3560, 16
    %v4024 = vrot.slane %v4022, 5
    %v4025 = vsel %vm270, %v4020, %v4024
    %v4026 = vshrl.u32 %v3560, 16
    %v4028 = vrot.slane %v4026, 4
    %v4029 = vor.u32 %v4028, %v4024
    %v4030 = vrot.slane %v4029, 4
    %v4032 = vshll.u32 %v3561, 16
    %v4034 = vrot.slane %v4032, 5
    %v4035 = vsel %vm270, %v4030, %v4034
    %v4037 = vshrl.u32 %v3562, 16
    %v4039 = vrot.slane %v4037, 4
    %v4040 = vshll.u32 %v3562, 16
    %v4042 = vrot.slane %v4040, 5
    %v4043 = vor.u32 %v4039, %v4042
    %v4044 = vrot.slane %v4043, 4
    %v4046 = vshll.u32 %v3563, 16
    %v4048 = vrot.slane %v4046, 5
    %v4049 = vsel %vm270, %v4044, %v4048
    %v4050 = vshrl.u32 %v3563, 16
    %v4052 = vrot.slane %v4050, 4
    %v4053 = vor.u32 %v4052, %v4048
    %v4054 = vrot.slane %v4053, 4
    %v4056 = vshll.u32 %v3564, 16
    %v4058 = vrot.slane %v4056, 5
    %v4059 = vsel %vm270, %v4054, %v4058
    %v4061 = vshrl.u32 %v3565, 16
    %v4063 = vrot.slane %v4061, 4
    %v4064 = vshll.u32 %v3565, 16
    %v4066 = vrot.slane %v4064, 5
    %v4067 = vor.u32 %v4063, %v4066
    %v4068 = vrot.slane %v4067, 4
    %v4070 = vshll.u32 %v3566, 16
    %v4072 = vrot.slane %v4070, 5
    %v4073 = vsel %vm270, %v4068, %v4072
    %v4074 = vshrl.u32 %v3566, 16
    %v4076 = vrot.slane %v4074, 4
    %v4077 = vor.u32 %v4076, %v4072
    %v4078 = vrot.slane %v4077, 4
    %v4080 = vshll.u32 %v3567, 16
    %v4082 = vrot.slane %v4080, 5
    %v4083 = vsel %vm270, %v4078, %v4082
    %v4085 = vshrl.u32 %v3568, 16
    %v4087 = vrot.slane %v4085, 4
    %v4088 = vshll.u32 %v3568, 16
    %v4090 = vrot.slane %v4088, 5
    %v4091 = vor.u32 %v4087, %v4090
    %v4092 = vrot.slane %v4091, 4
    %v4094 = vshll.u32 %v3569, 16
    %v4096 = vrot.slane %v4094, 5
    %v4097 = vsel %vm270, %v4092, %v4096
    %v4098 = vshrl.u32 %v3569, 16
    %v4100 = vrot.slane %v4098, 4
    %v4101 = vor.u32 %v4100, %v4096
    %v4102 = vrot.slane %v4101, 4
    %v4104 = vshll.u32 %v3570, 16
    %v4106 = vrot.slane %v4104, 5
    %v4107 = vsel %vm270, %v4102, %v4106
    %v4109 = vshrl.u32 %v3571, 16
    %v4111 = vrot.slane %v4109, 4
    %v4112 = vshll.u32 %v3571, 16
    %v4114 = vrot.slane %v4112, 5
    %v4115 = vor.u32 %v4111, %v4114
    %v4116 = vrot.slane %v4115, 4
    %v4118 = vshll.u32 %v3572, 16
    %v4120 = vrot.slane %v4118, 5
    %v4121 = vsel %vm270, %v4116, %v4120
    %v4122 = vshrl.u32 %v3572, 16
    %v4124 = vrot.slane %v4122, 4
    %v4125 = vor.u32 %v4124, %v4120
    %v4126 = vrot.slane %v4125, 4
    %v4128 = vshll.u32 %v3573, 16
    %v4130 = vrot.slane %v4128, 5
    %v4131 = vsel %vm270, %v4126, %v4130
    %v4133 = vshrl.u32 %v3574, 16
    %v4135 = vrot.slane %v4133, 4
    %v4136 = vshll.u32 %v3574, 16
    %v4138 = vrot.slane %v4136, 5
    %v4139 = vor.u32 %v4135, %v4138
    %v4140 = vrot.slane %v4139, 4
    %v4142 = vshll.u32 %v3575, 16
    %v4144 = vrot.slane %v4142, 5
    %v4145 = vsel %vm270, %v4140, %v4144
    %v4146 = vshrl.u32 %v3575, 16
    %v4148 = vrot.slane %v4146, 4
    %v4149 = vor.u32 %v4148, %v4144
    %v4150 = vrot.slane %v4149, 4
    %v4152 = vshll.u32 %v3576, 16
    %v4154 = vrot.slane %v4152, 5
    %v4155 = vsel %vm270, %v4150, %v4154
    %v4157 = vshrl.u32 %v3577, 16
    %v4159 = vrot.slane %v4157, 4
    %v4160 = vshll.u32 %v3577, 16
    %v4162 = vrot.slane %v4160, 5
    %v4163 = vor.u32 %v4159, %v4162
    %v4164 = vrot.slane %v4163, 4
    %v4166 = vshll.u32 %v3578, 16
    %v4168 = vrot.slane %v4166, 5
    %v4169 = vsel %vm270, %v4164, %v4168
    %v4170 = vshrl.u32 %v3578, 16
    %v4172 = vrot.slane %v4170, 4
    %v4173 = vor.u32 %v4172, %v4168
    %v4174 = vrot.slane %v4173, 4
    %v4176 = vshll.u32 %v3579, 16
    %v4178 = vrot.slane %v4176, 5
    %v4179 = vsel %vm270, %v4174, %v4178
    %v4181 = vshrl.u32 %v3580, 16
    %v4183 = vrot.slane %v4181, 4
    %v4184 = vshll.u32 %v3580, 16
    %v4186 = vrot.slane %v4184, 5
    %v4187 = vor.u32 %v4183, %v4186
    %v4188 = vrot.slane %v4187, 4
    %v4190 = vshll.u32 %v3581, 16
    %v4192 = vrot.slane %v4190, 5
    %v4193 = vsel %vm270, %v4188, %v4192
    %v4194 = vshrl.u32 %v3581, 16
    %v4196 = vrot.slane %v4194, 4
    %v4197 = vor.u32 %v4196, %v4192
    %v4198 = vrot.slane %v4197, 4
    %v4200 = vshll.u32 %v3582, 16
    %v4202 = vrot.slane %v4200, 5
    %v4203 = vsel %vm270, %v4198, %v4202
    %v4205 = vshrl.u32 %v3583, 16
    %v4207 = vrot.slane %v4205, 4
    %v4208 = vshll.u32 %v3583, 16
    %v4210 = vrot.slane %v4208, 5
    %v4211 = vor.u32 %v4207, %v4210
    %v4212 = vrot.slane %v4211, 4
    %v4214 = vshll.u32 %v3584, 16
    %v4216 = vrot.slane %v4214, 5
    %v4217 = vsel %vm270, %v4212, %v4216
    %v4218 = vshrl.u32 %v3584, 16
    %v4220 = vrot.slane %v4218, 4
    %v4221 = vor.u32 %v4220, %v4216
    %v4222 = vrot.slane %v4221, 4
    %v4224 = vshll.u32 %v3585, 16
    %v4226 = vrot.slane %v4224, 5
    %v4227 = vsel %vm270, %v4222, %v4226
    %v4229 = vshrl.u32 %v3586, 16
    %v4231 = vrot.slane %v4229, 4
    %v4232 = vshll.u32 %v3586, 16
    %v4234 = vrot.slane %v4232, 5
    %v4235 = vor.u32 %v4231, %v4234
    %v4236 = vrot.slane %v4235, 4
    %v4238 = vshll.u32 %v3587, 16
    %v4240 = vrot.slane %v4238, 5
    %v4241 = vsel %vm270, %v4236, %v4240
    %v4242 = vshrl.u32 %v3587, 16
    %v4244 = vrot.slane %v4242, 4
    %v4245 = vor.u32 %v4244, %v4240
    %v4246 = vrot.slane %v4245, 4
    %v4248 = vshll.u32 %v3588, 16
    %v4250 = vrot.slane %v4248, 5
    %v4251 = vsel %vm270, %v4246, %v4250
    %v4253 = vshrl.u32 %v3589, 16
    %v4255 = vrot.slane %v4253, 4
    %v4256 = vshll.u32 %v3589, 16
    %v4258 = vrot.slane %v4256, 5
    %v4259 = vor.u32 %v4255, %v4258
    %v4260 = vrot.slane %v4259, 4
    %v4262 = vshll.u32 %v3590, 16
    %v4264 = vrot.slane %v4262, 5
    %v4265 = vsel %vm270, %v4260, %v4264
    %v4266 = vshrl.u32 %v3590, 16
    %v4268 = vrot.slane %v4266, 4
    %v4269 = vor.u32 %v4268, %v4264
    %v4270 = vrot.slane %v4269, 4
    %v4272 = vshll.u32 %v3591, 16
    %v4274 = vrot.slane %v4272, 5
    %v4275 = vsel %vm270, %v4270, %v4274
    %v4277 = vshrl.u32 %v3592, 16
    %v4279 = vrot.slane %v4277, 4
    %v4280 = vshll.u32 %v3592, 16
    %v4282 = vrot.slane %v4280, 5
    %v4283 = vor.u32 %v4279, %v4282
    %v4284 = vrot.slane %v4283, 4
    %v4286 = vshll.u32 %v3593, 16
    %v4288 = vrot.slane %v4286, 5
    %v4289 = vsel %vm270, %v4284, %v4288
    %v4290 = vshrl.u32 %v3593, 16
    %v4292 = vrot.slane %v4290, 4
    %v4293 = vor.u32 %v4292, %v4288
    %v4294 = vrot.slane %v4293, 4
    %v4296 = vshll.u32 %v3594, 16
    %v4298 = vrot.slane %v4296, 5
    %v4299 = vsel %vm270, %v4294, %v4298
    %v4301 = vshrl.u32 %v3595, 16
    %v4303 = vrot.slane %v4301, 4
    %v4304 = vshll.u32 %v3595, 16
    %v4306 = vrot.slane %v4304, 5
    %v4307 = vor.u32 %v4303, %v4306
    %v4308 = vrot.slane %v4307, 4
    %v4310 = vshll.u32 %v3596, 16
    %v4312 = vrot.slane %v4310, 5
    %v4313 = vsel %vm270, %v4308, %v4312
    %v4314 = vshrl.u32 %v3596, 16
    %v4316 = vrot.slane %v4314, 4
    %v4317 = vor.u32 %v4316, %v4312
    %v4318 = vrot.slane %v4317, 4
    %v4320 = vshll.u32 %v3597, 16
    %v4322 = vrot.slane %v4320, 5
    %v4323 = vsel %vm270, %v4318, %v4322
    %v4325 = vshrl.u32 %v3598, 16
    %v4327 = vrot.slane %v4325, 4
    %v4328 = vshll.u32 %v3598, 16
    %v4330 = vrot.slane %v4328, 5
    %v4331 = vor.u32 %v4327, %v4330
    %v4332 = vrot.slane %v4331, 4
    %v4334 = vshll.u32 %v3599, 16
    %v4336 = vrot.slane %v4334, 5
    %v4337 = vsel %vm270, %v4332, %v4336
    %v4338 = vshrl.u32 %v3599, 16
    %v4340 = vrot.slane %v4338, 4
    %v4341 = vor.u32 %v4340, %v4336
    %v4342 = vrot.slane %v4341, 4
    %v4344 = vshll.u32 %v3600, 16
    %v4346 = vrot.slane %v4344, 5
    %v4347 = vsel %vm270, %v4342, %v4346
    %v4349 = vshrl.u32 %v3601, 16
    %v4351 = vrot.slane %v4349, 4
    %v4352 = vshll.u32 %v3601, 16
    %v4354 = vrot.slane %v4352, 5
    %v4355 = vor.u32 %v4351, %v4354
    %v4356 = vrot.slane %v4355, 4
    %v4358 = vshll.u32 %v3602, 16
    %v4360 = vrot.slane %v4358, 5
    %v4361 = vsel %vm270, %v4356, %v4360
    %v4362 = vshrl.u32 %v3602, 16
    %v4364 = vrot.slane %v4362, 4
    %v4365 = vor.u32 %v4364, %v4360
    %v4366 = vrot.slane %v4365, 4
    %v4368 = vshll.u32 %v3603, 16
    %v4370 = vrot.slane %v4368, 5
    %v4371 = vsel %vm270, %v4366, %v4370
    %4436 = vst [vmem:[#allocation2 + $0x1c] sm:$0xf] %v3617
    %4437 = vst [vmem:[#allocation2 + $0x40] sm:$0xf] %v3627
    %4438 = vst [vmem:[#allocation2 + $0x64] sm:$0xf] %v3641
    %4439 = vst [vmem:[#allocation2 + $0x88] sm:$0xf] %v3651
    %4440 = vst [vmem:[#allocation2 + $0xac] sm:$0xf] %v3665
    %4441 = vst [vmem:[#allocation2 + $0xd0] sm:$0xf] %v3675
    %4442 = vst [vmem:[#allocation2 + $0xf4] sm:$0xf] %v3689
    %4443 = vst [vmem:[#allocation2 + $0x118] sm:$0xf] %v3699
    %4444 = vst [vmem:[#allocation2 + $0x13c] sm:$0xf] %v3713
    %4445 = vst [vmem:[#allocation2 + $0x160] sm:$0xf] %v3723
    %4446 = vst [vmem:[#allocation2 + $0x184] sm:$0xf] %v3737
    %4447 = vst [vmem:[#allocation2 + $0x1a8] sm:$0xf] %v3747
    %4448 = vst [vmem:[#allocation2 + $0x1cc] sm:$0xf] %v3761
    %4449 = vst [vmem:[#allocation2 + $0x1f0] sm:$0xf] %v3771
    %4450 = vst [vmem:[#allocation2 + $0x214] sm:$0xf] %v3785
    %4451 = vst [vmem:[#allocation2 + $0x238] sm:$0xf] %v3795
    %4452 = vst [vmem:[#allocation2 + $0x25c] sm:$0xf] %v3809
    %4453 = vst [vmem:[#allocation2 + $0x280] sm:$0xf] %v3819
    %4454 = vst [vmem:[#allocation2 + $0x2a4] sm:$0xf] %v3833
    %4455 = vst [vmem:[#allocation2 + $0x2c8] sm:$0xf] %v3843
    %4456 = vst [vmem:[#allocation2 + $0x2ec] sm:$0xf] %v3857
    %4457 = vst [vmem:[#allocation2 + $0x310] sm:$0xf] %v3867
    %4458 = vst [vmem:[#allocation2 + $0x334] sm:$0xf] %v3881
    %4459 = vst [vmem:[#allocation2 + $0x358] sm:$0xf] %v3891
    %4460 = vst [vmem:[#allocation2 + $0x37c] sm:$0xf] %v3905
    %4461 = vst [vmem:[#allocation2 + $0x3a0] sm:$0xf] %v3915
    %4462 = vst [vmem:[#allocation2 + $0x3c4] sm:$0xf] %v3929
    %4463 = vst [vmem:[#allocation2 + $0x3e8] sm:$0xf] %v3939
    %4464 = vst [vmem:[#allocation2 + $0x40c] sm:$0xf] %v3953
    %4465 = vst [vmem:[#allocation2 + $0x430] sm:$0xf] %v3963
    %4466 = vst [vmem:[#allocation2 + $0x454] sm:$0xf] %v3977
    %4467 = vst [vmem:[#allocation2 + $0x478] sm:$0xf] %v3987
    %4468 = vst [vmem:[#allocation2 + $0x49c] sm:$0xf] %v4001
    %4469 = vst [vmem:[#allocation2 + $0x4c0] sm:$0xf] %v4011
    %4470 = vst [vmem:[#allocation2 + $0x4e4] sm:$0xf] %v4025
    %4471 = vst [vmem:[#allocation2 + $0x508] sm:$0xf] %v4035
    %4472 = vst [vmem:[#allocation2 + $0x52c] sm:$0xf] %v4049
    %4473 = vst [vmem:[#allocation2 + $0x550] sm:$0xf] %v4059
    %4474 = vst [vmem:[#allocation2 + $0x574] sm:$0xf] %v4073
    %4475 = vst [vmem:[#allocation2 + $0x598] sm:$0xf] %v4083
    %4476 = vst [vmem:[#allocation2 + $0x5bc] sm:$0xf] %v4097
    %4477 = vst [vmem:[#allocation2 + $0x5e0] sm:$0xf] %v4107
    %4478 = vst [vmem:[#allocation2 + $0x604] sm:$0xf] %v4121
    %4479 = vst [vmem:[#allocation2 + $0x628] sm:$0xf] %v4131
    %4480 = vst [vmem:[#allocation2 + $0x64c] sm:$0xf] %v4145
    %4481 = vst [vmem:[#allocation2 + $0x670] sm:$0xf] %v4155
    %4482 = vst [vmem:[#allocation2 + $0x694] sm:$0xf] %v4169
    %4483 = vst [vmem:[#allocation2 + $0x6b8] sm:$0xf] %v4179
    %4484 = vst [vmem:[#allocation2 + $0x6dc] sm:$0xf] %v4193
    %4485 = vst [vmem:[#allocation2 + $0x700] sm:$0xf] %v4203
    %4486 = vst [vmem:[#allocation2 + $0x724] sm:$0xf] %v4217
    %4487 = vst [vmem:[#allocation2 + $0x748] sm:$0xf] %v4227
    %4488 = vst [vmem:[#allocation2 + $0x76c] sm:$0xf] %v4241
    %4489 = vst [vmem:[#allocation2 + $0x790] sm:$0xf] %v4251
    %4490 = vst [vmem:[#allocation2 + $0x7b4] sm:$0xf] %v4265
    %4491 = vst [vmem:[#allocation2 + $0x7d8] sm:$0xf] %v4275
    %4492 = vst [vmem:[#allocation2 + $0x7fc] sm:$0xf] %v4289
    %4493 = vst [vmem:[#allocation2 + $0x820] sm:$0xf] %v4299
    %4494 = vst [vmem:[#allocation2 + $0x844] sm:$0xf] %v4313
    %4495 = vst [vmem:[#allocation2 + $0x868] sm:$0xf] %v4323
    %4496 = vst [vmem:[#allocation2 + $0x88c] sm:$0xf] %v4337
    %4497 = vst [vmem:[#allocation2 + $0x8b0] sm:$0xf] %v4347
    %4498 = vst [vmem:[#allocation2 + $0x8d4] sm:$0xf] %v4361
    %4499 = vst [vmem:[#allocation2 + $0x8f8] sm:$0xf] %v4371
    %v4500 = vld [vmem:[%s3379] sm:$0xe]
    %v4501 = vld [vmem:[%s3379 + $0x4] sm:$0xf]
    %v4502 = vld [vmem:[%s3379 + $0x8] sm:$0x1]
    %v4503 = vld [vmem:[%s3379 + $0xc] sm:$0xe]
    %v4504 = vld [vmem:[%s3379 + $0x10] sm:$0xf]
    %v4505 = vld [vmem:[%s3379 + $0x14] sm:$0x1]
    %v4506 = vld [vmem:[%s3379 + $0x18] sm:$0xe]
    %v4507 = vld [vmem:[%s3379 + $0x1c] sm:$0xf]
    %v4508 = vld [vmem:[%s3379 + $0x20] sm:$0x1]
    %v4509 = vld [vmem:[%s3379 + $0x24] sm:$0xe]
    %v4510 = vld [vmem:[%s3379 + $0x28] sm:$0xf]
    %v4511 = vld [vmem:[%s3379 + $0x2c] sm:$0x1]
    %v4512 = vld [vmem:[%s3379 + $0x30] sm:$0xe]
    %v4513 = vld [vmem:[%s3379 + $0x34] sm:$0xf]
    %v4514 = vld [vmem:[%s3379 + $0x38] sm:$0x1]
    %v4515 = vld [vmem:[%s3379 + $0x3c] sm:$0xe]
    %v4516 = vld [vmem:[%s3379 + $0x40] sm:$0xf]
    %v4517 = vld [vmem:[%s3379 + $0x44] sm:$0x1]
    %v4518 = vld [vmem:[%s3379 + $0x48] sm:$0xe]
    %v4519 = vld [vmem:[%s3379 + $0x4c] sm:$0xf]
    %v4520 = vld [vmem:[%s3379 + $0x50] sm:$0x1]
    %v4521 = vld [vmem:[%s3379 + $0x54] sm:$0xe]
    %v4522 = vld [vmem:[%s3379 + $0x58] sm:$0xf]
    %v4523 = vld [vmem:[%s3379 + $0x5c] sm:$0x1]
    %v4524 = vld [vmem:[%s3379 + $0x60] sm:$0xe]
    %v4525 = vld [vmem:[%s3379 + $0x64] sm:$0xf]
    %v4526 = vld [vmem:[%s3379 + $0x68] sm:$0x1]
    %v4527 = vld [vmem:[%s3379 + $0x6c] sm:$0xe]
    %v4528 = vld [vmem:[%s3379 + $0x70] sm:$0xf]
    %v4529 = vld [vmem:[%s3379 + $0x74] sm:$0x1]
    %v4530 = vld [vmem:[%s3379 + $0x78] sm:$0xe]
    %v4531 = vld [vmem:[%s3379 + $0x7c] sm:$0xf]
    %v4532 = vld [vmem:[%s3379 + $0x80] sm:$0x1]
    %v4533 = vld [vmem:[%s3379 + $0x84] sm:$0xe]
    %v4534 = vld [vmem:[%s3379 + $0x88] sm:$0xf]
    %v4535 = vld [vmem:[%s3379 + $0x8c] sm:$0x1]
    %v4536 = vld [vmem:[%s3379 + $0x90] sm:$0xe]
    %v4537 = vld [vmem:[%s3379 + $0x94] sm:$0xf]
    %v4538 = vld [vmem:[%s3379 + $0x98] sm:$0x1]
    %v4539 = vld [vmem:[%s3379 + $0x9c] sm:$0xe]
    %v4540 = vld [vmem:[%s3379 + $0xa0] sm:$0xf]
    %v4541 = vld [vmem:[%s3379 + $0xa4] sm:$0x1]
    %v4542 = vld [vmem:[%s3379 + $0xa8] sm:$0xe]
    %v4543 = vld [vmem:[%s3379 + $0xac] sm:$0xf]
    %v4544 = vld [vmem:[%s3379 + $0xb0] sm:$0x1]
    %v4545 = vld [vmem:[%s3379 + $0xb4] sm:$0xe]
    %v4546 = vld [vmem:[%s3379 + $0xb8] sm:$0xf]
    %v4547 = vld [vmem:[%s3379 + $0xbc] sm:$0x1]
    %v4548 = vld [vmem:[%s3379 + $0xd8] sm:$0xe]
    %v4549 = vld [vmem:[%s3379 + $0xdc] sm:$0xf]
    %v4550 = vld [vmem:[%s3379 + $0xe0] sm:$0x1]
    %v4551 = vld [vmem:[%s3379 + $0xe4] sm:$0xe]
    %v4552 = vld [vmem:[%s3379 + $0xe8] sm:$0xf]
    %v4553 = vld [vmem:[%s3379 + $0xec] sm:$0x1]
    %v4554 = vld [vmem:[%s3379 + $0xf0] sm:$0xe]
    %v4555 = vld [vmem:[%s3379 + $0xf4] sm:$0xf]
    %v4556 = vld [vmem:[%s3379 + $0xf8] sm:$0x1]
    %v4557 = vld [vmem:[%s3379 + $0xfc] sm:$0xe]
    %v4558 = vld [vmem:[%s3379 + $0x100] sm:$0xf]
    %v4559 = vld [vmem:[%s3379 + $0x104] sm:$0x1]
    %v4560 = vld [vmem:[%s3379 + $0x108] sm:$0xe]
    %v4561 = vld [vmem:[%s3379 + $0x10c] sm:$0xf]
    %v4562 = vld [vmem:[%s3379 + $0x110] sm:$0x1]
    %v4563 = vld [vmem:[%s3379 + $0x114] sm:$0xe]
    %v4564 = vld [vmem:[%s3379 + $0x118] sm:$0xf]
    %v4565 = vld [vmem:[%s3379 + $0x11c] sm:$0x1]
    %v4566 = vld [vmem:[%s3379 + $0x120] sm:$0xe]
    %v4567 = vld [vmem:[%s3379 + $0x124] sm:$0xf]
    %v4568 = vld [vmem:[%s3379 + $0x128] sm:$0x1]
    %v4569 = vld [vmem:[%s3379 + $0x12c] sm:$0xe]
    %v4570 = vld [vmem:[%s3379 + $0x130] sm:$0xf]
    %v4571 = vld [vmem:[%s3379 + $0x134] sm:$0x1]
    %v4572 = vld [vmem:[%s3379 + $0x138] sm:$0xe]
    %v4573 = vld [vmem:[%s3379 + $0x13c] sm:$0xf]
    %v4574 = vld [vmem:[%s3379 + $0x140] sm:$0x1]
    %v4575 = vld [vmem:[%s3379 + $0x144] sm:$0xe]
    %v4576 = vld [vmem:[%s3379 + $0x148] sm:$0xf]
    %v4577 = vld [vmem:[%s3379 + $0x14c] sm:$0x1]
    %v4578 = vld [vmem:[%s3379 + $0x150] sm:$0xe]
    %v4579 = vld [vmem:[%s3379 + $0x154] sm:$0xf]
    %v4580 = vld [vmem:[%s3379 + $0x158] sm:$0x1]
    %v4581 = vld [vmem:[%s3379 + $0x15c] sm:$0xe]
    %v4582 = vld [vmem:[%s3379 + $0x160] sm:$0xf]
    %v4583 = vld [vmem:[%s3379 + $0x164] sm:$0x1]
    %v4584 = vld [vmem:[%s3379 + $0x168] sm:$0xe]
    %v4585 = vld [vmem:[%s3379 + $0x16c] sm:$0xf]
    %v4586 = vld [vmem:[%s3379 + $0x170] sm:$0x1]
    %v4587 = vld [vmem:[%s3379 + $0x174] sm:$0xe]
    %v4588 = vld [vmem:[%s3379 + $0x178] sm:$0xf]
    %v4589 = vld [vmem:[%s3379 + $0x17c] sm:$0x1]
    %v4590 = vld [vmem:[%s3379 + $0x180] sm:$0xe]
    %v4591 = vld [vmem:[%s3379 + $0x184] sm:$0xf]
    %v4592 = vld [vmem:[%s3379 + $0x188] sm:$0x1]
    %v4593 = vld [vmem:[%s3379 + $0x18c] sm:$0xe]
    %v4594 = vld [vmem:[%s3379 + $0x190] sm:$0xf]
    %v4595 = vld [vmem:[%s3379 + $0x194] sm:$0x1]
    %v4692 = vrot.slane %v4500, 5
    %v4693 = vrot.slane %v4692, 4
    %v4694 = vrot.slane %v4501, 5
    %v4695 = vsel %vm1361, %v4693, %v4694
    %v4696 = vrot.slane %v4694, 4
    %v4697 = vrot.slane %v4502, 5
    %v4698 = vsel %vm1361, %v4696, %v4697
    %v4699 = vrot.slane %v4503, 5
    %v4700 = vrot.slane %v4699, 4
    %v4701 = vrot.slane %v4504, 5
    %v4702 = vsel %vm1361, %v4700, %v4701
    %v4703 = vrot.slane %v4701, 4
    %v4704 = vrot.slane %v4505, 5
    %v4705 = vsel %vm1361, %v4703, %v4704
    %v4706 = vrot.slane %v4506, 5
    %v4707 = vrot.slane %v4706, 4
    %v4708 = vrot.slane %v4507, 5
    %v4709 = vsel %vm1361, %v4707, %v4708
    %v4710 = vrot.slane %v4708, 4
    %v4711 = vrot.slane %v4508, 5
    %v4712 = vsel %vm1361, %v4710, %v4711
    %v4713 = vrot.slane %v4509, 5
    %v4714 = vrot.slane %v4713, 4
    %v4715 = vrot.slane %v4510, 5
    %v4716 = vsel %vm1361, %v4714, %v4715
    %v4717 = vrot.slane %v4715, 4
    %v4718 = vrot.slane %v4511, 5
    %v4719 = vsel %vm1361, %v4717, %v4718
    %v4720 = vrot.slane %v4512, 5
    %v4721 = vrot.slane %v4720, 4
    %v4722 = vrot.slane %v4513, 5
    %v4723 = vsel %vm1361, %v4721, %v4722
    %v4724 = vrot.slane %v4722, 4
    %v4725 = vrot.slane %v4514, 5
    %v4726 = vsel %vm1361, %v4724, %v4725
    %v4727 = vrot.slane %v4515, 5
    %v4728 = vrot.slane %v4727, 4
    %v4729 = vrot.slane %v4516, 5
    %v4730 = vsel %vm1361, %v4728, %v4729
    %v4731 = vrot.slane %v4729, 4
    %v4732 = vrot.slane %v4517, 5
    %v4733 = vsel %vm1361, %v4731, %v4732
    %v4734 = vrot.slane %v4518, 5
    %v4735 = vrot.slane %v4734, 4
    %v4736 = vrot.slane %v4519, 5
    %v4737 = vsel %vm1361, %v4735, %v4736
    %v4738 = vrot.slane %v4736, 4
    %v4739 = vrot.slane %v4520, 5
    %v4740 = vsel %vm1361, %v4738, %v4739
    %v4741 = vrot.slane %v4521, 5
    %v4742 = vrot.slane %v4741, 4
    %v4743 = vrot.slane %v4522, 5
    %v4744 = vsel %vm1361, %v4742, %v4743
    %v4745 = vrot.slane %v4743, 4
    %v4746 = vrot.slane %v4523, 5
    %v4747 = vsel %vm1361, %v4745, %v4746
    %v4748 = vrot.slane %v4524, 5
    %v4749 = vrot.slane %v4748, 4
    %v4750 = vrot.slane %v4525, 5
    %v4751 = vsel %vm1361, %v4749, %v4750
    %v4752 = vrot.slane %v4750, 4
    %v4753 = vrot.slane %v4526, 5
    %v4754 = vsel %vm1361, %v4752, %v4753
    %v4755 = vrot.slane %v4527, 5
    %v4756 = vrot.slane %v4755, 4
    %v4757 = vrot.slane %v4528, 5
    %v4758 = vsel %vm1361, %v4756, %v4757
    %v4759 = vrot.slane %v4757, 4
    %v4760 = vrot.slane %v4529, 5
    %v4761 = vsel %vm1361, %v4759, %v4760
    %v4762 = vrot.slane %v4530, 5
    %v4763 = vrot.slane %v4762, 4
    %v4764 = vrot.slane %v4531, 5
    %v4765 = vsel %vm1361, %v4763, %v4764
    %v4766 = vrot.slane %v4764, 4
    %v4767 = vrot.slane %v4532, 5
    %v4768 = vsel %vm1361, %v4766, %v4767
    %v4769 = vrot.slane %v4533, 5
    %v4770 = vrot.slane %v4769, 4
    %v4771 = vrot.slane %v4534, 5
    %v4772 = vsel %vm1361, %v4770, %v4771
    %v4773 = vrot.slane %v4771, 4
    %v4774 = vrot.slane %v4535, 5
    %v4775 = vsel %vm1361, %v4773, %v4774
    %v4776 = vrot.slane %v4536, 5
    %v4777 = vrot.slane %v4776, 4
    %v4778 = vrot.slane %v4537, 5
    %v4779 = vsel %vm1361, %v4777, %v4778
    %v4780 = vrot.slane %v4778, 4
    %v4781 = vrot.slane %v4538, 5
    %v4782 = vsel %vm1361, %v4780, %v4781
    %v4783 = vrot.slane %v4539, 5
    %v4784 = vrot.slane %v4783, 4
    %v4785 = vrot.slane %v4540, 5
    %v4786 = vsel %vm1361, %v4784, %v4785
    %v4787 = vrot.slane %v4785, 4
    %v4788 = vrot.slane %v4541, 5
    %v4789 = vsel %vm1361, %v4787, %v4788
    %v4790 = vrot.slane %v4542, 5
    %v4791 = vrot.slane %v4790, 4
    %v4792 = vrot.slane %v4543, 5
    %v4793 = vsel %vm1361, %v4791, %v4792
    %v4794 = vrot.slane %v4792, 4
    %v4795 = vrot.slane %v4544, 5
    %v4796 = vsel %vm1361, %v4794, %v4795
    %v4797 = vrot.slane %v4545, 5
    %v4798 = vrot.slane %v4797, 4
    %v4799 = vrot.slane %v4546, 5
    %v4800 = vsel %vm1361, %v4798, %v4799
    %v4801 = vrot.slane %v4799, 4
    %v4802 = vrot.slane %v4547, 5
    %v4803 = vsel %vm1361, %v4801, %v4802
    %v4804 = vrot.slane %v4548, 5
    %v4805 = vrot.slane %v4804, 4
    %v4806 = vrot.slane %v4549, 5
    %v4807 = vsel %vm1361, %v4805, %v4806
    %v4808 = vrot.slane %v4806, 4
    %v4809 = vrot.slane %v4550, 5
    %v4810 = vsel %vm1361, %v4808, %v4809
    %v4811 = vrot.slane %v4551, 5
    %v4812 = vrot.slane %v4811, 4
    %v4813 = vrot.slane %v4552, 5
    %v4814 = vsel %vm1361, %v4812, %v4813
    %v4815 = vrot.slane %v4813, 4
    %v4816 = vrot.slane %v4553, 5
    %v4817 = vsel %vm1361, %v4815, %v4816
    %v4818 = vrot.slane %v4554, 5
    %v4819 = vrot.slane %v4818, 4
    %v4820 = vrot.slane %v4555, 5
    %v4821 = vsel %vm1361, %v4819, %v4820
    %v4822 = vrot.slane %v4820, 4
    %v4823 = vrot.slane %v4556, 5
    %v4824 = vsel %vm1361, %v4822, %v4823
    %v4825 = vrot.slane %v4557, 5
    %v4826 = vrot.slane %v4825, 4
    %v4827 = vrot.slane %v4558, 5
    %v4828 = vsel %vm1361, %v4826, %v4827
    %v4829 = vrot.slane %v4827, 4
    %v4830 = vrot.slane %v4559, 5
    %v4831 = vsel %vm1361, %v4829, %v4830
    %v4832 = vrot.slane %v4560, 5
    %v4833 = vrot.slane %v4832, 4
    %v4834 = vrot.slane %v4561, 5
    %v4835 = vsel %vm1361, %v4833, %v4834
    %v4836 = vrot.slane %v4834, 4
    %v4837 = vrot.slane %v4562, 5
    %v4838 = vsel %vm1361, %v4836, %v4837
    %v4839 = vrot.slane %v4563, 5
    %v4840 = vrot.slane %v4839, 4
    %v4841 = vrot.slane %v4564, 5
    %v4842 = vsel %vm1361, %v4840, %v4841
    %v4843 = vrot.slane %v4841, 4
    %v4844 = vrot.slane %v4565, 5
    %v4845 = vsel %vm1361, %v4843, %v4844
    %v4846 = vrot.slane %v4566, 5
    %v4847 = vrot.slane %v4846, 4
    %v4848 = vrot.slane %v4567, 5
    %v4849 = vsel %vm1361, %v4847, %v4848
    %v4850 = vrot.slane %v4848, 4
    %v4851 = vrot.slane %v4568, 5
    %v4852 = vsel %vm1361, %v4850, %v4851
    %v4853 = vrot.slane %v4569, 5
    %v4854 = vrot.slane %v4853, 4
    %v4855 = vrot.slane %v4570, 5
    %v4856 = vsel %vm1361, %v4854, %v4855
    %v4857 = vrot.slane %v4855, 4
    %v4858 = vrot.slane %v4571, 5
    %v4859 = vsel %vm1361, %v4857, %v4858
    %v4860 = vrot.slane %v4572, 5
    %v4861 = vrot.slane %v4860, 4
    %v4862 = vrot.slane %v4573, 5
    %v4863 = vsel %vm1361, %v4861, %v4862
    %v4864 = vrot.slane %v4862, 4
    %v4865 = vrot.slane %v4574, 5
    %v4866 = vsel %vm1361, %v4864, %v4865
    %v4867 = vrot.slane %v4575, 5
    %v4868 = vrot.slane %v4867, 4
    %v4869 = vrot.slane %v4576, 5
    %v4870 = vsel %vm1361, %v4868, %v4869
    %v4871 = vrot.slane %v4869, 4
    %v4872 = vrot.slane %v4577, 5
    %v4873 = vsel %vm1361, %v4871, %v4872
    %v4874 = vrot.slane %v4578, 5
    %v4875 = vrot.slane %v4874, 4
    %v4876 = vrot.slane %v4579, 5
    %v4877 = vsel %vm1361, %v4875, %v4876
    %v4878 = vrot.slane %v4876, 4
    %v4879 = vrot.slane %v4580, 5
    %v4880 = vsel %vm1361, %v4878, %v4879
    %v4881 = vrot.slane %v4581, 5
    %v4882 = vrot.slane %v4881, 4
    %v4883 = vrot.slane %v4582, 5
    %v4884 = vsel %vm1361, %v4882, %v4883
    %v4885 = vrot.slane %v4883, 4
    %v4886 = vrot.slane %v4583, 5
    %v4887 = vsel %vm1361, %v4885, %v4886
    %v4888 = vrot.slane %v4584, 5
    %v4889 = vrot.slane %v4888, 4
    %v4890 = vrot.slane %v4585, 5
    %v4891 = vsel %vm1361, %v4889, %v4890
    %v4892 = vrot.slane %v4890, 4
    %v4893 = vrot.slane %v4586, 5
    %v4894 = vsel %vm1361, %v4892, %v4893
    %v4895 = vrot.slane %v4587, 5
    %v4896 = vrot.slane %v4895, 4
    %v4897 = vrot.slane %v4588, 5
    %v4898 = vsel %vm1361, %v4896, %v4897
    %v4899 = vrot.slane %v4897, 4
    %v4900 = vrot.slane %v4589, 5
    %v4901 = vsel %vm1361, %v4899, %v4900
    %v4902 = vrot.slane %v4590, 5
    %v4903 = vrot.slane %v4902, 4
    %v4904 = vrot.slane %v4591, 5
    %v4905 = vsel %vm1361, %v4903, %v4904
    %v4906 = vrot.slane %v4904, 4
    %v4907 = vrot.slane %v4592, 5
    %v4908 = vsel %vm1361, %v4906, %v4907
    %v4909 = vrot.slane %v4593, 5
    %v4910 = vrot.slane %v4909, 4
    %v4911 = vrot.slane %v4594, 5
    %v4912 = vsel %vm1361, %v4910, %v4911
    %v4913 = vrot.slane %v4911, 4
    %v4914 = vrot.slane %v4595, 5
    %v4915 = vsel %vm1361, %v4913, %v4914
    %4980 = vst [vmem:[#allocation2 + $0x20] sm:$0xf] %v4695
    %4981 = vst [vmem:[#allocation2 + $0x44] sm:$0xf] %v4698
    %4982 = vst [vmem:[#allocation2 + $0x68] sm:$0xf] %v4702
    %4983 = vst [vmem:[#allocation2 + $0x8c] sm:$0xf] %v4705
    %4984 = vst [vmem:[#allocation2 + $0xb0] sm:$0xf] %v4709
    %4985 = vst [vmem:[#allocation2 + $0xd4] sm:$0xf] %v4712
    %4986 = vst [vmem:[#allocation2 + $0xf8] sm:$0xf] %v4716
    %4987 = vst [vmem:[#allocation2 + $0x11c] sm:$0xf] %v4719
    %4988 = vst [vmem:[#allocation2 + $0x140] sm:$0xf] %v4723
    %4989 = vst [vmem:[#allocation2 + $0x164] sm:$0xf] %v4726
    %4990 = vst [vmem:[#allocation2 + $0x188] sm:$0xf] %v4730
    %4991 = vst [vmem:[#allocation2 + $0x1ac] sm:$0xf] %v4733
    %4992 = vst [vmem:[#allocation2 + $0x1d0] sm:$0xf] %v4737
    %4993 = vst [vmem:[#allocation2 + $0x1f4] sm:$0xf] %v4740
    %4994 = vst [vmem:[#allocation2 + $0x218] sm:$0xf] %v4744
    %4995 = vst [vmem:[#allocation2 + $0x23c] sm:$0xf] %v4747
    %4996 = vst [vmem:[#allocation2 + $0x260] sm:$0xf] %v4751
    %4997 = vst [vmem:[#allocation2 + $0x284] sm:$0xf] %v4754
    %4998 = vst [vmem:[#allocation2 + $0x2a8] sm:$0xf] %v4758
    %4999 = vst [vmem:[#allocation2 + $0x2cc] sm:$0xf] %v4761
    %5000 = vst [vmem:[#allocation2 + $0x2f0] sm:$0xf] %v4765
    %5001 = vst [vmem:[#allocation2 + $0x314] sm:$0xf] %v4768
    %5002 = vst [vmem:[#allocation2 + $0x338] sm:$0xf] %v4772
    %5003 = vst [vmem:[#allocation2 + $0x35c] sm:$0xf] %v4775
    %5004 = vst [vmem:[#allocation2 + $0x380] sm:$0xf] %v4779
    %5005 = vst [vmem:[#allocation2 + $0x3a4] sm:$0xf] %v4782
    %5006 = vst [vmem:[#allocation2 + $0x3c8] sm:$0xf] %v4786
    %5007 = vst [vmem:[#allocation2 + $0x3ec] sm:$0xf] %v4789
    %5008 = vst [vmem:[#allocation2 + $0x410] sm:$0xf] %v4793
    %5009 = vst [vmem:[#allocation2 + $0x434] sm:$0xf] %v4796
    %5010 = vst [vmem:[#allocation2 + $0x458] sm:$0xf] %v4800
    %5011 = vst [vmem:[#allocation2 + $0x47c] sm:$0xf] %v4803
    %5012 = vst [vmem:[#allocation2 + $0x4a0] sm:$0xf] %v4807
    %5013 = vst [vmem:[#allocation2 + $0x4c4] sm:$0xf] %v4810
    %5014 = vst [vmem:[#allocation2 + $0x4e8] sm:$0xf] %v4814
    %5015 = vst [vmem:[#allocation2 + $0x50c] sm:$0xf] %v4817
    %5016 = vst [vmem:[#allocation2 + $0x530] sm:$0xf] %v4821
    %5017 = vst [vmem:[#allocation2 + $0x554] sm:$0xf] %v4824
    %5018 = vst [vmem:[#allocation2 + $0x578] sm:$0xf] %v4828
    %5019 = vst [vmem:[#allocation2 + $0x59c] sm:$0xf] %v4831
    %5020 = vst [vmem:[#allocation2 + $0x5c0] sm:$0xf] %v4835
    %5021 = vst [vmem:[#allocation2 + $0x5e4] sm:$0xf] %v4838
    %5022 = vst [vmem:[#allocation2 + $0x608] sm:$0xf] %v4842
    %5023 = vst [vmem:[#allocation2 + $0x62c] sm:$0xf] %v4845
    %5024 = vst [vmem:[#allocation2 + $0x650] sm:$0xf] %v4849
    %5025 = vst [vmem:[#allocation2 + $0x674] sm:$0xf] %v4852
    %5026 = vst [vmem:[#allocation2 + $0x698] sm:$0xf] %v4856
    %5027 = vst [vmem:[#allocation2 + $0x6bc] sm:$0xf] %v4859
    %5028 = vst [vmem:[#allocation2 + $0x6e0] sm:$0xf] %v4863
    %5029 = vst [vmem:[#allocation2 + $0x704] sm:$0xf] %v4866
    %5030 = vst [vmem:[#allocation2 + $0x728] sm:$0xf] %v4870
    %5031 = vst [vmem:[#allocation2 + $0x74c] sm:$0xf] %v4873
    %5032 = vst [vmem:[#allocation2 + $0x770] sm:$0xf] %v4877
    %5033 = vst [vmem:[#allocation2 + $0x794] sm:$0xf] %v4880
    %5034 = vst [vmem:[#allocation2 + $0x7b8] sm:$0xf] %v4884
    %5035 = vst [vmem:[#allocation2 + $0x7dc] sm:$0xf] %v4887
    %5036 = vst [vmem:[#allocation2 + $0x800] sm:$0xf] %v4891
    %5037 = vst [vmem:[#allocation2 + $0x824] sm:$0xf] %v4894
    %5038 = vst [vmem:[#allocation2 + $0x848] sm:$0xf] %v4898
    %5039 = vst [vmem:[#allocation2 + $0x86c] sm:$0xf] %v4901
    %5040 = vst [vmem:[#allocation2 + $0x890] sm:$0xf] %v4905
    %5041 = vst [vmem:[#allocation2 + $0x8b4] sm:$0xf] %v4908
    %5042 = vst [vmem:[#allocation2 + $0x8d8] sm:$0xf] %v4912
    %5043 = vst [vmem:[#allocation2 + $0x8fc] sm:$0xf] %v4915
    %v5044 = vld [vmem:[#allocation2] sm:$0xff]
    %v5045 = vld [vmem:[#allocation2 + $0x8] sm:$0xff]
    %v5046 = vld [vmem:[#allocation2 + $0x10] sm:$0xff]
    %v5047 = vld [vmem:[#allocation2 + $0x18] sm:$0xff]
    %v5048 = vld [vmem:[#allocation2 + $0x20] sm:$0xf]
    %v5049 = vld [vmem:[#allocation2 + $0x24] sm:$0xff]
    %v5050 = vld [vmem:[#allocation2 + $0x2c] sm:$0xff]
    %v5051 = vld [vmem:[#allocation2 + $0x34] sm:$0xff]
    %v5052 = vld [vmem:[#allocation2 + $0x3c] sm:$0xff]
    %v5053 = vld [vmem:[#allocation2 + $0x44] sm:$0xf]
    %v5054 = vld [vmem:[#allocation2 + $0x48] sm:$0xff]
    %v5055 = vld [vmem:[#allocation2 + $0x50] sm:$0xff]
    %v5056 = vld [vmem:[#allocation2 + $0x58] sm:$0xff]
    %v5057 = vld [vmem:[#allocation2 + $0x60] sm:$0xff]
    %v5058 = vld [vmem:[#allocation2 + $0x68] sm:$0xf]
    %v5059 = vld [vmem:[#allocation2 + $0x6c] sm:$0xff]
    %v5060 = vld [vmem:[#allocation2 + $0x74] sm:$0xff]
    %v5061 = vld [vmem:[#allocation2 + $0x7c] sm:$0xff]
    %v5062 = vld [vmem:[#allocation2 + $0x84] sm:$0xff]
    %v5063 = vld [vmem:[#allocation2 + $0x8c] sm:$0xf]
    %v5064 = vld [vmem:[#allocation2 + $0x90] sm:$0xff]
    %v5065 = vld [vmem:[#allocation2 + $0x98] sm:$0xff]
    %v5066 = vld [vmem:[#allocation2 + $0xa0] sm:$0xff]
    %v5067 = vld [vmem:[#allocation2 + $0xa8] sm:$0xff]
    %v5068 = vld [vmem:[#allocation2 + $0xb0] sm:$0xf]
    %v5069 = vld [vmem:[#allocation2 + $0xb4] sm:$0xff]
    %v5070 = vld [vmem:[#allocation2 + $0xbc] sm:$0xff]
    %v5071 = vld [vmem:[#allocation2 + $0xc4] sm:$0xff]
    %v5072 = vld [vmem:[#allocation2 + $0xcc] sm:$0xff]
    %v5073 = vld [vmem:[#allocation2 + $0xd4] sm:$0xf]
    %v5074 = vld [vmem:[#allocation2 + $0xd8] sm:$0xff]
    %v5075 = vld [vmem:[#allocation2 + $0xe0] sm:$0xff]
    %v5076 = vld [vmem:[#allocation2 + $0xe8] sm:$0xff]
    %v5077 = vld [vmem:[#allocation2 + $0xf0] sm:$0xff]
    %v5078 = vld [vmem:[#allocation2 + $0xf8] sm:$0xf]
    %v5079 = vld [vmem:[#allocation2 + $0xfc] sm:$0xff]
    %v5080 = vld [vmem:[#allocation2 + $0x104] sm:$0xff]
    %v5081 = vld [vmem:[#allocation2 + $0x10c] sm:$0xff]
    %v5082 = vld [vmem:[#allocation2 + $0x114] sm:$0xff]
    %v5083 = vld [vmem:[#allocation2 + $0x11c] sm:$0xf]
    %v5084 = vld [vmem:[#allocation2 + $0x120] sm:$0xff]
    %v5085 = vld [vmem:[#allocation2 + $0x128] sm:$0xff]
    %v5086 = vld [vmem:[#allocation2 + $0x130] sm:$0xff]
    %v5087 = vld [vmem:[#allocation2 + $0x138] sm:$0xff]
    %v5088 = vld [vmem:[#allocation2 + $0x140] sm:$0xf]
    %v5089 = vld [vmem:[#allocation2 + $0x144] sm:$0xff]
    %v5090 = vld [vmem:[#allocation2 + $0x14c] sm:$0xff]
    %v5091 = vld [vmem:[#allocation2 + $0x154] sm:$0xff]
    %v5092 = vld [vmem:[#allocation2 + $0x15c] sm:$0xff]
    %v5093 = vld [vmem:[#allocation2 + $0x164] sm:$0xf]
    %v5094 = vld [vmem:[#allocation2 + $0x168] sm:$0xff]
    %v5095 = vld [vmem:[#allocation2 + $0x170] sm:$0xff]
    %v5096 = vld [vmem:[#allocation2 + $0x178] sm:$0xff]
    %v5097 = vld [vmem:[#allocation2 + $0x180] sm:$0xff]
    %v5098 = vld [vmem:[#allocation2 + $0x188] sm:$0xf]
    %v5099 = vld [vmem:[#allocation2 + $0x18c] sm:$0xff]
    %v5100 = vld [vmem:[#allocation2 + $0x194] sm:$0xff]
    %v5101 = vld [vmem:[#allocation2 + $0x19c] sm:$0xff]
    %v5102 = vld [vmem:[#allocation2 + $0x1a4] sm:$0xff]
    %v5103 = vld [vmem:[#allocation2 + $0x1ac] sm:$0xf]
    %v5104 = vld [vmem:[#allocation2 + $0x1b0] sm:$0xff]
    %v5105 = vld [vmem:[#allocation2 + $0x1b8] sm:$0xff]
    %v5106 = vld [vmem:[#allocation2 + $0x1c0] sm:$0xff]
    %v5107 = vld [vmem:[#allocation2 + $0x1c8] sm:$0xff]
    %v5108 = vld [vmem:[#allocation2 + $0x1d0] sm:$0xf]
    %v5109 = vld [vmem:[#allocation2 + $0x1d4] sm:$0xff]
    %v5110 = vld [vmem:[#allocation2 + $0x1dc] sm:$0xff]
    %v5111 = vld [vmem:[#allocation2 + $0x1e4] sm:$0xff]
    %v5112 = vld [vmem:[#allocation2 + $0x1ec] sm:$0xff]
    %v5113 = vld [vmem:[#allocation2 + $0x1f4] sm:$0xf]
    %v5114 = vld [vmem:[#allocation2 + $0x1f8] sm:$0xff]
    %v5115 = vld [vmem:[#allocation2 + $0x200] sm:$0xff]
    %v5116 = vld [vmem:[#allocation2 + $0x208] sm:$0xff]
    %v5117 = vld [vmem:[#allocation2 + $0x210] sm:$0xff]
    %v5118 = vld [vmem:[#allocation2 + $0x218] sm:$0xf]
    %v5119 = vld [vmem:[#allocation2 + $0x21c] sm:$0xff]
    %v5120 = vld [vmem:[#allocation2 + $0x224] sm:$0xff]
    %v5121 = vld [vmem:[#allocation2 + $0x22c] sm:$0xff]
    %v5122 = vld [vmem:[#allocation2 + $0x234] sm:$0xff]
    %v5123 = vld [vmem:[#allocation2 + $0x23c] sm:$0xf]
    %v5124 = vld [vmem:[#allocation2 + $0x240] sm:$0xff]
    %v5125 = vld [vmem:[#allocation2 + $0x248] sm:$0xff]
    %v5126 = vld [vmem:[#allocation2 + $0x250] sm:$0xff]
    %v5127 = vld [vmem:[#allocation2 + $0x258] sm:$0xff]
    %v5128 = vld [vmem:[#allocation2 + $0x260] sm:$0xf]
    %v5129 = vld [vmem:[#allocation2 + $0x264] sm:$0xff]
    %v5130 = vld [vmem:[#allocation2 + $0x26c] sm:$0xff]
    %v5131 = vld [vmem:[#allocation2 + $0x274] sm:$0xff]
    %v5132 = vld [vmem:[#allocation2 + $0x27c] sm:$0xff]
    %v5133 = vld [vmem:[#allocation2 + $0x284] sm:$0xf]
    %v5134 = vld [vmem:[#allocation2 + $0x288] sm:$0xff]
    %v5135 = vld [vmem:[#allocation2 + $0x290] sm:$0xff]
    %v5136 = vld [vmem:[#allocation2 + $0x298] sm:$0xff]
    %v5137 = vld [vmem:[#allocation2 + $0x2a0] sm:$0xff]
    %v5138 = vld [vmem:[#allocation2 + $0x2a8] sm:$0xf]
    %v5139 = vld [vmem:[#allocation2 + $0x2ac] sm:$0xff]
    %v5140 = vld [vmem:[#allocation2 + $0x2b4] sm:$0xff]
    %v5141 = vld [vmem:[#allocation2 + $0x2bc] sm:$0xff]
    %v5142 = vld [vmem:[#allocation2 + $0x2c4] sm:$0xff]
    %v5143 = vld [vmem:[#allocation2 + $0x2cc] sm:$0xf]
    %v5144 = vld [vmem:[#allocation2 + $0x2d0] sm:$0xff]
    %v5145 = vld [vmem:[#allocation2 + $0x2d8] sm:$0xff]
    %v5146 = vld [vmem:[#allocation2 + $0x2e0] sm:$0xff]
    %v5147 = vld [vmem:[#allocation2 + $0x2e8] sm:$0xff]
    %v5148 = vld [vmem:[#allocation2 + $0x2f0] sm:$0xf]
    %v5149 = vld [vmem:[#allocation2 + $0x2f4] sm:$0xff]
    %v5150 = vld [vmem:[#allocation2 + $0x2fc] sm:$0xff]
    %v5151 = vld [vmem:[#allocation2 + $0x304] sm:$0xff]
    %v5152 = vld [vmem:[#allocation2 + $0x30c] sm:$0xff]
    %v5153 = vld [vmem:[#allocation2 + $0x314] sm:$0xf]
    %v5154 = vld [vmem:[#allocation2 + $0x318] sm:$0xff]
    %v5155 = vld [vmem:[#allocation2 + $0x320] sm:$0xff]
    %v5156 = vld [vmem:[#allocation2 + $0x328] sm:$0xff]
    %v5157 = vld [vmem:[#allocation2 + $0x330] sm:$0xff]
    %v5158 = vld [vmem:[#allocation2 + $0x338] sm:$0xf]
    %v5159 = vld [vmem:[#allocation2 + $0x33c] sm:$0xff]
    %v5160 = vld [vmem:[#allocation2 + $0x344] sm:$0xff]
    %v5161 = vld [vmem:[#allocation2 + $0x34c] sm:$0xff]
    %v5162 = vld [vmem:[#allocation2 + $0x354] sm:$0xff]
    %v5163 = vld [vmem:[#allocation2 + $0x35c] sm:$0xf]
    %v5164 = vld [vmem:[#allocation2 + $0x360] sm:$0xff]
    %v5165 = vld [vmem:[#allocation2 + $0x368] sm:$0xff]
    %v5166 = vld [vmem:[#allocation2 + $0x370] sm:$0xff]
    %v5167 = vld [vmem:[#allocation2 + $0x378] sm:$0xff]
    %v5168 = vld [vmem:[#allocation2 + $0x380] sm:$0xf]
    %v5169 = vld [vmem:[#allocation2 + $0x384] sm:$0xff]
    %v5170 = vld [vmem:[#allocation2 + $0x38c] sm:$0xff]
    %v5171 = vld [vmem:[#allocation2 + $0x394] sm:$0xff]
    %v5172 = vld [vmem:[#allocation2 + $0x39c] sm:$0xff]
    %v5173 = vld [vmem:[#allocation2 + $0x3a4] sm:$0xf]
    %v5174 = vld [vmem:[#allocation2 + $0x3a8] sm:$0xff]
    %v5175 = vld [vmem:[#allocation2 + $0x3b0] sm:$0xff]
    %v5176 = vld [vmem:[#allocation2 + $0x3b8] sm:$0xff]
    %v5177 = vld [vmem:[#allocation2 + $0x3c0] sm:$0xff]
    %v5178 = vld [vmem:[#allocation2 + $0x3c8] sm:$0xf]
    %v5179 = vld [vmem:[#allocation2 + $0x3cc] sm:$0xff]
    %v5180 = vld [vmem:[#allocation2 + $0x3d4] sm:$0xff]
    %v5181 = vld [vmem:[#allocation2 + $0x3dc] sm:$0xff]
    %v5182 = vld [vmem:[#allocation2 + $0x3e4] sm:$0xff]
    %v5183 = vld [vmem:[#allocation2 + $0x3ec] sm:$0xf]
    %v5184 = vld [vmem:[#allocation2 + $0x3f0] sm:$0xff]
    %v5185 = vld [vmem:[#allocation2 + $0x3f8] sm:$0xff]
    %v5186 = vld [vmem:[#allocation2 + $0x400] sm:$0xff]
    %v5187 = vld [vmem:[#allocation2 + $0x408] sm:$0xff]
    %v5188 = vld [vmem:[#allocation2 + $0x410] sm:$0xf]
    %v5189 = vld [vmem:[#allocation2 + $0x414] sm:$0xff]
    %v5190 = vld [vmem:[#allocation2 + $0x41c] sm:$0xff]
    %v5191 = vld [vmem:[#allocation2 + $0x424] sm:$0xff]
    %v5192 = vld [vmem:[#allocation2 + $0x42c] sm:$0xff]
    %v5193 = vld [vmem:[#allocation2 + $0x434] sm:$0xf]
    %v5194 = vld [vmem:[#allocation2 + $0x438] sm:$0xff]
    %v5195 = vld [vmem:[#allocation2 + $0x440] sm:$0xff]
    %v5196 = vld [vmem:[#allocation2 + $0x448] sm:$0xff]
    %v5197 = vld [vmem:[#allocation2 + $0x450] sm:$0xff]
    %v5198 = vld [vmem:[#allocation2 + $0x458] sm:$0xf]
    %v5199 = vld [vmem:[#allocation2 + $0x45c] sm:$0xff]
    %v5200 = vld [vmem:[#allocation2 + $0x464] sm:$0xff]
    %v5201 = vld [vmem:[#allocation2 + $0x46c] sm:$0xff]
    %v5202 = vld [vmem:[#allocation2 + $0x474] sm:$0xff]
    %v5203 = vld [vmem:[#allocation2 + $0x47c] sm:$0xf]
    %v5204 = vld [vmem:[#allocation2 + $0x480] sm:$0xff]
    %v5205 = vld [vmem:[#allocation2 + $0x488] sm:$0xff]
    %v5206 = vld [vmem:[#allocation2 + $0x490] sm:$0xff]
    %v5207 = vld [vmem:[#allocation2 + $0x498] sm:$0xff]
    %v5208 = vld [vmem:[#allocation2 + $0x4a0] sm:$0xf]
    %v5209 = vld [vmem:[#allocation2 + $0x4a4] sm:$0xff]
    %v5210 = vld [vmem:[#allocation2 + $0x4ac] sm:$0xff]
    %v5211 = vld [vmem:[#allocation2 + $0x4b4] sm:$0xff]
    %v5212 = vld [vmem:[#allocation2 + $0x4bc] sm:$0xff]
    %v5213 = vld [vmem:[#allocation2 + $0x4c4] sm:$0xf]
    %v5214 = vld [vmem:[#allocation2 + $0x4c8] sm:$0xff]
    %v5215 = vld [vmem:[#allocation2 + $0x4d0] sm:$0xff]
    %v5216 = vld [vmem:[#allocation2 + $0x4d8] sm:$0xff]
    %v5217 = vld [vmem:[#allocation2 + $0x4e0] sm:$0xff]
    %v5218 = vld [vmem:[#allocation2 + $0x4e8] sm:$0xf]
    %v5219 = vld [vmem:[#allocation2 + $0x4ec] sm:$0xff]
    %v5220 = vld [vmem:[#allocation2 + $0x4f4] sm:$0xff]
    %v5221 = vld [vmem:[#allocation2 + $0x4fc] sm:$0xff]
    %v5222 = vld [vmem:[#allocation2 + $0x504] sm:$0xff]
    %v5223 = vld [vmem:[#allocation2 + $0x50c] sm:$0xf]
    %v5224 = vld [vmem:[#allocation2 + $0x510] sm:$0xff]
    %v5225 = vld [vmem:[#allocation2 + $0x518] sm:$0xff]
    %v5226 = vld [vmem:[#allocation2 + $0x520] sm:$0xff]
    %v5227 = vld [vmem:[#allocation2 + $0x528] sm:$0xff]
    %v5228 = vld [vmem:[#allocation2 + $0x530] sm:$0xf]
    %v5229 = vld [vmem:[#allocation2 + $0x534] sm:$0xff]
    %v5230 = vld [vmem:[#allocation2 + $0x53c] sm:$0xff]
    %v5231 = vld [vmem:[#allocation2 + $0x544] sm:$0xff]
    %v5232 = vld [vmem:[#allocation2 + $0x54c] sm:$0xff]
    %v5233 = vld [vmem:[#allocation2 + $0x554] sm:$0xf]
    %v5234 = vld [vmem:[#allocation2 + $0x558] sm:$0xff]
    %v5235 = vld [vmem:[#allocation2 + $0x560] sm:$0xff]
    %v5236 = vld [vmem:[#allocation2 + $0x568] sm:$0xff]
    %v5237 = vld [vmem:[#allocation2 + $0x570] sm:$0xff]
    %v5238 = vld [vmem:[#allocation2 + $0x578] sm:$0xf]
    %v5239 = vld [vmem:[#allocation2 + $0x57c] sm:$0xff]
    %v5240 = vld [vmem:[#allocation2 + $0x584] sm:$0xff]
    %v5241 = vld [vmem:[#allocation2 + $0x58c] sm:$0xff]
    %v5242 = vld [vmem:[#allocation2 + $0x594] sm:$0xff]
    %v5243 = vld [vmem:[#allocation2 + $0x59c] sm:$0xf]
    %v5244 = vld [vmem:[#allocation2 + $0x5a0] sm:$0xff]
    %v5245 = vld [vmem:[#allocation2 + $0x5a8] sm:$0xff]
    %v5246 = vld [vmem:[#allocation2 + $0x5b0] sm:$0xff]
    %v5247 = vld [vmem:[#allocation2 + $0x5b8] sm:$0xff]
    %v5248 = vld [vmem:[#allocation2 + $0x5c0] sm:$0xf]
    %v5249 = vld [vmem:[#allocation2 + $0x5c4] sm:$0xff]
    %v5250 = vld [vmem:[#allocation2 + $0x5cc] sm:$0xff]
    %v5251 = vld [vmem:[#allocation2 + $0x5d4] sm:$0xff]
    %v5252 = vld [vmem:[#allocation2 + $0x5dc] sm:$0xff]
    %v5253 = vld [vmem:[#allocation2 + $0x5e4] sm:$0xf]
    %v5254 = vld [vmem:[#allocation2 + $0x5e8] sm:$0xff]
    %v5255 = vld [vmem:[#allocation2 + $0x5f0] sm:$0xff]
    %v5256 = vld [vmem:[#allocation2 + $0x5f8] sm:$0xff]
    %v5257 = vld [vmem:[#allocation2 + $0x600] sm:$0xff]
    %v5258 = vld [vmem:[#allocation2 + $0x608] sm:$0xf]
    %v5259 = vld [vmem:[#allocation2 + $0x60c] sm:$0xff]
    %v5260 = vld [vmem:[#allocation2 + $0x614] sm:$0xff]
    %v5261 = vld [vmem:[#allocation2 + $0x61c] sm:$0xff]
    %v5262 = vld [vmem:[#allocation2 + $0x624] sm:$0xff]
    %v5263 = vld [vmem:[#allocation2 + $0x62c] sm:$0xf]
    %v5264 = vld [vmem:[#allocation2 + $0x630] sm:$0xff]
    %v5265 = vld [vmem:[#allocation2 + $0x638] sm:$0xff]
    %v5266 = vld [vmem:[#allocation2 + $0x640] sm:$0xff]
    %v5267 = vld [vmem:[#allocation2 + $0x648] sm:$0xff]
    %v5268 = vld [vmem:[#allocation2 + $0x650] sm:$0xf]
    %v5269 = vld [vmem:[#allocation2 + $0x654] sm:$0xff]
    %v5270 = vld [vmem:[#allocation2 + $0x65c] sm:$0xff]
    %v5271 = vld [vmem:[#allocation2 + $0x664] sm:$0xff]
    %v5272 = vld [vmem:[#allocation2 + $0x66c] sm:$0xff]
    %v5273 = vld [vmem:[#allocation2 + $0x674] sm:$0xf]
    %v5274 = vld [vmem:[#allocation2 + $0x678] sm:$0xff]
    %v5275 = vld [vmem:[#allocation2 + $0x680] sm:$0xff]
    %v5276 = vld [vmem:[#allocation2 + $0x688] sm:$0xff]
    %v5277 = vld [vmem:[#allocation2 + $0x690] sm:$0xff]
    %v5278 = vld [vmem:[#allocation2 + $0x698] sm:$0xf]
    %v5279 = vld [vmem:[#allocation2 + $0x69c] sm:$0xff]
    %v5280 = vld [vmem:[#allocation2 + $0x6a4] sm:$0xff]
    %v5281 = vld [vmem:[#allocation2 + $0x6ac] sm:$0xff]
    %v5282 = vld [vmem:[#allocation2 + $0x6b4] sm:$0xff]
    %v5283 = vld [vmem:[#allocation2 + $0x6bc] sm:$0xf]
    %v5284 = vld [vmem:[#allocation2 + $0x6c0] sm:$0xff]
    %v5285 = vld [vmem:[#allocation2 + $0x6c8] sm:$0xff]
    %v5286 = vld [vmem:[#allocation2 + $0x6d0] sm:$0xff]
    %v5287 = vld [vmem:[#allocation2 + $0x6d8] sm:$0xff]
    %v5288 = vld [vmem:[#allocation2 + $0x6e0] sm:$0xf]
    %v5289 = vld [vmem:[#allocation2 + $0x6e4] sm:$0xff]
    %v5290 = vld [vmem:[#allocation2 + $0x6ec] sm:$0xff]
    %v5291 = vld [vmem:[#allocation2 + $0x6f4] sm:$0xff]
    %v5292 = vld [vmem:[#allocation2 + $0x6fc] sm:$0xff]
    %v5293 = vld [vmem:[#allocation2 + $0x704] sm:$0xf]
    %v5294 = vld [vmem:[#allocation2 + $0x708] sm:$0xff]
    %v5295 = vld [vmem:[#allocation2 + $0x710] sm:$0xff]
    %v5296 = vld [vmem:[#allocation2 + $0x718] sm:$0xff]
    %v5297 = vld [vmem:[#allocation2 + $0x720] sm:$0xff]
    %v5298 = vld [vmem:[#allocation2 + $0x728] sm:$0xf]
    %v5299 = vld [vmem:[#allocation2 + $0x72c] sm:$0xff]
    %v5300 = vld [vmem:[#allocation2 + $0x734] sm:$0xff]
    %v5301 = vld [vmem:[#allocation2 + $0x73c] sm:$0xff]
    %v5302 = vld [vmem:[#allocation2 + $0x744] sm:$0xff]
    %v5303 = vld [vmem:[#allocation2 + $0x74c] sm:$0xf]
    %v5304 = vld [vmem:[#allocation2 + $0x750] sm:$0xff]
    %v5305 = vld [vmem:[#allocation2 + $0x758] sm:$0xff]
    %v5306 = vld [vmem:[#allocation2 + $0x760] sm:$0xff]
    %v5307 = vld [vmem:[#allocation2 + $0x768] sm:$0xff]
    %v5308 = vld [vmem:[#allocation2 + $0x770] sm:$0xf]
    %v5309 = vld [vmem:[#allocation2 + $0x774] sm:$0xff]
    %v5310 = vld [vmem:[#allocation2 + $0x77c] sm:$0xff]
    %v5311 = vld [vmem:[#allocation2 + $0x784] sm:$0xff]
    %v5312 = vld [vmem:[#allocation2 + $0x78c] sm:$0xff]
    %v5313 = vld [vmem:[#allocation2 + $0x794] sm:$0xf]
    %v5314 = vld [vmem:[#allocation2 + $0x798] sm:$0xff]
    %v5315 = vld [vmem:[#allocation2 + $0x7a0] sm:$0xff]
    %v5316 = vld [vmem:[#allocation2 + $0x7a8] sm:$0xff]
    %v5317 = vld [vmem:[#allocation2 + $0x7b0] sm:$0xff]
    %v5318 = vld [vmem:[#allocation2 + $0x7b8] sm:$0xf]
    %v5319 = vld [vmem:[#allocation2 + $0x7bc] sm:$0xff]
    %v5320 = vld [vmem:[#allocation2 + $0x7c4] sm:$0xff]
    %v5321 = vld [vmem:[#allocation2 + $0x7cc] sm:$0xff]
    %v5322 = vld [vmem:[#allocation2 + $0x7d4] sm:$0xff]
    %v5323 = vld [vmem:[#allocation2 + $0x7dc] sm:$0xf]
    %v5324 = vld [vmem:[#allocation2 + $0x7e0] sm:$0xff]
    %v5325 = vld [vmem:[#allocation2 + $0x7e8] sm:$0xff]
    %v5326 = vld [vmem:[#allocation2 + $0x7f0] sm:$0xff]
    %v5327 = vld [vmem:[#allocation2 + $0x7f8] sm:$0xff]
    %v5328 = vld [vmem:[#allocation2 + $0x800] sm:$0xf]
    %v5329 = vld [vmem:[#allocation2 + $0x804] sm:$0xff]
    %v5330 = vld [vmem:[#allocation2 + $0x80c] sm:$0xff]
    %v5331 = vld [vmem:[#allocation2 + $0x814] sm:$0xff]
    %v5332 = vld [vmem:[#allocation2 + $0x81c] sm:$0xff]
    %v5333 = vld [vmem:[#allocation2 + $0x824] sm:$0xf]
    %v5334 = vld [vmem:[#allocation2 + $0x828] sm:$0xff]
    %v5335 = vld [vmem:[#allocation2 + $0x830] sm:$0xff]
    %v5336 = vld [vmem:[#allocation2 + $0x838] sm:$0xff]
    %v5337 = vld [vmem:[#allocation2 + $0x840] sm:$0xff]
    %v5338 = vld [vmem:[#allocation2 + $0x848] sm:$0xf]
    %v5339 = vld [vmem:[#allocation2 + $0x84c] sm:$0xff]
    %v5340 = vld [vmem:[#allocation2 + $0x854] sm:$0xff]
    %v5341 = vld [vmem:[#allocation2 + $0x85c] sm:$0xff]
    %v5342 = vld [vmem:[#allocation2 + $0x864] sm:$0xff]
    %v5343 = vld [vmem:[#allocation2 + $0x86c] sm:$0xf]
    %v5344 = vld [vmem:[#allocation2 + $0x870] sm:$0xff]
    %v5345 = vld [vmem:[#allocation2 + $0x878] sm:$0xff]
    %v5346 = vld [vmem:[#allocation2 + $0x880] sm:$0xff]
    %v5347 = vld [vmem:[#allocation2 + $0x888] sm:$0xff]
    %v5348 = vld [vmem:[#allocation2 + $0x890] sm:$0xf]
    %v5349 = vld [vmem:[#allocation2 + $0x894] sm:$0xff]
    %v5350 = vld [vmem:[#allocation2 + $0x89c] sm:$0xff]
    %v5351 = vld [vmem:[#allocation2 + $0x8a4] sm:$0xff]
    %v5352 = vld [vmem:[#allocation2 + $0x8ac] sm:$0xff]
    %v5353 = vld [vmem:[#allocation2 + $0x8b4] sm:$0xf]
    %v5354 = vld [vmem:[#allocation2 + $0x8b8] sm:$0xff]
    %v5355 = vld [vmem:[#allocation2 + $0x8c0] sm:$0xff]
    %v5356 = vld [vmem:[#allocation2 + $0x8c8] sm:$0xff]
    %v5357 = vld [vmem:[#allocation2 + $0x8d0] sm:$0xff]
    %v5358 = vld [vmem:[#allocation2 + $0x8d8] sm:$0xf]
    %v5359 = vld [vmem:[#allocation2 + $0x8dc] sm:$0xff]
    %v5360 = vld [vmem:[#allocation2 + $0x8e4] sm:$0xff]
    %v5361 = vld [vmem:[#allocation2 + $0x8ec] sm:$0xff]
    %v5362 = vld [vmem:[#allocation2 + $0x8f4] sm:$0xff]
    %v5363 = vld [vmem:[#allocation2 + $0x8fc] sm:$0xf]
    %v5364 = vld [vmem:[#allocation6] sm:$0xf]
    %v5365 = vld [vmem:[#allocation6 + $0x4] sm:$0xf]
    %v5366 = vld [vmem:[#allocation6 + $0x8] sm:$0xf]
    %v5367 = vld [vmem:[#allocation6 + $0xc] sm:$0xf]
    %v5368 = vld [vmem:[#allocation6 + $0x10] sm:$0xf]
    %v5369 = vld [vmem:[#allocation6 + $0x14] sm:$0xf]
    %v5370 = vld [vmem:[#allocation6 + $0x18] sm:$0xf]
    %v5371 = vld [vmem:[#allocation6 + $0x1c] sm:$0xf]
    %v5372 = vld [vmem:[#allocation6 + $0x20] sm:$0xf]
    %v5373 = vld [vmem:[#allocation6 + $0x24] sm:$0xf]
    %v5374 = vld [vmem:[#allocation6 + $0x28] sm:$0xf]
    %v5375 = vld [vmem:[#allocation6 + $0x2c] sm:$0xf]
    %v5376 = vld [vmem:[#allocation6 + $0x30] sm:$0xf]
    %v5377 = vld [vmem:[#allocation6 + $0x34] sm:$0xf]
    %v5378 = vld [vmem:[#allocation6 + $0x38] sm:$0xf]
    %v5379 = vld [vmem:[#allocation6 + $0x3c] sm:$0xf]
    %v5380 = vld [vmem:[#allocation6 + $0x40] sm:$0xf]
    %v5381 = vld [vmem:[#allocation6 + $0x44] sm:$0xf]
    %v5382 = vld [vmem:[#allocation6 + $0x48] sm:$0xf]
    %v5383 = vld [vmem:[#allocation6 + $0x4c] sm:$0xf]
    %v5384 = vld [vmem:[#allocation6 + $0x50] sm:$0xf]
    %v5385 = vld [vmem:[#allocation6 + $0x54] sm:$0xf]
    %v5386 = vld [vmem:[#allocation6 + $0x58] sm:$0xf]
    %v5387 = vld [vmem:[#allocation6 + $0x5c] sm:$0xf]
    %v5388 = vld [vmem:[#allocation6 + $0x60] sm:$0xf]
    %v5389 = vld [vmem:[#allocation6 + $0x64] sm:$0xf]
    %v5390 = vld [vmem:[#allocation6 + $0x68] sm:$0xf]
    %v5391 = vld [vmem:[#allocation6 + $0x6c] sm:$0xf]
    %v5392 = vld [vmem:[#allocation6 + $0x70] sm:$0xf]
    %v5393 = vld [vmem:[#allocation6 + $0x74] sm:$0xf]
    %v5394 = vld [vmem:[#allocation6 + $0x78] sm:$0xf]
    %v5395 = vld [vmem:[#allocation6 + $0x7c] sm:$0xf]
    %v5396 = vld [vmem:[#allocation6 + $0x80] sm:$0xf]
    %v5397 = vld [vmem:[#allocation6 + $0x84] sm:$0xf]
    %v5398 = vld [vmem:[#allocation6 + $0x88] sm:$0xf]
    %v5399 = vld [vmem:[#allocation6 + $0x8c] sm:$0xf]
    %v5400 = vld [vmem:[#allocation6 + $0x90] sm:$0xf]
    %v5401 = vld [vmem:[#allocation6 + $0x94] sm:$0xf]
    %v5402 = vld [vmem:[#allocation6 + $0x98] sm:$0xf]
    %v5403 = vld [vmem:[#allocation6 + $0x9c] sm:$0xf]
    %v5404 = vld [vmem:[#allocation6 + $0xa0] sm:$0xf]
    %v5405 = vld [vmem:[#allocation6 + $0xa4] sm:$0xf]
    %v5406 = vld [vmem:[#allocation6 + $0xa8] sm:$0xf]
    %v5407 = vld [vmem:[#allocation6 + $0xac] sm:$0xf]
    %v5408 = vld [vmem:[#allocation6 + $0xb0] sm:$0xf]
    %v5409 = vld [vmem:[#allocation6 + $0xb4] sm:$0xf]
    %v5410 = vld [vmem:[#allocation6 + $0xb8] sm:$0xf]
    %v5411 = vld [vmem:[#allocation6 + $0xbc] sm:$0xf]
    %v5412 = vld [vmem:[#allocation6 + $0xc0] sm:$0xf]
    %v5413 = vld [vmem:[#allocation6 + $0xc4] sm:$0xf]
    %v5414 = vld [vmem:[#allocation6 + $0xc8] sm:$0xf]
    %v5415 = vld [vmem:[#allocation6 + $0xcc] sm:$0xf]
    %v5416 = vld [vmem:[#allocation6 + $0xd0] sm:$0xf]
    %v5417 = vld [vmem:[#allocation6 + $0xd4] sm:$0xf]
    %v5418 = vld [vmem:[#allocation6 + $0xd8] sm:$0xf]
    %v5419 = vld [vmem:[#allocation6 + $0xdc] sm:$0xf]
    %v5420 = vld [vmem:[#allocation6 + $0xe0] sm:$0xf]
    %v5421 = vld [vmem:[#allocation6 + $0xe4] sm:$0xf]
    %v5422 = vld [vmem:[#allocation6 + $0xe8] sm:$0xf]
    %v5423 = vld [vmem:[#allocation6 + $0xec] sm:$0xf]
    %v5424 = vld [vmem:[#allocation6 + $0xf0] sm:$0xf]
    %v5425 = vld [vmem:[#allocation6 + $0xf4] sm:$0xf]
    %v5426 = vld [vmem:[#allocation6 + $0xf8] sm:$0xf]
    %v5427 = vld [vmem:[#allocation6 + $0xfc] sm:$0xf]
    %v5428 = vld [vmem:[#allocation6 + $0x100] sm:$0xf]
    %v5429 = vld [vmem:[#allocation6 + $0x104] sm:$0xf]
    %v5430 = vld [vmem:[#allocation6 + $0x108] sm:$0xf]
    %v5431 = vld [vmem:[#allocation6 + $0x10c] sm:$0xf]
    %v5432 = vld [vmem:[#allocation6 + $0x110] sm:$0xf]
    %v5433 = vld [vmem:[#allocation6 + $0x114] sm:$0xf]
    %v5434 = vld [vmem:[#allocation6 + $0x118] sm:$0xf]
    %v5435 = vld [vmem:[#allocation6 + $0x11c] sm:$0xf]
    %v5436 = vld [vmem:[#allocation6 + $0x120] sm:$0xf]
    %v5437 = vld [vmem:[#allocation6 + $0x124] sm:$0xf]
    %v5438 = vld [vmem:[#allocation6 + $0x128] sm:$0xf]
    %v5439 = vld [vmem:[#allocation6 + $0x12c] sm:$0xf]
    %v5440 = vld [vmem:[#allocation6 + $0x130] sm:$0xf]
    %v5441 = vld [vmem:[#allocation6 + $0x134] sm:$0xf]
    %v5442 = vld [vmem:[#allocation6 + $0x138] sm:$0xf]
    %v5443 = vld [vmem:[#allocation6 + $0x13c] sm:$0xf]
    %v5444 = vld [vmem:[#allocation6 + $0x140] sm:$0xf]
    %v5445 = vld [vmem:[#allocation6 + $0x144] sm:$0xf]
    %v5446 = vld [vmem:[#allocation6 + $0x148] sm:$0xf]
    %v5447 = vld [vmem:[#allocation6 + $0x14c] sm:$0xf]
    %v5448 = vld [vmem:[#allocation6 + $0x150] sm:$0xf]
    %v5449 = vld [vmem:[#allocation6 + $0x154] sm:$0xf]
    %v5450 = vld [vmem:[#allocation6 + $0x158] sm:$0xf]
    %v5451 = vld [vmem:[#allocation6 + $0x15c] sm:$0xf]
    %v5452 = vld [vmem:[#allocation6 + $0x160] sm:$0xf]
    %v5453 = vld [vmem:[#allocation6 + $0x164] sm:$0xf]
    %v5454 = vld [vmem:[#allocation6 + $0x168] sm:$0xf]
    %v5455 = vld [vmem:[#allocation6 + $0x16c] sm:$0xf]
    %v5456 = vld [vmem:[#allocation6 + $0x170] sm:$0xf]
    %v5457 = vld [vmem:[#allocation6 + $0x174] sm:$0xf]
    %v5458 = vld [vmem:[#allocation6 + $0x178] sm:$0xf]
    %v5459 = vld [vmem:[#allocation6 + $0x17c] sm:$0xf]
    %v5460 = vld [vmem:[#allocation6 + $0x180] sm:$0xf]
    %v5461 = vld [vmem:[#allocation6 + $0x184] sm:$0xf]
    %v5462 = vld [vmem:[#allocation6 + $0x188] sm:$0xf]
    %v5463 = vld [vmem:[#allocation6 + $0x18c] sm:$0xf]
    %v5464 = vld [vmem:[#allocation6 + $0x190] sm:$0xf]
    %v5465 = vld [vmem:[#allocation6 + $0x194] sm:$0xf]
    %v5466 = vld [vmem:[#allocation6 + $0x198] sm:$0xf]
    %v5467 = vld [vmem:[#allocation6 + $0x19c] sm:$0xf]
    %v5468 = vld [vmem:[#allocation6 + $0x1a0] sm:$0xf]
    %v5469 = vld [vmem:[#allocation6 + $0x1a4] sm:$0xf]
    %v5470 = vld [vmem:[#allocation6 + $0x1a8] sm:$0xf]
    %v5471 = vld [vmem:[#allocation6 + $0x1ac] sm:$0xf]
    %v5472 = vld [vmem:[#allocation6 + $0x1b0] sm:$0xf]
    %v5473 = vld [vmem:[#allocation6 + $0x1b4] sm:$0xf]
    %v5474 = vld [vmem:[#allocation6 + $0x1b8] sm:$0xf]
    %v5475 = vld [vmem:[#allocation6 + $0x1bc] sm:$0xf]
    %v5476 = vld [vmem:[#allocation6 + $0x1c0] sm:$0xf]
    %v5477 = vld [vmem:[#allocation6 + $0x1c4] sm:$0xf]
    %v5478 = vld [vmem:[#allocation6 + $0x1c8] sm:$0xf]
    %v5479 = vld [vmem:[#allocation6 + $0x1cc] sm:$0xf]
    %v5480 = vld [vmem:[#allocation6 + $0x1d0] sm:$0xf]
    %v5481 = vld [vmem:[#allocation6 + $0x1d4] sm:$0xf]
    %v5482 = vld [vmem:[#allocation6 + $0x1d8] sm:$0xf]
    %v5483 = vld [vmem:[#allocation6 + $0x1dc] sm:$0xf]
    %v5484 = vld [vmem:[#allocation6 + $0x1e0] sm:$0xf]
    %v5485 = vld [vmem:[#allocation6 + $0x1e4] sm:$0xf]
    %v5486 = vld [vmem:[#allocation6 + $0x1e8] sm:$0xf]
    %v5487 = vld [vmem:[#allocation6 + $0x1ec] sm:$0xf]
    %v5488 = vld [vmem:[#allocation6 + $0x1f0] sm:$0xf]
    %v5489 = vld [vmem:[#allocation6 + $0x1f4] sm:$0xf]
    %v5490 = vld [vmem:[#allocation6 + $0x1f8] sm:$0xf]
    %v5491 = vld [vmem:[#allocation6 + $0x1fc] sm:$0xf]
    %v5492 = vld [vmem:[#allocation6 + $0x200] sm:$0xf]
    %v5493 = vld [vmem:[#allocation6 + $0x204] sm:$0xf]
    %v5494 = vld [vmem:[#allocation6 + $0x208] sm:$0xf]
    %v5495 = vld [vmem:[#allocation6 + $0x20c] sm:$0xf]
    %v5496 = vld [vmem:[#allocation6 + $0x210] sm:$0xf]
    %v5497 = vld [vmem:[#allocation6 + $0x214] sm:$0xf]
    %v5498 = vld [vmem:[#allocation6 + $0x218] sm:$0xf]
    %v5499 = vld [vmem:[#allocation6 + $0x21c] sm:$0xf]
    %v5500 = vld [vmem:[#allocation6 + $0x220] sm:$0xf]
    %v5501 = vld [vmem:[#allocation6 + $0x224] sm:$0xf]
    %v5502 = vld [vmem:[#allocation6 + $0x228] sm:$0xf]
    %v5503 = vld [vmem:[#allocation6 + $0x22c] sm:$0xf]
    %v5504 = vld [vmem:[#allocation6 + $0x230] sm:$0xf]
    %v5505 = vld [vmem:[#allocation6 + $0x234] sm:$0xf]
    %v5506 = vld [vmem:[#allocation6 + $0x238] sm:$0xf]
    %v5507 = vld [vmem:[#allocation6 + $0x23c] sm:$0xf]
    %v5828 = vunpack.c.l.b16 %v5044
    %v5829 = vunpack.c.h.b16 %v5044
    %v5830 = vunpack.c.l.b16 %v5045
    %v5831 = vunpack.c.h.b16 %v5045
    %v5832 = vunpack.c.l.b16 %v5046
    %v5833 = vunpack.c.h.b16 %v5046
    %v5834 = vunpack.c.l.b16 %v5047
    %v5835 = vunpack.c.h.b16 %v5047
    %v5836 = vunpack.c.l.b16 %v5048
    %v5837 = vunpack.c.l.b16 %v5049
    %v5838 = vunpack.c.h.b16 %v5049
    %v5839 = vunpack.c.l.b16 %v5050
    %v5840 = vunpack.c.h.b16 %v5050
    %v5841 = vunpack.c.l.b16 %v5051
    %v5842 = vunpack.c.h.b16 %v5051
    %v5843 = vunpack.c.l.b16 %v5052
    %v5844 = vunpack.c.h.b16 %v5052
    %v5845 = vunpack.c.l.b16 %v5053
    %v5846 = vunpack.c.l.b16 %v5054
    %v5847 = vunpack.c.h.b16 %v5054
    %v5848 = vunpack.c.l.b16 %v5055
    %v5849 = vunpack.c.h.b16 %v5055
    %v5850 = vunpack.c.l.b16 %v5056
    %v5851 = vunpack.c.h.b16 %v5056
    %v5852 = vunpack.c.l.b16 %v5057
    %v5853 = vunpack.c.h.b16 %v5057
    %v5854 = vunpack.c.l.b16 %v5058
    %v5855 = vunpack.c.l.b16 %v5059
    %v5856 = vunpack.c.h.b16 %v5059
    %v5857 = vunpack.c.l.b16 %v5060
    %v5858 = vunpack.c.h.b16 %v5060
    %v5859 = vunpack.c.l.b16 %v5061
    %v5860 = vunpack.c.h.b16 %v5061
    %v5861 = vunpack.c.l.b16 %v5062
    %v5862 = vunpack.c.h.b16 %v5062
    %v5863 = vunpack.c.l.b16 %v5063
    %v5864 = vunpack.c.l.b16 %v5064
    %v5865 = vunpack.c.h.b16 %v5064
    %v5866 = vunpack.c.l.b16 %v5065
    %v5867 = vunpack.c.h.b16 %v5065
    %v5868 = vunpack.c.l.b16 %v5066
    %v5869 = vunpack.c.h.b16 %v5066
    %v5870 = vunpack.c.l.b16 %v5067
    %v5871 = vunpack.c.h.b16 %v5067
    %v5872 = vunpack.c.l.b16 %v5068
    %v5873 = vunpack.c.l.b16 %v5069
    %v5874 = vunpack.c.h.b16 %v5069
    %v5875 = vunpack.c.l.b16 %v5070
    %v5876 = vunpack.c.h.b16 %v5070
    %v5877 = vunpack.c.l.b16 %v5071
    %v5878 = vunpack.c.h.b16 %v5071
    %v5879 = vunpack.c.l.b16 %v5072
    %v5880 = vunpack.c.h.b16 %v5072
    %v5881 = vunpack.c.l.b16 %v5073
    %v5882 = vunpack.c.l.b16 %v5074
    %v5883 = vunpack.c.h.b16 %v5074
    %v5884 = vunpack.c.l.b16 %v5075
    %v5885 = vunpack.c.h.b16 %v5075
    %v5886 = vunpack.c.l.b16 %v5076
    %v5887 = vunpack.c.h.b16 %v5076
    %v5888 = vunpack.c.l.b16 %v5077
    %v5889 = vunpack.c.h.b16 %v5077
    %v5890 = vunpack.c.l.b16 %v5078
    %v5891 = vunpack.c.l.b16 %v5079
    %v5892 = vunpack.c.h.b16 %v5079
    %v5893 = vunpack.c.l.b16 %v5080
    %v5894 = vunpack.c.h.b16 %v5080
    %v5895 = vunpack.c.l.b16 %v5081
    %v5896 = vunpack.c.h.b16 %v5081
    %v5897 = vunpack.c.l.b16 %v5082
    %v5898 = vunpack.c.h.b16 %v5082
    %v5899 = vunpack.c.l.b16 %v5083
    %v5900 = vunpack.c.l.b16 %v5084
    %v5901 = vunpack.c.h.b16 %v5084
    %v5902 = vunpack.c.l.b16 %v5085
    %v5903 = vunpack.c.h.b16 %v5085
    %v5904 = vunpack.c.l.b16 %v5086
    %v5905 = vunpack.c.h.b16 %v5086
    %v5906 = vunpack.c.l.b16 %v5087
    %v5907 = vunpack.c.h.b16 %v5087
    %v5908 = vunpack.c.l.b16 %v5088
    %v5909 = vunpack.c.l.b16 %v5089
    %v5910 = vunpack.c.h.b16 %v5089
    %v5911 = vunpack.c.l.b16 %v5090
    %v5912 = vunpack.c.h.b16 %v5090
    %v5913 = vunpack.c.l.b16 %v5091
    %v5914 = vunpack.c.h.b16 %v5091
    %v5915 = vunpack.c.l.b16 %v5092
    %v5916 = vunpack.c.h.b16 %v5092
    %v5917 = vunpack.c.l.b16 %v5093
    %v5918 = vunpack.c.l.b16 %v5094
    %v5919 = vunpack.c.h.b16 %v5094
    %v5920 = vunpack.c.l.b16 %v5095
    %v5921 = vunpack.c.h.b16 %v5095
    %v5922 = vunpack.c.l.b16 %v5096
    %v5923 = vunpack.c.h.b16 %v5096
    %v5924 = vunpack.c.l.b16 %v5097
    %v5925 = vunpack.c.h.b16 %v5097
    %v5926 = vunpack.c.l.b16 %v5098
    %v5927 = vunpack.c.l.b16 %v5099
    %v5928 = vunpack.c.h.b16 %v5099
    %v5929 = vunpack.c.l.b16 %v5100
    %v5930 = vunpack.c.h.b16 %v5100
    %v5931 = vunpack.c.l.b16 %v5101
    %v5932 = vunpack.c.h.b16 %v5101
    %v5933 = vunpack.c.l.b16 %v5102
    %v5934 = vunpack.c.h.b16 %v5102
    %v5935 = vunpack.c.l.b16 %v5103
    %v5936 = vunpack.c.l.b16 %v5104
    %v5937 = vunpack.c.h.b16 %v5104
    %v5938 = vunpack.c.l.b16 %v5105
    %v5939 = vunpack.c.h.b16 %v5105
    %v5940 = vunpack.c.l.b16 %v5106
    %v5941 = vunpack.c.h.b16 %v5106
    %v5942 = vunpack.c.l.b16 %v5107
    %v5943 = vunpack.c.h.b16 %v5107
    %v5944 = vunpack.c.l.b16 %v5108
    %v5945 = vunpack.c.l.b16 %v5109
    %v5946 = vunpack.c.h.b16 %v5109
    %v5947 = vunpack.c.l.b16 %v5110
    %v5948 = vunpack.c.h.b16 %v5110
    %v5949 = vunpack.c.l.b16 %v5111
    %v5950 = vunpack.c.h.b16 %v5111
    %v5951 = vunpack.c.l.b16 %v5112
    %v5952 = vunpack.c.h.b16 %v5112
    %v5953 = vunpack.c.l.b16 %v5113
    %v5954 = vunpack.c.l.b16 %v5114
    %v5955 = vunpack.c.h.b16 %v5114
    %v5956 = vunpack.c.l.b16 %v5115
    %v5957 = vunpack.c.h.b16 %v5115
    %v5958 = vunpack.c.l.b16 %v5116
    %v5959 = vunpack.c.h.b16 %v5116
    %v5960 = vunpack.c.l.b16 %v5117
    %v5961 = vunpack.c.h.b16 %v5117
    %v5962 = vunpack.c.l.b16 %v5118
    %v5963 = vunpack.c.l.b16 %v5119
    %v5964 = vunpack.c.h.b16 %v5119
    %v5965 = vunpack.c.l.b16 %v5120
    %v5966 = vunpack.c.h.b16 %v5120
    %v5967 = vunpack.c.l.b16 %v5121
    %v5968 = vunpack.c.h.b16 %v5121
    %v5969 = vunpack.c.l.b16 %v5122
    %v5970 = vunpack.c.h.b16 %v5122
    %v5971 = vunpack.c.l.b16 %v5123
    %v5972 = vunpack.c.l.b16 %v5124
    %v5973 = vunpack.c.h.b16 %v5124
    %v5974 = vunpack.c.l.b16 %v5125
    %v5975 = vunpack.c.h.b16 %v5125
    %v5976 = vunpack.c.l.b16 %v5126
    %v5977 = vunpack.c.h.b16 %v5126
    %v5978 = vunpack.c.l.b16 %v5127
    %v5979 = vunpack.c.h.b16 %v5127
    %v5980 = vunpack.c.l.b16 %v5128
    %v5981 = vunpack.c.l.b16 %v5129
    %v5982 = vunpack.c.h.b16 %v5129
    %v5983 = vunpack.c.l.b16 %v5130
    %v5984 = vunpack.c.h.b16 %v5130
    %v5985 = vunpack.c.l.b16 %v5131
    %v5986 = vunpack.c.h.b16 %v5131
    %v5987 = vunpack.c.l.b16 %v5132
    %v5988 = vunpack.c.h.b16 %v5132
    %v5989 = vunpack.c.l.b16 %v5133
    %v5990 = vunpack.c.l.b16 %v5134
    %v5991 = vunpack.c.h.b16 %v5134
    %v5992 = vunpack.c.l.b16 %v5135
    %v5993 = vunpack.c.h.b16 %v5135
    %v5994 = vunpack.c.l.b16 %v5136
    %v5995 = vunpack.c.h.b16 %v5136
    %v5996 = vunpack.c.l.b16 %v5137
    %v5997 = vunpack.c.h.b16 %v5137
    %v5998 = vunpack.c.l.b16 %v5138
    %v5999 = vunpack.c.l.b16 %v5139
    %v6000 = vunpack.c.h.b16 %v5139
    %v6001 = vunpack.c.l.b16 %v5140
    %v6002 = vunpack.c.h.b16 %v5140
    %v6003 = vunpack.c.l.b16 %v5141
    %v6004 = vunpack.c.h.b16 %v5141
    %v6005 = vunpack.c.l.b16 %v5142
    %v6006 = vunpack.c.h.b16 %v5142
    %v6007 = vunpack.c.l.b16 %v5143
    %v6008 = vunpack.c.l.b16 %v5144
    %v6009 = vunpack.c.h.b16 %v5144
    %v6010 = vunpack.c.l.b16 %v5145
    %v6011 = vunpack.c.h.b16 %v5145
    %v6012 = vunpack.c.l.b16 %v5146
    %v6013 = vunpack.c.h.b16 %v5146
    %v6014 = vunpack.c.l.b16 %v5147
    %v6015 = vunpack.c.h.b16 %v5147
    %v6016 = vunpack.c.l.b16 %v5148
    %v6017 = vunpack.c.l.b16 %v5149
    %v6018 = vunpack.c.h.b16 %v5149
    %v6019 = vunpack.c.l.b16 %v5150
    %v6020 = vunpack.c.h.b16 %v5150
    %v6021 = vunpack.c.l.b16 %v5151
    %v6022 = vunpack.c.h.b16 %v5151
    %v6023 = vunpack.c.l.b16 %v5152
    %v6024 = vunpack.c.h.b16 %v5152
    %v6025 = vunpack.c.l.b16 %v5153
    %v6026 = vunpack.c.l.b16 %v5154
    %v6027 = vunpack.c.h.b16 %v5154
    %v6028 = vunpack.c.l.b16 %v5155
    %v6029 = vunpack.c.h.b16 %v5155
    %v6030 = vunpack.c.l.b16 %v5156
    %v6031 = vunpack.c.h.b16 %v5156
    %v6032 = vunpack.c.l.b16 %v5157
    %v6033 = vunpack.c.h.b16 %v5157
    %v6034 = vunpack.c.l.b16 %v5158
    %v6035 = vunpack.c.l.b16 %v5159
    %v6036 = vunpack.c.h.b16 %v5159
    %v6037 = vunpack.c.l.b16 %v5160
    %v6038 = vunpack.c.h.b16 %v5160
    %v6039 = vunpack.c.l.b16 %v5161
    %v6040 = vunpack.c.h.b16 %v5161
    %v6041 = vunpack.c.l.b16 %v5162
    %v6042 = vunpack.c.h.b16 %v5162
    %v6043 = vunpack.c.l.b16 %v5163
    %v6044 = vunpack.c.l.b16 %v5164
    %v6045 = vunpack.c.h.b16 %v5164
    %v6046 = vunpack.c.l.b16 %v5165
    %v6047 = vunpack.c.h.b16 %v5165
    %v6048 = vunpack.c.l.b16 %v5166
    %v6049 = vunpack.c.h.b16 %v5166
    %v6050 = vunpack.c.l.b16 %v5167
    %v6051 = vunpack.c.h.b16 %v5167
    %v6052 = vunpack.c.l.b16 %v5168
    %v6053 = vunpack.c.l.b16 %v5169
    %v6054 = vunpack.c.h.b16 %v5169
    %v6055 = vunpack.c.l.b16 %v5170
    %v6056 = vunpack.c.h.b16 %v5170
    %v6057 = vunpack.c.l.b16 %v5171
    %v6058 = vunpack.c.h.b16 %v5171
    %v6059 = vunpack.c.l.b16 %v5172
    %v6060 = vunpack.c.h.b16 %v5172
    %v6061 = vunpack.c.l.b16 %v5173
    %v6062 = vunpack.c.l.b16 %v5174
    %v6063 = vunpack.c.h.b16 %v5174
    %v6064 = vunpack.c.l.b16 %v5175
    %v6065 = vunpack.c.h.b16 %v5175
    %v6066 = vunpack.c.l.b16 %v5176
    %v6067 = vunpack.c.h.b16 %v5176
    %v6068 = vunpack.c.l.b16 %v5177
    %v6069 = vunpack.c.h.b16 %v5177
    %v6070 = vunpack.c.l.b16 %v5178
    %v6071 = vunpack.c.l.b16 %v5179
    %v6072 = vunpack.c.h.b16 %v5179
    %v6073 = vunpack.c.l.b16 %v5180
    %v6074 = vunpack.c.h.b16 %v5180
    %v6075 = vunpack.c.l.b16 %v5181
    %v6076 = vunpack.c.h.b16 %v5181
    %v6077 = vunpack.c.l.b16 %v5182
    %v6078 = vunpack.c.h.b16 %v5182
    %v6079 = vunpack.c.l.b16 %v5183
    %v6080 = vunpack.c.l.b16 %v5184
    %v6081 = vunpack.c.h.b16 %v5184
    %v6082 = vunpack.c.l.b16 %v5185
    %v6083 = vunpack.c.h.b16 %v5185
    %v6084 = vunpack.c.l.b16 %v5186
    %v6085 = vunpack.c.h.b16 %v5186
    %v6086 = vunpack.c.l.b16 %v5187
    %v6087 = vunpack.c.h.b16 %v5187
    %v6088 = vunpack.c.l.b16 %v5188
    %v6089 = vunpack.c.l.b16 %v5189
    %v6090 = vunpack.c.h.b16 %v5189
    %v6091 = vunpack.c.l.b16 %v5190
    %v6092 = vunpack.c.h.b16 %v5190
    %v6093 = vunpack.c.l.b16 %v5191
    %v6094 = vunpack.c.h.b16 %v5191
    %v6095 = vunpack.c.l.b16 %v5192
    %v6096 = vunpack.c.h.b16 %v5192
    %v6097 = vunpack.c.l.b16 %v5193
    %v6098 = vunpack.c.l.b16 %v5194
    %v6099 = vunpack.c.h.b16 %v5194
    %v6100 = vunpack.c.l.b16 %v5195
    %v6101 = vunpack.c.h.b16 %v5195
    %v6102 = vunpack.c.l.b16 %v5196
    %v6103 = vunpack.c.h.b16 %v5196
    %v6104 = vunpack.c.l.b16 %v5197
    %v6105 = vunpack.c.h.b16 %v5197
    %v6106 = vunpack.c.l.b16 %v5198
    %v6107 = vunpack.c.l.b16 %v5199
    %v6108 = vunpack.c.h.b16 %v5199
    %v6109 = vunpack.c.l.b16 %v5200
    %v6110 = vunpack.c.h.b16 %v5200
    %v6111 = vunpack.c.l.b16 %v5201
    %v6112 = vunpack.c.h.b16 %v5201
    %v6113 = vunpack.c.l.b16 %v5202
    %v6114 = vunpack.c.h.b16 %v5202
    %v6115 = vunpack.c.l.b16 %v5203
    %v6116 = vunpack.c.l.b16 %v5204
    %v6117 = vunpack.c.h.b16 %v5204
    %v6118 = vunpack.c.l.b16 %v5205
    %v6119 = vunpack.c.h.b16 %v5205
    %v6120 = vunpack.c.l.b16 %v5206
    %v6121 = vunpack.c.h.b16 %v5206
    %v6122 = vunpack.c.l.b16 %v5207
    %v6123 = vunpack.c.h.b16 %v5207
    %v6124 = vunpack.c.l.b16 %v5208
    %v6125 = vunpack.c.l.b16 %v5209
    %v6126 = vunpack.c.h.b16 %v5209
    %v6127 = vunpack.c.l.b16 %v5210
    %v6128 = vunpack.c.h.b16 %v5210
    %v6129 = vunpack.c.l.b16 %v5211
    %v6130 = vunpack.c.h.b16 %v5211
    %v6131 = vunpack.c.l.b16 %v5212
    %v6132 = vunpack.c.h.b16 %v5212
    %v6133 = vunpack.c.l.b16 %v5213
    %v6134 = vunpack.c.l.b16 %v5214
    %v6135 = vunpack.c.h.b16 %v5214
    %v6136 = vunpack.c.l.b16 %v5215
    %v6137 = vunpack.c.h.b16 %v5215
    %v6138 = vunpack.c.l.b16 %v5216
    %v6139 = vunpack.c.h.b16 %v5216
    %v6140 = vunpack.c.l.b16 %v5217
    %v6141 = vunpack.c.h.b16 %v5217
    %v6142 = vunpack.c.l.b16 %v5218
    %v6143 = vunpack.c.l.b16 %v5219
    %v6144 = vunpack.c.h.b16 %v5219
    %v6145 = vunpack.c.l.b16 %v5220
    %v6146 = vunpack.c.h.b16 %v5220
    %v6147 = vunpack.c.l.b16 %v5221
    %v6148 = vunpack.c.h.b16 %v5221
    %v6149 = vunpack.c.l.b16 %v5222
    %v6150 = vunpack.c.h.b16 %v5222
    %v6151 = vunpack.c.l.b16 %v5223
    %v6152 = vunpack.c.l.b16 %v5224
    %v6153 = vunpack.c.h.b16 %v5224
    %v6154 = vunpack.c.l.b16 %v5225
    %v6155 = vunpack.c.h.b16 %v5225
    %v6156 = vunpack.c.l.b16 %v5226
    %v6157 = vunpack.c.h.b16 %v5226
    %v6158 = vunpack.c.l.b16 %v5227
    %v6159 = vunpack.c.h.b16 %v5227
    %v6160 = vunpack.c.l.b16 %v5228
    %v6161 = vunpack.c.l.b16 %v5229
    %v6162 = vunpack.c.h.b16 %v5229
    %v6163 = vunpack.c.l.b16 %v5230
    %v6164 = vunpack.c.h.b16 %v5230
    %v6165 = vunpack.c.l.b16 %v5231
    %v6166 = vunpack.c.h.b16 %v5231
    %v6167 = vunpack.c.l.b16 %v5232
    %v6168 = vunpack.c.h.b16 %v5232
    %v6169 = vunpack.c.l.b16 %v5233
    %v6170 = vunpack.c.l.b16 %v5234
    %v6171 = vunpack.c.h.b16 %v5234
    %v6172 = vunpack.c.l.b16 %v5235
    %v6173 = vunpack.c.h.b16 %v5235
    %v6174 = vunpack.c.l.b16 %v5236
    %v6175 = vunpack.c.h.b16 %v5236
    %v6176 = vunpack.c.l.b16 %v5237
    %v6177 = vunpack.c.h.b16 %v5237
    %v6178 = vunpack.c.l.b16 %v5238
    %v6179 = vunpack.c.l.b16 %v5239
    %v6180 = vunpack.c.h.b16 %v5239
    %v6181 = vunpack.c.l.b16 %v5240
    %v6182 = vunpack.c.h.b16 %v5240
    %v6183 = vunpack.c.l.b16 %v5241
    %v6184 = vunpack.c.h.b16 %v5241
    %v6185 = vunpack.c.l.b16 %v5242
    %v6186 = vunpack.c.h.b16 %v5242
    %v6187 = vunpack.c.l.b16 %v5243
    %v6188 = vunpack.c.l.b16 %v5244
    %v6189 = vunpack.c.h.b16 %v5244
    %v6190 = vunpack.c.l.b16 %v5245
    %v6191 = vunpack.c.h.b16 %v5245
    %v6192 = vunpack.c.l.b16 %v5246
    %v6193 = vunpack.c.h.b16 %v5246
    %v6194 = vunpack.c.l.b16 %v5247
    %v6195 = vunpack.c.h.b16 %v5247
    %v6196 = vunpack.c.l.b16 %v5248
    %v6197 = vunpack.c.l.b16 %v5249
    %v6198 = vunpack.c.h.b16 %v5249
    %v6199 = vunpack.c.l.b16 %v5250
    %v6200 = vunpack.c.h.b16 %v5250
    %v6201 = vunpack.c.l.b16 %v5251
    %v6202 = vunpack.c.h.b16 %v5251
    %v6203 = vunpack.c.l.b16 %v5252
    %v6204 = vunpack.c.h.b16 %v5252
    %v6205 = vunpack.c.l.b16 %v5253
    %v6206 = vunpack.c.l.b16 %v5254
    %v6207 = vunpack.c.h.b16 %v5254
    %v6208 = vunpack.c.l.b16 %v5255
    %v6209 = vunpack.c.h.b16 %v5255
    %v6210 = vunpack.c.l.b16 %v5256
    %v6211 = vunpack.c.h.b16 %v5256
    %v6212 = vunpack.c.l.b16 %v5257
    %v6213 = vunpack.c.h.b16 %v5257
    %v6214 = vunpack.c.l.b16 %v5258
    %v6215 = vunpack.c.l.b16 %v5259
    %v6216 = vunpack.c.h.b16 %v5259
    %v6217 = vunpack.c.l.b16 %v5260
    %v6218 = vunpack.c.h.b16 %v5260
    %v6219 = vunpack.c.l.b16 %v5261
    %v6220 = vunpack.c.h.b16 %v5261
    %v6221 = vunpack.c.l.b16 %v5262
    %v6222 = vunpack.c.h.b16 %v5262
    %v6223 = vunpack.c.l.b16 %v5263
    %v6224 = vunpack.c.l.b16 %v5264
    %v6225 = vunpack.c.h.b16 %v5264
    %v6226 = vunpack.c.l.b16 %v5265
    %v6227 = vunpack.c.h.b16 %v5265
    %v6228 = vunpack.c.l.b16 %v5266
    %v6229 = vunpack.c.h.b16 %v5266
    %v6230 = vunpack.c.l.b16 %v5267
    %v6231 = vunpack.c.h.b16 %v5267
    %v6232 = vunpack.c.l.b16 %v5268
    %v6233 = vunpack.c.l.b16 %v5269
    %v6234 = vunpack.c.h.b16 %v5269
    %v6235 = vunpack.c.l.b16 %v5270
    %v6236 = vunpack.c.h.b16 %v5270
    %v6237 = vunpack.c.l.b16 %v5271
    %v6238 = vunpack.c.h.b16 %v5271
    %v6239 = vunpack.c.l.b16 %v5272
    %v6240 = vunpack.c.h.b16 %v5272
    %v6241 = vunpack.c.l.b16 %v5273
    %v6242 = vunpack.c.l.b16 %v5274
    %v6243 = vunpack.c.h.b16 %v5274
    %v6244 = vunpack.c.l.b16 %v5275
    %v6245 = vunpack.c.h.b16 %v5275
    %v6246 = vunpack.c.l.b16 %v5276
    %v6247 = vunpack.c.h.b16 %v5276
    %v6248 = vunpack.c.l.b16 %v5277
    %v6249 = vunpack.c.h.b16 %v5277
    %v6250 = vunpack.c.l.b16 %v5278
    %v6251 = vunpack.c.l.b16 %v5279
    %v6252 = vunpack.c.h.b16 %v5279
    %v6253 = vunpack.c.l.b16 %v5280
    %v6254 = vunpack.c.h.b16 %v5280
    %v6255 = vunpack.c.l.b16 %v5281
    %v6256 = vunpack.c.h.b16 %v5281
    %v6257 = vunpack.c.l.b16 %v5282
    %v6258 = vunpack.c.h.b16 %v5282
    %v6259 = vunpack.c.l.b16 %v5283
    %v6260 = vunpack.c.l.b16 %v5284
    %v6261 = vunpack.c.h.b16 %v5284
    %v6262 = vunpack.c.l.b16 %v5285
    %v6263 = vunpack.c.h.b16 %v5285
    %v6264 = vunpack.c.l.b16 %v5286
    %v6265 = vunpack.c.h.b16 %v5286
    %v6266 = vunpack.c.l.b16 %v5287
    %v6267 = vunpack.c.h.b16 %v5287
    %v6268 = vunpack.c.l.b16 %v5288
    %v6269 = vunpack.c.l.b16 %v5289
    %v6270 = vunpack.c.h.b16 %v5289
    %v6271 = vunpack.c.l.b16 %v5290
    %v6272 = vunpack.c.h.b16 %v5290
    %v6273 = vunpack.c.l.b16 %v5291
    %v6274 = vunpack.c.h.b16 %v5291
    %v6275 = vunpack.c.l.b16 %v5292
    %v6276 = vunpack.c.h.b16 %v5292
    %v6277 = vunpack.c.l.b16 %v5293
    %v6278 = vunpack.c.l.b16 %v5294
    %v6279 = vunpack.c.h.b16 %v5294
    %v6280 = vunpack.c.l.b16 %v5295
    %v6281 = vunpack.c.h.b16 %v5295
    %v6282 = vunpack.c.l.b16 %v5296
    %v6283 = vunpack.c.h.b16 %v5296
    %v6284 = vunpack.c.l.b16 %v5297
    %v6285 = vunpack.c.h.b16 %v5297
    %v6286 = vunpack.c.l.b16 %v5298
    %v6287 = vunpack.c.l.b16 %v5299
    %v6288 = vunpack.c.h.b16 %v5299
    %v6289 = vunpack.c.l.b16 %v5300
    %v6290 = vunpack.c.h.b16 %v5300
    %v6291 = vunpack.c.l.b16 %v5301
    %v6292 = vunpack.c.h.b16 %v5301
    %v6293 = vunpack.c.l.b16 %v5302
    %v6294 = vunpack.c.h.b16 %v5302
    %v6295 = vunpack.c.l.b16 %v5303
    %v6296 = vunpack.c.l.b16 %v5304
    %v6297 = vunpack.c.h.b16 %v5304
    %v6298 = vunpack.c.l.b16 %v5305
    %v6299 = vunpack.c.h.b16 %v5305
    %v6300 = vunpack.c.l.b16 %v5306
    %v6301 = vunpack.c.h.b16 %v5306
    %v6302 = vunpack.c.l.b16 %v5307
    %v6303 = vunpack.c.h.b16 %v5307
    %v6304 = vunpack.c.l.b16 %v5308
    %v6305 = vunpack.c.l.b16 %v5309
    %v6306 = vunpack.c.h.b16 %v5309
    %v6307 = vunpack.c.l.b16 %v5310
    %v6308 = vunpack.c.h.b16 %v5310
    %v6309 = vunpack.c.l.b16 %v5311
    %v6310 = vunpack.c.h.b16 %v5311
    %v6311 = vunpack.c.l.b16 %v5312
    %v6312 = vunpack.c.h.b16 %v5312
    %v6313 = vunpack.c.l.b16 %v5313
    %v6314 = vunpack.c.l.b16 %v5314
    %v6315 = vunpack.c.h.b16 %v5314
    %v6316 = vunpack.c.l.b16 %v5315
    %v6317 = vunpack.c.h.b16 %v5315
    %v6318 = vunpack.c.l.b16 %v5316
    %v6319 = vunpack.c.h.b16 %v5316
    %v6320 = vunpack.c.l.b16 %v5317
    %v6321 = vunpack.c.h.b16 %v5317
    %v6322 = vunpack.c.l.b16 %v5318
    %v6323 = vunpack.c.l.b16 %v5319
    %v6324 = vunpack.c.h.b16 %v5319
    %v6325 = vunpack.c.l.b16 %v5320
    %v6326 = vunpack.c.h.b16 %v5320
    %v6327 = vunpack.c.l.b16 %v5321
    %v6328 = vunpack.c.h.b16 %v5321
    %v6329 = vunpack.c.l.b16 %v5322
    %v6330 = vunpack.c.h.b16 %v5322
    %v6331 = vunpack.c.l.b16 %v5323
    %v6332 = vunpack.c.l.b16 %v5324
    %v6333 = vunpack.c.h.b16 %v5324
    %v6334 = vunpack.c.l.b16 %v5325
    %v6335 = vunpack.c.h.b16 %v5325
    %v6336 = vunpack.c.l.b16 %v5326
    %v6337 = vunpack.c.h.b16 %v5326
    %v6338 = vunpack.c.l.b16 %v5327
    %v6339 = vunpack.c.h.b16 %v5327
    %v6340 = vunpack.c.l.b16 %v5328
    %v6341 = vunpack.c.l.b16 %v5329
    %v6342 = vunpack.c.h.b16 %v5329
    %v6343 = vunpack.c.l.b16 %v5330
    %v6344 = vunpack.c.h.b16 %v5330
    %v6345 = vunpack.c.l.b16 %v5331
    %v6346 = vunpack.c.h.b16 %v5331
    %v6347 = vunpack.c.l.b16 %v5332
    %v6348 = vunpack.c.h.b16 %v5332
    %v6349 = vunpack.c.l.b16 %v5333
    %v6350 = vunpack.c.l.b16 %v5334
    %v6351 = vunpack.c.h.b16 %v5334
    %v6352 = vunpack.c.l.b16 %v5335
    %v6353 = vunpack.c.h.b16 %v5335
    %v6354 = vunpack.c.l.b16 %v5336
    %v6355 = vunpack.c.h.b16 %v5336
    %v6356 = vunpack.c.l.b16 %v5337
    %v6357 = vunpack.c.h.b16 %v5337
    %v6358 = vunpack.c.l.b16 %v5338
    %v6359 = vunpack.c.l.b16 %v5339
    %v6360 = vunpack.c.h.b16 %v5339
    %v6361 = vunpack.c.l.b16 %v5340
    %v6362 = vunpack.c.h.b16 %v5340
    %v6363 = vunpack.c.l.b16 %v5341
    %v6364 = vunpack.c.h.b16 %v5341
    %v6365 = vunpack.c.l.b16 %v5342
    %v6366 = vunpack.c.h.b16 %v5342
    %v6367 = vunpack.c.l.b16 %v5343
    %v6368 = vunpack.c.l.b16 %v5344
    %v6369 = vunpack.c.h.b16 %v5344
    %v6370 = vunpack.c.l.b16 %v5345
    %v6371 = vunpack.c.h.b16 %v5345
    %v6372 = vunpack.c.l.b16 %v5346
    %v6373 = vunpack.c.h.b16 %v5346
    %v6374 = vunpack.c.l.b16 %v5347
    %v6375 = vunpack.c.h.b16 %v5347
    %v6376 = vunpack.c.l.b16 %v5348
    %v6377 = vunpack.c.l.b16 %v5349
    %v6378 = vunpack.c.h.b16 %v5349
    %v6379 = vunpack.c.l.b16 %v5350
    %v6380 = vunpack.c.h.b16 %v5350
    %v6381 = vunpack.c.l.b16 %v5351
    %v6382 = vunpack.c.h.b16 %v5351
    %v6383 = vunpack.c.l.b16 %v5352
    %v6384 = vunpack.c.h.b16 %v5352
    %v6385 = vunpack.c.l.b16 %v5353
    %v6386 = vunpack.c.l.b16 %v5354
    %v6387 = vunpack.c.h.b16 %v5354
    %v6388 = vunpack.c.l.b16 %v5355
    %v6389 = vunpack.c.h.b16 %v5355
    %v6390 = vunpack.c.l.b16 %v5356
    %v6391 = vunpack.c.h.b16 %v5356
    %v6392 = vunpack.c.l.b16 %v5357
    %v6393 = vunpack.c.h.b16 %v5357
    %v6394 = vunpack.c.l.b16 %v5358
    %v6395 = vunpack.c.l.b16 %v5359
    %v6396 = vunpack.c.h.b16 %v5359
    %v6397 = vunpack.c.l.b16 %v5360
    %v6398 = vunpack.c.h.b16 %v5360
    %v6399 = vunpack.c.l.b16 %v5361
    %v6400 = vunpack.c.h.b16 %v5361
    %v6401 = vunpack.c.l.b16 %v5362
    %v6402 = vunpack.c.h.b16 %v5362
    %v6403 = vunpack.c.l.b16 %v5363
    %v6404 = vpack.c.b16 %v5837, %v5828
    %v6405 = vpack.c.b16 %v5838, %v5829
    %v6406 = vpack.c.b16 %v5839, %v5830
    %v6407 = vpack.c.b16 %v5840, %v5831
    %v6408 = vpack.c.b16 %v5841, %v5832
    %v6409 = vpack.c.b16 %v5842, %v5833
    %v6410 = vpack.c.b16 %v5843, %v5834
    %v6411 = vpack.c.b16 %v5844, %v5835
    %v6412 = vpack.c.b16 %v5845, %v5836
    %v6413 = vpack.c.b16 %v5855, %v5846
    %v6414 = vpack.c.b16 %v5856, %v5847
    %v6415 = vpack.c.b16 %v5857, %v5848
    %v6416 = vpack.c.b16 %v5858, %v5849
    %v6417 = vpack.c.b16 %v5859, %v5850
    %v6418 = vpack.c.b16 %v5860, %v5851
    %v6419 = vpack.c.b16 %v5861, %v5852
    %v6420 = vpack.c.b16 %v5862, %v5853
    %v6421 = vpack.c.b16 %v5863, %v5854
    %v6422 = vpack.c.b16 %v5873, %v5864
    %v6423 = vpack.c.b16 %v5874, %v5865
    %v6424 = vpack.c.b16 %v5875, %v5866
    %v6425 = vpack.c.b16 %v5876, %v5867
    %v6426 = vpack.c.b16 %v5877, %v5868
    %v6427 = vpack.c.b16 %v5878, %v5869
    %v6428 = vpack.c.b16 %v5879, %v5870
    %v6429 = vpack.c.b16 %v5880, %v5871
    %v6430 = vpack.c.b16 %v5881, %v5872
    %v6431 = vpack.c.b16 %v5891, %v5882
    %v6432 = vpack.c.b16 %v5892, %v5883
    %v6433 = vpack.c.b16 %v5893, %v5884
    %v6434 = vpack.c.b16 %v5894, %v5885
    %v6435 = vpack.c.b16 %v5895, %v5886
    %v6436 = vpack.c.b16 %v5896, %v5887
    %v6437 = vpack.c.b16 %v5897, %v5888
    %v6438 = vpack.c.b16 %v5898, %v5889
    %v6439 = vpack.c.b16 %v5899, %v5890
    %v6440 = vpack.c.b16 %v5909, %v5900
    %v6441 = vpack.c.b16 %v5910, %v5901
    %v6442 = vpack.c.b16 %v5911, %v5902
    %v6443 = vpack.c.b16 %v5912, %v5903
    %v6444 = vpack.c.b16 %v5913, %v5904
    %v6445 = vpack.c.b16 %v5914, %v5905
    %v6446 = vpack.c.b16 %v5915, %v5906
    %v6447 = vpack.c.b16 %v5916, %v5907
    %v6448 = vpack.c.b16 %v5917, %v5908
    %v6449 = vpack.c.b16 %v5927, %v5918
    %v6450 = vpack.c.b16 %v5928, %v5919
    %v6451 = vpack.c.b16 %v5929, %v5920
    %v6452 = vpack.c.b16 %v5930, %v5921
    %v6453 = vpack.c.b16 %v5931, %v5922
    %v6454 = vpack.c.b16 %v5932, %v5923
    %v6455 = vpack.c.b16 %v5933, %v5924
    %v6456 = vpack.c.b16 %v5934, %v5925
    %v6457 = vpack.c.b16 %v5935, %v5926
    %v6458 = vpack.c.b16 %v5945, %v5936
    %v6459 = vpack.c.b16 %v5946, %v5937
    %v6460 = vpack.c.b16 %v5947, %v5938
    %v6461 = vpack.c.b16 %v5948, %v5939
    %v6462 = vpack.c.b16 %v5949, %v5940
    %v6463 = vpack.c.b16 %v5950, %v5941
    %v6464 = vpack.c.b16 %v5951, %v5942
    %v6465 = vpack.c.b16 %v5952, %v5943
    %v6466 = vpack.c.b16 %v5953, %v5944
    %v6467 = vpack.c.b16 %v5963, %v5954
    %v6468 = vpack.c.b16 %v5964, %v5955
    %v6469 = vpack.c.b16 %v5965, %v5956
    %v6470 = vpack.c.b16 %v5966, %v5957
    %v6471 = vpack.c.b16 %v5967, %v5958
    %v6472 = vpack.c.b16 %v5968, %v5959
    %v6473 = vpack.c.b16 %v5969, %v5960
    %v6474 = vpack.c.b16 %v5970, %v5961
    %v6475 = vpack.c.b16 %v5971, %v5962
    %v6476 = vpack.c.b16 %v5981, %v5972
    %v6477 = vpack.c.b16 %v5982, %v5973
    %v6478 = vpack.c.b16 %v5983, %v5974
    %v6479 = vpack.c.b16 %v5984, %v5975
    %v6480 = vpack.c.b16 %v5985, %v5976
    %v6481 = vpack.c.b16 %v5986, %v5977
    %v6482 = vpack.c.b16 %v5987, %v5978
    %v6483 = vpack.c.b16 %v5988, %v5979
    %v6484 = vpack.c.b16 %v5989, %v5980
    %v6485 = vpack.c.b16 %v5999, %v5990
    %v6486 = vpack.c.b16 %v6000, %v5991
    %v6487 = vpack.c.b16 %v6001, %v5992
    %v6488 = vpack.c.b16 %v6002, %v5993
    %v6489 = vpack.c.b16 %v6003, %v5994
    %v6490 = vpack.c.b16 %v6004, %v5995
    %v6491 = vpack.c.b16 %v6005, %v5996
    %v6492 = vpack.c.b16 %v6006, %v5997
    %v6493 = vpack.c.b16 %v6007, %v5998
    %v6494 = vpack.c.b16 %v6017, %v6008
    %v6495 = vpack.c.b16 %v6018, %v6009
    %v6496 = vpack.c.b16 %v6019, %v6010
    %v6497 = vpack.c.b16 %v6020, %v6011
    %v6498 = vpack.c.b16 %v6021, %v6012
    %v6499 = vpack.c.b16 %v6022, %v6013
    %v6500 = vpack.c.b16 %v6023, %v6014
    %v6501 = vpack.c.b16 %v6024, %v6015
    %v6502 = vpack.c.b16 %v6025, %v6016
    %v6503 = vpack.c.b16 %v6035, %v6026
    %v6504 = vpack.c.b16 %v6036, %v6027
    %v6505 = vpack.c.b16 %v6037, %v6028
    %v6506 = vpack.c.b16 %v6038, %v6029
    %v6507 = vpack.c.b16 %v6039, %v6030
    %v6508 = vpack.c.b16 %v6040, %v6031
    %v6509 = vpack.c.b16 %v6041, %v6032
    %v6510 = vpack.c.b16 %v6042, %v6033
    %v6511 = vpack.c.b16 %v6043, %v6034
    %v6512 = vpack.c.b16 %v6053, %v6044
    %v6513 = vpack.c.b16 %v6054, %v6045
    %v6514 = vpack.c.b16 %v6055, %v6046
    %v6515 = vpack.c.b16 %v6056, %v6047
    %v6516 = vpack.c.b16 %v6057, %v6048
    %v6517 = vpack.c.b16 %v6058, %v6049
    %v6518 = vpack.c.b16 %v6059, %v6050
    %v6519 = vpack.c.b16 %v6060, %v6051
    %v6520 = vpack.c.b16 %v6061, %v6052
    %v6521 = vpack.c.b16 %v6071, %v6062
    %v6522 = vpack.c.b16 %v6072, %v6063
    %v6523 = vpack.c.b16 %v6073, %v6064
    %v6524 = vpack.c.b16 %v6074, %v6065
    %v6525 = vpack.c.b16 %v6075, %v6066
    %v6526 = vpack.c.b16 %v6076, %v6067
    %v6527 = vpack.c.b16 %v6077, %v6068
    %v6528 = vpack.c.b16 %v6078, %v6069
    %v6529 = vpack.c.b16 %v6079, %v6070
    %v6530 = vpack.c.b16 %v6089, %v6080
    %v6531 = vpack.c.b16 %v6090, %v6081
    %v6532 = vpack.c.b16 %v6091, %v6082
    %v6533 = vpack.c.b16 %v6092, %v6083
    %v6534 = vpack.c.b16 %v6093, %v6084
    %v6535 = vpack.c.b16 %v6094, %v6085
    %v6536 = vpack.c.b16 %v6095, %v6086
    %v6537 = vpack.c.b16 %v6096, %v6087
    %v6538 = vpack.c.b16 %v6097, %v6088
    %v6539 = vpack.c.b16 %v6107, %v6098
    %v6540 = vpack.c.b16 %v6108, %v6099
    %v6541 = vpack.c.b16 %v6109, %v6100
    %v6542 = vpack.c.b16 %v6110, %v6101
    %v6543 = vpack.c.b16 %v6111, %v6102
    %v6544 = vpack.c.b16 %v6112, %v6103
    %v6545 = vpack.c.b16 %v6113, %v6104
    %v6546 = vpack.c.b16 %v6114, %v6105
    %v6547 = vpack.c.b16 %v6115, %v6106
    %v6548 = vpack.c.b16 %v6125, %v6116
    %v6549 = vpack.c.b16 %v6126, %v6117
    %v6550 = vpack.c.b16 %v6127, %v6118
    %v6551 = vpack.c.b16 %v6128, %v6119
    %v6552 = vpack.c.b16 %v6129, %v6120
    %v6553 = vpack.c.b16 %v6130, %v6121
    %v6554 = vpack.c.b16 %v6131, %v6122
    %v6555 = vpack.c.b16 %v6132, %v6123
    %v6556 = vpack.c.b16 %v6133, %v6124
    %v6557 = vpack.c.b16 %v6143, %v6134
    %v6558 = vpack.c.b16 %v6144, %v6135
    %v6559 = vpack.c.b16 %v6145, %v6136
    %v6560 = vpack.c.b16 %v6146, %v6137
    %v6561 = vpack.c.b16 %v6147, %v6138
    %v6562 = vpack.c.b16 %v6148, %v6139
    %v6563 = vpack.c.b16 %v6149, %v6140
    %v6564 = vpack.c.b16 %v6150, %v6141
    %v6565 = vpack.c.b16 %v6151, %v6142
    %v6566 = vpack.c.b16 %v6161, %v6152
    %v6567 = vpack.c.b16 %v6162, %v6153
    %v6568 = vpack.c.b16 %v6163, %v6154
    %v6569 = vpack.c.b16 %v6164, %v6155
    %v6570 = vpack.c.b16 %v6165, %v6156
    %v6571 = vpack.c.b16 %v6166, %v6157
    %v6572 = vpack.c.b16 %v6167, %v6158
    %v6573 = vpack.c.b16 %v6168, %v6159
    %v6574 = vpack.c.b16 %v6169, %v6160
    %v6575 = vpack.c.b16 %v6179, %v6170
    %v6576 = vpack.c.b16 %v6180, %v6171
    %v6577 = vpack.c.b16 %v6181, %v6172
    %v6578 = vpack.c.b16 %v6182, %v6173
    %v6579 = vpack.c.b16 %v6183, %v6174
    %v6580 = vpack.c.b16 %v6184, %v6175
    %v6581 = vpack.c.b16 %v6185, %v6176
    %v6582 = vpack.c.b16 %v6186, %v6177
    %v6583 = vpack.c.b16 %v6187, %v6178
    %v6584 = vpack.c.b16 %v6197, %v6188
    %v6585 = vpack.c.b16 %v6198, %v6189
    %v6586 = vpack.c.b16 %v6199, %v6190
    %v6587 = vpack.c.b16 %v6200, %v6191
    %v6588 = vpack.c.b16 %v6201, %v6192
    %v6589 = vpack.c.b16 %v6202, %v6193
    %v6590 = vpack.c.b16 %v6203, %v6194
    %v6591 = vpack.c.b16 %v6204, %v6195
    %v6592 = vpack.c.b16 %v6205, %v6196
    %v6593 = vpack.c.b16 %v6215, %v6206
    %v6594 = vpack.c.b16 %v6216, %v6207
    %v6595 = vpack.c.b16 %v6217, %v6208
    %v6596 = vpack.c.b16 %v6218, %v6209
    %v6597 = vpack.c.b16 %v6219, %v6210
    %v6598 = vpack.c.b16 %v6220, %v6211
    %v6599 = vpack.c.b16 %v6221, %v6212
    %v6600 = vpack.c.b16 %v6222, %v6213
    %v6601 = vpack.c.b16 %v6223, %v6214
    %v6602 = vpack.c.b16 %v6233, %v6224
    %v6603 = vpack.c.b16 %v6234, %v6225
    %v6604 = vpack.c.b16 %v6235, %v6226
    %v6605 = vpack.c.b16 %v6236, %v6227
    %v6606 = vpack.c.b16 %v6237, %v6228
    %v6607 = vpack.c.b16 %v6238, %v6229
    %v6608 = vpack.c.b16 %v6239, %v6230
    %v6609 = vpack.c.b16 %v6240, %v6231
    %v6610 = vpack.c.b16 %v6241, %v6232
    %v6611 = vpack.c.b16 %v6251, %v6242
    %v6612 = vpack.c.b16 %v6252, %v6243
    %v6613 = vpack.c.b16 %v6253, %v6244
    %v6614 = vpack.c.b16 %v6254, %v6245
    %v6615 = vpack.c.b16 %v6255, %v6246
    %v6616 = vpack.c.b16 %v6256, %v6247
    %v6617 = vpack.c.b16 %v6257, %v6248
    %v6618 = vpack.c.b16 %v6258, %v6249
    %v6619 = vpack.c.b16 %v6259, %v6250
    %v6620 = vpack.c.b16 %v6269, %v6260
    %v6621 = vpack.c.b16 %v6270, %v6261
    %v6622 = vpack.c.b16 %v6271, %v6262
    %v6623 = vpack.c.b16 %v6272, %v6263
    %v6624 = vpack.c.b16 %v6273, %v6264
    %v6625 = vpack.c.b16 %v6274, %v6265
    %v6626 = vpack.c.b16 %v6275, %v6266
    %v6627 = vpack.c.b16 %v6276, %v6267
    %v6628 = vpack.c.b16 %v6277, %v6268
    %v6629 = vpack.c.b16 %v6287, %v6278
    %v6630 = vpack.c.b16 %v6288, %v6279
    %v6631 = vpack.c.b16 %v6289, %v6280
    %v6632 = vpack.c.b16 %v6290, %v6281
    %v6633 = vpack.c.b16 %v6291, %v6282
    %v6634 = vpack.c.b16 %v6292, %v6283
    %v6635 = vpack.c.b16 %v6293, %v6284
    %v6636 = vpack.c.b16 %v6294, %v6285
    %v6637 = vpack.c.b16 %v6295, %v6286
    %v6638 = vpack.c.b16 %v6305, %v6296
    %v6639 = vpack.c.b16 %v6306, %v6297
    %v6640 = vpack.c.b16 %v6307, %v6298
    %v6641 = vpack.c.b16 %v6308, %v6299
    %v6642 = vpack.c.b16 %v6309, %v6300
    %v6643 = vpack.c.b16 %v6310, %v6301
    %v6644 = vpack.c.b16 %v6311, %v6302
    %v6645 = vpack.c.b16 %v6312, %v6303
    %v6646 = vpack.c.b16 %v6313, %v6304
    %v6647 = vpack.c.b16 %v6323, %v6314
    %v6648 = vpack.c.b16 %v6324, %v6315
    %v6649 = vpack.c.b16 %v6325, %v6316
    %v6650 = vpack.c.b16 %v6326, %v6317
    %v6651 = vpack.c.b16 %v6327, %v6318
    %v6652 = vpack.c.b16 %v6328, %v6319
    %v6653 = vpack.c.b16 %v6329, %v6320
    %v6654 = vpack.c.b16 %v6330, %v6321
    %v6655 = vpack.c.b16 %v6331, %v6322
    %v6656 = vpack.c.b16 %v6341, %v6332
    %v6657 = vpack.c.b16 %v6342, %v6333
    %v6658 = vpack.c.b16 %v6343, %v6334
    %v6659 = vpack.c.b16 %v6344, %v6335
    %v6660 = vpack.c.b16 %v6345, %v6336
    %v6661 = vpack.c.b16 %v6346, %v6337
    %v6662 = vpack.c.b16 %v6347, %v6338
    %v6663 = vpack.c.b16 %v6348, %v6339
    %v6664 = vpack.c.b16 %v6349, %v6340
    %v6665 = vpack.c.b16 %v6359, %v6350
    %v6666 = vpack.c.b16 %v6360, %v6351
    %v6667 = vpack.c.b16 %v6361, %v6352
    %v6668 = vpack.c.b16 %v6362, %v6353
    %v6669 = vpack.c.b16 %v6363, %v6354
    %v6670 = vpack.c.b16 %v6364, %v6355
    %v6671 = vpack.c.b16 %v6365, %v6356
    %v6672 = vpack.c.b16 %v6366, %v6357
    %v6673 = vpack.c.b16 %v6367, %v6358
    %v6674 = vpack.c.b16 %v6377, %v6368
    %v6675 = vpack.c.b16 %v6378, %v6369
    %v6676 = vpack.c.b16 %v6379, %v6370
    %v6677 = vpack.c.b16 %v6380, %v6371
    %v6678 = vpack.c.b16 %v6381, %v6372
    %v6679 = vpack.c.b16 %v6382, %v6373
    %v6680 = vpack.c.b16 %v6383, %v6374
    %v6681 = vpack.c.b16 %v6384, %v6375
    %v6682 = vpack.c.b16 %v6385, %v6376
    %v6683 = vpack.c.b16 %v6395, %v6386
    %v6684 = vpack.c.b16 %v6396, %v6387
    %v6685 = vpack.c.b16 %v6397, %v6388
    %v6686 = vpack.c.b16 %v6398, %v6389
    %v6687 = vpack.c.b16 %v6399, %v6390
    %v6688 = vpack.c.b16 %v6400, %v6391
    %v6689 = vpack.c.b16 %v6401, %v6392
    %v6690 = vpack.c.b16 %v6402, %v6393
    %v6691 = vpack.c.b16 %v6403, %v6394
    %v7124 = vunpack.c.l.b16 %v5364
    %v7125 = vunpack.c.l.b16 %v5365
    %v7126 = vunpack.c.l.b16 %v5366
    %v7127 = vunpack.c.l.b16 %v5367
    %v7128 = vunpack.c.l.b16 %v5368
    %v7129 = vunpack.c.l.b16 %v5369
    %v7130 = vunpack.c.l.b16 %v5370
    %v7131 = vunpack.c.l.b16 %v5371
    %v7132 = vunpack.c.l.b16 %v5372
    %v7133 = vunpack.c.l.b16 %v5373
    %v7134 = vunpack.c.l.b16 %v5374
    %v7135 = vunpack.c.l.b16 %v5375
    %v7136 = vunpack.c.l.b16 %v5376
    %v7137 = vunpack.c.l.b16 %v5377
    %v7138 = vunpack.c.l.b16 %v5378
    %v7139 = vunpack.c.l.b16 %v5379
    %v7140 = vunpack.c.l.b16 %v5380
    %v7141 = vunpack.c.l.b16 %v5381
    %v7142 = vunpack.c.l.b16 %v5382
    %v7143 = vunpack.c.l.b16 %v5383
    %v7144 = vunpack.c.l.b16 %v5384
    %v7145 = vunpack.c.l.b16 %v5385
    %v7146 = vunpack.c.l.b16 %v5386
    %v7147 = vunpack.c.l.b16 %v5387
    %v7148 = vunpack.c.l.b16 %v5388
    %v7149 = vunpack.c.l.b16 %v5389
    %v7150 = vunpack.c.l.b16 %v5390
    %v7151 = vunpack.c.l.b16 %v5391
    %v7152 = vunpack.c.l.b16 %v5392
    %v7153 = vunpack.c.l.b16 %v5393
    %v7154 = vunpack.c.l.b16 %v5394
    %v7155 = vunpack.c.l.b16 %v5395
    %v7156 = vunpack.c.l.b16 %v5396
    %v7157 = vunpack.c.l.b16 %v5397
    %v7158 = vunpack.c.l.b16 %v5398
    %v7159 = vunpack.c.l.b16 %v5399
    %v7160 = vunpack.c.l.b16 %v5400
    %v7161 = vunpack.c.l.b16 %v5401
    %v7162 = vunpack.c.l.b16 %v5402
    %v7163 = vunpack.c.l.b16 %v5403
    %v7164 = vunpack.c.l.b16 %v5404
    %v7165 = vunpack.c.l.b16 %v5405
    %v7166 = vunpack.c.l.b16 %v5406
    %v7167 = vunpack.c.l.b16 %v5407
    %v7168 = vunpack.c.l.b16 %v5408
    %v7169 = vunpack.c.l.b16 %v5409
    %v7170 = vunpack.c.l.b16 %v5410
    %v7171 = vunpack.c.l.b16 %v5411
    %v7172 = vunpack.c.l.b16 %v5412
    %v7173 = vunpack.c.l.b16 %v5413
    %v7174 = vunpack.c.l.b16 %v5414
    %v7175 = vunpack.c.l.b16 %v5415
    %v7176 = vunpack.c.l.b16 %v5416
    %v7177 = vunpack.c.l.b16 %v5417
    %v7178 = vunpack.c.l.b16 %v5418
    %v7179 = vunpack.c.l.b16 %v5419
    %v7180 = vunpack.c.l.b16 %v5420
    %v7181 = vunpack.c.l.b16 %v5421
    %v7182 = vunpack.c.l.b16 %v5422
    %v7183 = vunpack.c.l.b16 %v5423
    %v7184 = vunpack.c.l.b16 %v5424
    %v7185 = vunpack.c.l.b16 %v5425
    %v7186 = vunpack.c.l.b16 %v5426
    %v7187 = vunpack.c.l.b16 %v5427
    %v7188 = vunpack.c.l.b16 %v5428
    %v7189 = vunpack.c.l.b16 %v5429
    %v7190 = vunpack.c.l.b16 %v5430
    %v7191 = vunpack.c.l.b16 %v5431
    %v7192 = vunpack.c.l.b16 %v5432
    %v7193 = vunpack.c.l.b16 %v5433
    %v7194 = vunpack.c.l.b16 %v5434
    %v7195 = vunpack.c.l.b16 %v5435
    %v7196 = vunpack.c.l.b16 %v5436
    %v7197 = vunpack.c.l.b16 %v5437
    %v7198 = vunpack.c.l.b16 %v5438
    %v7199 = vunpack.c.l.b16 %v5439
    %v7200 = vunpack.c.l.b16 %v5440
    %v7201 = vunpack.c.l.b16 %v5441
    %v7202 = vunpack.c.l.b16 %v5442
    %v7203 = vunpack.c.l.b16 %v5443
    %v7204 = vunpack.c.l.b16 %v5444
    %v7205 = vunpack.c.l.b16 %v5445
    %v7206 = vunpack.c.l.b16 %v5446
    %v7207 = vunpack.c.l.b16 %v5447
    %v7208 = vunpack.c.l.b16 %v5448
    %v7209 = vunpack.c.l.b16 %v5449
    %v7210 = vunpack.c.l.b16 %v5450
    %v7211 = vunpack.c.l.b16 %v5451
    %v7212 = vunpack.c.l.b16 %v5452
    %v7213 = vunpack.c.l.b16 %v5453
    %v7214 = vunpack.c.l.b16 %v5454
    %v7215 = vunpack.c.l.b16 %v5455
    %v7216 = vunpack.c.l.b16 %v5456
    %v7217 = vunpack.c.l.b16 %v5457
    %v7218 = vunpack.c.l.b16 %v5458
    %v7219 = vunpack.c.l.b16 %v5459
    %v7220 = vunpack.c.l.b16 %v5460
    %v7221 = vunpack.c.l.b16 %v5461
    %v7222 = vunpack.c.l.b16 %v5462
    %v7223 = vunpack.c.l.b16 %v5463
    %v7224 = vunpack.c.l.b16 %v5464
    %v7225 = vunpack.c.l.b16 %v5465
    %v7226 = vunpack.c.l.b16 %v5466
    %v7227 = vunpack.c.l.b16 %v5467
    %v7228 = vunpack.c.l.b16 %v5468
    %v7229 = vunpack.c.l.b16 %v5469
    %v7230 = vunpack.c.l.b16 %v5470
    %v7231 = vunpack.c.l.b16 %v5471
    %v7232 = vunpack.c.l.b16 %v5472
    %v7233 = vunpack.c.l.b16 %v5473
    %v7234 = vunpack.c.l.b16 %v5474
    %v7235 = vunpack.c.l.b16 %v5475
    %v7236 = vunpack.c.l.b16 %v5476
    %v7237 = vunpack.c.l.b16 %v5477
    %v7238 = vunpack.c.l.b16 %v5478
    %v7239 = vunpack.c.l.b16 %v5479
    %v7240 = vunpack.c.l.b16 %v5480
    %v7241 = vunpack.c.l.b16 %v5481
    %v7242 = vunpack.c.l.b16 %v5482
    %v7243 = vunpack.c.l.b16 %v5483
    %v7244 = vunpack.c.l.b16 %v5484
    %v7245 = vunpack.c.l.b16 %v5485
    %v7246 = vunpack.c.l.b16 %v5486
    %v7247 = vunpack.c.l.b16 %v5487
    %v7248 = vunpack.c.l.b16 %v5488
    %v7249 = vunpack.c.l.b16 %v5489
    %v7250 = vunpack.c.l.b16 %v5490
    %v7251 = vunpack.c.l.b16 %v5491
    %v7252 = vunpack.c.l.b16 %v5492
    %v7253 = vunpack.c.l.b16 %v5493
    %v7254 = vunpack.c.l.b16 %v5494
    %v7255 = vunpack.c.l.b16 %v5495
    %v7256 = vunpack.c.l.b16 %v5496
    %v7257 = vunpack.c.l.b16 %v5497
    %v7258 = vunpack.c.l.b16 %v5498
    %v7259 = vunpack.c.l.b16 %v5499
    %v7260 = vunpack.c.l.b16 %v5500
    %v7261 = vunpack.c.l.b16 %v5501
    %v7262 = vunpack.c.l.b16 %v5502
    %v7263 = vunpack.c.l.b16 %v5503
    %v7264 = vunpack.c.l.b16 %v5504
    %v7265 = vunpack.c.l.b16 %v5505
    %v7266 = vunpack.c.l.b16 %v5506
    %v7267 = vunpack.c.l.b16 %v5507
    %v7268 = vpack.c.b16 %v7125, %v7124
    %v7269 = vpack.c.b16 %v7127, %v7126
    %v7270 = vpack.c.b16 %v7129, %v7128
    %v7271 = vpack.c.b16 %v7131, %v7130
    %v7272 = vpack.c.b16 %v7133, %v7132
    %v7273 = vpack.c.b16 %v7135, %v7134
    %v7274 = vpack.c.b16 %v7137, %v7136
    %v7275 = vpack.c.b16 %v7139, %v7138
    %v7276 = vpack.c.b16 %v7141, %v7140
    %v7277 = vpack.c.b16 %v7143, %v7142
    %v7278 = vpack.c.b16 %v7145, %v7144
    %v7279 = vpack.c.b16 %v7147, %v7146
    %v7280 = vpack.c.b16 %v7149, %v7148
    %v7281 = vpack.c.b16 %v7151, %v7150
    %v7282 = vpack.c.b16 %v7153, %v7152
    %v7283 = vpack.c.b16 %v7155, %v7154
    %v7284 = vpack.c.b16 %v7157, %v7156
    %v7285 = vpack.c.b16 %v7159, %v7158
    %v7286 = vpack.c.b16 %v7161, %v7160
    %v7287 = vpack.c.b16 %v7163, %v7162
    %v7288 = vpack.c.b16 %v7165, %v7164
    %v7289 = vpack.c.b16 %v7167, %v7166
    %v7290 = vpack.c.b16 %v7169, %v7168
    %v7291 = vpack.c.b16 %v7171, %v7170
    %v7292 = vpack.c.b16 %v7173, %v7172
    %v7293 = vpack.c.b16 %v7175, %v7174
    %v7294 = vpack.c.b16 %v7177, %v7176
    %v7295 = vpack.c.b16 %v7179, %v7178
    %v7296 = vpack.c.b16 %v7181, %v7180
    %v7297 = vpack.c.b16 %v7183, %v7182
    %v7298 = vpack.c.b16 %v7185, %v7184
    %v7299 = vpack.c.b16 %v7187, %v7186
    %v7300 = vpack.c.b16 %v7189, %v7188
    %v7301 = vpack.c.b16 %v7191, %v7190
    %v7302 = vpack.c.b16 %v7193, %v7192
    %v7303 = vpack.c.b16 %v7195, %v7194
    %v7304 = vpack.c.b16 %v7197, %v7196
    %v7305 = vpack.c.b16 %v7199, %v7198
    %v7306 = vpack.c.b16 %v7201, %v7200
    %v7307 = vpack.c.b16 %v7203, %v7202
    %v7308 = vpack.c.b16 %v7205, %v7204
    %v7309 = vpack.c.b16 %v7207, %v7206
    %v7310 = vpack.c.b16 %v7209, %v7208
    %v7311 = vpack.c.b16 %v7211, %v7210
    %v7312 = vpack.c.b16 %v7213, %v7212
    %v7313 = vpack.c.b16 %v7215, %v7214
    %v7314 = vpack.c.b16 %v7217, %v7216
    %v7315 = vpack.c.b16 %v7219, %v7218
    %v7316 = vpack.c.b16 %v7221, %v7220
    %v7317 = vpack.c.b16 %v7223, %v7222
    %v7318 = vpack.c.b16 %v7225, %v7224
    %v7319 = vpack.c.b16 %v7227, %v7226
    %v7320 = vpack.c.b16 %v7229, %v7228
    %v7321 = vpack.c.b16 %v7231, %v7230
    %v7322 = vpack.c.b16 %v7233, %v7232
    %v7323 = vpack.c.b16 %v7235, %v7234
    %v7324 = vpack.c.b16 %v7237, %v7236
    %v7325 = vpack.c.b16 %v7239, %v7238
    %v7326 = vpack.c.b16 %v7241, %v7240
    %v7327 = vpack.c.b16 %v7243, %v7242
    %v7328 = vpack.c.b16 %v7245, %v7244
    %v7329 = vpack.c.b16 %v7247, %v7246
    %v7330 = vpack.c.b16 %v7249, %v7248
    %v7331 = vpack.c.b16 %v7251, %v7250
    %v7332 = vpack.c.b16 %v7253, %v7252
    %v7333 = vpack.c.b16 %v7255, %v7254
    %v7334 = vpack.c.b16 %v7257, %v7256
    %v7335 = vpack.c.b16 %v7259, %v7258
    %v7336 = vpack.c.b16 %v7261, %v7260
    %v7337 = vpack.c.b16 %v7263, %v7262
    %v7338 = vpack.c.b16 %v7265, %v7264
    %v7339 = vpack.c.b16 %v7267, %v7266
    %7412 = vmatprep.subr.bf16.mxu0 0
    %7413 = vmatpush1.bf16.msra.mxu0 %v7275
    %7414 = vmatprep.subr.bf16.mxu0 0
    %7415 = vmatpush1.bf16.msra.mxu0 %v7274
    %7416 = vmatprep.subr.bf16.mxu0 0
    %7417 = vmatpush1.bf16.msra.mxu0 %v7273
    %7418 = vmatprep.subr.bf16.mxu0 0
    %7419 = vmatpush1.bf16.msra.mxu0 %v7272
    %7420 = vmatprep.subr.bf16.mxu0 0
    %7421 = vmatpush1.bf16.msra.mxu0 %v7271
    %7422 = vmatprep.subr.bf16.mxu0 0
    %7423 = vmatpush1.bf16.msra.mxu0 %v7270
    %7424 = vmatprep.subr.bf16.mxu0 0
    %7425 = vmatpush1.bf16.msra.mxu0 %v7269
    %7426 = vmatprep.subr.bf16.mxu0 0
    %7427 = vmatpush1.bf16.msra.mxu0 %v7268
    %7428 = vmatprep.subr.bf16.mxu0 0
    %7429 = vmatpush2.bf16.msra.mxu0 %v7283
    %7430 = vmatprep.subr.bf16.mxu0 0
    %7431 = vmatpush2.bf16.msra.mxu0 %v7282
    %7432 = vmatprep.subr.bf16.mxu0 0
    %7433 = vmatpush2.bf16.msra.mxu0 %v7281
    %7434 = vmatprep.subr.bf16.mxu0 0
    %7435 = vmatpush2.bf16.msra.mxu0 %v7280
    %7436 = vmatprep.subr.bf16.mxu0 0
    %7437 = vmatpush2.bf16.msra.mxu0 %v7279
    %7438 = vmatprep.subr.bf16.mxu0 0
    %7439 = vmatpush2.bf16.msra.mxu0 %v7278
    %7440 = vmatprep.subr.bf16.mxu0 0
    %7441 = vmatpush2.bf16.msra.mxu0 %v7277
    %7442 = vmatprep.subr.bf16.mxu0 0
    %7443 = vmatpush2.bf16.msra.mxu0 %v7276
    %7444 = vmatprep.mubr.bf16.mxu0 %v6405
    %7445 = vmatmul.mubr.bf16.gmra.mxu0 %v6404
    %v7446 = vpop.f32.mrf.mxu0
    %v7447 = vadd.f32 0.0, %v7446
    %v7448 = vpop.f32.mrf.mxu0
    %v7449 = vpop.f32.mrf.mxu0
    %v7450 = vadd.f32 0.0, %v7449
    %v7451 = vpop.f32.mrf.mxu0
    %7452 = vmatprep.mubr.bf16.mxu0 %v6414
    %7453 = vmatmul.mubr.bf16.gmra.mxu0 %v6413
    %v7454 = vpop.f32.mrf.mxu0
    %v7455 = vadd.f32 0.0, %v7454
    %v7456 = vpop.f32.mrf.mxu0
    %v7457 = vpop.f32.mrf.mxu0
    %v7458 = vadd.f32 0.0, %v7457
    %v7459 = vpop.f32.mrf.mxu0
    %7460 = vmatprep.mubr.bf16.mxu0 %v6423
    %7461 = vmatmul.mubr.bf16.gmra.mxu0 %v6422
    %v7462 = vpop.f32.mrf.mxu0
    %v7463 = vadd.f32 0.0, %v7462
    %v7464 = vpop.f32.mrf.mxu0
    %v7465 = vpop.f32.mrf.mxu0
    %v7466 = vadd.f32 0.0, %v7465
    %v7467 = vpop.f32.mrf.mxu0
    %7468 = vmatprep.mubr.bf16.mxu0 %v6432
    %7469 = vmatmul.mubr.bf16.gmra.mxu0 %v6431
    %v7470 = vpop.f32.mrf.mxu0
    %v7471 = vadd.f32 0.0, %v7470
    %v7472 = vpop.f32.mrf.mxu0
    %v7473 = vpop.f32.mrf.mxu0
    %v7474 = vadd.f32 0.0, %v7473
    %v7475 = vpop.f32.mrf.mxu0
    %7476 = vmatprep.mubr.bf16.mxu0 %v6441
    %7477 = vmatmul.mubr.bf16.gmra.mxu0 %v6440
    %v7478 = vpop.f32.mrf.mxu0
    %v7479 = vadd.f32 0.0, %v7478
    %v7480 = vpop.f32.mrf.mxu0
    %v7481 = vpop.f32.mrf.mxu0
    %v7482 = vadd.f32 0.0, %v7481
    %v7483 = vpop.f32.mrf.mxu0
    %7484 = vmatprep.mubr.bf16.mxu0 %v6450
    %7485 = vmatmul.mubr.bf16.gmra.mxu0 %v6449
    %v7486 = vpop.f32.mrf.mxu0
    %v7487 = vadd.f32 0.0, %v7486
    %v7488 = vpop.f32.mrf.mxu0
    %v7489 = vpop.f32.mrf.mxu0
    %v7490 = vadd.f32 0.0, %v7489
    %v7491 = vpop.f32.mrf.mxu0
    %7492 = vmatprep.mubr.bf16.mxu0 %v6459
    %7493 = vmatmul.mubr.bf16.gmra.mxu0 %v6458
    %v7494 = vpop.f32.mrf.mxu0
    %v7495 = vadd.f32 0.0, %v7494
    %v7496 = vpop.f32.mrf.mxu0
    %v7497 = vpop.f32.mrf.mxu0
    %v7498 = vadd.f32 0.0, %v7497
    %v7499 = vpop.f32.mrf.mxu0
    %7500 = vmatprep.mubr.bf16.mxu0 %v6468
    %7501 = vmatmul.mubr.bf16.gmra.mxu0 %v6467
    %v7502 = vpop.f32.mrf.mxu0
    %v7503 = vadd.f32 0.0, %v7502
    %v7504 = vpop.f32.mrf.mxu0
    %v7505 = vpop.f32.mrf.mxu0
    %v7506 = vadd.f32 0.0, %v7505
    %v7507 = vpop.f32.mrf.mxu0
    %7508 = vmatprep.mubr.bf16.mxu0 %v6477
    %7509 = vmatmul.mubr.bf16.gmra.mxu0 %v6476
    %v7510 = vpop.f32.mrf.mxu0
    %v7511 = vadd.f32 0.0, %v7510
    %v7512 = vpop.f32.mrf.mxu0
    %v7513 = vpop.f32.mrf.mxu0
    %v7514 = vadd.f32 0.0, %v7513
    %v7515 = vpop.f32.mrf.mxu0
    %7516 = vmatprep.mubr.bf16.mxu0 %v6486
    %7517 = vmatmul.mubr.bf16.gmra.mxu0 %v6485
    %v7518 = vpop.f32.mrf.mxu0
    %v7519 = vadd.f32 0.0, %v7518
    %v7520 = vpop.f32.mrf.mxu0
    %v7521 = vpop.f32.mrf.mxu0
    %v7522 = vadd.f32 0.0, %v7521
    %v7523 = vpop.f32.mrf.mxu0
    %7524 = vmatprep.mubr.bf16.mxu0 %v6495
    %7525 = vmatmul.mubr.bf16.gmra.mxu0 %v6494
    %v7526 = vpop.f32.mrf.mxu0
    %v7527 = vadd.f32 0.0, %v7526
    %v7528 = vpop.f32.mrf.mxu0
    %v7529 = vpop.f32.mrf.mxu0
    %v7530 = vadd.f32 0.0, %v7529
    %v7531 = vpop.f32.mrf.mxu0
    %7532 = vmatprep.mubr.bf16.mxu0 %v6504
    %7533 = vmatmul.mubr.bf16.gmra.mxu0 %v6503
    %v7534 = vpop.f32.mrf.mxu0
    %v7535 = vadd.f32 0.0, %v7534
    %v7536 = vpop.f32.mrf.mxu0
    %v7537 = vpop.f32.mrf.mxu0
    %v7538 = vadd.f32 0.0, %v7537
    %v7539 = vpop.f32.mrf.mxu0
    %7540 = vmatprep.mubr.bf16.mxu0 %v6513
    %7541 = vmatmul.mubr.bf16.gmra.mxu0 %v6512
    %v7542 = vpop.f32.mrf.mxu0
    %v7543 = vadd.f32 0.0, %v7542
    %v7544 = vpop.f32.mrf.mxu0
    %v7545 = vpop.f32.mrf.mxu0
    %v7546 = vadd.f32 0.0, %v7545
    %v7547 = vpop.f32.mrf.mxu0
    %7548 = vmatprep.mubr.bf16.mxu0 %v6522
    %7549 = vmatmul.mubr.bf16.gmra.mxu0 %v6521
    %v7550 = vpop.f32.mrf.mxu0
    %v7551 = vadd.f32 0.0, %v7550
    %v7552 = vpop.f32.mrf.mxu0
    %v7553 = vpop.f32.mrf.mxu0
    %v7554 = vadd.f32 0.0, %v7553
    %v7555 = vpop.f32.mrf.mxu0
    %7556 = vmatprep.mubr.bf16.mxu0 %v6531
    %7557 = vmatmul.mubr.bf16.gmra.mxu0 %v6530
    %v7558 = vpop.f32.mrf.mxu0
    %v7559 = vadd.f32 0.0, %v7558
    %v7560 = vpop.f32.mrf.mxu0
    %v7561 = vpop.f32.mrf.mxu0
    %v7562 = vadd.f32 0.0, %v7561
    %v7563 = vpop.f32.mrf.mxu0
    %7564 = vmatprep.mubr.bf16.mxu0 %v6540
    %7565 = vmatmul.mubr.bf16.gmra.mxu0 %v6539
    %v7566 = vpop.f32.mrf.mxu0
    %v7567 = vadd.f32 0.0, %v7566
    %v7568 = vpop.f32.mrf.mxu0
    %v7569 = vpop.f32.mrf.mxu0
    %v7570 = vadd.f32 0.0, %v7569
    %v7571 = vpop.f32.mrf.mxu0
    %7572 = vmatprep.mubr.bf16.mxu0 %v6549
    %7573 = vmatmul.mubr.bf16.gmra.mxu0 %v6548
    %v7574 = vpop.f32.mrf.mxu0
    %v7575 = vadd.f32 0.0, %v7574
    %v7576 = vpop.f32.mrf.mxu0
    %v7577 = vpop.f32.mrf.mxu0
    %v7578 = vadd.f32 0.0, %v7577
    %v7579 = vpop.f32.mrf.mxu0
    %7580 = vmatprep.mubr.bf16.mxu0 %v6558
    %7581 = vmatmul.mubr.bf16.gmra.mxu0 %v6557
    %v7582 = vpop.f32.mrf.mxu0
    %v7583 = vadd.f32 0.0, %v7582
    %v7584 = vpop.f32.mrf.mxu0
    %v7585 = vpop.f32.mrf.mxu0
    %v7586 = vadd.f32 0.0, %v7585
    %v7587 = vpop.f32.mrf.mxu0
    %7588 = vmatprep.mubr.bf16.mxu0 %v6567
    %7589 = vmatmul.mubr.bf16.gmra.mxu0 %v6566
    %v7590 = vpop.f32.mrf.mxu0
    %v7591 = vadd.f32 0.0, %v7590
    %v7592 = vpop.f32.mrf.mxu0
    %v7593 = vpop.f32.mrf.mxu0
    %v7594 = vadd.f32 0.0, %v7593
    %v7595 = vpop.f32.mrf.mxu0
    %7596 = vmatprep.mubr.bf16.mxu0 %v6576
    %7597 = vmatmul.mubr.bf16.gmra.mxu0 %v6575
    %v7598 = vpop.f32.mrf.mxu0
    %v7599 = vadd.f32 0.0, %v7598
    %v7600 = vpop.f32.mrf.mxu0
    %v7601 = vpop.f32.mrf.mxu0
    %v7602 = vadd.f32 0.0, %v7601
    %v7603 = vpop.f32.mrf.mxu0
    %7604 = vmatprep.mubr.bf16.mxu0 %v6585
    %7605 = vmatmul.mubr.bf16.gmra.mxu0 %v6584
    %v7606 = vpop.f32.mrf.mxu0
    %v7607 = vadd.f32 0.0, %v7606
    %v7608 = vpop.f32.mrf.mxu0
    %v7609 = vpop.f32.mrf.mxu0
    %v7610 = vadd.f32 0.0, %v7609
    %v7611 = vpop.f32.mrf.mxu0
    %7612 = vmatprep.mubr.bf16.mxu0 %v6594
    %7613 = vmatmul.mubr.bf16.gmra.mxu0 %v6593
    %v7614 = vpop.f32.mrf.mxu0
    %v7615 = vadd.f32 0.0, %v7614
    %v7616 = vpop.f32.mrf.mxu0
    %v7617 = vpop.f32.mrf.mxu0
    %v7618 = vadd.f32 0.0, %v7617
    %v7619 = vpop.f32.mrf.mxu0
    %7620 = vmatprep.mubr.bf16.mxu0 %v6603
    %7621 = vmatmul.mubr.bf16.gmra.mxu0 %v6602
    %v7622 = vpop.f32.mrf.mxu0
    %v7623 = vadd.f32 0.0, %v7622
    %v7624 = vpop.f32.mrf.mxu0
    %v7625 = vpop.f32.mrf.mxu0
    %v7626 = vadd.f32 0.0, %v7625
    %v7627 = vpop.f32.mrf.mxu0
    %7628 = vmatprep.mubr.bf16.mxu0 %v6612
    %7629 = vmatmul.mubr.bf16.gmra.mxu0 %v6611
    %v7630 = vpop.f32.mrf.mxu0
    %v7631 = vadd.f32 0.0, %v7630
    %v7632 = vpop.f32.mrf.mxu0
    %v7633 = vpop.f32.mrf.mxu0
    %v7634 = vadd.f32 0.0, %v7633
    %v7635 = vpop.f32.mrf.mxu0
    %7636 = vmatprep.mubr.bf16.mxu0 %v6621
    %7637 = vmatmul.mubr.bf16.gmra.mxu0 %v6620
    %v7638 = vpop.f32.mrf.mxu0
    %v7639 = vadd.f32 0.0, %v7638
    %v7640 = vpop.f32.mrf.mxu0
    %v7641 = vpop.f32.mrf.mxu0
    %v7642 = vadd.f32 0.0, %v7641
    %v7643 = vpop.f32.mrf.mxu0
    %7644 = vmatprep.mubr.bf16.mxu0 %v6630
    %7645 = vmatmul.mubr.bf16.gmra.mxu0 %v6629
    %v7646 = vpop.f32.mrf.mxu0
    %v7647 = vadd.f32 0.0, %v7646
    %v7648 = vpop.f32.mrf.mxu0
    %v7649 = vpop.f32.mrf.mxu0
    %v7650 = vadd.f32 0.0, %v7649
    %v7651 = vpop.f32.mrf.mxu0
    %7652 = vmatprep.mubr.bf16.mxu0 %v6639
    %7653 = vmatmul.mubr.bf16.gmra.mxu0 %v6638
    %v7654 = vpop.f32.mrf.mxu0
    %v7655 = vadd.f32 0.0, %v7654
    %v7656 = vpop.f32.mrf.mxu0
    %v7657 = vpop.f32.mrf.mxu0
    %v7658 = vadd.f32 0.0, %v7657
    %v7659 = vpop.f32.mrf.mxu0
    %7660 = vmatprep.mubr.bf16.mxu0 %v6648
    %7661 = vmatmul.mubr.bf16.gmra.mxu0 %v6647
    %v7662 = vpop.f32.mrf.mxu0
    %v7663 = vadd.f32 0.0, %v7662
    %v7664 = vpop.f32.mrf.mxu0
    %v7665 = vpop.f32.mrf.mxu0
    %v7666 = vadd.f32 0.0, %v7665
    %v7667 = vpop.f32.mrf.mxu0
    %7668 = vmatprep.mubr.bf16.mxu0 %v6657
    %7669 = vmatmul.mubr.bf16.gmra.mxu0 %v6656
    %v7670 = vpop.f32.mrf.mxu0
    %v7671 = vadd.f32 0.0, %v7670
    %v7672 = vpop.f32.mrf.mxu0
    %v7673 = vpop.f32.mrf.mxu0
    %v7674 = vadd.f32 0.0, %v7673
    %v7675 = vpop.f32.mrf.mxu0
    %7676 = vmatprep.mubr.bf16.mxu0 %v6666
    %7677 = vmatmul.mubr.bf16.gmra.mxu0 %v6665
    %v7678 = vpop.f32.mrf.mxu0
    %v7679 = vadd.f32 0.0, %v7678
    %v7680 = vpop.f32.mrf.mxu0
    %v7681 = vpop.f32.mrf.mxu0
    %v7682 = vadd.f32 0.0, %v7681
    %v7683 = vpop.f32.mrf.mxu0
    %7684 = vmatprep.mubr.bf16.mxu0 %v6675
    %7685 = vmatmul.mubr.bf16.gmra.mxu0 %v6674
    %v7686 = vpop.f32.mrf.mxu0
    %v7687 = vadd.f32 0.0, %v7686
    %v7688 = vpop.f32.mrf.mxu0
    %v7689 = vpop.f32.mrf.mxu0
    %v7690 = vadd.f32 0.0, %v7689
    %v7691 = vpop.f32.mrf.mxu0
    %7692 = vmatprep.mubr.bf16.mxu0 %v6684
    %7693 = vmatmul.mubr.bf16.gmra.mxu0 %v6683
    %v7694 = vpop.f32.mrf.mxu0
    %v7695 = vadd.f32 0.0, %v7694
    %v7696 = vpop.f32.mrf.mxu0
    %v7697 = vpop.f32.mrf.mxu0
    %v7698 = vadd.f32 0.0, %v7697
    %v7699 = vpop.f32.mrf.mxu0
    %7700 = vdwg.mxu0
    %7701 = vmatprep.subr.bf16.mxu0 0
    %7702 = vmatpush1.bf16.msra.mxu0 %v7291
    %7703 = vmatprep.subr.bf16.mxu0 0
    %7704 = vmatpush1.bf16.msra.mxu0 %v7290
    %7705 = vmatprep.subr.bf16.mxu0 0
    %7706 = vmatpush1.bf16.msra.mxu0 %v7289
    %7707 = vmatprep.subr.bf16.mxu0 0
    %7708 = vmatpush1.bf16.msra.mxu0 %v7288
    %7709 = vmatprep.subr.bf16.mxu0 0
    %7710 = vmatpush1.bf16.msra.mxu0 %v7287
    %7711 = vmatprep.subr.bf16.mxu0 0
    %7712 = vmatpush1.bf16.msra.mxu0 %v7286
    %7713 = vmatprep.subr.bf16.mxu0 0
    %7714 = vmatpush1.bf16.msra.mxu0 %v7285
    %7715 = vmatprep.subr.bf16.mxu0 0
    %7716 = vmatpush1.bf16.msra.mxu0 %v7284
    %7717 = vmatprep.subr.bf16.mxu0 0
    %7718 = vmatpush2.bf16.msra.mxu0 %v7299
    %7719 = vmatprep.subr.bf16.mxu0 0
    %7720 = vmatpush2.bf16.msra.mxu0 %v7298
    %7721 = vmatprep.subr.bf16.mxu0 0
    %7722 = vmatpush2.bf16.msra.mxu0 %v7297
    %7723 = vmatprep.subr.bf16.mxu0 0
    %7724 = vmatpush2.bf16.msra.mxu0 %v7296
    %7725 = vmatprep.subr.bf16.mxu0 0
    %7726 = vmatpush2.bf16.msra.mxu0 %v7295
    %7727 = vmatprep.subr.bf16.mxu0 0
    %7728 = vmatpush2.bf16.msra.mxu0 %v7294
    %7729 = vmatprep.subr.bf16.mxu0 0
    %7730 = vmatpush2.bf16.msra.mxu0 %v7293
    %7731 = vmatprep.subr.bf16.mxu0 0
    %7732 = vmatpush2.bf16.msra.mxu0 %v7292
    %7733 = vmatprep.mubr.bf16.mxu0 %v6407
    %7734 = vmatmul.mubr.bf16.gmra.mxu0 %v6406
    %v7735 = vpop.f32.mrf.mxu0
    %v7736 = vadd.f32 %v7447, %v7735
    %v7737 = vpop.f32.mrf.mxu0
    %v7738 = vpop.f32.mrf.mxu0
    %v7739 = vadd.f32 %v7450, %v7738
    %v7740 = vpop.f32.mrf.mxu0
    %7741 = vmatprep.mubr.bf16.mxu0 %v6416
    %7742 = vmatmul.mubr.bf16.gmra.mxu0 %v6415
    %v7743 = vpop.f32.mrf.mxu0
    %v7744 = vadd.f32 %v7455, %v7743
    %v7745 = vpop.f32.mrf.mxu0
    %v7746 = vpop.f32.mrf.mxu0
    %v7747 = vadd.f32 %v7458, %v7746
    %v7748 = vpop.f32.mrf.mxu0
    %7749 = vmatprep.mubr.bf16.mxu0 %v6425
    %7750 = vmatmul.mubr.bf16.gmra.mxu0 %v6424
    %v7751 = vpop.f32.mrf.mxu0
    %v7752 = vadd.f32 %v7463, %v7751
    %v7753 = vpop.f32.mrf.mxu0
    %v7754 = vpop.f32.mrf.mxu0
    %v7755 = vadd.f32 %v7466, %v7754
    %v7756 = vpop.f32.mrf.mxu0
    %7757 = vmatprep.mubr.bf16.mxu0 %v6434
    %7758 = vmatmul.mubr.bf16.gmra.mxu0 %v6433
    %v7759 = vpop.f32.mrf.mxu0
    %v7760 = vadd.f32 %v7471, %v7759
    %v7761 = vpop.f32.mrf.mxu0
    %v7762 = vpop.f32.mrf.mxu0
    %v7763 = vadd.f32 %v7474, %v7762
    %v7764 = vpop.f32.mrf.mxu0
    %7765 = vmatprep.mubr.bf16.mxu0 %v6443
    %7766 = vmatmul.mubr.bf16.gmra.mxu0 %v6442
    %v7767 = vpop.f32.mrf.mxu0
    %v7768 = vadd.f32 %v7479, %v7767
    %v7769 = vpop.f32.mrf.mxu0
    %v7770 = vpop.f32.mrf.mxu0
    %v7771 = vadd.f32 %v7482, %v7770
    %v7772 = vpop.f32.mrf.mxu0
    %7773 = vmatprep.mubr.bf16.mxu0 %v6452
    %7774 = vmatmul.mubr.bf16.gmra.mxu0 %v6451
    %v7775 = vpop.f32.mrf.mxu0
    %v7776 = vadd.f32 %v7487, %v7775
    %v7777 = vpop.f32.mrf.mxu0
    %v7778 = vpop.f32.mrf.mxu0
    %v7779 = vadd.f32 %v7490, %v7778
    %v7780 = vpop.f32.mrf.mxu0
    %7781 = vmatprep.mubr.bf16.mxu0 %v6461
    %7782 = vmatmul.mubr.bf16.gmra.mxu0 %v6460
    %v7783 = vpop.f32.mrf.mxu0
    %v7784 = vadd.f32 %v7495, %v7783
    %v7785 = vpop.f32.mrf.mxu0
    %v7786 = vpop.f32.mrf.mxu0
    %v7787 = vadd.f32 %v7498, %v7786
    %v7788 = vpop.f32.mrf.mxu0
    %7789 = vmatprep.mubr.bf16.mxu0 %v6470
    %7790 = vmatmul.mubr.bf16.gmra.mxu0 %v6469
    %v7791 = vpop.f32.mrf.mxu0
    %v7792 = vadd.f32 %v7503, %v7791
    %v7793 = vpop.f32.mrf.mxu0
    %v7794 = vpop.f32.mrf.mxu0
    %v7795 = vadd.f32 %v7506, %v7794
    %v7796 = vpop.f32.mrf.mxu0
    %7797 = vmatprep.mubr.bf16.mxu0 %v6479
    %7798 = vmatmul.mubr.bf16.gmra.mxu0 %v6478
    %v7799 = vpop.f32.mrf.mxu0
    %v7800 = vadd.f32 %v7511, %v7799
    %v7801 = vpop.f32.mrf.mxu0
    %v7802 = vpop.f32.mrf.mxu0
    %v7803 = vadd.f32 %v7514, %v7802
    %v7804 = vpop.f32.mrf.mxu0
    %7805 = vmatprep.mubr.bf16.mxu0 %v6488
    %7806 = vmatmul.mubr.bf16.gmra.mxu0 %v6487
    %v7807 = vpop.f32.mrf.mxu0
    %v7808 = vadd.f32 %v7519, %v7807
    %v7809 = vpop.f32.mrf.mxu0
    %v7810 = vpop.f32.mrf.mxu0
    %v7811 = vadd.f32 %v7522, %v7810
    %v7812 = vpop.f32.mrf.mxu0
    %7813 = vmatprep.mubr.bf16.mxu0 %v6497
    %7814 = vmatmul.mubr.bf16.gmra.mxu0 %v6496
    %v7815 = vpop.f32.mrf.mxu0
    %v7816 = vadd.f32 %v7527, %v7815
    %v7817 = vpop.f32.mrf.mxu0
    %v7818 = vpop.f32.mrf.mxu0
    %v7819 = vadd.f32 %v7530, %v7818
    %v7820 = vpop.f32.mrf.mxu0
    %7821 = vmatprep.mubr.bf16.mxu0 %v6506
    %7822 = vmatmul.mubr.bf16.gmra.mxu0 %v6505
    %v7823 = vpop.f32.mrf.mxu0
    %v7824 = vadd.f32 %v7535, %v7823
    %v7825 = vpop.f32.mrf.mxu0
    %v7826 = vpop.f32.mrf.mxu0
    %v7827 = vadd.f32 %v7538, %v7826
    %v7828 = vpop.f32.mrf.mxu0
    %7829 = vmatprep.mubr.bf16.mxu0 %v6515
    %7830 = vmatmul.mubr.bf16.gmra.mxu0 %v6514
    %v7831 = vpop.f32.mrf.mxu0
    %v7832 = vadd.f32 %v7543, %v7831
    %v7833 = vpop.f32.mrf.mxu0
    %v7834 = vpop.f32.mrf.mxu0
    %v7835 = vadd.f32 %v7546, %v7834
    %v7836 = vpop.f32.mrf.mxu0
    %7837 = vmatprep.mubr.bf16.mxu0 %v6524
    %7838 = vmatmul.mubr.bf16.gmra.mxu0 %v6523
    %v7839 = vpop.f32.mrf.mxu0
    %v7840 = vadd.f32 %v7551, %v7839
    %v7841 = vpop.f32.mrf.mxu0
    %v7842 = vpop.f32.mrf.mxu0
    %v7843 = vadd.f32 %v7554, %v7842
    %v7844 = vpop.f32.mrf.mxu0
    %7845 = vmatprep.mubr.bf16.mxu0 %v6533
    %7846 = vmatmul.mubr.bf16.gmra.mxu0 %v6532
    %v7847 = vpop.f32.mrf.mxu0
    %v7848 = vadd.f32 %v7559, %v7847
    %v7849 = vpop.f32.mrf.mxu0
    %v7850 = vpop.f32.mrf.mxu0
    %v7851 = vadd.f32 %v7562, %v7850
    %v7852 = vpop.f32.mrf.mxu0
    %7853 = vmatprep.mubr.bf16.mxu0 %v6542
    %7854 = vmatmul.mubr.bf16.gmra.mxu0 %v6541
    %v7855 = vpop.f32.mrf.mxu0
    %v7856 = vadd.f32 %v7567, %v7855
    %v7857 = vpop.f32.mrf.mxu0
    %v7858 = vpop.f32.mrf.mxu0
    %v7859 = vadd.f32 %v7570, %v7858
    %v7860 = vpop.f32.mrf.mxu0
    %7861 = vmatprep.mubr.bf16.mxu0 %v6551
    %7862 = vmatmul.mubr.bf16.gmra.mxu0 %v6550
    %v7863 = vpop.f32.mrf.mxu0
    %v7864 = vadd.f32 %v7575, %v7863
    %v7865 = vpop.f32.mrf.mxu0
    %v7866 = vpop.f32.mrf.mxu0
    %v7867 = vadd.f32 %v7578, %v7866
    %v7868 = vpop.f32.mrf.mxu0
    %7869 = vmatprep.mubr.bf16.mxu0 %v6560
    %7870 = vmatmul.mubr.bf16.gmra.mxu0 %v6559
    %v7871 = vpop.f32.mrf.mxu0
    %v7872 = vadd.f32 %v7583, %v7871
    %v7873 = vpop.f32.mrf.mxu0
    %v7874 = vpop.f32.mrf.mxu0
    %v7875 = vadd.f32 %v7586, %v7874
    %v7876 = vpop.f32.mrf.mxu0
    %7877 = vmatprep.mubr.bf16.mxu0 %v6569
    %7878 = vmatmul.mubr.bf16.gmra.mxu0 %v6568
    %v7879 = vpop.f32.mrf.mxu0
    %v7880 = vadd.f32 %v7591, %v7879
    %v7881 = vpop.f32.mrf.mxu0
    %v7882 = vpop.f32.mrf.mxu0
    %v7883 = vadd.f32 %v7594, %v7882
    %v7884 = vpop.f32.mrf.mxu0
    %7885 = vmatprep.mubr.bf16.mxu0 %v6578
    %7886 = vmatmul.mubr.bf16.gmra.mxu0 %v6577
    %v7887 = vpop.f32.mrf.mxu0
    %v7888 = vadd.f32 %v7599, %v7887
    %v7889 = vpop.f32.mrf.mxu0
    %v7890 = vpop.f32.mrf.mxu0
    %v7891 = vadd.f32 %v7602, %v7890
    %v7892 = vpop.f32.mrf.mxu0
    %7893 = vmatprep.mubr.bf16.mxu0 %v6587
    %7894 = vmatmul.mubr.bf16.gmra.mxu0 %v6586
    %v7895 = vpop.f32.mrf.mxu0
    %v7896 = vadd.f32 %v7607, %v7895
    %v7897 = vpop.f32.mrf.mxu0
    %v7898 = vpop.f32.mrf.mxu0
    %v7899 = vadd.f32 %v7610, %v7898
    %v7900 = vpop.f32.mrf.mxu0
    %7901 = vmatprep.mubr.bf16.mxu0 %v6596
    %7902 = vmatmul.mubr.bf16.gmra.mxu0 %v6595
    %v7903 = vpop.f32.mrf.mxu0
    %v7904 = vadd.f32 %v7615, %v7903
    %v7905 = vpop.f32.mrf.mxu0
    %v7906 = vpop.f32.mrf.mxu0
    %v7907 = vadd.f32 %v7618, %v7906
    %v7908 = vpop.f32.mrf.mxu0
    %7909 = vmatprep.mubr.bf16.mxu0 %v6605
    %7910 = vmatmul.mubr.bf16.gmra.mxu0 %v6604
    %v7911 = vpop.f32.mrf.mxu0
    %v7912 = vadd.f32 %v7623, %v7911
    %v7913 = vpop.f32.mrf.mxu0
    %v7914 = vpop.f32.mrf.mxu0
    %v7915 = vadd.f32 %v7626, %v7914
    %v7916 = vpop.f32.mrf.mxu0
    %7917 = vmatprep.mubr.bf16.mxu0 %v6614
    %7918 = vmatmul.mubr.bf16.gmra.mxu0 %v6613
    %v7919 = vpop.f32.mrf.mxu0
    %v7920 = vadd.f32 %v7631, %v7919
    %v7921 = vpop.f32.mrf.mxu0
    %v7922 = vpop.f32.mrf.mxu0
    %v7923 = vadd.f32 %v7634, %v7922
    %v7924 = vpop.f32.mrf.mxu0
    %7925 = vmatprep.mubr.bf16.mxu0 %v6623
    %7926 = vmatmul.mubr.bf16.gmra.mxu0 %v6622
    %v7927 = vpop.f32.mrf.mxu0
    %v7928 = vadd.f32 %v7639, %v7927
    %v7929 = vpop.f32.mrf.mxu0
    %v7930 = vpop.f32.mrf.mxu0
    %v7931 = vadd.f32 %v7642, %v7930
    %v7932 = vpop.f32.mrf.mxu0
    %7933 = vmatprep.mubr.bf16.mxu0 %v6632
    %7934 = vmatmul.mubr.bf16.gmra.mxu0 %v6631
    %v7935 = vpop.f32.mrf.mxu0
    %v7936 = vadd.f32 %v7647, %v7935
    %v7937 = vpop.f32.mrf.mxu0
    %v7938 = vpop.f32.mrf.mxu0
    %v7939 = vadd.f32 %v7650, %v7938
    %v7940 = vpop.f32.mrf.mxu0
    %7941 = vmatprep.mubr.bf16.mxu0 %v6641
    %7942 = vmatmul.mubr.bf16.gmra.mxu0 %v6640
    %v7943 = vpop.f32.mrf.mxu0
    %v7944 = vadd.f32 %v7655, %v7943
    %v7945 = vpop.f32.mrf.mxu0
    %v7946 = vpop.f32.mrf.mxu0
    %v7947 = vadd.f32 %v7658, %v7946
    %v7948 = vpop.f32.mrf.mxu0
    %7949 = vmatprep.mubr.bf16.mxu0 %v6650
    %7950 = vmatmul.mubr.bf16.gmra.mxu0 %v6649
    %v7951 = vpop.f32.mrf.mxu0
    %v7952 = vadd.f32 %v7663, %v7951
    %v7953 = vpop.f32.mrf.mxu0
    %v7954 = vpop.f32.mrf.mxu0
    %v7955 = vadd.f32 %v7666, %v7954
    %v7956 = vpop.f32.mrf.mxu0
    %7957 = vmatprep.mubr.bf16.mxu0 %v6659
    %7958 = vmatmul.mubr.bf16.gmra.mxu0 %v6658
    %v7959 = vpop.f32.mrf.mxu0
    %v7960 = vadd.f32 %v7671, %v7959
    %v7961 = vpop.f32.mrf.mxu0
    %v7962 = vpop.f32.mrf.mxu0
    %v7963 = vadd.f32 %v7674, %v7962
    %v7964 = vpop.f32.mrf.mxu0
    %7965 = vmatprep.mubr.bf16.mxu0 %v6668
    %7966 = vmatmul.mubr.bf16.gmra.mxu0 %v6667
    %v7967 = vpop.f32.mrf.mxu0
    %v7968 = vadd.f32 %v7679, %v7967
    %v7969 = vpop.f32.mrf.mxu0
    %v7970 = vpop.f32.mrf.mxu0
    %v7971 = vadd.f32 %v7682, %v7970
    %v7972 = vpop.f32.mrf.mxu0
    %7973 = vmatprep.mubr.bf16.mxu0 %v6677
    %7974 = vmatmul.mubr.bf16.gmra.mxu0 %v6676
    %v7975 = vpop.f32.mrf.mxu0
    %v7976 = vadd.f32 %v7687, %v7975
    %v7977 = vpop.f32.mrf.mxu0
    %v7978 = vpop.f32.mrf.mxu0
    %v7979 = vadd.f32 %v7690, %v7978
    %v7980 = vpop.f32.mrf.mxu0
    %7981 = vmatprep.mubr.bf16.mxu0 %v6686
    %7982 = vmatmul.mubr.bf16.gmra.mxu0 %v6685
    %v7983 = vpop.f32.mrf.mxu0
    %v7984 = vadd.f32 %v7695, %v7983
    %v7985 = vpop.f32.mrf.mxu0
    %v7986 = vpop.f32.mrf.mxu0
    %v7987 = vadd.f32 %v7698, %v7986
    %v7988 = vpop.f32.mrf.mxu0
    %7989 = vdwg.mxu0
    %7990 = vmatprep.subr.bf16.mxu0 0
    %7991 = vmatpush1.bf16.msra.mxu0 %v7307
    %7992 = vmatprep.subr.bf16.mxu0 0
    %7993 = vmatpush1.bf16.msra.mxu0 %v7306
    %7994 = vmatprep.subr.bf16.mxu0 0
    %7995 = vmatpush1.bf16.msra.mxu0 %v7305
    %7996 = vmatprep.subr.bf16.mxu0 0
    %7997 = vmatpush1.bf16.msra.mxu0 %v7304
    %7998 = vmatprep.subr.bf16.mxu0 0
    %7999 = vmatpush1.bf16.msra.mxu0 %v7303
    %8000 = vmatprep.subr.bf16.mxu0 0
    %8001 = vmatpush1.bf16.msra.mxu0 %v7302
    %8002 = vmatprep.subr.bf16.mxu0 0
    %8003 = vmatpush1.bf16.msra.mxu0 %v7301
    %8004 = vmatprep.subr.bf16.mxu0 0
    %8005 = vmatpush1.bf16.msra.mxu0 %v7300
    %8006 = vmatprep.subr.bf16.mxu0 0
    %8007 = vmatpush2.bf16.msra.mxu0 %v7315
    %8008 = vmatprep.subr.bf16.mxu0 0
    %8009 = vmatpush2.bf16.msra.mxu0 %v7314
    %8010 = vmatprep.subr.bf16.mxu0 0
    %8011 = vmatpush2.bf16.msra.mxu0 %v7313
    %8012 = vmatprep.subr.bf16.mxu0 0
    %8013 = vmatpush2.bf16.msra.mxu0 %v7312
    %8014 = vmatprep.subr.bf16.mxu0 0
    %8015 = vmatpush2.bf16.msra.mxu0 %v7311
    %8016 = vmatprep.subr.bf16.mxu0 0
    %8017 = vmatpush2.bf16.msra.mxu0 %v7310
    %8018 = vmatprep.subr.bf16.mxu0 0
    %8019 = vmatpush2.bf16.msra.mxu0 %v7309
    %8020 = vmatprep.subr.bf16.mxu0 0
    %8021 = vmatpush2.bf16.msra.mxu0 %v7308
    %8022 = vmatprep.mubr.bf16.mxu0 %v6409
    %8023 = vmatmul.mubr.bf16.gmra.mxu0 %v6408
    %v8024 = vpop.f32.mrf.mxu0
    %v8025 = vadd.f32 %v7736, %v8024
    %v8026 = vpop.f32.mrf.mxu0
    %v8027 = vpop.f32.mrf.mxu0
    %v8028 = vadd.f32 %v7739, %v8027
    %v8029 = vpop.f32.mrf.mxu0
    %8030 = vmatprep.mubr.bf16.mxu0 %v6418
    %8031 = vmatmul.mubr.bf16.gmra.mxu0 %v6417
    %v8032 = vpop.f32.mrf.mxu0
    %v8033 = vadd.f32 %v7744, %v8032
    %v8034 = vpop.f32.mrf.mxu0
    %v8035 = vpop.f32.mrf.mxu0
    %v8036 = vadd.f32 %v7747, %v8035
    %v8037 = vpop.f32.mrf.mxu0
    %8038 = vmatprep.mubr.bf16.mxu0 %v6427
    %8039 = vmatmul.mubr.bf16.gmra.mxu0 %v6426
    %v8040 = vpop.f32.mrf.mxu0
    %v8041 = vadd.f32 %v7752, %v8040
    %v8042 = vpop.f32.mrf.mxu0
    %v8043 = vpop.f32.mrf.mxu0
    %v8044 = vadd.f32 %v7755, %v8043
    %v8045 = vpop.f32.mrf.mxu0
    %8046 = vmatprep.mubr.bf16.mxu0 %v6436
    %8047 = vmatmul.mubr.bf16.gmra.mxu0 %v6435
    %v8048 = vpop.f32.mrf.mxu0
    %v8049 = vadd.f32 %v7760, %v8048
    %v8050 = vpop.f32.mrf.mxu0
    %v8051 = vpop.f32.mrf.mxu0
    %v8052 = vadd.f32 %v7763, %v8051
    %v8053 = vpop.f32.mrf.mxu0
    %8054 = vmatprep.mubr.bf16.mxu0 %v6445
    %8055 = vmatmul.mubr.bf16.gmra.mxu0 %v6444
    %v8056 = vpop.f32.mrf.mxu0
    %v8057 = vadd.f32 %v7768, %v8056
    %v8058 = vpop.f32.mrf.mxu0
    %v8059 = vpop.f32.mrf.mxu0
    %v8060 = vadd.f32 %v7771, %v8059
    %v8061 = vpop.f32.mrf.mxu0
    %8062 = vmatprep.mubr.bf16.mxu0 %v6454
    %8063 = vmatmul.mubr.bf16.gmra.mxu0 %v6453
    %v8064 = vpop.f32.mrf.mxu0
    %v8065 = vadd.f32 %v7776, %v8064
    %v8066 = vpop.f32.mrf.mxu0
    %v8067 = vpop.f32.mrf.mxu0
    %v8068 = vadd.f32 %v7779, %v8067
    %v8069 = vpop.f32.mrf.mxu0
    %8070 = vmatprep.mubr.bf16.mxu0 %v6463
    %8071 = vmatmul.mubr.bf16.gmra.mxu0 %v6462
    %v8072 = vpop.f32.mrf.mxu0
    %v8073 = vadd.f32 %v7784, %v8072
    %v8074 = vpop.f32.mrf.mxu0
    %v8075 = vpop.f32.mrf.mxu0
    %v8076 = vadd.f32 %v7787, %v8075
    %v8077 = vpop.f32.mrf.mxu0
    %8078 = vmatprep.mubr.bf16.mxu0 %v6472
    %8079 = vmatmul.mubr.bf16.gmra.mxu0 %v6471
    %v8080 = vpop.f32.mrf.mxu0
    %v8081 = vadd.f32 %v7792, %v8080
    %v8082 = vpop.f32.mrf.mxu0
    %v8083 = vpop.f32.mrf.mxu0
    %v8084 = vadd.f32 %v7795, %v8083
    %v8085 = vpop.f32.mrf.mxu0
    %8086 = vmatprep.mubr.bf16.mxu0 %v6481
    %8087 = vmatmul.mubr.bf16.gmra.mxu0 %v6480
    %v8088 = vpop.f32.mrf.mxu0
    %v8089 = vadd.f32 %v7800, %v8088
    %v8090 = vpop.f32.mrf.mxu0
    %v8091 = vpop.f32.mrf.mxu0
    %v8092 = vadd.f32 %v7803, %v8091
    %v8093 = vpop.f32.mrf.mxu0
    %8094 = vmatprep.mubr.bf16.mxu0 %v6490
    %8095 = vmatmul.mubr.bf16.gmra.mxu0 %v6489
    %v8096 = vpop.f32.mrf.mxu0
    %v8097 = vadd.f32 %v7808, %v8096
    %v8098 = vpop.f32.mrf.mxu0
    %v8099 = vpop.f32.mrf.mxu0
    %v8100 = vadd.f32 %v7811, %v8099
    %v8101 = vpop.f32.mrf.mxu0
    %8102 = vmatprep.mubr.bf16.mxu0 %v6499
    %8103 = vmatmul.mubr.bf16.gmra.mxu0 %v6498
    %v8104 = vpop.f32.mrf.mxu0
    %v8105 = vadd.f32 %v7816, %v8104
    %v8106 = vpop.f32.mrf.mxu0
    %v8107 = vpop.f32.mrf.mxu0
    %v8108 = vadd.f32 %v7819, %v8107
    %v8109 = vpop.f32.mrf.mxu0
    %8110 = vmatprep.mubr.bf16.mxu0 %v6508
    %8111 = vmatmul.mubr.bf16.gmra.mxu0 %v6507
    %v8112 = vpop.f32.mrf.mxu0
    %v8113 = vadd.f32 %v7824, %v8112
    %v8114 = vpop.f32.mrf.mxu0
    %v8115 = vpop.f32.mrf.mxu0
    %v8116 = vadd.f32 %v7827, %v8115
    %v8117 = vpop.f32.mrf.mxu0
    %8118 = vmatprep.mubr.bf16.mxu0 %v6517
    %8119 = vmatmul.mubr.bf16.gmra.mxu0 %v6516
    %v8120 = vpop.f32.mrf.mxu0
    %v8121 = vadd.f32 %v7832, %v8120
    %v8122 = vpop.f32.mrf.mxu0
    %v8123 = vpop.f32.mrf.mxu0
    %v8124 = vadd.f32 %v7835, %v8123
    %v8125 = vpop.f32.mrf.mxu0
    %8126 = vmatprep.mubr.bf16.mxu0 %v6526
    %8127 = vmatmul.mubr.bf16.gmra.mxu0 %v6525
    %v8128 = vpop.f32.mrf.mxu0
    %v8129 = vadd.f32 %v7840, %v8128
    %v8130 = vpop.f32.mrf.mxu0
    %v8131 = vpop.f32.mrf.mxu0
    %v8132 = vadd.f32 %v7843, %v8131
    %v8133 = vpop.f32.mrf.mxu0
    %8134 = vmatprep.mubr.bf16.mxu0 %v6535
    %8135 = vmatmul.mubr.bf16.gmra.mxu0 %v6534
    %v8136 = vpop.f32.mrf.mxu0
    %v8137 = vadd.f32 %v7848, %v8136
    %v8138 = vpop.f32.mrf.mxu0
    %v8139 = vpop.f32.mrf.mxu0
    %v8140 = vadd.f32 %v7851, %v8139
    %v8141 = vpop.f32.mrf.mxu0
    %8142 = vmatprep.mubr.bf16.mxu0 %v6544
    %8143 = vmatmul.mubr.bf16.gmra.mxu0 %v6543
    %v8144 = vpop.f32.mrf.mxu0
    %v8145 = vadd.f32 %v7856, %v8144
    %v8146 = vpop.f32.mrf.mxu0
    %v8147 = vpop.f32.mrf.mxu0
    %v8148 = vadd.f32 %v7859, %v8147
    %v8149 = vpop.f32.mrf.mxu0
    %8150 = vmatprep.mubr.bf16.mxu0 %v6553
    %8151 = vmatmul.mubr.bf16.gmra.mxu0 %v6552
    %v8152 = vpop.f32.mrf.mxu0
    %v8153 = vadd.f32 %v7864, %v8152
    %v8154 = vpop.f32.mrf.mxu0
    %v8155 = vpop.f32.mrf.mxu0
    %v8156 = vadd.f32 %v7867, %v8155
    %v8157 = vpop.f32.mrf.mxu0
    %8158 = vmatprep.mubr.bf16.mxu0 %v6562
    %8159 = vmatmul.mubr.bf16.gmra.mxu0 %v6561
    %v8160 = vpop.f32.mrf.mxu0
    %v8161 = vadd.f32 %v7872, %v8160
    %v8162 = vpop.f32.mrf.mxu0
    %v8163 = vpop.f32.mrf.mxu0
    %v8164 = vadd.f32 %v7875, %v8163
    %v8165 = vpop.f32.mrf.mxu0
    %8166 = vmatprep.mubr.bf16.mxu0 %v6571
    %8167 = vmatmul.mubr.bf16.gmra.mxu0 %v6570
    %v8168 = vpop.f32.mrf.mxu0
    %v8169 = vadd.f32 %v7880, %v8168
    %v8170 = vpop.f32.mrf.mxu0
    %v8171 = vpop.f32.mrf.mxu0
    %v8172 = vadd.f32 %v7883, %v8171
    %v8173 = vpop.f32.mrf.mxu0
    %8174 = vmatprep.mubr.bf16.mxu0 %v6580
    %8175 = vmatmul.mubr.bf16.gmra.mxu0 %v6579
    %v8176 = vpop.f32.mrf.mxu0
    %v8177 = vadd.f32 %v7888, %v8176
    %v8178 = vpop.f32.mrf.mxu0
    %v8179 = vpop.f32.mrf.mxu0
    %v8180 = vadd.f32 %v7891, %v8179
    %v8181 = vpop.f32.mrf.mxu0
    %8182 = vmatprep.mubr.bf16.mxu0 %v6589
    %8183 = vmatmul.mubr.bf16.gmra.mxu0 %v6588
    %v8184 = vpop.f32.mrf.mxu0
    %v8185 = vadd.f32 %v7896, %v8184
    %v8186 = vpop.f32.mrf.mxu0
    %v8187 = vpop.f32.mrf.mxu0
    %v8188 = vadd.f32 %v7899, %v8187
    %v8189 = vpop.f32.mrf.mxu0
    %8190 = vmatprep.mubr.bf16.mxu0 %v6598
    %8191 = vmatmul.mubr.bf16.gmra.mxu0 %v6597
    %v8192 = vpop.f32.mrf.mxu0
    %v8193 = vadd.f32 %v7904, %v8192
    %v8194 = vpop.f32.mrf.mxu0
    %v8195 = vpop.f32.mrf.mxu0
    %v8196 = vadd.f32 %v7907, %v8195
    %v8197 = vpop.f32.mrf.mxu0
    %8198 = vmatprep.mubr.bf16.mxu0 %v6607
    %8199 = vmatmul.mubr.bf16.gmra.mxu0 %v6606
    %v8200 = vpop.f32.mrf.mxu0
    %v8201 = vadd.f32 %v7912, %v8200
    %v8202 = vpop.f32.mrf.mxu0
    %v8203 = vpop.f32.mrf.mxu0
    %v8204 = vadd.f32 %v7915, %v8203
    %v8205 = vpop.f32.mrf.mxu0
    %8206 = vmatprep.mubr.bf16.mxu0 %v6616
    %8207 = vmatmul.mubr.bf16.gmra.mxu0 %v6615
    %v8208 = vpop.f32.mrf.mxu0
    %v8209 = vadd.f32 %v7920, %v8208
    %v8210 = vpop.f32.mrf.mxu0
    %v8211 = vpop.f32.mrf.mxu0
    %v8212 = vadd.f32 %v7923, %v8211
    %v8213 = vpop.f32.mrf.mxu0
    %8214 = vmatprep.mubr.bf16.mxu0 %v6625
    %8215 = vmatmul.mubr.bf16.gmra.mxu0 %v6624
    %v8216 = vpop.f32.mrf.mxu0
    %v8217 = vadd.f32 %v7928, %v8216
    %v8218 = vpop.f32.mrf.mxu0
    %v8219 = vpop.f32.mrf.mxu0
    %v8220 = vadd.f32 %v7931, %v8219
    %v8221 = vpop.f32.mrf.mxu0
    %8222 = vmatprep.mubr.bf16.mxu0 %v6634
    %8223 = vmatmul.mubr.bf16.gmra.mxu0 %v6633
    %v8224 = vpop.f32.mrf.mxu0
    %v8225 = vadd.f32 %v7936, %v8224
    %v8226 = vpop.f32.mrf.mxu0
    %v8227 = vpop.f32.mrf.mxu0
    %v8228 = vadd.f32 %v7939, %v8227
    %v8229 = vpop.f32.mrf.mxu0
    %8230 = vmatprep.mubr.bf16.mxu0 %v6643
    %8231 = vmatmul.mubr.bf16.gmra.mxu0 %v6642
    %v8232 = vpop.f32.mrf.mxu0
    %v8233 = vadd.f32 %v7944, %v8232
    %v8234 = vpop.f32.mrf.mxu0
    %v8235 = vpop.f32.mrf.mxu0
    %v8236 = vadd.f32 %v7947, %v8235
    %v8237 = vpop.f32.mrf.mxu0
    %8238 = vmatprep.mubr.bf16.mxu0 %v6652
    %8239 = vmatmul.mubr.bf16.gmra.mxu0 %v6651
    %v8240 = vpop.f32.mrf.mxu0
    %v8241 = vadd.f32 %v7952, %v8240
    %v8242 = vpop.f32.mrf.mxu0
    %v8243 = vpop.f32.mrf.mxu0
    %v8244 = vadd.f32 %v7955, %v8243
    %v8245 = vpop.f32.mrf.mxu0
    %8246 = vmatprep.mubr.bf16.mxu0 %v6661
    %8247 = vmatmul.mubr.bf16.gmra.mxu0 %v6660
    %v8248 = vpop.f32.mrf.mxu0
    %v8249 = vadd.f32 %v7960, %v8248
    %v8250 = vpop.f32.mrf.mxu0
    %v8251 = vpop.f32.mrf.mxu0
    %v8252 = vadd.f32 %v7963, %v8251
    %v8253 = vpop.f32.mrf.mxu0
    %8254 = vmatprep.mubr.bf16.mxu0 %v6670
    %8255 = vmatmul.mubr.bf16.gmra.mxu0 %v6669
    %v8256 = vpop.f32.mrf.mxu0
    %v8257 = vadd.f32 %v7968, %v8256
    %v8258 = vpop.f32.mrf.mxu0
    %v8259 = vpop.f32.mrf.mxu0
    %v8260 = vadd.f32 %v7971, %v8259
    %v8261 = vpop.f32.mrf.mxu0
    %8262 = vmatprep.mubr.bf16.mxu0 %v6679
    %8263 = vmatmul.mubr.bf16.gmra.mxu0 %v6678
    %v8264 = vpop.f32.mrf.mxu0
    %v8265 = vadd.f32 %v7976, %v8264
    %v8266 = vpop.f32.mrf.mxu0
    %v8267 = vpop.f32.mrf.mxu0
    %v8268 = vadd.f32 %v7979, %v8267
    %v8269 = vpop.f32.mrf.mxu0
    %8270 = vmatprep.mubr.bf16.mxu0 %v6688
    %8271 = vmatmul.mubr.bf16.gmra.mxu0 %v6687
    %v8272 = vpop.f32.mrf.mxu0
    %v8273 = vadd.f32 %v7984, %v8272
    %v8274 = vpop.f32.mrf.mxu0
    %v8275 = vpop.f32.mrf.mxu0
    %v8276 = vadd.f32 %v7987, %v8275
    %v8277 = vpop.f32.mrf.mxu0
    %8278 = vdwg.mxu0
    %8279 = vmatprep.subr.bf16.mxu0 0
    %8280 = vmatpush1.bf16.msra.mxu0 %v7323
    %8281 = vmatprep.subr.bf16.mxu0 0
    %8282 = vmatpush1.bf16.msra.mxu0 %v7322
    %8283 = vmatprep.subr.bf16.mxu0 0
    %8284 = vmatpush1.bf16.msra.mxu0 %v7321
    %8285 = vmatprep.subr.bf16.mxu0 0
    %8286 = vmatpush1.bf16.msra.mxu0 %v7320
    %8287 = vmatprep.subr.bf16.mxu0 0
    %8288 = vmatpush1.bf16.msra.mxu0 %v7319
    %8289 = vmatprep.subr.bf16.mxu0 0
    %8290 = vmatpush1.bf16.msra.mxu0 %v7318
    %8291 = vmatprep.subr.bf16.mxu0 0
    %8292 = vmatpush1.bf16.msra.mxu0 %v7317
    %8293 = vmatprep.subr.bf16.mxu0 0
    %8294 = vmatpush1.bf16.msra.mxu0 %v7316
    %8295 = vmatprep.subr.bf16.mxu0 0
    %8296 = vmatpush2.bf16.msra.mxu0 %v7331
    %8297 = vmatprep.subr.bf16.mxu0 0
    %8298 = vmatpush2.bf16.msra.mxu0 %v7330
    %8299 = vmatprep.subr.bf16.mxu0 0
    %8300 = vmatpush2.bf16.msra.mxu0 %v7329
    %8301 = vmatprep.subr.bf16.mxu0 0
    %8302 = vmatpush2.bf16.msra.mxu0 %v7328
    %8303 = vmatprep.subr.bf16.mxu0 0
    %8304 = vmatpush2.bf16.msra.mxu0 %v7327
    %8305 = vmatprep.subr.bf16.mxu0 0
    %8306 = vmatpush2.bf16.msra.mxu0 %v7326
    %8307 = vmatprep.subr.bf16.mxu0 0
    %8308 = vmatpush2.bf16.msra.mxu0 %v7325
    %8309 = vmatprep.subr.bf16.mxu0 0
    %8310 = vmatpush2.bf16.msra.mxu0 %v7324
    %8311 = vmatprep.mubr.bf16.mxu0 %v6411
    %8312 = vmatmul.mubr.bf16.gmra.mxu0 %v6410
    %v8313 = vpop.f32.mrf.mxu0
    %v8314 = vadd.f32 %v8025, %v8313
    %v8315 = vpop.f32.mrf.mxu0
    %v8316 = vpop.f32.mrf.mxu0
    %v8317 = vadd.f32 %v8028, %v8316
    %v8318 = vpop.f32.mrf.mxu0
    %8319 = vmatprep.mubr.bf16.mxu0 %v6420
    %8320 = vmatmul.mubr.bf16.gmra.mxu0 %v6419
    %v8321 = vpop.f32.mrf.mxu0
    %v8322 = vadd.f32 %v8033, %v8321
    %v8323 = vpop.f32.mrf.mxu0
    %v8324 = vpop.f32.mrf.mxu0
    %v8325 = vadd.f32 %v8036, %v8324
    %v8326 = vpop.f32.mrf.mxu0
    %8327 = vmatprep.mubr.bf16.mxu0 %v6429
    %8328 = vmatmul.mubr.bf16.gmra.mxu0 %v6428
    %v8329 = vpop.f32.mrf.mxu0
    %v8330 = vadd.f32 %v8041, %v8329
    %v8331 = vpop.f32.mrf.mxu0
    %v8332 = vpop.f32.mrf.mxu0
    %v8333 = vadd.f32 %v8044, %v8332
    %v8334 = vpop.f32.mrf.mxu0
    %8335 = vmatprep.mubr.bf16.mxu0 %v6438
    %8336 = vmatmul.mubr.bf16.gmra.mxu0 %v6437
    %v8337 = vpop.f32.mrf.mxu0
    %v8338 = vadd.f32 %v8049, %v8337
    %v8339 = vpop.f32.mrf.mxu0
    %v8340 = vpop.f32.mrf.mxu0
    %v8341 = vadd.f32 %v8052, %v8340
    %v8342 = vpop.f32.mrf.mxu0
    %8343 = vmatprep.mubr.bf16.mxu0 %v6447
    %8344 = vmatmul.mubr.bf16.gmra.mxu0 %v6446
    %v8345 = vpop.f32.mrf.mxu0
    %v8346 = vadd.f32 %v8057, %v8345
    %v8347 = vpop.f32.mrf.mxu0
    %v8348 = vpop.f32.mrf.mxu0
    %v8349 = vadd.f32 %v8060, %v8348
    %v8350 = vpop.f32.mrf.mxu0
    %8351 = vmatprep.mubr.bf16.mxu0 %v6456
    %8352 = vmatmul.mubr.bf16.gmra.mxu0 %v6455
    %v8353 = vpop.f32.mrf.mxu0
    %v8354 = vadd.f32 %v8065, %v8353
    %v8355 = vpop.f32.mrf.mxu0
    %v8356 = vpop.f32.mrf.mxu0
    %v8357 = vadd.f32 %v8068, %v8356
    %v8358 = vpop.f32.mrf.mxu0
    %8359 = vmatprep.mubr.bf16.mxu0 %v6465
    %8360 = vmatmul.mubr.bf16.gmra.mxu0 %v6464
    %v8361 = vpop.f32.mrf.mxu0
    %v8362 = vadd.f32 %v8073, %v8361
    %v8363 = vpop.f32.mrf.mxu0
    %v8364 = vpop.f32.mrf.mxu0
    %v8365 = vadd.f32 %v8076, %v8364
    %v8366 = vpop.f32.mrf.mxu0
    %8367 = vmatprep.mubr.bf16.mxu0 %v6474
    %8368 = vmatmul.mubr.bf16.gmra.mxu0 %v6473
    %v8369 = vpop.f32.mrf.mxu0
    %v8370 = vadd.f32 %v8081, %v8369
    %v8371 = vpop.f32.mrf.mxu0
    %v8372 = vpop.f32.mrf.mxu0
    %v8373 = vadd.f32 %v8084, %v8372
    %v8374 = vpop.f32.mrf.mxu0
    %8375 = vmatprep.mubr.bf16.mxu0 %v6483
    %8376 = vmatmul.mubr.bf16.gmra.mxu0 %v6482
    %v8377 = vpop.f32.mrf.mxu0
    %v8378 = vadd.f32 %v8089, %v8377
    %v8379 = vpop.f32.mrf.mxu0
    %v8380 = vpop.f32.mrf.mxu0
    %v8381 = vadd.f32 %v8092, %v8380
    %v8382 = vpop.f32.mrf.mxu0
    %8383 = vmatprep.mubr.bf16.mxu0 %v6492
    %8384 = vmatmul.mubr.bf16.gmra.mxu0 %v6491
    %v8385 = vpop.f32.mrf.mxu0
    %v8386 = vadd.f32 %v8097, %v8385
    %v8387 = vpop.f32.mrf.mxu0
    %v8388 = vpop.f32.mrf.mxu0
    %v8389 = vadd.f32 %v8100, %v8388
    %v8390 = vpop.f32.mrf.mxu0
    %8391 = vmatprep.mubr.bf16.mxu0 %v6501
    %8392 = vmatmul.mubr.bf16.gmra.mxu0 %v6500
    %v8393 = vpop.f32.mrf.mxu0
    %v8394 = vadd.f32 %v8105, %v8393
    %v8395 = vpop.f32.mrf.mxu0
    %v8396 = vpop.f32.mrf.mxu0
    %v8397 = vadd.f32 %v8108, %v8396
    %v8398 = vpop.f32.mrf.mxu0
    %8399 = vmatprep.mubr.bf16.mxu0 %v6510
    %8400 = vmatmul.mubr.bf16.gmra.mxu0 %v6509
    %v8401 = vpop.f32.mrf.mxu0
    %v8402 = vadd.f32 %v8113, %v8401
    %v8403 = vpop.f32.mrf.mxu0
    %v8404 = vpop.f32.mrf.mxu0
    %v8405 = vadd.f32 %v8116, %v8404
    %v8406 = vpop.f32.mrf.mxu0
    %8407 = vmatprep.mubr.bf16.mxu0 %v6519
    %8408 = vmatmul.mubr.bf16.gmra.mxu0 %v6518
    %v8409 = vpop.f32.mrf.mxu0
    %v8410 = vadd.f32 %v8121, %v8409
    %v8411 = vpop.f32.mrf.mxu0
    %v8412 = vpop.f32.mrf.mxu0
    %v8413 = vadd.f32 %v8124, %v8412
    %v8414 = vpop.f32.mrf.mxu0
    %8415 = vmatprep.mubr.bf16.mxu0 %v6528
    %8416 = vmatmul.mubr.bf16.gmra.mxu0 %v6527
    %v8417 = vpop.f32.mrf.mxu0
    %v8418 = vadd.f32 %v8129, %v8417
    %v8419 = vpop.f32.mrf.mxu0
    %v8420 = vpop.f32.mrf.mxu0
    %v8421 = vadd.f32 %v8132, %v8420
    %v8422 = vpop.f32.mrf.mxu0
    %8423 = vmatprep.mubr.bf16.mxu0 %v6537
    %8424 = vmatmul.mubr.bf16.gmra.mxu0 %v6536
    %v8425 = vpop.f32.mrf.mxu0
    %v8426 = vadd.f32 %v8137, %v8425
    %v8427 = vpop.f32.mrf.mxu0
    %v8428 = vpop.f32.mrf.mxu0
    %v8429 = vadd.f32 %v8140, %v8428
    %v8430 = vpop.f32.mrf.mxu0
    %8431 = vmatprep.mubr.bf16.mxu0 %v6546
    %8432 = vmatmul.mubr.bf16.gmra.mxu0 %v6545
    %v8433 = vpop.f32.mrf.mxu0
    %v8434 = vadd.f32 %v8145, %v8433
    %v8435 = vpop.f32.mrf.mxu0
    %v8436 = vpop.f32.mrf.mxu0
    %v8437 = vadd.f32 %v8148, %v8436
    %v8438 = vpop.f32.mrf.mxu0
    %8439 = vmatprep.mubr.bf16.mxu0 %v6555
    %8440 = vmatmul.mubr.bf16.gmra.mxu0 %v6554
    %v8441 = vpop.f32.mrf.mxu0
    %v8442 = vadd.f32 %v8153, %v8441
    %v8443 = vpop.f32.mrf.mxu0
    %v8444 = vpop.f32.mrf.mxu0
    %v8445 = vadd.f32 %v8156, %v8444
    %v8446 = vpop.f32.mrf.mxu0
    %8447 = vmatprep.mubr.bf16.mxu0 %v6564
    %8448 = vmatmul.mubr.bf16.gmra.mxu0 %v6563
    %v8449 = vpop.f32.mrf.mxu0
    %v8450 = vadd.f32 %v8161, %v8449
    %v8451 = vpop.f32.mrf.mxu0
    %v8452 = vpop.f32.mrf.mxu0
    %v8453 = vadd.f32 %v8164, %v8452
    %v8454 = vpop.f32.mrf.mxu0
    %8455 = vmatprep.mubr.bf16.mxu0 %v6573
    %8456 = vmatmul.mubr.bf16.gmra.mxu0 %v6572
    %v8457 = vpop.f32.mrf.mxu0
    %v8458 = vadd.f32 %v8169, %v8457
    %v8459 = vpop.f32.mrf.mxu0
    %v8460 = vpop.f32.mrf.mxu0
    %v8461 = vadd.f32 %v8172, %v8460
    %v8462 = vpop.f32.mrf.mxu0
    %8463 = vmatprep.mubr.bf16.mxu0 %v6582
    %8464 = vmatmul.mubr.bf16.gmra.mxu0 %v6581
    %v8465 = vpop.f32.mrf.mxu0
    %v8466 = vadd.f32 %v8177, %v8465
    %v8467 = vpop.f32.mrf.mxu0
    %v8468 = vpop.f32.mrf.mxu0
    %v8469 = vadd.f32 %v8180, %v8468
    %v8470 = vpop.f32.mrf.mxu0
    %8471 = vmatprep.mubr.bf16.mxu0 %v6591
    %8472 = vmatmul.mubr.bf16.gmra.mxu0 %v6590
    %v8473 = vpop.f32.mrf.mxu0
    %v8474 = vadd.f32 %v8185, %v8473
    %v8475 = vpop.f32.mrf.mxu0
    %v8476 = vpop.f32.mrf.mxu0
    %v8477 = vadd.f32 %v8188, %v8476
    %v8478 = vpop.f32.mrf.mxu0
    %8479 = vmatprep.mubr.bf16.mxu0 %v6600
    %8480 = vmatmul.mubr.bf16.gmra.mxu0 %v6599
    %v8481 = vpop.f32.mrf.mxu0
    %v8482 = vadd.f32 %v8193, %v8481
    %v8483 = vpop.f32.mrf.mxu0
    %v8484 = vpop.f32.mrf.mxu0
    %v8485 = vadd.f32 %v8196, %v8484
    %v8486 = vpop.f32.mrf.mxu0
    %8487 = vmatprep.mubr.bf16.mxu0 %v6609
    %8488 = vmatmul.mubr.bf16.gmra.mxu0 %v6608
    %v8489 = vpop.f32.mrf.mxu0
    %v8490 = vadd.f32 %v8201, %v8489
    %v8491 = vpop.f32.mrf.mxu0
    %v8492 = vpop.f32.mrf.mxu0
    %v8493 = vadd.f32 %v8204, %v8492
    %v8494 = vpop.f32.mrf.mxu0
    %8495 = vmatprep.mubr.bf16.mxu0 %v6618
    %8496 = vmatmul.mubr.bf16.gmra.mxu0 %v6617
    %v8497 = vpop.f32.mrf.mxu0
    %v8498 = vadd.f32 %v8209, %v8497
    %v8499 = vpop.f32.mrf.mxu0
    %v8500 = vpop.f32.mrf.mxu0
    %v8501 = vadd.f32 %v8212, %v8500
    %v8502 = vpop.f32.mrf.mxu0
    %8503 = vmatprep.mubr.bf16.mxu0 %v6627
    %8504 = vmatmul.mubr.bf16.gmra.mxu0 %v6626
    %v8505 = vpop.f32.mrf.mxu0
    %v8506 = vadd.f32 %v8217, %v8505
    %v8507 = vpop.f32.mrf.mxu0
    %v8508 = vpop.f32.mrf.mxu0
    %v8509 = vadd.f32 %v8220, %v8508
    %v8510 = vpop.f32.mrf.mxu0
    %8511 = vmatprep.mubr.bf16.mxu0 %v6636
    %8512 = vmatmul.mubr.bf16.gmra.mxu0 %v6635
    %v8513 = vpop.f32.mrf.mxu0
    %v8514 = vadd.f32 %v8225, %v8513
    %v8515 = vpop.f32.mrf.mxu0
    %v8516 = vpop.f32.mrf.mxu0
    %v8517 = vadd.f32 %v8228, %v8516
    %v8518 = vpop.f32.mrf.mxu0
    %8519 = vmatprep.mubr.bf16.mxu0 %v6645
    %8520 = vmatmul.mubr.bf16.gmra.mxu0 %v6644
    %v8521 = vpop.f32.mrf.mxu0
    %v8522 = vadd.f32 %v8233, %v8521
    %v8523 = vpop.f32.mrf.mxu0
    %v8524 = vpop.f32.mrf.mxu0
    %v8525 = vadd.f32 %v8236, %v8524
    %v8526 = vpop.f32.mrf.mxu0
    %8527 = vmatprep.mubr.bf16.mxu0 %v6654
    %8528 = vmatmul.mubr.bf16.gmra.mxu0 %v6653
    %v8529 = vpop.f32.mrf.mxu0
    %v8530 = vadd.f32 %v8241, %v8529
    %v8531 = vpop.f32.mrf.mxu0
    %v8532 = vpop.f32.mrf.mxu0
    %v8533 = vadd.f32 %v8244, %v8532
    %v8534 = vpop.f32.mrf.mxu0
    %8535 = vmatprep.mubr.bf16.mxu0 %v6663
    %8536 = vmatmul.mubr.bf16.gmra.mxu0 %v6662
    %v8537 = vpop.f32.mrf.mxu0
    %v8538 = vadd.f32 %v8249, %v8537
    %v8539 = vpop.f32.mrf.mxu0
    %v8540 = vpop.f32.mrf.mxu0
    %v8541 = vadd.f32 %v8252, %v8540
    %v8542 = vpop.f32.mrf.mxu0
    %8543 = vmatprep.mubr.bf16.mxu0 %v6672
    %8544 = vmatmul.mubr.bf16.gmra.mxu0 %v6671
    %v8545 = vpop.f32.mrf.mxu0
    %v8546 = vadd.f32 %v8257, %v8545
    %v8547 = vpop.f32.mrf.mxu0
    %v8548 = vpop.f32.mrf.mxu0
    %v8549 = vadd.f32 %v8260, %v8548
    %v8550 = vpop.f32.mrf.mxu0
    %8551 = vmatprep.mubr.bf16.mxu0 %v6681
    %8552 = vmatmul.mubr.bf16.gmra.mxu0 %v6680
    %v8553 = vpop.f32.mrf.mxu0
    %v8554 = vadd.f32 %v8265, %v8553
    %v8555 = vpop.f32.mrf.mxu0
    %v8556 = vpop.f32.mrf.mxu0
    %v8557 = vadd.f32 %v8268, %v8556
    %v8558 = vpop.f32.mrf.mxu0
    %8559 = vmatprep.mubr.bf16.mxu0 %v6690
    %8560 = vmatmul.mubr.bf16.gmra.mxu0 %v6689
    %v8561 = vpop.f32.mrf.mxu0
    %v8562 = vadd.f32 %v8273, %v8561
    %v8563 = vpop.f32.mrf.mxu0
    %v8564 = vpop.f32.mrf.mxu0
    %v8565 = vadd.f32 %v8276, %v8564
    %v8566 = vpop.f32.mrf.mxu0
    %8567 = vdwg.mxu0
    %8568 = vmatprep.subr.bf16.mxu0 0
    %8569 = vmatpush1.bf16.msra.mxu0 %v7339
    %8570 = vmatprep.subr.bf16.mxu0 0
    %8571 = vmatpush1.bf16.msra.mxu0 %v7338
    %8572 = vmatprep.subr.bf16.mxu0 0
    %8573 = vmatpush1.bf16.msra.mxu0 %v7337
    %8574 = vmatprep.subr.bf16.mxu0 0
    %8575 = vmatpush1.bf16.msra.mxu0 %v7336
    %8576 = vmatprep.subr.bf16.mxu0 0
    %8577 = vmatpush1.bf16.msra.mxu0 %v7335
    %8578 = vmatprep.subr.bf16.mxu0 0
    %8579 = vmatpush1.bf16.msra.mxu0 %v7334
    %8580 = vmatprep.subr.bf16.mxu0 0
    %8581 = vmatpush1.bf16.msra.mxu0 %v7333
    %8582 = vmatprep.subr.bf16.mxu0 0
    %8583 = vmatpush1.bf16.msra.mxu0 %v7332
    %8584 = vmatprep.subr.bf16.mxu0 0
    %8585 = vmatpush2.bf16.msra.mxu0 0
    %8586 = vmatprep.subr.bf16.mxu0 0
    %8587 = vmatpush2.bf16.msra.mxu0 0
    %8588 = vmatprep.subr.bf16.mxu0 0
    %8589 = vmatpush2.bf16.msra.mxu0 0
    %8590 = vmatprep.subr.bf16.mxu0 0
    %8591 = vmatpush2.bf16.msra.mxu0 0
    %8592 = vmatprep.subr.bf16.mxu0 0
    %8593 = vmatpush2.bf16.msra.mxu0 0
    %8594 = vmatprep.subr.bf16.mxu0 0
    %8595 = vmatpush2.bf16.msra.mxu0 0
    %8596 = vmatprep.subr.bf16.mxu0 0
    %8597 = vmatpush2.bf16.msra.mxu0 0
    %8598 = vmatprep.subr.bf16.mxu0 0
    %8599 = vmatpush2.bf16.msra.mxu0 0
    %8600 = vmatprep.mubr.bf16.mxu0 0
    %8601 = vmatmul.mubr.bf16.gmra.mxu0 %v6412
    %v8602 = vpop.f32.mrf.mxu0
    %v8603 = vadd.f32 %v8314, %v8602
    %v8604 = vpop.f32.mrf.mxu0
    %v8605 = vpop.f32.mrf.mxu0
    %v8606 = vadd.f32 %v8317, %v8605
    %v8607 = vpop.f32.mrf.mxu0
    %8608 = vmatprep.mubr.bf16.mxu0 0
    %8609 = vmatmul.mubr.bf16.gmra.mxu0 %v6421
    %v8610 = vpop.f32.mrf.mxu0
    %v8611 = vadd.f32 %v8322, %v8610
    %v8612 = vpop.f32.mrf.mxu0
    %v8613 = vpop.f32.mrf.mxu0
    %v8614 = vadd.f32 %v8325, %v8613
    %v8615 = vpop.f32.mrf.mxu0
    %8616 = vmatprep.mubr.bf16.mxu0 0
    %8617 = vmatmul.mubr.bf16.gmra.mxu0 %v6430
    %v8618 = vpop.f32.mrf.mxu0
    %v8619 = vadd.f32 %v8330, %v8618
    %v8620 = vpop.f32.mrf.mxu0
    %v8621 = vpop.f32.mrf.mxu0
    %v8622 = vadd.f32 %v8333, %v8621
    %v8623 = vpop.f32.mrf.mxu0
    %8624 = vmatprep.mubr.bf16.mxu0 0
    %8625 = vmatmul.mubr.bf16.gmra.mxu0 %v6439
    %v8626 = vpop.f32.mrf.mxu0
    %v8627 = vadd.f32 %v8338, %v8626
    %v8628 = vpop.f32.mrf.mxu0
    %v8629 = vpop.f32.mrf.mxu0
    %v8630 = vadd.f32 %v8341, %v8629
    %v8631 = vpop.f32.mrf.mxu0
    %8632 = vmatprep.mubr.bf16.mxu0 0
    %8633 = vmatmul.mubr.bf16.gmra.mxu0 %v6448
    %v8634 = vpop.f32.mrf.mxu0
    %v8635 = vadd.f32 %v8346, %v8634
    %v8636 = vpop.f32.mrf.mxu0
    %v8637 = vpop.f32.mrf.mxu0
    %v8638 = vadd.f32 %v8349, %v8637
    %v8639 = vpop.f32.mrf.mxu0
    %8640 = vmatprep.mubr.bf16.mxu0 0
    %8641 = vmatmul.mubr.bf16.gmra.mxu0 %v6457
    %v8642 = vpop.f32.mrf.mxu0
    %v8643 = vadd.f32 %v8354, %v8642
    %v8644 = vpop.f32.mrf.mxu0
    %v8645 = vpop.f32.mrf.mxu0
    %v8646 = vadd.f32 %v8357, %v8645
    %v8647 = vpop.f32.mrf.mxu0
    %8648 = vmatprep.mubr.bf16.mxu0 0
    %8649 = vmatmul.mubr.bf16.gmra.mxu0 %v6466
    %v8650 = vpop.f32.mrf.mxu0
    %v8651 = vadd.f32 %v8362, %v8650
    %v8652 = vpop.f32.mrf.mxu0
    %v8653 = vpop.f32.mrf.mxu0
    %v8654 = vadd.f32 %v8365, %v8653
    %v8655 = vpop.f32.mrf.mxu0
    %8656 = vmatprep.mubr.bf16.mxu0 0
    %8657 = vmatmul.mubr.bf16.gmra.mxu0 %v6475
    %v8658 = vpop.f32.mrf.mxu0
    %v8659 = vadd.f32 %v8370, %v8658
    %v8660 = vpop.f32.mrf.mxu0
    %v8661 = vpop.f32.mrf.mxu0
    %v8662 = vadd.f32 %v8373, %v8661
    %v8663 = vpop.f32.mrf.mxu0
    %8664 = vmatprep.mubr.bf16.mxu0 0
    %8665 = vmatmul.mubr.bf16.gmra.mxu0 %v6484
    %v8666 = vpop.f32.mrf.mxu0
    %v8667 = vadd.f32 %v8378, %v8666
    %v8668 = vpop.f32.mrf.mxu0
    %v8669 = vpop.f32.mrf.mxu0
    %v8670 = vadd.f32 %v8381, %v8669
    %v8671 = vpop.f32.mrf.mxu0
    %8672 = vmatprep.mubr.bf16.mxu0 0
    %8673 = vmatmul.mubr.bf16.gmra.mxu0 %v6493
    %v8674 = vpop.f32.mrf.mxu0
    %v8675 = vadd.f32 %v8386, %v8674
    %v8676 = vpop.f32.mrf.mxu0
    %v8677 = vpop.f32.mrf.mxu0
    %v8678 = vadd.f32 %v8389, %v8677
    %v8679 = vpop.f32.mrf.mxu0
    %8680 = vmatprep.mubr.bf16.mxu0 0
    %8681 = vmatmul.mubr.bf16.gmra.mxu0 %v6502
    %v8682 = vpop.f32.mrf.mxu0
    %v8683 = vadd.f32 %v8394, %v8682
    %v8684 = vpop.f32.mrf.mxu0
    %v8685 = vpop.f32.mrf.mxu0
    %v8686 = vadd.f32 %v8397, %v8685
    %v8687 = vpop.f32.mrf.mxu0
    %8688 = vmatprep.mubr.bf16.mxu0 0
    %8689 = vmatmul.mubr.bf16.gmra.mxu0 %v6511
    %v8690 = vpop.f32.mrf.mxu0
    %v8691 = vadd.f32 %v8402, %v8690
    %v8692 = vpop.f32.mrf.mxu0
    %v8693 = vpop.f32.mrf.mxu0
    %v8694 = vadd.f32 %v8405, %v8693
    %v8695 = vpop.f32.mrf.mxu0
    %8696 = vmatprep.mubr.bf16.mxu0 0
    %8697 = vmatmul.mubr.bf16.gmra.mxu0 %v6520
    %v8698 = vpop.f32.mrf.mxu0
    %v8699 = vadd.f32 %v8410, %v8698
    %v8700 = vpop.f32.mrf.mxu0
    %v8701 = vpop.f32.mrf.mxu0
    %v8702 = vadd.f32 %v8413, %v8701
    %v8703 = vpop.f32.mrf.mxu0
    %8704 = vmatprep.mubr.bf16.mxu0 0
    %8705 = vmatmul.mubr.bf16.gmra.mxu0 %v6529
    %v8706 = vpop.f32.mrf.mxu0
    %v8707 = vadd.f32 %v8418, %v8706
    %v8708 = vpop.f32.mrf.mxu0
    %v8709 = vpop.f32.mrf.mxu0
    %v8710 = vadd.f32 %v8421, %v8709
    %v8711 = vpop.f32.mrf.mxu0
    %8712 = vmatprep.mubr.bf16.mxu0 0
    %8713 = vmatmul.mubr.bf16.gmra.mxu0 %v6538
    %v8714 = vpop.f32.mrf.mxu0
    %v8715 = vadd.f32 %v8426, %v8714
    %v8716 = vpop.f32.mrf.mxu0
    %v8717 = vpop.f32.mrf.mxu0
    %v8718 = vadd.f32 %v8429, %v8717
    %v8719 = vpop.f32.mrf.mxu0
    %8720 = vmatprep.mubr.bf16.mxu0 0
    %8721 = vmatmul.mubr.bf16.gmra.mxu0 %v6547
    %v8722 = vpop.f32.mrf.mxu0
    %v8723 = vadd.f32 %v8434, %v8722
    %v8724 = vpop.f32.mrf.mxu0
    %v8725 = vpop.f32.mrf.mxu0
    %v8726 = vadd.f32 %v8437, %v8725
    %v8727 = vpop.f32.mrf.mxu0
    %8728 = vmatprep.mubr.bf16.mxu0 0
    %8729 = vmatmul.mubr.bf16.gmra.mxu0 %v6556
    %v8730 = vpop.f32.mrf.mxu0
    %v8731 = vadd.f32 %v8442, %v8730
    %v8732 = vpop.f32.mrf.mxu0
    %v8733 = vpop.f32.mrf.mxu0
    %v8734 = vadd.f32 %v8445, %v8733
    %v8735 = vpop.f32.mrf.mxu0
    %8736 = vmatprep.mubr.bf16.mxu0 0
    %8737 = vmatmul.mubr.bf16.gmra.mxu0 %v6565
    %v8738 = vpop.f32.mrf.mxu0
    %v8739 = vadd.f32 %v8450, %v8738
    %v8740 = vpop.f32.mrf.mxu0
    %v8741 = vpop.f32.mrf.mxu0
    %v8742 = vadd.f32 %v8453, %v8741
    %v8743 = vpop.f32.mrf.mxu0
    %8744 = vmatprep.mubr.bf16.mxu0 0
    %8745 = vmatmul.mubr.bf16.gmra.mxu0 %v6574
    %v8746 = vpop.f32.mrf.mxu0
    %v8747 = vadd.f32 %v8458, %v8746
    %v8748 = vpop.f32.mrf.mxu0
    %v8749 = vpop.f32.mrf.mxu0
    %v8750 = vadd.f32 %v8461, %v8749
    %v8751 = vpop.f32.mrf.mxu0
    %8752 = vmatprep.mubr.bf16.mxu0 0
    %8753 = vmatmul.mubr.bf16.gmra.mxu0 %v6583
    %v8754 = vpop.f32.mrf.mxu0
    %v8755 = vadd.f32 %v8466, %v8754
    %v8756 = vpop.f32.mrf.mxu0
    %v8757 = vpop.f32.mrf.mxu0
    %v8758 = vadd.f32 %v8469, %v8757
    %v8759 = vpop.f32.mrf.mxu0
    %8760 = vmatprep.mubr.bf16.mxu0 0
    %8761 = vmatmul.mubr.bf16.gmra.mxu0 %v6592
    %v8762 = vpop.f32.mrf.mxu0
    %v8763 = vadd.f32 %v8474, %v8762
    %v8764 = vpop.f32.mrf.mxu0
    %v8765 = vpop.f32.mrf.mxu0
    %v8766 = vadd.f32 %v8477, %v8765
    %v8767 = vpop.f32.mrf.mxu0
    %8768 = vmatprep.mubr.bf16.mxu0 0
    %8769 = vmatmul.mubr.bf16.gmra.mxu0 %v6601
    %v8770 = vpop.f32.mrf.mxu0
    %v8771 = vadd.f32 %v8482, %v8770
    %v8772 = vpop.f32.mrf.mxu0
    %v8773 = vpop.f32.mrf.mxu0
    %v8774 = vadd.f32 %v8485, %v8773
    %v8775 = vpop.f32.mrf.mxu0
    %8776 = vmatprep.mubr.bf16.mxu0 0
    %8777 = vmatmul.mubr.bf16.gmra.mxu0 %v6610
    %v8778 = vpop.f32.mrf.mxu0
    %v8779 = vadd.f32 %v8490, %v8778
    %v8780 = vpop.f32.mrf.mxu0
    %v8781 = vpop.f32.mrf.mxu0
    %v8782 = vadd.f32 %v8493, %v8781
    %v8783 = vpop.f32.mrf.mxu0
    %8784 = vmatprep.mubr.bf16.mxu0 0
    %8785 = vmatmul.mubr.bf16.gmra.mxu0 %v6619
    %v8786 = vpop.f32.mrf.mxu0
    %v8787 = vadd.f32 %v8498, %v8786
    %v8788 = vpop.f32.mrf.mxu0
    %v8789 = vpop.f32.mrf.mxu0
    %v8790 = vadd.f32 %v8501, %v8789
    %v8791 = vpop.f32.mrf.mxu0
    %8792 = vmatprep.mubr.bf16.mxu0 0
    %8793 = vmatmul.mubr.bf16.gmra.mxu0 %v6628
    %v8794 = vpop.f32.mrf.mxu0
    %v8795 = vadd.f32 %v8506, %v8794
    %v8796 = vpop.f32.mrf.mxu0
    %v8797 = vpop.f32.mrf.mxu0
    %v8798 = vadd.f32 %v8509, %v8797
    %v8799 = vpop.f32.mrf.mxu0
    %8800 = vmatprep.mubr.bf16.mxu0 0
    %8801 = vmatmul.mubr.bf16.gmra.mxu0 %v6637
    %v8802 = vpop.f32.mrf.mxu0
    %v8803 = vadd.f32 %v8514, %v8802
    %v8804 = vpop.f32.mrf.mxu0
    %v8805 = vpop.f32.mrf.mxu0
    %v8806 = vadd.f32 %v8517, %v8805
    %v8807 = vpop.f32.mrf.mxu0
    %8808 = vmatprep.mubr.bf16.mxu0 0
    %8809 = vmatmul.mubr.bf16.gmra.mxu0 %v6646
    %v8810 = vpop.f32.mrf.mxu0
    %v8811 = vadd.f32 %v8522, %v8810
    %v8812 = vpop.f32.mrf.mxu0
    %v8813 = vpop.f32.mrf.mxu0
    %v8814 = vadd.f32 %v8525, %v8813
    %v8815 = vpop.f32.mrf.mxu0
    %8816 = vmatprep.mubr.bf16.mxu0 0
    %8817 = vmatmul.mubr.bf16.gmra.mxu0 %v6655
    %v8818 = vpop.f32.mrf.mxu0
    %v8819 = vadd.f32 %v8530, %v8818
    %v8820 = vpop.f32.mrf.mxu0
    %v8821 = vpop.f32.mrf.mxu0
    %v8822 = vadd.f32 %v8533, %v8821
    %v8823 = vpop.f32.mrf.mxu0
    %8824 = vmatprep.mubr.bf16.mxu0 0
    %8825 = vmatmul.mubr.bf16.gmra.mxu0 %v6664
    %v8826 = vpop.f32.mrf.mxu0
    %v8827 = vadd.f32 %v8538, %v8826
    %v8828 = vpop.f32.mrf.mxu0
    %v8829 = vpop.f32.mrf.mxu0
    %v8830 = vadd.f32 %v8541, %v8829
    %v8831 = vpop.f32.mrf.mxu0
    %8832 = vmatprep.mubr.bf16.mxu0 0
    %8833 = vmatmul.mubr.bf16.gmra.mxu0 %v6673
    %v8834 = vpop.f32.mrf.mxu0
    %v8835 = vadd.f32 %v8546, %v8834
    %v8836 = vpop.f32.mrf.mxu0
    %v8837 = vpop.f32.mrf.mxu0
    %v8838 = vadd.f32 %v8549, %v8837
    %v8839 = vpop.f32.mrf.mxu0
    %8840 = vmatprep.mubr.bf16.mxu0 0
    %8841 = vmatmul.mubr.bf16.gmra.mxu0 %v6682
    %v8842 = vpop.f32.mrf.mxu0
    %v8843 = vadd.f32 %v8554, %v8842
    %v8844 = vpop.f32.mrf.mxu0
    %v8845 = vpop.f32.mrf.mxu0
    %v8846 = vadd.f32 %v8557, %v8845
    %v8847 = vpop.f32.mrf.mxu0
    %8848 = vmatprep.mubr.bf16.mxu0 0
    %8849 = vmatmul.mubr.bf16.gmra.mxu0 %v6691
    %v8850 = vpop.f32.mrf.mxu0
    %v8851 = vadd.f32 %v8562, %v8850
    %v8852 = vpop.f32.mrf.mxu0
    %v8853 = vpop.f32.mrf.mxu0
    %v8854 = vadd.f32 %v8565, %v8853
    %v8855 = vpop.f32.mrf.mxu0
    %8856 = vdwg.mxu0
    %v8857 = vpack.c.bf16 %v8606, %v8603
    %v8858 = vpack.c.bf16 %v8614, %v8611
    %v8859 = vpack.c.bf16 %v8622, %v8619
    %v8860 = vpack.c.bf16 %v8630, %v8627
    %v8861 = vpack.c.bf16 %v8638, %v8635
    %v8862 = vpack.c.bf16 %v8646, %v8643
    %v8863 = vpack.c.bf16 %v8654, %v8651
    %v8864 = vpack.c.bf16 %v8662, %v8659
    %v8865 = vpack.c.bf16 %v8670, %v8667
    %v8866 = vpack.c.bf16 %v8678, %v8675
    %v8867 = vpack.c.bf16 %v8686, %v8683
    %v8868 = vpack.c.bf16 %v8694, %v8691
    %v8869 = vpack.c.bf16 %v8702, %v8699
    %v8870 = vpack.c.bf16 %v8710, %v8707
    %v8871 = vpack.c.bf16 %v8718, %v8715
    %v8872 = vpack.c.bf16 %v8726, %v8723
    %v8873 = vpack.c.bf16 %v8734, %v8731
    %v8874 = vpack.c.bf16 %v8742, %v8739
    %v8875 = vpack.c.bf16 %v8750, %v8747
    %v8876 = vpack.c.bf16 %v8758, %v8755
    %v8877 = vpack.c.bf16 %v8766, %v8763
    %v8878 = vpack.c.bf16 %v8774, %v8771
    %v8879 = vpack.c.bf16 %v8782, %v8779
    %v8880 = vpack.c.bf16 %v8790, %v8787
    %v8881 = vpack.c.bf16 %v8798, %v8795
    %v8882 = vpack.c.bf16 %v8806, %v8803
    %v8883 = vpack.c.bf16 %v8814, %v8811
    %v8884 = vpack.c.bf16 %v8822, %v8819
    %v8885 = vpack.c.bf16 %v8830, %v8827
    %v8886 = vpack.c.bf16 %v8838, %v8835
    %v8887 = vpack.c.bf16 %v8846, %v8843
    %v8888 = vpack.c.bf16 %v8854, %v8851
    %v8921 = vunpack.c.l.b16 %v8857
    %v8922 = vunpack.c.h.b16 %v8857
    %v8923 = vunpack.c.l.b16 %v8858
    %v8924 = vunpack.c.h.b16 %v8858
    %v8925 = vunpack.c.l.b16 %v8859
    %v8926 = vunpack.c.h.b16 %v8859
    %v8927 = vunpack.c.l.b16 %v8860
    %v8928 = vunpack.c.h.b16 %v8860
    %v8929 = vunpack.c.l.b16 %v8861
    %v8930 = vunpack.c.h.b16 %v8861
    %v8931 = vunpack.c.l.b16 %v8862
    %v8932 = vunpack.c.h.b16 %v8862
    %v8933 = vunpack.c.l.b16 %v8863
    %v8934 = vunpack.c.h.b16 %v8863
    %v8935 = vunpack.c.l.b16 %v8864
    %v8936 = vunpack.c.h.b16 %v8864
    %v8937 = vunpack.c.l.b16 %v8865
    %v8938 = vunpack.c.h.b16 %v8865
    %v8939 = vunpack.c.l.b16 %v8866
    %v8940 = vunpack.c.h.b16 %v8866
    %v8941 = vunpack.c.l.b16 %v8867
    %v8942 = vunpack.c.h.b16 %v8867
    %v8943 = vunpack.c.l.b16 %v8868
    %v8944 = vunpack.c.h.b16 %v8868
    %v8945 = vunpack.c.l.b16 %v8869
    %v8946 = vunpack.c.h.b16 %v8869
    %v8947 = vunpack.c.l.b16 %v8870
    %v8948 = vunpack.c.h.b16 %v8870
    %v8949 = vunpack.c.l.b16 %v8871
    %v8950 = vunpack.c.h.b16 %v8871
    %v8951 = vunpack.c.l.b16 %v8872
    %v8952 = vunpack.c.h.b16 %v8872
    %v8953 = vunpack.c.l.b16 %v8873
    %v8954 = vunpack.c.h.b16 %v8873
    %v8955 = vunpack.c.l.b16 %v8874
    %v8956 = vunpack.c.h.b16 %v8874
    %v8957 = vunpack.c.l.b16 %v8875
    %v8958 = vunpack.c.h.b16 %v8875
    %v8959 = vunpack.c.l.b16 %v8876
    %v8960 = vunpack.c.h.b16 %v8876
    %v8961 = vunpack.c.l.b16 %v8877
    %v8962 = vunpack.c.h.b16 %v8877
    %v8963 = vunpack.c.l.b16 %v8878
    %v8964 = vunpack.c.h.b16 %v8878
    %v8965 = vunpack.c.l.b16 %v8879
    %v8966 = vunpack.c.h.b16 %v8879
    %v8967 = vunpack.c.l.b16 %v8880
    %v8968 = vunpack.c.h.b16 %v8880
    %v8969 = vunpack.c.l.b16 %v8881
    %v8970 = vunpack.c.h.b16 %v8881
    %v8971 = vunpack.c.l.b16 %v8882
    %v8972 = vunpack.c.h.b16 %v8882
    %v8973 = vunpack.c.l.b16 %v8883
    %v8974 = vunpack.c.h.b16 %v8883
    %v8975 = vunpack.c.l.b16 %v8884
    %v8976 = vunpack.c.h.b16 %v8884
    %v8977 = vunpack.c.l.b16 %v8885
    %v8978 = vunpack.c.h.b16 %v8885
    %v8979 = vunpack.c.l.b16 %v8886
    %v8980 = vunpack.c.h.b16 %v8886
    %v8981 = vunpack.c.l.b16 %v8887
    %v8982 = vunpack.c.h.b16 %v8887
    %v8983 = vunpack.c.l.b16 %v8888
    %v8984 = vunpack.c.h.b16 %v8888
    %v8985 = vpack.c.b16 %v8921, %v8921
    %v8986 = vpack.c.b16 %v8922, %v8922
    %v8987 = vpack.c.b16 %v8923, %v8923
    %v8988 = vpack.c.b16 %v8924, %v8924
    %v8989 = vpack.c.b16 %v8925, %v8925
    %v8990 = vpack.c.b16 %v8926, %v8926
    %v8991 = vpack.c.b16 %v8927, %v8927
    %v8992 = vpack.c.b16 %v8928, %v8928
    %v8993 = vpack.c.b16 %v8929, %v8929
    %v8994 = vpack.c.b16 %v8930, %v8930
    %v8995 = vpack.c.b16 %v8931, %v8931
    %v8996 = vpack.c.b16 %v8932, %v8932
    %v8997 = vpack.c.b16 %v8933, %v8933
    %v8998 = vpack.c.b16 %v8934, %v8934
    %v8999 = vpack.c.b16 %v8935, %v8935
    %v9000 = vpack.c.b16 %v8936, %v8936
    %v9001 = vpack.c.b16 %v8937, %v8937
    %v9002 = vpack.c.b16 %v8938, %v8938
    %v9003 = vpack.c.b16 %v8939, %v8939
    %v9004 = vpack.c.b16 %v8940, %v8940
    %v9005 = vpack.c.b16 %v8941, %v8941
    %v9006 = vpack.c.b16 %v8942, %v8942
    %v9007 = vpack.c.b16 %v8943, %v8943
    %v9008 = vpack.c.b16 %v8944, %v8944
    %v9009 = vpack.c.b16 %v8945, %v8945
    %v9010 = vpack.c.b16 %v8946, %v8946
    %v9011 = vpack.c.b16 %v8947, %v8947
    %v9012 = vpack.c.b16 %v8948, %v8948
    %v9013 = vpack.c.b16 %v8949, %v8949
    %v9014 = vpack.c.b16 %v8950, %v8950
    %v9015 = vpack.c.b16 %v8951, %v8951
    %v9016 = vpack.c.b16 %v8952, %v8952
    %v9017 = vpack.c.b16 %v8953, %v8953
    %v9018 = vpack.c.b16 %v8954, %v8954
    %v9019 = vpack.c.b16 %v8955, %v8955
    %v9020 = vpack.c.b16 %v8956, %v8956
    %v9021 = vpack.c.b16 %v8957, %v8957
    %v9022 = vpack.c.b16 %v8958, %v8958
    %v9023 = vpack.c.b16 %v8959, %v8959
    %v9024 = vpack.c.b16 %v8960, %v8960
    %v9025 = vpack.c.b16 %v8961, %v8961
    %v9026 = vpack.c.b16 %v8962, %v8962
    %v9027 = vpack.c.b16 %v8963, %v8963
    %v9028 = vpack.c.b16 %v8964, %v8964
    %v9029 = vpack.c.b16 %v8965, %v8965
    %v9030 = vpack.c.b16 %v8966, %v8966
    %v9031 = vpack.c.b16 %v8967, %v8967
    %v9032 = vpack.c.b16 %v8968, %v8968
    %v9033 = vpack.c.b16 %v8969, %v8969
    %v9034 = vpack.c.b16 %v8970, %v8970
    %v9035 = vpack.c.b16 %v8971, %v8971
    %v9036 = vpack.c.b16 %v8972, %v8972
    %v9037 = vpack.c.b16 %v8973, %v8973
    %v9038 = vpack.c.b16 %v8974, %v8974
    %v9039 = vpack.c.b16 %v8975, %v8975
    %v9040 = vpack.c.b16 %v8976, %v8976
    %v9041 = vpack.c.b16 %v8977, %v8977
    %v9042 = vpack.c.b16 %v8978, %v8978
    %v9043 = vpack.c.b16 %v8979, %v8979
    %v9044 = vpack.c.b16 %v8980, %v8980
    %v9045 = vpack.c.b16 %v8981, %v8981
    %v9046 = vpack.c.b16 %v8982, %v8982
    %v9047 = vpack.c.b16 %v8983, %v8983
    %v9048 = vpack.c.b16 %v8984, %v8984
    %9113 = vst [vmem:[#allocation8] sm:$0xf] %v8985
    %9114 = vst [vmem:[#allocation8 + $0x4] sm:$0xf] %v8986
    %9115 = vst [vmem:[#allocation8 + $0x8] sm:$0xf] %v8987
    %9116 = vst [vmem:[#allocation8 + $0xc] sm:$0xf] %v8988
    %9117 = vst [vmem:[#allocation8 + $0x10] sm:$0xf] %v8989
    %9118 = vst [vmem:[#allocation8 + $0x14] sm:$0xf] %v8990
    %9119 = vst [vmem:[#allocation8 + $0x18] sm:$0xf] %v8991
    %9120 = vst [vmem:[#allocation8 + $0x1c] sm:$0xf] %v8992
    %9121 = vst [vmem:[#allocation8 + $0x20] sm:$0xf] %v8993
    %9122 = vst [vmem:[#allocation8 + $0x24] sm:$0xf] %v8994
    %9123 = vst [vmem:[#allocation8 + $0x28] sm:$0xf] %v8995
    %9124 = vst [vmem:[#allocation8 + $0x2c] sm:$0xf] %v8996
    %9125 = vst [vmem:[#allocation8 + $0x30] sm:$0xf] %v8997
    %9126 = vst [vmem:[#allocation8 + $0x34] sm:$0xf] %v8998
    %9127 = vst [vmem:[#allocation8 + $0x38] sm:$0xf] %v8999
    %9128 = vst [vmem:[#allocation8 + $0x3c] sm:$0xf] %v9000
    %9129 = vst [vmem:[#allocation8 + $0x40] sm:$0xf] %v9001
    %9130 = vst [vmem:[#allocation8 + $0x44] sm:$0xf] %v9002
    %9131 = vst [vmem:[#allocation8 + $0x48] sm:$0xf] %v9003
    %9132 = vst [vmem:[#allocation8 + $0x4c] sm:$0xf] %v9004
    %9133 = vst [vmem:[#allocation8 + $0x50] sm:$0xf] %v9005
    %9134 = vst [vmem:[#allocation8 + $0x54] sm:$0xf] %v9006
    %9135 = vst [vmem:[#allocation8 + $0x58] sm:$0xf] %v9007
    %9136 = vst [vmem:[#allocation8 + $0x5c] sm:$0xf] %v9008
    %9137 = vst [vmem:[#allocation8 + $0x60] sm:$0xf] %v9009
    %9138 = vst [vmem:[#allocation8 + $0x64] sm:$0xf] %v9010
    %9139 = vst [vmem:[#allocation8 + $0x68] sm:$0xf] %v9011
    %9140 = vst [vmem:[#allocation8 + $0x6c] sm:$0xf] %v9012
    %9141 = vst [vmem:[#allocation8 + $0x70] sm:$0xf] %v9013
    %9142 = vst [vmem:[#allocation8 + $0x74] sm:$0xf] %v9014
    %9143 = vst [vmem:[#allocation8 + $0x78] sm:$0xf] %v9015
    %9144 = vst [vmem:[#allocation8 + $0x7c] sm:$0xf] %v9016
    %9145 = vst [vmem:[#allocation8 + $0x80] sm:$0xf] %v9017
    %9146 = vst [vmem:[#allocation8 + $0x84] sm:$0xf] %v9018
    %9147 = vst [vmem:[#allocation8 + $0x88] sm:$0xf] %v9019
    %9148 = vst [vmem:[#allocation8 + $0x8c] sm:$0xf] %v9020
    %9149 = vst [vmem:[#allocation8 + $0x90] sm:$0xf] %v9021
    %9150 = vst [vmem:[#allocation8 + $0x94] sm:$0xf] %v9022
    %9151 = vst [vmem:[#allocation8 + $0x98] sm:$0xf] %v9023
    %9152 = vst [vmem:[#allocation8 + $0x9c] sm:$0xf] %v9024
    %9153 = vst [vmem:[#allocation8 + $0xa0] sm:$0xf] %v9025
    %9154 = vst [vmem:[#allocation8 + $0xa4] sm:$0xf] %v9026
    %9155 = vst [vmem:[#allocation8 + $0xa8] sm:$0xf] %v9027
    %9156 = vst [vmem:[#allocation8 + $0xac] sm:$0xf] %v9028
    %9157 = vst [vmem:[#allocation8 + $0xb0] sm:$0xf] %v9029
    %9158 = vst [vmem:[#allocation8 + $0xb4] sm:$0xf] %v9030
    %9159 = vst [vmem:[#allocation8 + $0xb8] sm:$0xf] %v9031
    %9160 = vst [vmem:[#allocation8 + $0xbc] sm:$0xf] %v9032
    %9161 = vst [vmem:[#allocation8 + $0xc0] sm:$0xf] %v9033
    %9162 = vst [vmem:[#allocation8 + $0xc4] sm:$0xf] %v9034
    %9163 = vst [vmem:[#allocation8 + $0xc8] sm:$0xf] %v9035
    %9164 = vst [vmem:[#allocation8 + $0xcc] sm:$0xf] %v9036
    %9165 = vst [vmem:[#allocation8 + $0xd0] sm:$0xf] %v9037
    %9166 = vst [vmem:[#allocation8 + $0xd4] sm:$0xf] %v9038
    %9167 = vst [vmem:[#allocation8 + $0xd8] sm:$0xf] %v9039
    %9168 = vst [vmem:[#allocation8 + $0xdc] sm:$0xf] %v9040
    %9169 = vst [vmem:[#allocation8 + $0xe0] sm:$0xf] %v9041
    %9170 = vst [vmem:[#allocation8 + $0xe4] sm:$0xf] %v9042
    %9171 = vst [vmem:[#allocation8 + $0xe8] sm:$0xf] %v9043
    %9172 = vst [vmem:[#allocation8 + $0xec] sm:$0xf] %v9044
    %9173 = vst [vmem:[#allocation8 + $0xf0] sm:$0xf] %v9045
    %9174 = vst [vmem:[#allocation8 + $0xf4] sm:$0xf] %v9046
    %9175 = vst [vmem:[#allocation8 + $0xf8] sm:$0xf] %v9047
    %9176 = vst [vmem:[#allocation8 + $0xfc] sm:$0xf] %v9048
    %v9177 = vld [vmem:[#allocation8] sm:$0xf]
    %v9178 = vld [vmem:[#allocation8 + $0x4] sm:$0xf]
    %v9179 = vld [vmem:[#allocation8 + $0x8] sm:$0xf]
    %v9180 = vld [vmem:[#allocation8 + $0xc] sm:$0xf]
    %v9181 = vld [vmem:[#allocation8 + $0x10] sm:$0xf]
    %v9182 = vld [vmem:[#allocation8 + $0x14] sm:$0xf]
    %v9183 = vld [vmem:[#allocation8 + $0x18] sm:$0xf]
    %v9184 = vld [vmem:[#allocation8 + $0x1c] sm:$0xf]
    %v9185 = vld [vmem:[#allocation8 + $0x20] sm:$0xf]
    %v9186 = vld [vmem:[#allocation8 + $0x24] sm:$0xf]
    %v9187 = vld [vmem:[#allocation8 + $0x28] sm:$0xf]
    %v9188 = vld [vmem:[#allocation8 + $0x2c] sm:$0xf]
    %v9189 = vld [vmem:[#allocation8 + $0x30] sm:$0xf]
    %v9190 = vld [vmem:[#allocation8 + $0x34] sm:$0xf]
    %v9191 = vld [vmem:[#allocation8 + $0x38] sm:$0xf]
    %v9192 = vld [vmem:[#allocation8 + $0x3c] sm:$0xf]
    %v9193 = vld [vmem:[#allocation8 + $0x40] sm:$0xf]
    %v9194 = vld [vmem:[#allocation8 + $0x44] sm:$0xf]
    %v9195 = vld [vmem:[#allocation8 + $0x48] sm:$0xf]
    %v9196 = vld [vmem:[#allocation8 + $0x4c] sm:$0xf]
    %v9197 = vld [vmem:[#allocation8 + $0x50] sm:$0xf]
    %v9198 = vld [vmem:[#allocation8 + $0x54] sm:$0xf]
    %v9199 = vld [vmem:[#allocation8 + $0x58] sm:$0xf]
    %v9200 = vld [vmem:[#allocation8 + $0x5c] sm:$0xf]
    %v9201 = vld [vmem:[#allocation8 + $0x60] sm:$0xf]
    %v9202 = vld [vmem:[#allocation8 + $0x64] sm:$0xf]
    %v9203 = vld [vmem:[#allocation8 + $0x68] sm:$0xf]
    %v9204 = vld [vmem:[#allocation8 + $0x6c] sm:$0xf]
    %v9205 = vld [vmem:[#allocation8 + $0x70] sm:$0xf]
    %v9206 = vld [vmem:[#allocation8 + $0x74] sm:$0xf]
    %v9207 = vld [vmem:[#allocation8 + $0x78] sm:$0xf]
    %v9208 = vld [vmem:[#allocation8 + $0x7c] sm:$0xf]
    %v9209 = vld [vmem:[#allocation8 + $0x80] sm:$0xf]
    %v9210 = vld [vmem:[#allocation8 + $0x84] sm:$0xf]
    %v9211 = vld [vmem:[#allocation8 + $0x88] sm:$0xf]
    %v9212 = vld [vmem:[#allocation8 + $0x8c] sm:$0xf]
    %v9213 = vld [vmem:[#allocation8 + $0x90] sm:$0xf]
    %v9214 = vld [vmem:[#allocation8 + $0x94] sm:$0xf]
    %v9215 = vld [vmem:[#allocation8 + $0x98] sm:$0xf]
    %v9216 = vld [vmem:[#allocation8 + $0x9c] sm:$0xf]
    %v9217 = vld [vmem:[#allocation8 + $0xa0] sm:$0xf]
    %v9218 = vld [vmem:[#allocation8 + $0xa4] sm:$0xf]
    %v9219 = vld [vmem:[#allocation8 + $0xa8] sm:$0xf]
    %v9220 = vld [vmem:[#allocation8 + $0xac] sm:$0xf]
    %v9221 = vld [vmem:[#allocation8 + $0xb0] sm:$0xf]
    %v9222 = vld [vmem:[#allocation8 + $0xb4] sm:$0xf]
    %v9223 = vld [vmem:[#allocation8 + $0xb8] sm:$0xf]
    %v9224 = vld [vmem:[#allocation8 + $0xbc] sm:$0xf]
    %v9225 = vld [vmem:[#allocation8 + $0xc0] sm:$0xf]
    %v9226 = vld [vmem:[#allocation8 + $0xc4] sm:$0xf]
    %v9227 = vld [vmem:[#allocation8 + $0xc8] sm:$0xf]
    %v9228 = vld [vmem:[#allocation8 + $0xcc] sm:$0xf]
    %v9229 = vld [vmem:[#allocation8 + $0xd0] sm:$0xf]
    %v9230 = vld [vmem:[#allocation8 + $0xd4] sm:$0xf]
    %v9231 = vld [vmem:[#allocation8 + $0xd8] sm:$0xf]
    %v9232 = vld [vmem:[#allocation8 + $0xdc] sm:$0xf]
    %v9233 = vld [vmem:[#allocation8 + $0xe0] sm:$0xf]
    %v9234 = vld [vmem:[#allocation8 + $0xe4] sm:$0xf]
    %v9235 = vld [vmem:[#allocation8 + $0xe8] sm:$0xf]
    %v9236 = vld [vmem:[#allocation8 + $0xec] sm:$0xf]
    %v9237 = vld [vmem:[#allocation8 + $0xf0] sm:$0xf]
    %v9238 = vld [vmem:[#allocation8 + $0xf4] sm:$0xf]
    %v9239 = vld [vmem:[#allocation8 + $0xf8] sm:$0xf]
    %v9240 = vld [vmem:[#allocation8 + $0xfc] sm:$0xf]
    %v9241 = vunpack.c.l.bf16 %v9177
    %v9242 = vunpack.c.l.bf16 %v9178
    %v9243 = vunpack.c.l.bf16 %v9179
    %v9244 = vunpack.c.l.bf16 %v9180
    %v9245 = vunpack.c.l.bf16 %v9181
    %v9246 = vunpack.c.l.bf16 %v9182
    %v9247 = vunpack.c.l.bf16 %v9183
    %v9248 = vunpack.c.l.bf16 %v9184
    %v9249 = vunpack.c.l.bf16 %v9185
    %v9250 = vunpack.c.l.bf16 %v9186
    %v9251 = vunpack.c.l.bf16 %v9187
    %v9252 = vunpack.c.l.bf16 %v9188
    %v9253 = vunpack.c.l.bf16 %v9189
    %v9254 = vunpack.c.l.bf16 %v9190
    %v9255 = vunpack.c.l.bf16 %v9191
    %v9256 = vunpack.c.l.bf16 %v9192
    %v9257 = vunpack.c.l.bf16 %v9193
    %v9258 = vunpack.c.l.bf16 %v9194
    %v9259 = vunpack.c.l.bf16 %v9195
    %v9260 = vunpack.c.l.bf16 %v9196
    %v9261 = vunpack.c.l.bf16 %v9197
    %v9262 = vunpack.c.l.bf16 %v9198
    %v9263 = vunpack.c.l.bf16 %v9199
    %v9264 = vunpack.c.l.bf16 %v9200
    %v9265 = vunpack.c.l.bf16 %v9201
    %v9266 = vunpack.c.l.bf16 %v9202
    %v9267 = vunpack.c.l.bf16 %v9203
    %v9268 = vunpack.c.l.bf16 %v9204
    %v9269 = vunpack.c.l.bf16 %v9205
    %v9270 = vunpack.c.l.bf16 %v9206
    %v9271 = vunpack.c.l.bf16 %v9207
    %v9272 = vunpack.c.l.bf16 %v9208
    %v9273 = vunpack.c.l.bf16 %v9209
    %v9274 = vunpack.c.l.bf16 %v9210
    %v9275 = vunpack.c.l.bf16 %v9211
    %v9276 = vunpack.c.l.bf16 %v9212
    %v9277 = vunpack.c.l.bf16 %v9213
    %v9278 = vunpack.c.l.bf16 %v9214
    %v9279 = vunpack.c.l.bf16 %v9215
    %v9280 = vunpack.c.l.bf16 %v9216
    %v9281 = vunpack.c.l.bf16 %v9217
    %v9282 = vunpack.c.l.bf16 %v9218
    %v9283 = vunpack.c.l.bf16 %v9219
    %v9284 = vunpack.c.l.bf16 %v9220
    %v9285 = vunpack.c.l.bf16 %v9221
    %v9286 = vunpack.c.l.bf16 %v9222
    %v9287 = vunpack.c.l.bf16 %v9223
    %v9288 = vunpack.c.l.bf16 %v9224
    %v9289 = vunpack.c.l.bf16 %v9225
    %v9290 = vunpack.c.l.bf16 %v9226
    %v9291 = vunpack.c.l.bf16 %v9227
    %v9292 = vunpack.c.l.bf16 %v9228
    %v9293 = vunpack.c.l.bf16 %v9229
    %v9294 = vunpack.c.l.bf16 %v9230
    %v9295 = vunpack.c.l.bf16 %v9231
    %v9296 = vunpack.c.l.bf16 %v9232
    %v9297 = vunpack.c.l.bf16 %v9233
    %v9298 = vunpack.c.l.bf16 %v9234
    %v9299 = vunpack.c.l.bf16 %v9235
    %v9300 = vunpack.c.l.bf16 %v9236
    %v9301 = vunpack.c.l.bf16 %v9237
    %v9302 = vunpack.c.l.bf16 %v9238
    %v9303 = vunpack.c.l.bf16 %v9239
    %v9304 = vunpack.c.l.bf16 %v9240
    %v9305 = vadd.f32 %v9241, %v9242
    %v9306 = vadd.f32 %v9305, %v9243
    %v9307 = vadd.f32 %v9306, %v9244
    %v9308 = vadd.f32 %v9307, %v9245
    %v9309 = vadd.f32 %v9308, %v9246
    %v9310 = vadd.f32 %v9309, %v9247
    %v9311 = vadd.f32 %v9310, %v9248
    %v9312 = vadd.f32 %v9311, %v9249
    %v9313 = vadd.f32 %v9312, %v9250
    %v9314 = vadd.f32 %v9313, %v9251
    %v9315 = vadd.f32 %v9314, %v9252
    %v9316 = vadd.f32 %v9315, %v9253
    %v9317 = vadd.f32 %v9316, %v9254
    %v9318 = vadd.f32 %v9317, %v9255
    %v9319 = vadd.f32 %v9318, %v9256
    %v9320 = vadd.f32 %v9319, %v9257
    %v9321 = vadd.f32 %v9320, %v9258
    %v9322 = vadd.f32 %v9321, %v9259
    %v9323 = vadd.f32 %v9322, %v9260
    %v9324 = vadd.f32 %v9323, %v9261
    %v9325 = vadd.f32 %v9324, %v9262
    %v9326 = vadd.f32 %v9325, %v9263
    %v9327 = vadd.f32 %v9326, %v9264
    %v9328 = vadd.f32 %v9327, %v9265
    %v9329 = vadd.f32 %v9328, %v9266
    %v9330 = vadd.f32 %v9329, %v9267
    %v9331 = vadd.f32 %v9330, %v9268
    %v9332 = vadd.f32 %v9331, %v9269
    %v9333 = vadd.f32 %v9332, %v9270
    %v9334 = vadd.f32 %v9333, %v9271
    %v9335 = vadd.f32 %v9334, %v9272
    %v9336 = vadd.f32 %v9335, %v9273
    %v9337 = vadd.f32 %v9336, %v9274
    %v9338 = vadd.f32 %v9337, %v9275
    %v9339 = vadd.f32 %v9338, %v9276
    %v9340 = vadd.f32 %v9339, %v9277
    %v9341 = vadd.f32 %v9340, %v9278
    %v9342 = vadd.f32 %v9341, %v9279
    %v9343 = vadd.f32 %v9342, %v9280
    %v9344 = vadd.f32 %v9343, %v9281
    %v9345 = vadd.f32 %v9344, %v9282
    %v9346 = vadd.f32 %v9345, %v9283
    %v9347 = vadd.f32 %v9346, %v9284
    %v9348 = vadd.f32 %v9347, %v9285
    %v9349 = vadd.f32 %v9348, %v9286
    %v9350 = vadd.f32 %v9349, %v9287
    %v9351 = vadd.f32 %v9350, %v9288
    %v9352 = vadd.f32 %v9351, %v9289
    %v9353 = vadd.f32 %v9352, %v9290
    %v9354 = vadd.f32 %v9353, %v9291
    %v9355 = vadd.f32 %v9354, %v9292
    %v9356 = vadd.f32 %v9355, %v9293
    %v9357 = vadd.f32 %v9356, %v9294
    %v9358 = vadd.f32 %v9357, %v9295
    %v9359 = vadd.f32 %v9358, %v9296
    %v9360 = vadd.f32 %v9359, %v9297
    %v9361 = vadd.f32 %v9360, %v9298
    %v9362 = vadd.f32 %v9361, %v9299
    %v9363 = vadd.f32 %v9362, %v9300
    %v9364 = vadd.f32 %v9363, %v9301
    %v9365 = vadd.f32 %v9364, %v9302
    %v9366 = vadd.f32 %v9365, %v9303
    %v9367 = vadd.f32 %v9366, %v9304
    %v9368 = vrot.slane %v9367, 4
    %v9369 = vadd.f32 %v9367, %v9368
    %v9370 = vrot.slane %v9369, 2
    %v9371 = vadd.f32 %v9369, %v9370
    %v9372 = vrot.slane %v9371, 1
    %v9373 = vadd.f32 %v9371, %v9372
    %9374 = vst [vmem:[#allocation9] sm:$0x1] %v9373
    %v9375 = vmul.f32 %v9241, %v9241
    %v9376 = vmul.f32 %v9242, %v9242
    %v9377 = vmul.f32 %v9243, %v9243
    %v9378 = vmul.f32 %v9244, %v9244
    %v9379 = vmul.f32 %v9245, %v9245
    %v9380 = vmul.f32 %v9246, %v9246
    %v9381 = vmul.f32 %v9247, %v9247
    %v9382 = vmul.f32 %v9248, %v9248
    %v9383 = vmul.f32 %v9249, %v9249
    %v9384 = vmul.f32 %v9250, %v9250
    %v9385 = vmul.f32 %v9251, %v9251
    %v9386 = vmul.f32 %v9252, %v9252
    %v9387 = vmul.f32 %v9253, %v9253
    %v9388 = vmul.f32 %v9254, %v9254
    %v9389 = vmul.f32 %v9255, %v9255
    %v9390 = vmul.f32 %v9256, %v9256
    %v9391 = vmul.f32 %v9257, %v9257
    %v9392 = vmul.f32 %v9258, %v9258
    %v9393 = vmul.f32 %v9259, %v9259
    %v9394 = vmul.f32 %v9260, %v9260
    %v9395 = vmul.f32 %v9261, %v9261
    %v9396 = vmul.f32 %v9262, %v9262
    %v9397 = vmul.f32 %v9263, %v9263
    %v9398 = vmul.f32 %v9264, %v9264
    %v9399 = vmul.f32 %v9265, %v9265
    %v9400 = vmul.f32 %v9266, %v9266
    %v9401 = vmul.f32 %v9267, %v9267
    %v9402 = vmul.f32 %v9268, %v9268
    %v9403 = vmul.f32 %v9269, %v9269
    %v9404 = vmul.f32 %v9270, %v9270
    %v9405 = vmul.f32 %v9271, %v9271
    %v9406 = vmul.f32 %v9272, %v9272
    %v9407 = vmul.f32 %v9273, %v9273
    %v9408 = vmul.f32 %v9274, %v9274
    %v9409 = vmul.f32 %v9275, %v9275
    %v9410 = vmul.f32 %v9276, %v9276
    %v9411 = vmul.f32 %v9277, %v9277
    %v9412 = vmul.f32 %v9278, %v9278
    %v9413 = vmul.f32 %v9279, %v9279
    %v9414 = vmul.f32 %v9280, %v9280
    %v9415 = vmul.f32 %v9281, %v9281
    %v9416 = vmul.f32 %v9282, %v9282
    %v9417 = vmul.f32 %v9283, %v9283
    %v9418 = vmul.f32 %v9284, %v9284
    %v9419 = vmul.f32 %v9285, %v9285
    %v9420 = vmul.f32 %v9286, %v9286
    %v9421 = vmul.f32 %v9287, %v9287
    %v9422 = vmul.f32 %v9288, %v9288
    %v9423 = vmul.f32 %v9289, %v9289
    %v9424 = vmul.f32 %v9290, %v9290
    %v9425 = vmul.f32 %v9291, %v9291
    %v9426 = vmul.f32 %v9292, %v9292
    %v9427 = vmul.f32 %v9293, %v9293
    %v9428 = vmul.f32 %v9294, %v9294
    %v9429 = vmul.f32 %v9295, %v9295
    %v9430 = vmul.f32 %v9296, %v9296
    %v9431 = vmul.f32 %v9297, %v9297
    %v9432 = vmul.f32 %v9298, %v9298
    %v9433 = vmul.f32 %v9299, %v9299
    %v9434 = vmul.f32 %v9300, %v9300
    %v9435 = vmul.f32 %v9301, %v9301
    %v9436 = vmul.f32 %v9302, %v9302
    %v9437 = vmul.f32 %v9303, %v9303
    %v9438 = vmul.f32 %v9304, %v9304
    %v9439 = vadd.f32 %v9375, %v9376
    %v9440 = vadd.f32 %v9439, %v9377
    %v9441 = vadd.f32 %v9440, %v9378
    %v9442 = vadd.f32 %v9441, %v9379
    %v9443 = vadd.f32 %v9442, %v9380
    %v9444 = vadd.f32 %v9443, %v9381
    %v9445 = vadd.f32 %v9444, %v9382
    %v9446 = vadd.f32 %v9445, %v9383
    %v9447 = vadd.f32 %v9446, %v9384
    %v9448 = vadd.f32 %v9447, %v9385
    %v9449 = vadd.f32 %v9448, %v9386
    %v9450 = vadd.f32 %v9449, %v9387
    %v9451 = vadd.f32 %v9450, %v9388
    %v9452 = vadd.f32 %v9451, %v9389
    %v9453 = vadd.f32 %v9452, %v9390
    %v9454 = vadd.f32 %v9453, %v9391
    %v9455 = vadd.f32 %v9454, %v9392
    %v9456 = vadd.f32 %v9455, %v9393
    %v9457 = vadd.f32 %v9456, %v9394
    %v9458 = vadd.f32 %v9457, %v9395
    %v9459 = vadd.f32 %v9458, %v9396
    %v9460 = vadd.f32 %v9459, %v9397
    %v9461 = vadd.f32 %v9460, %v9398
    %v9462 = vadd.f32 %v9461, %v9399
    %v9463 = vadd.f32 %v9462, %v9400
    %v9464 = vadd.f32 %v9463, %v9401
    %v9465 = vadd.f32 %v9464, %v9402
    %v9466 = vadd.f32 %v9465, %v9403
    %v9467 = vadd.f32 %v9466, %v9404
    %v9468 = vadd.f32 %v9467, %v9405
    %v9469 = vadd.f32 %v9468, %v9406
    %v9470 = vadd.f32 %v9469, %v9407
    %v9471 = vadd.f32 %v9470, %v9408
    %v9472 = vadd.f32 %v9471, %v9409
    %v9473 = vadd.f32 %v9472, %v9410
    %v9474 = vadd.f32 %v9473, %v9411
    %v9475 = vadd.f32 %v9474, %v9412
    %v9476 = vadd.f32 %v9475, %v9413
    %v9477 = vadd.f32 %v9476, %v9414
    %v9478 = vadd.f32 %v9477, %v9415
    %v9479 = vadd.f32 %v9478, %v9416
    %v9480 = vadd.f32 %v9479, %v9417
    %v9481 = vadd.f32 %v9480, %v9418
    %v9482 = vadd.f32 %v9481, %v9419
    %v9483 = vadd.f32 %v9482, %v9420
    %v9484 = vadd.f32 %v9483, %v9421
    %v9485 = vadd.f32 %v9484, %v9422
    %v9486 = vadd.f32 %v9485, %v9423
    %v9487 = vadd.f32 %v9486, %v9424
    %v9488 = vadd.f32 %v9487, %v9425
    %v9489 = vadd.f32 %v9488, %v9426
    %v9490 = vadd.f32 %v9489, %v9427
    %v9491 = vadd.f32 %v9490, %v9428
    %v9492 = vadd.f32 %v9491, %v9429
    %v9493 = vadd.f32 %v9492, %v9430
    %v9494 = vadd.f32 %v9493, %v9431
    %v9495 = vadd.f32 %v9494, %v9432
    %v9496 = vadd.f32 %v9495, %v9433
    %v9497 = vadd.f32 %v9496, %v9434
    %v9498 = vadd.f32 %v9497, %v9435
    %v9499 = vadd.f32 %v9498, %v9436
    %v9500 = vadd.f32 %v9499, %v9437
    %v9501 = vadd.f32 %v9500, %v9438
    %v9502 = vrot.slane %v9501, 4
    %v9503 = vadd.f32 %v9501, %v9502
    %v9504 = vrot.slane %v9503, 2
    %v9505 = vadd.f32 %v9503, %v9504
    %v9506 = vrot.slane %v9505, 1
    %v9507 = vadd.f32 %v9505, %v9506
    %9508 = vst [vmem:[#allocation9 + $0x1] sm:$0x1] %v9507
    // Predicated region
    $region18: #{tpu_custom_call.1} parent=1 // pred_check
      _
    $region19: #{tpu_custom_call.1} parent=1 // pred_check_branch
      %9510 = sbr.rel (0) target = $region21
    $region20: #{tpu_custom_call.1} parent=1 // pred_region
      %s9512 = ssub.s32 4096, 4096
      %9513 = vsyncadd [#allocation5], %s9512
      %s9514 = sshll.u32 [#allocation8], 4
      %s9515 = int_to_ptr.vmem [resolvable:$true] %s9514
      %9520 = dma.vmem_to_hbm [thread:$0]  %s9515, 4096, %s2, [#allocation5], 64, 64, 4
    $region21: #{tpu_custom_call.1} parent=1 // pred_fallthru
      _
    // Predicated region
    $region22: #{tpu_custom_call.1} parent=1 // pred_check
      _
    $region23: #{tpu_custom_call.1} parent=1 // pred_check_branch
      %9522 = sbr.rel (0) target = $region25
    $region24: #{tpu_custom_call.1} parent=1 // pred_region
      %s9524 = ssub.s32 32, 32
      %9525 = vsyncadd [#allocation10], %s9524
      %s9527 = sshll.u32 [#allocation9], 4
      %s9528 = int_to_ptr.vmem [resolvable:$true] %s9527
      %9530 = dma.vmem_to_hbm [thread:$0]  %s9528, 32, %s3, [#allocation10]
    $region25: #{tpu_custom_call.1} parent=1 // pred_fallthru
      _
    // Predicated region
    $region26: #{tpu_custom_call.1} parent=1 // pred_check
      _
    $region27: #{tpu_custom_call.1} parent=1 // pred_check_branch
      %9532 = sbr.rel (0) target = $region29
    $region28: #{tpu_custom_call.1} parent=1 // pred_region
      %9533 = dma.done [#allocation5], 4096
    $region29: #{tpu_custom_call.1} parent=1 // pred_fallthru
      _
    // Predicated region
    $region30: #{tpu_custom_call.1} parent=1 // pred_check
      _
    $region31: #{tpu_custom_call.1} parent=1 // pred_check_branch
      %9535 = sbr.rel (0) target = $region33
    $region32: #{tpu_custom_call.1} parent=1 // pred_region
      %9536 = dma.done [#allocation10], 32
    $region33: #{tpu_custom_call.1} parent=1 // pred_fallthru
      _
    %9537 = vsyncpa [#allocation4], 1
    %9538 = vsyncpa [#allocation7], 1
    %9539 = vsyncpa [#allocation5], 1
    %9540 = vsyncpa [#allocation10], 1

</llo_original>
